<compile_context>
chip_gen: v7x
topology: tpu7x:2x2x1
jax: 0.10.0
libtpu: 0.0.40
codegen_flags: <defaults>
</compile_context>

<pallas_src>
import functools
import math

import jax
import jax.numpy as jnp
from jax import lax
from jax.experimental import pallas as pl
from jax.experimental.pallas import tpu as pltpu


# ----------------------------- helpers (traced inside the kernel) ------------

def _silu(z):
    return z / (1.0 + jnp.exp(-z))


def _layernorm(z, eps=1e-6):
    # one-pass mean / E[x^2] formulation; rsqrt goes to the EUP slot.
    mu = jnp.mean(z, axis=-1, keepdims=True)
    ms = jnp.mean(z * z, axis=-1, keepdims=True)
    var = ms - mu * mu
    return (z - mu) * lax.rsqrt(var + eps)


def _gelu_tanh(z):
    c = math.sqrt(2.0 / math.pi)
    return 0.5 * z * (1.0 + jnp.tanh(c * (z + 0.044715 * z * z * z)))


def _swap01(z):
    """(a, b, c) -> (b, a, c); lane (last) dim untouched."""
    if hasattr(pltpu, "einshape"):
        return pltpu.einshape("abc->bac", z)
    return jnp.swapaxes(z, 0, 1)


# ----------------------------- Pallas kernel ---------------------------------

def dit_block_kernel(xf_ref, xq_ref, t_ref,
                     wada_ref, bada_ref,
                     wq_ref, bq_ref, wk_ref, bk_ref, wv_ref, bv_ref,
                     wout_ref, bout_ref,
                     w1_ref, b1_ref, w2_ref, b2_ref,
                     o_ref, *, hidden_size, n_heads):
    H = hidden_size
    NH = n_heads
    HD = H // NH
    bf16 = jnp.bfloat16

    xf = xf_ref[0]          # (S,  H) f32  full sequence (for K / V)
    xq = xq_ref[0]          # (TQ, H) f32  query-row tile
    t = t_ref[0]            # (1,  H) f32

    # --- adaLN_modulation: Linear(SiLU(t)) -> (1, 6H), chunk into 6 ----------
    tb = _silu(t).astype(bf16)
    mod = jnp.dot(tb, wada_ref[...],
                  preferred_element_type=jnp.float32) + bada_ref[...]
    shift_msa = mod[:, 0 * H:1 * H]
    scale1_msa = 1.0 + mod[:, 1 * H:2 * H]          # hoisted (1 + scale)
    gate_msa = mod[:, 2 * H:3 * H]
    shift_mlp = mod[:, 3 * H:4 * H]
    scale1_mlp = 1.0 + mod[:, 4 * H:5 * H]
    gate_mlp = mod[:, 5 * H:6 * H]

    def to_heads(z):        # (N, H) f32 -> (NH, N, HD) bf16, head axis leading
        zh = z.astype(bf16).reshape(z.shape[0], NH, HD)
        return _swap01(zh)

    # --- K / V over the full sequence (head-major, bf16) ---------------------
    x1f_b = (_layernorm(xf) * scale1_msa + shift_msa).astype(bf16)    # (S, H)
    k = jnp.dot(x1f_b, wk_ref[...],
                preferred_element_type=jnp.float32) + bk_ref[...]
    v = jnp.dot(x1f_b, wv_ref[...],
                preferred_element_type=jnp.float32) + bv_ref[...]
    kh = to_heads(k)                                                  # (NH,S,HD)
    vh = to_heads(v)

    # --- Q over the query tile (keep x1q in f32 for the residual) ------------
    x1q = _layernorm(xq) * scale1_msa + shift_msa                     # (TQ, H)
    q = jnp.dot(x1q.astype(bf16), wq_ref[...],
                preferred_element_type=jnp.float32) + bq_ref[...]
    qh = to_heads(q * (1.0 / math.sqrt(HD)))                          # (NH,TQ,HD)

    # --- attention: all heads in one batched einsum ---------------------------
    s = jnp.einsum('hqd,hkd->hqk', qh, kh,
                   preferred_element_type=jnp.float32)                # (NH,TQ,S)
    s = s - jnp.max(s, axis=-1, keepdims=True)
    p = jnp.exp(s)
    p = p * pl.reciprocal(jnp.sum(p, axis=-1, keepdims=True), approx=True)
    o = jnp.einsum('hqk,hkd->hqd', p.astype(bf16), vh,
                   preferred_element_type=jnp.float32)                # (NH,TQ,HD)

    # single concatenated out-projection: (TQ, H) @ (H, H)
    o_flat = _swap01(o.astype(bf16)).reshape(xq.shape[0], H)
    attn = jnp.dot(o_flat, wout_ref[...],
                   preferred_element_type=jnp.float32) + bout_ref[...]

    x2 = x1q + gate_msa * attn                                        # (TQ, H)

    # --- MLP branch ------------------------------------------------------------
    h_in = (_layernorm(x2) * scale1_mlp + shift_mlp).astype(bf16)
    h1 = jnp.dot(h_in, w1_ref[...],
                 preferred_element_type=jnp.float32) + b1_ref[...]    # (TQ, 4H)
    h1b = _gelu_tanh(h1).astype(bf16)
    h2 = jnp.dot(h1b, w2_ref[...],
                 preferred_element_type=jnp.float32) + b2_ref[...]    # (TQ, H)

    o_ref[0] = (x2 + gate_mlp * h2).astype(o_ref.dtype)


# ----------------------------- wrapper ---------------------------------------

def dit_block(x, t, params, *, n_heads, q_tile=None):
    """x: (B, S, H) f32, t: (B, H) f32, params in PyTorch (out, in) convention."""
    B, S, H = x.shape
    (w_ada, b_ada, w_in, b_in, w_out, b_out, w1, b1, w2, b2) = params
    assert H % n_heads == 0

    if q_tile is None:
        q_tile = min(S, 128)
    assert S % q_tile == 0 and q_tile % 8 == 0

    bf16, f32 = jnp.bfloat16, jnp.float32

    # Pre-transpose (so the kernel does x @ W^T), split fused QKV, cast bf16.
    w_ada_t = jnp.asarray(w_ada.T, bf16)                    # (H, 6H)
    w_in_t = jnp.asarray(w_in.T, f32)                       # (H, 3H)
    wq_t = w_in_t[:, 0 * H:1 * H].astype(bf16)
    wk_t = w_in_t[:, 1 * H:2 * H].astype(bf16)
    wv_t = w_in_t[:, 2 * H:3 * H].astype(bf16)
    w_out_t = jnp.asarray(w_out.T, bf16)                    # (H, H)
    w1_t = jnp.asarray(w1.T, bf16)                          # (H, 4H)
    w2_t = jnp.asarray(w2.T, bf16)                          # (4H, H)

    b_ada2 = jnp.asarray(b_ada, f32).reshape(1, -1)
    bq2 = jnp.asarray(b_in[0 * H:1 * H], f32).reshape(1, -1)
    bk2 = jnp.asarray(b_in[1 * H:2 * H], f32).reshape(1, -1)
    bv2 = jnp.asarray(b_in[2 * H:3 * H], f32).reshape(1, -1)
    b_out2 = jnp.asarray(b_out, f32).reshape(1, -1)
    b1_2 = jnp.asarray(b1, f32).reshape(1, -1)
    b2_2 = jnp.asarray(b2, f32).reshape(1, -1)

    t3 = jnp.asarray(t, f32).reshape(B, 1, H)

    def rep_spec(a):  # constant-index (VMEM-resident) operand
        return pl.BlockSpec(a.shape, lambda b, qi, _nd=a.ndim: (0,) * _nd)

    kernel = functools.partial(dit_block_kernel,
                               hidden_size=H, n_heads=n_heads)

    grid_spec = pltpu.PrefetchScalarGridSpec(
        num_scalar_prefetch=0,
        grid=(B, S // q_tile),
        in_specs=[
            pl.BlockSpec((1, S, H), lambda b, qi: (b, 0, 0)),        # x full (K/V)
            pl.BlockSpec((1, q_tile, H), lambda b, qi: (b, qi, 0)),  # x query tile
            pl.BlockSpec((1, 1, H), lambda b, qi: (b, 0, 0)),        # t
            rep_spec(w_ada_t), rep_spec(b_ada2),
            rep_spec(wq_t), rep_spec(bq2),
            rep_spec(wk_t), rep_spec(bk2),
            rep_spec(wv_t), rep_spec(bv2),
            rep_spec(w_out_t), rep_spec(b_out2),
            rep_spec(w1_t), rep_spec(b1_2),
            rep_spec(w2_t), rep_spec(b2_2),
        ],
        out_specs=pl.BlockSpec((1, q_tile, H), lambda b, qi: (b, qi, 0)),
    )

    return pl.pallas_call(
        kernel,
        out_shape=jax.ShapeDtypeStruct((B, S, H), jnp.float32),
        grid_spec=grid_spec,
        compiler_params=pltpu.CompilerParams(
            dimension_semantics=("parallel", "parallel"),
            vmem_limit_bytes=64 * 1024 * 1024,
        ),
    )(x, x, t3, w_ada_t, b_ada2, wq_t, bq2, wk_t, bk2, wv_t, bv2,
      w_out_t, b_out2, w1_t, b1_2, w2_t, b2_2)


# ----------------------------- pure-JAX reference ----------------------------

def dit_block_ref(x, t, params, n_heads):
    (w_ada, b_ada, w_in, b_in, w_out, b_out, w1, b1, w2, b2) = params
    B, S, H = x.shape
    HD = H // n_heads

    def ln(z):
        mu = z.mean(-1, keepdims=True)
        var = ((z - mu) ** 2).mean(-1, keepdims=True)
        return (z - mu) / jnp.sqrt(var + 1e-6)

    silu = lambda z: z / (1.0 + jnp.exp(-z))

    mod = silu(t) @ w_ada.T + b_ada
    sm, scm, gm, sml, scml, gml = jnp.split(mod, 6, axis=1)

    x1 = ln(x) * (1.0 + scm[:, None, :]) + sm[:, None, :]
    qkv = x1 @ w_in.T + b_in
    q, k, v = jnp.split(qkv, 3, axis=-1)

    def heads(z):
        return z.reshape(B, S, n_heads, HD).transpose(0, 2, 1, 3)

    qh, kh, vh = heads(q), heads(k), heads(v)
    s = jnp.einsum('bhqd,bhkd->bhqk', qh, kh) / math.sqrt(HD)
    p = jax.nn.softmax(s, axis=-1)
    o = jnp.einsum('bhqk,bhkd->bhqd', p, vh).transpose(0, 2, 1, 3).reshape(B, S, H)
    attn = o @ w_out.T + b_out
    x2 = x1 + gm[:, None, :] * attn

    h = ln(x2) * (1.0 + scml[:, None, :]) + sml[:, None, :]
    h1 = h @ w1.T + b1
    g = 0.5 * h1 * (1.0 + jnp.tanh(math.sqrt(2.0 / math.pi)
                                   * (h1 + 0.044715 * h1 ** 3)))
    h2 = g @ w2.T + b2
    return x2 + gml[:, None, :] * h2


# ----------------------------- main -------------------------------------------

if __name__ == "__main__":
    # HD = H / NH = 128 keeps every per-head block lane-dense; TQ multiple of 8.
    B, S, H, NH = 2, 64, 256, 2
    TQ = 32

    key = jax.random.PRNGKey(0)
    ks = jax.random.split(key, 12)

    wscale = 0.03

    def nrm(k, shape, scale):
        return (scale * jax.random.normal(k, shape)).astype(jnp.float32)

    x = nrm(ks[0], (B, S, H), 1.0)
    t = nrm(ks[1], (B, H), 1.0)

    w_ada = nrm(ks[2], (6 * H, H), wscale)
    b_ada = nrm(ks[3], (6 * H,), wscale)
    w_in = nrm(ks[4], (3 * H, H), wscale)
    b_in = nrm(ks[5], (3 * H,), wscale)
    w_out = nrm(ks[6], (H, H), wscale)
    b_out = nrm(ks[7], (H,), wscale)
    w1 = nrm(ks[8], (4 * H, H), wscale)
    b1 = nrm(ks[9], (4 * H,), wscale)
    w2 = nrm(ks[10], (H, 4 * H), wscale)
    b2 = nrm(ks[11], (H,), wscale)

    params = (w_ada, b_ada, w_in, b_in, w_out, b_out, w1, b1, w2, b2)

    out = jax.block_until_ready(dit_block(x, t, params, n_heads=NH, q_tile=TQ))

    with jax.default_matmul_precision("highest"):
        ref = jax.block_until_ready(dit_block_ref(x, t, params, NH))

    assert out.shape == (B, S, H)
    max_err = float(jnp.max(jnp.abs(out - ref)))
    # kernel matmuls run in bf16 with f32 accumulation; tolerance sized for that
    assert max_err < 5e-2, f"mismatch vs reference, max abs err = {max_err}"

    print("KERNEL_OK")
</pallas_src>

<mosaic_0001>
module attributes {stable_mosaic.version = 11 : i64} {
  func.func @dit_block_kernel(%arg0: i32, %arg1: i32, %arg2: memref<1x64x256xf32, #tpu.memory_space<vmem>>, %arg3: memref<1x32x256xf32, #tpu.memory_space<vmem>>, %arg4: memref<1x1x256xf32, #tpu.memory_space<vmem>>, %arg5: memref<256x1536xbf16, #tpu.memory_space<vmem>>, %arg6: memref<1x1536xf32, #tpu.memory_space<vmem>>, %arg7: memref<256x256xbf16, #tpu.memory_space<vmem>>, %arg8: memref<1x256xf32, #tpu.memory_space<vmem>>, %arg9: memref<256x256xbf16, #tpu.memory_space<vmem>>, %arg10: memref<1x256xf32, #tpu.memory_space<vmem>>, %arg11: memref<256x256xbf16, #tpu.memory_space<vmem>>, %arg12: memref<1x256xf32, #tpu.memory_space<vmem>>, %arg13: memref<256x256xbf16, #tpu.memory_space<vmem>>, %arg14: memref<1x256xf32, #tpu.memory_space<vmem>>, %arg15: memref<256x1024xbf16, #tpu.memory_space<vmem>>, %arg16: memref<1x1024xf32, #tpu.memory_space<vmem>>, %arg17: memref<1024x256xbf16, #tpu.memory_space<vmem>>, %arg18: memref<1x256xf32, #tpu.memory_space<vmem>>, %arg19: memref<1x32x256xf32, #tpu.memory_space<vmem>>) attributes {dimension_semantics = [#tpu.dimension_semantics<parallel>, #tpu.dimension_semantics<parallel>], iteration_bounds = array<i64: 2, 2>, scalar_prefetch = 0 : i64, scratch_operands = 0 : i64, tpu.core_type = #tpu.core_type<tc>, window_params = [{transform_indices = @transform_0, window_bounds = array<i64: 1, 64, 256>}, {transform_indices = @transform_1, window_bounds = array<i64: 1, 32, 256>}, {transform_indices = @transform_2, window_bounds = array<i64: 1, 1, 256>}, {pipeline_mode = #tpu.pipeline_mode<synchronous>, transform_indices = @transform_3, window_bounds = array<i64: 256, 1536>}, {pipeline_mode = #tpu.pipeline_mode<synchronous>, transform_indices = @transform_4, window_bounds = array<i64: 1, 1536>}, {pipeline_mode = #tpu.pipeline_mode<synchronous>, transform_indices = @transform_5, window_bounds = array<i64: 256, 256>}, {pipeline_mode = #tpu.pipeline_mode<synchronous>, transform_indices = @transform_6, window_bounds = array<i64: 1, 256>}, {pipeline_mode = #tpu.pipeline_mode<synchronous>, transform_indices = @transform_7, window_bounds = array<i64: 256, 256>}, {pipeline_mode = #tpu.pipeline_mode<synchronous>, transform_indices = @transform_8, window_bounds = array<i64: 1, 256>}, {pipeline_mode = #tpu.pipeline_mode<synchronous>, transform_indices = @transform_9, window_bounds = array<i64: 256, 256>}, {pipeline_mode = #tpu.pipeline_mode<synchronous>, transform_indices = @transform_10, window_bounds = array<i64: 1, 256>}, {pipeline_mode = #tpu.pipeline_mode<synchronous>, transform_indices = @transform_11, window_bounds = array<i64: 256, 256>}, {pipeline_mode = #tpu.pipeline_mode<synchronous>, transform_indices = @transform_12, window_bounds = array<i64: 1, 256>}, {pipeline_mode = #tpu.pipeline_mode<synchronous>, transform_indices = @transform_13, window_bounds = array<i64: 256, 1024>}, {pipeline_mode = #tpu.pipeline_mode<synchronous>, transform_indices = @transform_14, window_bounds = array<i64: 1, 1024>}, {pipeline_mode = #tpu.pipeline_mode<synchronous>, transform_indices = @transform_15, window_bounds = array<i64: 1024, 256>}, {pipeline_mode = #tpu.pipeline_mode<synchronous>, transform_indices = @transform_16, window_bounds = array<i64: 1, 256>}, {transform_indices = @transform_17, window_bounds = array<i64: 1, 32, 256>}]} {
    %c0 = arith.constant 0 : index
    %c0_0 = arith.constant 0 : index
    %c0_1 = arith.constant 0 : index
    %0 = vector.load %arg2[%c0, %c0_0, %c0_1] : memref<1x64x256xf32, #tpu.memory_space<vmem>>, vector<1x64x256xf32>
    %1 = vector.shape_cast %0 : vector<1x64x256xf32> to vector<64x256xf32>
    %c0_2 = arith.constant 0 : index
    %c0_3 = arith.constant 0 : index
    %c0_4 = arith.constant 0 : index
    %2 = vector.load %arg3[%c0_2, %c0_3, %c0_4] : memref<1x32x256xf32, #tpu.memory_space<vmem>>, vector<1x32x256xf32>
    %3 = vector.shape_cast %2 : vector<1x32x256xf32> to vector<32x256xf32>
    %c0_5 = arith.constant 0 : index
    %c0_6 = arith.constant 0 : index
    %c0_7 = arith.constant 0 : index
    %4 = vector.load %arg4[%c0_5, %c0_6, %c0_7] : memref<1x1x256xf32, #tpu.memory_space<vmem>>, vector<1x1x256xf32>
    %5 = vector.shape_cast %4 : vector<1x1x256xf32> to vector<1x256xf32>
    %cst = arith.constant 0.000000e+00 : f32
    %6 = vector.broadcast %cst : f32 to vector<1x256xf32>
    %7 = arith.subf %6, %5 : vector<1x256xf32>
    %8 = math.exp %7 : vector<1x256xf32>
    %cst_8 = arith.constant 1.000000e+00 : f32
    %9 = vector.broadcast %cst_8 : f32 to vector<1x256xf32>
    %10 = arith.addf %9, %8 : vector<1x256xf32>
    %11 = arith.divf %5, %10 : vector<1x256xf32>
    %12 = arith.truncf %11 : vector<1x256xf32> to vector<1x256xbf16>
    %c0_9 = arith.constant 0 : index
    %c0_10 = arith.constant 0 : index
    %13 = vector.load %arg5[%c0_9, %c0_10] : memref<256x1536xbf16, #tpu.memory_space<vmem>>, vector<256x1536xbf16>
    %cst_11 = arith.constant dense<0.000000e+00> : vector<1x1536xf32>
    %14 = tpu.matmul %12, %13, %cst_11 {dimension_numbers = #tpu.dot_dimension_numbers<[1], [0], [0], [1], [0, 0, 1, 1], [], []>} : vector<1x256xbf16>, vector<256x1536xbf16>, vector<1x1536xf32> -> vector<1x1536xf32>
    %c0_12 = arith.constant 0 : index
    %c0_13 = arith.constant 0 : index
    %15 = vector.load %arg6[%c0_12, %c0_13] : memref<1x1536xf32, #tpu.memory_space<vmem>>, vector<1x1536xf32>
    %16 = arith.addf %14, %15 : vector<1x1536xf32>
    %17 = vector.extract_strided_slice %16 {offsets = [0, 0], sizes = [1, 256], strides = [1, 1]} : vector<1x1536xf32> to vector<1x256xf32>
    %18 = vector.extract_strided_slice %16 {offsets = [0, 256], sizes = [1, 256], strides = [1, 1]} : vector<1x1536xf32> to vector<1x256xf32>
    %cst_14 = arith.constant 1.000000e+00 : f32
    %19 = vector.broadcast %cst_14 : f32 to vector<1x256xf32>
    %20 = arith.addf %19, %18 : vector<1x256xf32>
    %21 = vector.extract_strided_slice %16 {offsets = [0, 512], sizes = [1, 256], strides = [1, 1]} : vector<1x1536xf32> to vector<1x256xf32>
    %22 = vector.extract_strided_slice %16 {offsets = [0, 768], sizes = [1, 256], strides = [1, 1]} : vector<1x1536xf32> to vector<1x256xf32>
    %23 = vector.extract_strided_slice %16 {offsets = [0, 1024], sizes = [1, 256], strides = [1, 1]} : vector<1x1536xf32> to vector<1x256xf32>
    %cst_15 = arith.constant 1.000000e+00 : f32
    %24 = vector.broadcast %cst_15 : f32 to vector<1x256xf32>
    %25 = arith.addf %24, %23 : vector<1x256xf32>
    %26 = vector.extract_strided_slice %16 {offsets = [0, 1280], sizes = [1, 256], strides = [1, 1]} : vector<1x1536xf32> to vector<1x256xf32>
    %cst_16 = arith.constant dense<0.000000e+00> : vector<64xf32>
    %27 = vector.multi_reduction <add>, %1, %cst_16 [1] : vector<64x256xf32> to vector<64xf32>
    %28 = vector.shape_cast %27 : vector<64xf32> to vector<64x1xf32>
    %cst_17 = arith.constant 2.560000e+02 : f32
    %29 = vector.broadcast %cst_17 : f32 to vector<64x1xf32>
    %30 = arith.divf %28, %29 : vector<64x1xf32>
    %31 = arith.mulf %1, %1 : vector<64x256xf32>
    %cst_18 = arith.constant dense<0.000000e+00> : vector<64xf32>
    %32 = vector.multi_reduction <add>, %31, %cst_18 [1] : vector<64x256xf32> to vector<64xf32>
    %33 = vector.shape_cast %32 : vector<64xf32> to vector<64x1xf32>
    %cst_19 = arith.constant 2.560000e+02 : f32
    %34 = vector.broadcast %cst_19 : f32 to vector<64x1xf32>
    %35 = arith.divf %33, %34 : vector<64x1xf32>
    %36 = arith.mulf %30, %30 : vector<64x1xf32>
    %37 = arith.subf %35, %36 : vector<64x1xf32>
    %38 = vector.broadcast %30 : vector<64x1xf32> to vector<64x256xf32>
    %39 = arith.subf %1, %38 : vector<64x256xf32>
    %cst_20 = arith.constant 9.99999997E-7 : f32
    %40 = vector.broadcast %cst_20 : f32 to vector<64x1xf32>
    %41 = arith.addf %37, %40 : vector<64x1xf32>
    %42 = math.rsqrt %41 : vector<64x1xf32>
    %43 = vector.broadcast %42 : vector<64x1xf32> to vector<64x256xf32>
    %44 = arith.mulf %39, %43 : vector<64x256xf32>
    %45 = vector.broadcast %20 : vector<1x256xf32> to vector<64x256xf32>
    %46 = arith.mulf %44, %45 : vector<64x256xf32>
    %47 = vector.broadcast %17 : vector<1x256xf32> to vector<64x256xf32>
    %48 = arith.addf %46, %47 : vector<64x256xf32>
    %49 = arith.truncf %48 : vector<64x256xf32> to vector<64x256xbf16>
    %c0_21 = arith.constant 0 : index
    %c0_22 = arith.constant 0 : index
    %50 = vector.load %arg9[%c0_21, %c0_22] : memref<256x256xbf16, #tpu.memory_space<vmem>>, vector<256x256xbf16>
    %cst_23 = arith.constant dense<0.000000e+00> : vector<64x256xf32>
    %51 = tpu.matmul %49, %50, %cst_23 {dimension_numbers = #tpu.dot_dimension_numbers<[1], [0], [0], [1], [0, 0, 1, 1], [], []>} : vector<64x256xbf16>, vector<256x256xbf16>, vector<64x256xf32> -> vector<64x256xf32>
    %c0_24 = arith.constant 0 : index
    %c0_25 = arith.constant 0 : index
    %52 = vector.load %arg10[%c0_24, %c0_25] : memref<1x256xf32, #tpu.memory_space<vmem>>, vector<1x256xf32>
    %53 = vector.broadcast %52 : vector<1x256xf32> to vector<64x256xf32>
    %54 = arith.addf %51, %53 : vector<64x256xf32>
    %c0_26 = arith.constant 0 : index
    %c0_27 = arith.constant 0 : index
    %55 = vector.load %arg11[%c0_26, %c0_27] : memref<256x256xbf16, #tpu.memory_space<vmem>>, vector<256x256xbf16>
    %cst_28 = arith.constant dense<0.000000e+00> : vector<64x256xf32>
    %56 = tpu.matmul %49, %55, %cst_28 {dimension_numbers = #tpu.dot_dimension_numbers<[1], [0], [0], [1], [0, 0, 1, 1], [], []>} : vector<64x256xbf16>, vector<256x256xbf16>, vector<64x256xf32> -> vector<64x256xf32>
    %c0_29 = arith.constant 0 : index
    %c0_30 = arith.constant 0 : index
    %57 = vector.load %arg12[%c0_29, %c0_30] : memref<1x256xf32, #tpu.memory_space<vmem>>, vector<1x256xf32>
    %58 = vector.broadcast %57 : vector<1x256xf32> to vector<64x256xf32>
    %59 = arith.addf %56, %58 : vector<64x256xf32>
    %60 = arith.truncf %54 : vector<64x256xf32> to vector<64x256xbf16>
    %61 = vector.shape_cast %60 : vector<64x256xbf16> to vector<64x2x128xbf16>
    %62 = tpu.transpose %61, [1, 0, 2] : vector<64x2x128xbf16> -> vector<2x64x128xbf16>
    %63 = arith.truncf %59 : vector<64x256xf32> to vector<64x256xbf16>
    %64 = vector.shape_cast %63 : vector<64x256xbf16> to vector<64x2x128xbf16>
    %65 = tpu.transpose %64, [1, 0, 2] : vector<64x2x128xbf16> -> vector<2x64x128xbf16>
    %cst_31 = arith.constant dense<0.000000e+00> : vector<32xf32>
    %66 = vector.multi_reduction <add>, %3, %cst_31 [1] : vector<32x256xf32> to vector<32xf32>
    %67 = vector.shape_cast %66 : vector<32xf32> to vector<32x1xf32>
    %cst_32 = arith.constant 2.560000e+02 : f32
    %68 = vector.broadcast %cst_32 : f32 to vector<32x1xf32>
    %69 = arith.divf %67, %68 : vector<32x1xf32>
    %70 = arith.mulf %3, %3 : vector<32x256xf32>
    %cst_33 = arith.constant dense<0.000000e+00> : vector<32xf32>
    %71 = vector.multi_reduction <add>, %70, %cst_33 [1] : vector<32x256xf32> to vector<32xf32>
    %72 = vector.shape_cast %71 : vector<32xf32> to vector<32x1xf32>
    %cst_34 = arith.constant 2.560000e+02 : f32
    %73 = vector.broadcast %cst_34 : f32 to vector<32x1xf32>
    %74 = arith.divf %72, %73 : vector<32x1xf32>
    %75 = arith.mulf %69, %69 : vector<32x1xf32>
    %76 = arith.subf %74, %75 : vector<32x1xf32>
    %77 = vector.broadcast %69 : vector<32x1xf32> to vector<32x256xf32>
    %78 = arith.subf %3, %77 : vector<32x256xf32>
    %cst_35 = arith.constant 9.99999997E-7 : f32
    %79 = vector.broadcast %cst_35 : f32 to vector<32x1xf32>
    %80 = arith.addf %76, %79 : vector<32x1xf32>
    %81 = math.rsqrt %80 : vector<32x1xf32>
    %82 = vector.broadcast %81 : vector<32x1xf32> to vector<32x256xf32>
    %83 = arith.mulf %78, %82 : vector<32x256xf32>
    %84 = vector.broadcast %20 : vector<1x256xf32> to vector<32x256xf32>
    %85 = arith.mulf %83, %84 : vector<32x256xf32>
    %86 = vector.broadcast %17 : vector<1x256xf32> to vector<32x256xf32>
    %87 = arith.addf %85, %86 : vector<32x256xf32>
    %88 = arith.truncf %87 : vector<32x256xf32> to vector<32x256xbf16>
    %c0_36 = arith.constant 0 : index
    %c0_37 = arith.constant 0 : index
    %89 = vector.load %arg7[%c0_36, %c0_37] : memref<256x256xbf16, #tpu.memory_space<vmem>>, vector<256x256xbf16>
    %cst_38 = arith.constant dense<0.000000e+00> : vector<32x256xf32>
    %90 = tpu.matmul %88, %89, %cst_38 {dimension_numbers = #tpu.dot_dimension_numbers<[1], [0], [0], [1], [0, 0, 1, 1], [], []>} : vector<32x256xbf16>, vector<256x256xbf16>, vector<32x256xf32> -> vector<32x256xf32>
    %c0_39 = arith.constant 0 : index
    %c0_40 = arith.constant 0 : index
    %91 = vector.load %arg8[%c0_39, %c0_40] : memref<1x256xf32, #tpu.memory_space<vmem>>, vector<1x256xf32>
    %92 = vector.broadcast %91 : vector<1x256xf32> to vector<32x256xf32>
    %93 = arith.addf %90, %92 : vector<32x256xf32>
    %cst_41 = arith.constant 0.0883883461 : f32
    %94 = vector.broadcast %cst_41 : f32 to vector<32x256xf32>
    %95 = arith.mulf %93, %94 : vector<32x256xf32>
    %96 = arith.truncf %95 : vector<32x256xf32> to vector<32x256xbf16>
    %97 = vector.shape_cast %96 : vector<32x256xbf16> to vector<32x2x128xbf16>
    %98 = tpu.transpose %97, [1, 0, 2] : vector<32x2x128xbf16> -> vector<2x32x128xbf16>
    "tpu.trace_start"() <{level = 10 : i32, message = "hqd,hkd->hqk"}> : () -> ()
    %cst_42 = arith.constant dense<0.000000e+00> : vector<2x32x64xf32>
    %99 = tpu.matmul %98, %62, %cst_42 {dimension_numbers = #tpu.dot_dimension_numbers<[2], [2], [1], [1], [0, 0, 0, 1, 1, 1], [0], [0]>} : vector<2x32x128xbf16>, vector<2x64x128xbf16>, vector<2x32x64xf32> -> vector<2x32x64xf32>
    "tpu.trace_stop"() : () -> ()
    %cst_43 = arith.constant dense<0xFF800000> : vector<2x32xf32>
    %100 = vector.multi_reduction <maximumf>, %99, %cst_43 [2] : vector<2x32x64xf32> to vector<2x32xf32>
    %101 = vector.shape_cast %100 : vector<2x32xf32> to vector<2x32x1xf32>
    %102 = vector.broadcast %101 : vector<2x32x1xf32> to vector<2x32x64xf32>
    %103 = arith.subf %99, %102 : vector<2x32x64xf32>
    %104 = math.exp %103 : vector<2x32x64xf32>
    %cst_44 = arith.constant dense<0.000000e+00> : vector<2x32xf32>
    %105 = vector.multi_reduction <add>, %104, %cst_44 [2] : vector<2x32x64xf32> to vector<2x32xf32>
    %106 = vector.shape_cast %105 : vector<2x32xf32> to vector<2x32x1xf32>
    %107 = tpu.reciprocal %106 {approx = true} : vector<2x32x1xf32> -> vector<2x32x1xf32>
    %108 = vector.broadcast %107 : vector<2x32x1xf32> to vector<2x32x64xf32>
    %109 = arith.mulf %104, %108 : vector<2x32x64xf32>
    %110 = arith.truncf %109 : vector<2x32x64xf32> to vector<2x32x64xbf16>
    "tpu.trace_start"() <{level = 10 : i32, message = "hqk,hkd->hqd"}> : () -> ()
    %cst_45 = arith.constant dense<0.000000e+00> : vector<2x32x128xf32>
    %111 = tpu.matmul %110, %65, %cst_45 {dimension_numbers = #tpu.dot_dimension_numbers<[2], [1], [1], [2], [0, 0, 0, 1, 1, 2], [0], [0]>} : vector<2x32x64xbf16>, vector<2x64x128xbf16>, vector<2x32x128xf32> -> vector<2x32x128xf32>
    "tpu.trace_stop"() : () -> ()
    %112 = arith.truncf %111 : vector<2x32x128xf32> to vector<2x32x128xbf16>
    %113 = tpu.transpose %112, [1, 0, 2] : vector<2x32x128xbf16> -> vector<32x2x128xbf16>
    %114 = vector.shape_cast %113 : vector<32x2x128xbf16> to vector<32x256xbf16>
    %c0_46 = arith.constant 0 : index
    %c0_47 = arith.constant 0 : index
    %115 = vector.load %arg13[%c0_46, %c0_47] : memref<256x256xbf16, #tpu.memory_space<vmem>>, vector<256x256xbf16>
    %cst_48 = arith.constant dense<0.000000e+00> : vector<32x256xf32>
    %116 = tpu.matmul %114, %115, %cst_48 {dimension_numbers = #tpu.dot_dimension_numbers<[1], [0], [0], [1], [0, 0, 1, 1], [], []>} : vector<32x256xbf16>, vector<256x256xbf16>, vector<32x256xf32> -> vector<32x256xf32>
    %c0_49 = arith.constant 0 : index
    %c0_50 = arith.constant 0 : index
    %117 = vector.load %arg14[%c0_49, %c0_50] : memref<1x256xf32, #tpu.memory_space<vmem>>, vector<1x256xf32>
    %118 = vector.broadcast %117 : vector<1x256xf32> to vector<32x256xf32>
    %119 = arith.addf %116, %118 : vector<32x256xf32>
    %120 = vector.broadcast %21 : vector<1x256xf32> to vector<32x256xf32>
    %121 = arith.mulf %120, %119 : vector<32x256xf32>
    %122 = arith.addf %87, %121 : vector<32x256xf32>
    %cst_51 = arith.constant dense<0.000000e+00> : vector<32xf32>
    %123 = vector.multi_reduction <add>, %122, %cst_51 [1] : vector<32x256xf32> to vector<32xf32>
    %124 = vector.shape_cast %123 : vector<32xf32> to vector<32x1xf32>
    %cst_52 = arith.constant 2.560000e+02 : f32
    %125 = vector.broadcast %cst_52 : f32 to vector<32x1xf32>
    %126 = arith.divf %124, %125 : vector<32x1xf32>
    %127 = arith.mulf %122, %122 : vector<32x256xf32>
    %cst_53 = arith.constant dense<0.000000e+00> : vector<32xf32>
    %128 = vector.multi_reduction <add>, %127, %cst_53 [1] : vector<32x256xf32> to vector<32xf32>
    %129 = vector.shape_cast %128 : vector<32xf32> to vector<32x1xf32>
    %cst_54 = arith.constant 2.560000e+02 : f32
    %130 = vector.broadcast %cst_54 : f32 to vector<32x1xf32>
    %131 = arith.divf %129, %130 : vector<32x1xf32>
    %132 = arith.mulf %126, %126 : vector<32x1xf32>
    %133 = arith.subf %131, %132 : vector<32x1xf32>
    %134 = vector.broadcast %126 : vector<32x1xf32> to vector<32x256xf32>
    %135 = arith.subf %122, %134 : vector<32x256xf32>
    %cst_55 = arith.constant 9.99999997E-7 : f32
    %136 = vector.broadcast %cst_55 : f32 to vector<32x1xf32>
    %137 = arith.addf %133, %136 : vector<32x1xf32>
    %138 = math.rsqrt %137 : vector<32x1xf32>
    %139 = vector.broadcast %138 : vector<32x1xf32> to vector<32x256xf32>
    %140 = arith.mulf %135, %139 : vector<32x256xf32>
    %141 = vector.broadcast %25 : vector<1x256xf32> to vector<32x256xf32>
    %142 = arith.mulf %140, %141 : vector<32x256xf32>
    %143 = vector.broadcast %22 : vector<1x256xf32> to vector<32x256xf32>
    %144 = arith.addf %142, %143 : vector<32x256xf32>
    %145 = arith.truncf %144 : vector<32x256xf32> to vector<32x256xbf16>
    %c0_56 = arith.constant 0 : index
    %c0_57 = arith.constant 0 : index
    %146 = vector.load %arg15[%c0_56, %c0_57] : memref<256x1024xbf16, #tpu.memory_space<vmem>>, vector<256x1024xbf16>
    %cst_58 = arith.constant dense<0.000000e+00> : vector<32x1024xf32>
    %147 = tpu.matmul %145, %146, %cst_58 {dimension_numbers = #tpu.dot_dimension_numbers<[1], [0], [0], [1], [0, 0, 1, 1], [], []>} : vector<32x256xbf16>, vector<256x1024xbf16>, vector<32x1024xf32> -> vector<32x1024xf32>
    %c0_59 = arith.constant 0 : index
    %c0_60 = arith.constant 0 : index
    %148 = vector.load %arg16[%c0_59, %c0_60] : memref<1x1024xf32, #tpu.memory_space<vmem>>, vector<1x1024xf32>
    %149 = vector.broadcast %148 : vector<1x1024xf32> to vector<32x1024xf32>
    %150 = arith.addf %147, %149 : vector<32x1024xf32>
    %cst_61 = arith.constant 5.000000e-01 : f32
    %151 = vector.broadcast %cst_61 : f32 to vector<32x1024xf32>
    %152 = arith.mulf %151, %150 : vector<32x1024xf32>
    %cst_62 = arith.constant 4.471500e-02 : f32
    %153 = vector.broadcast %cst_62 : f32 to vector<32x1024xf32>
    %154 = arith.mulf %153, %150 : vector<32x1024xf32>
    %155 = arith.mulf %154, %150 : vector<32x1024xf32>
    %156 = arith.mulf %155, %150 : vector<32x1024xf32>
    %157 = arith.addf %150, %156 : vector<32x1024xf32>
    %cst_63 = arith.constant 0.797884583 : f32
    %158 = vector.broadcast %cst_63 : f32 to vector<32x1024xf32>
    %159 = arith.mulf %158, %157 : vector<32x1024xf32>
    %160 = math.tanh %159 : vector<32x1024xf32>
    %cst_64 = arith.constant 1.000000e+00 : f32
    %161 = vector.broadcast %cst_64 : f32 to vector<32x1024xf32>
    %162 = arith.addf %161, %160 : vector<32x1024xf32>
    %163 = arith.mulf %152, %162 : vector<32x1024xf32>
    %164 = arith.truncf %163 : vector<32x1024xf32> to vector<32x1024xbf16>
    %c0_65 = arith.constant 0 : index
    %c0_66 = arith.constant 0 : index
    %165 = vector.load %arg17[%c0_65, %c0_66] : memref<1024x256xbf16, #tpu.memory_space<vmem>>, vector<1024x256xbf16>
    %cst_67 = arith.constant dense<0.000000e+00> : vector<32x256xf32>
    %166 = tpu.matmul %164, %165, %cst_67 {dimension_numbers = #tpu.dot_dimension_numbers<[1], [0], [0], [1], [0, 0, 1, 1], [], []>} : vector<32x1024xbf16>, vector<1024x256xbf16>, vector<32x256xf32> -> vector<32x256xf32>
    %c0_68 = arith.constant 0 : index
    %c0_69 = arith.constant 0 : index
    %167 = vector.load %arg18[%c0_68, %c0_69] : memref<1x256xf32, #tpu.memory_space<vmem>>, vector<1x256xf32>
    %168 = vector.broadcast %167 : vector<1x256xf32> to vector<32x256xf32>
    %169 = arith.addf %166, %168 : vector<32x256xf32>
    %170 = vector.broadcast %26 : vector<1x256xf32> to vector<32x256xf32>
    %171 = arith.mulf %170, %169 : vector<32x256xf32>
    %172 = arith.addf %122, %171 : vector<32x256xf32>
    %c0_70 = arith.constant 0 : index
    %c0_71 = arith.constant 0 : index
    %c0_72 = arith.constant 0 : index
    %173 = vector.load %arg19[%c0_70, %c0_71, %c0_72] : memref<1x32x256xf32, #tpu.memory_space<vmem>>, vector<1x32x256xf32>
    %174 = vector.shape_cast %173 : vector<1x32x256xf32> to vector<32x256xf32>
    %175 = vector.shape_cast %172 : vector<32x256xf32> to vector<1x32x256xf32>
    tpu.vector_store %arg19[%c0_70, %c0_71, %c0_72], %175 {strides = array<i32>} : memref<1x32x256xf32, #tpu.memory_space<vmem>>, vector<1x32x256xf32>,
    return
  }
  func.func @transform_0(%arg0: i32, %arg1: i32) -> (i32, i32, i32) {
    %c0_i32 = arith.constant 0 : i32
    %c0_i32_0 = arith.constant 0 : i32
    %c0_i32_1 = arith.constant 0 : i32
    return %arg0, %c0_i32, %c0_i32_0 : i32, i32, i32
  }
  func.func @transform_1(%arg0: i32, %arg1: i32) -> (i32, i32, i32) {
    %c0_i32 = arith.constant 0 : i32
    %c0_i32_0 = arith.constant 0 : i32
    return %arg0, %arg1, %c0_i32 : i32, i32, i32
  }
  func.func @transform_2(%arg0: i32, %arg1: i32) -> (i32, i32, i32) {
    %c0_i32 = arith.constant 0 : i32
    %c0_i32_0 = arith.constant 0 : i32
    %c0_i32_1 = arith.constant 0 : i32
    return %arg0, %c0_i32, %c0_i32_0 : i32, i32, i32
  }
  func.func @transform_3(%arg0: i32, %arg1: i32) -> (i32, i32) {
    %c0_i32 = arith.constant 0 : i32
    %c0_i32_0 = arith.constant 0 : i32
    %c0_i32_1 = arith.constant 0 : i32
    return %c0_i32, %c0_i32_0 : i32, i32
  }
  func.func @transform_4(%arg0: i32, %arg1: i32) -> (i32, i32) {
    %c0_i32 = arith.constant 0 : i32
    %c0_i32_0 = arith.constant 0 : i32
    %c0_i32_1 = arith.constant 0 : i32
    return %c0_i32, %c0_i32_0 : i32, i32
  }
  func.func @transform_5(%arg0: i32, %arg1: i32) -> (i32, i32) {
    %c0_i32 = arith.constant 0 : i32
    %c0_i32_0 = arith.constant 0 : i32
    %c0_i32_1 = arith.constant 0 : i32
    return %c0_i32, %c0_i32_0 : i32, i32
  }
  func.func @transform_6(%arg0: i32, %arg1: i32) -> (i32, i32) {
    %c0_i32 = arith.constant 0 : i32
    %c0_i32_0 = arith.constant 0 : i32
    %c0_i32_1 = arith.constant 0 : i32
    return %c0_i32, %c0_i32_0 : i32, i32
  }
  func.func @transform_7(%arg0: i32, %arg1: i32) -> (i32, i32) {
    %c0_i32 = arith.constant 0 : i32
    %c0_i32_0 = arith.constant 0 : i32
    %c0_i32_1 = arith.constant 0 : i32
    return %c0_i32, %c0_i32_0 : i32, i32
  }
  func.func @transform_8(%arg0: i32, %arg1: i32) -> (i32, i32) {
    %c0_i32 = arith.constant 0 : i32
    %c0_i32_0 = arith.constant 0 : i32
    %c0_i32_1 = arith.constant 0 : i32
    return %c0_i32, %c0_i32_0 : i32, i32
  }
  func.func @transform_9(%arg0: i32, %arg1: i32) -> (i32, i32) {
    %c0_i32 = arith.constant 0 : i32
    %c0_i32_0 = arith.constant 0 : i32
    %c0_i32_1 = arith.constant 0 : i32
    return %c0_i32, %c0_i32_0 : i32, i32
  }
  func.func @transform_10(%arg0: i32, %arg1: i32) -> (i32, i32) {
    %c0_i32 = arith.constant 0 : i32
    %c0_i32_0 = arith.constant 0 : i32
    %c0_i32_1 = arith.constant 0 : i32
    return %c0_i32, %c0_i32_0 : i32, i32
  }
  func.func @transform_11(%arg0: i32, %arg1: i32) -> (i32, i32) {
    %c0_i32 = arith.constant 0 : i32
    %c0_i32_0 = arith.constant 0 : i32
    %c0_i32_1 = arith.constant 0 : i32
    return %c0_i32, %c0_i32_0 : i32, i32
  }
  func.func @transform_12(%arg0: i32, %arg1: i32) -> (i32, i32) {
    %c0_i32 = arith.constant 0 : i32
    %c0_i32_0 = arith.constant 0 : i32
    %c0_i32_1 = arith.constant 0 : i32
    return %c0_i32, %c0_i32_0 : i32, i32
  }
  func.func @transform_13(%arg0: i32, %arg1: i32) -> (i32, i32) {
    %c0_i32 = arith.constant 0 : i32
    %c0_i32_0 = arith.constant 0 : i32
    %c0_i32_1 = arith.constant 0 : i32
    return %c0_i32, %c0_i32_0 : i32, i32
  }
  func.func @transform_14(%arg0: i32, %arg1: i32) -> (i32, i32) {
    %c0_i32 = arith.constant 0 : i32
    %c0_i32_0 = arith.constant 0 : i32
    %c0_i32_1 = arith.constant 0 : i32
    return %c0_i32, %c0_i32_0 : i32, i32
  }
  func.func @transform_15(%arg0: i32, %arg1: i32) -> (i32, i32) {
    %c0_i32 = arith.constant 0 : i32
    %c0_i32_0 = arith.constant 0 : i32
    %c0_i32_1 = arith.constant 0 : i32
    return %c0_i32, %c0_i32_0 : i32, i32
  }
  func.func @transform_16(%arg0: i32, %arg1: i32) -> (i32, i32) {
    %c0_i32 = arith.constant 0 : i32
    %c0_i32_0 = arith.constant 0 : i32
    %c0_i32_1 = arith.constant 0 : i32
    return %c0_i32, %c0_i32_0 : i32, i32
  }
  func.func @transform_17(%arg0: i32, %arg1: i32) -> (i32, i32, i32) {
    %c0_i32 = arith.constant 0 : i32
    %c0_i32_0 = arith.constant 0 : i32
    return %arg0, %arg1, %c0_i32 : i32, i32, i32
  }
}

</mosaic_0001>

<llo_original>
// kernel: tpu_custom_call.1
$region0: #{tpu_custom_call.1}
  #allocation0 [shape = 'u32[]', space=smem, size = 0x4, offset = 0x4, fixed_abs, tag = 'smem constant byte address 0x4 - core index']
  #allocation1 [shape = 'u32[144,128]{1,0:T(1,128)}', space=vmem, size = 0x12000, scoped, tag = 'internal scratch']
  %s0 = inlined_call_operand.hbm [shape: f32[2,64,256], index: 0, kind: input, shape index: {}]
  %s1 = inlined_call_operand.hbm [shape: f32[2,64,256], index: 1, kind: input, shape index: {}]
  %s2 = inlined_call_operand.hbm [shape: f32[2,1,256], index: 2, kind: input, shape index: {}]
  %s3 = inlined_call_operand.hbm [shape: bf16[256,1536], index: 3, kind: input, shape index: {}]
  %s4 = inlined_call_operand.hbm [shape: f32[1,1536], index: 4, kind: input, shape index: {}]
  %s5 = inlined_call_operand.hbm [shape: bf16[256,256], index: 5, kind: input, shape index: {}]
  %s6 = inlined_call_operand.hbm [shape: f32[1,256], index: 6, kind: input, shape index: {}]
  %s7 = inlined_call_operand.hbm [shape: bf16[256,256], index: 7, kind: input, shape index: {}]
  %s8 = inlined_call_operand.hbm [shape: f32[1,256], index: 8, kind: input, shape index: {}]
  %s9 = inlined_call_operand.hbm [shape: bf16[256,256], index: 9, kind: input, shape index: {}]
  %s10 = inlined_call_operand.hbm [shape: f32[1,256], index: 10, kind: input, shape index: {}]
  %s11 = inlined_call_operand.hbm [shape: bf16[256,256], index: 11, kind: input, shape index: {}]
  %s12 = inlined_call_operand.hbm [shape: f32[1,256], index: 12, kind: input, shape index: {}]
  %s13 = inlined_call_operand.hbm [shape: bf16[256,1024], index: 13, kind: input, shape index: {}]
  %s14 = inlined_call_operand.hbm [shape: f32[1,1024], index: 14, kind: input, shape index: {}]
  %s15 = inlined_call_operand.hbm [shape: bf16[1024,256], index: 15, kind: input, shape index: {}]
  %s16 = inlined_call_operand.hbm [shape: f32[1,256], index: 16, kind: input, shape index: {}]
  %s17 = inlined_call_operand.hbm [shape: f32[2,64,256], index: 17, kind: output, shape index: {}]
  %s18 = sld [smem:[#allocation0]]
  $region169: #{tpu_custom_call.1} parent=0
    _
  %s20 = ssub.s32 1, %s18
  %s21 = scalar_select 0, %s20, %s18
  $region1: #{tpu_custom_call.1} parent=0
    #allocation2 [shape = 'u8[131072]{0}', space=vmem, size = 0x20000, scoped, tag = 'input window, operand 0']
    #allocation3 [shape = 's32[2]{0}', space=sflag, size = 0x8, scoped, tag = 'scoped memory for tpu_custom_call.1']
    #allocation4 [shape = 's32[2]{0}', space=sflag, size = 0x8, scoped, tag = 'scoped memory for tpu_custom_call.1']
    #allocation5 [shape = 'u8[65536]{0}', space=vmem, size = 0x10000, scoped, tag = 'input window, operand 1']
    #allocation6 [shape = 's32[2]{0}', space=sflag, size = 0x8, scoped, tag = 'scoped memory for tpu_custom_call.1']
    #allocation7 [shape = 'u8[2048]{0}', space=vmem, size = 0x800, scoped, tag = 'input window, operand 2']
    #allocation8 [shape = 'u8[786432]{0}', space=vmem, size = 0xc0000, scoped, tag = 'input window, operand 3, single buffered']
    #allocation9 [shape = 's32[1]{0}', space=sflag, size = 0x4, scoped, tag = 'scoped memory for tpu_custom_call.1']
    #allocation10 [shape = 'u8[6144]{0}', space=vmem, size = 0x1800, scoped, tag = 'input window, operand 4, single buffered']
    #allocation11 [shape = 'u8[131072]{0}', space=vmem, size = 0x20000, scoped, tag = 'input window, operand 5, single buffered']
    #allocation12 [shape = 's32[1]{0}', space=sflag, size = 0x4, scoped, tag = 'scoped memory for tpu_custom_call.1']
    #allocation13 [shape = 'u8[1024]{0}', space=vmem, size = 0x400, scoped, tag = 'input window, operand 6, single buffered']
    #allocation14 [shape = 'u8[131072]{0}', space=vmem, size = 0x20000, scoped, tag = 'input window, operand 7, single buffered']
    #allocation15 [shape = 's32[1]{0}', space=sflag, size = 0x4, scoped, tag = 'scoped memory for tpu_custom_call.1']
    #allocation16 [shape = 'u8[1024]{0}', space=vmem, size = 0x400, scoped, tag = 'input window, operand 8, single buffered']
    #allocation17 [shape = 'u8[131072]{0}', space=vmem, size = 0x20000, scoped, tag = 'input window, operand 9, single buffered']
    #allocation18 [shape = 's32[1]{0}', space=sflag, size = 0x4, scoped, tag = 'scoped memory for tpu_custom_call.1']
    #allocation19 [shape = 'u8[1024]{0}', space=vmem, size = 0x400, scoped, tag = 'input window, operand 10, single buffered']
    #allocation20 [shape = 'u8[131072]{0}', space=vmem, size = 0x20000, scoped, tag = 'input window, operand 11, single buffered']
    #allocation21 [shape = 's32[1]{0}', space=sflag, size = 0x4, scoped, tag = 'scoped memory for tpu_custom_call.1']
    #allocation22 [shape = 'u8[1024]{0}', space=vmem, size = 0x400, scoped, tag = 'input window, operand 12, single buffered']
    #allocation23 [shape = 'u8[524288]{0}', space=vmem, size = 0x80000, scoped, tag = 'input window, operand 13, single buffered']
    #allocation24 [shape = 's32[1]{0}', space=sflag, size = 0x4, scoped, tag = 'scoped memory for tpu_custom_call.1']
    #allocation25 [shape = 'u8[4096]{0}', space=vmem, size = 0x1000, scoped, tag = 'input window, operand 14, single buffered']
    #allocation26 [shape = 'u8[524288]{0}', space=vmem, size = 0x80000, scoped, tag = 'input window, operand 15, single buffered']
    #allocation27 [shape = 's32[1]{0}', space=sflag, size = 0x4, scoped, tag = 'scoped memory for tpu_custom_call.1']
    #allocation28 [shape = 'u8[1024]{0}', space=vmem, size = 0x400, scoped, tag = 'input window, operand 16, single buffered']
    #allocation29 [shape = 'u8[65536]{0}', space=vmem, size = 0x10000, scoped, tag = 'output window, operand 0']
    %22 = vsyncpa [#allocation3], 0
    %s23 = scalar_lea.sflag [#allocation3], 1
    %24 = vsyncpa %s23, 0
    %25 = vsyncpa [#allocation6], 0
    %s26 = scalar_lea.sflag [#allocation6], 1
    %27 = vsyncpa %s26, 0
    %28 = vsyncpa [#allocation9], 0
    %29 = vsyncpa [#allocation12], 0
    %30 = vsyncpa [#allocation15], 0
    %31 = vsyncpa [#allocation18], 0
    %32 = vsyncpa [#allocation21], 0
    %33 = vsyncpa [#allocation24], 0
    %34 = vsyncpa [#allocation27], 0
    %35 = vsyncpa [#allocation4], 0
    %s36 = scalar_lea.sflag [#allocation4], 1
    %37 = vsyncpa %s36, 0
    loop: start=0, step=1, limit=6
    $region2: #{tpu_custom_call.1} parent=1 // loop_pre_header
      _
    $region3: #{tpu_custom_call.1} parent=1 // loop_header
      %s39 = sphi 0, %s43
      %p40 = scmp.ge.s32.totalorder %s39, 6
      %s46 = sphi 0, %s58
      %s47 = sphi 0, %s54
      %s48 = sphi 0, %s46
      %s49 = sphi 0, %s47
      %s50 = sphi 0, %s48
      %s51 = sphi 0, %s49
      %s61 = sphi 0, %s63
      %s64 = sphi 0, %s61
      %s65 = sphi 0, %s64
      %s81 = sphi 0, %s65
      %s89 = sphi 0, %s91
      %s92 = sphi 0, %s89
      %s93 = sphi 0, %s92
      %s109 = sphi 0, %s93
      %s115 = sphi 0, %s117
      %s118 = sphi 0, %s115
      %s119 = sphi 0, %s118
      %s135 = sphi 0, %s119
      %s139 = sphi 0, %s139
      %s141 = sphi 0, %s139
      %s142 = sphi 0, %s141
      %s156 = sphi 0, %s142
      %s160 = sphi 0, %s160
      %s162 = sphi 0, %s160
      %s163 = sphi 0, %s162
      %s177 = sphi 0, %s163
      %s181 = sphi 0, %s181
      %s183 = sphi 0, %s181
      %s184 = sphi 0, %s183
      %s198 = sphi 0, %s184
      %s202 = sphi 0, %s202
      %s204 = sphi 0, %s202
      %s205 = sphi 0, %s204
      %s219 = sphi 0, %s205
      %s223 = sphi 0, %s223
      %s225 = sphi 0, %s223
      %s226 = sphi 0, %s225
      %s240 = sphi 0, %s226
      %s244 = sphi 0, %s244
      %s246 = sphi 0, %s244
      %s247 = sphi 0, %s246
      %s261 = sphi 0, %s247
      %s265 = sphi 0, %s265
      %s267 = sphi 0, %s265
      %s268 = sphi 0, %s267
      %s282 = sphi 0, %s268
      %s286 = sphi 0, %s286
      %s288 = sphi 0, %s286
      %s289 = sphi 0, %s288
      %s303 = sphi 0, %s289
      %s307 = sphi 0, %s307
      %s309 = sphi 0, %s307
      %s310 = sphi 0, %s309
      %s324 = sphi 0, %s310
      %s328 = sphi 0, %s328
      %s330 = sphi 0, %s328
      %s331 = sphi 0, %s330
      %s345 = sphi 0, %s331
      %s349 = sphi 0, %s349
      %s351 = sphi 0, %s349
      %s352 = sphi 0, %s351
      %s366 = sphi 0, %s352
      %s370 = sphi 0, %s370
      %s372 = sphi 0, %s370
      %s373 = sphi 0, %s372
      %s387 = sphi 0, %s373
      %s391 = sphi 0, %s391
      %s393 = sphi 0, %s391
      %s394 = sphi 0, %s393
      %s408 = sphi 0, %s394
      %s412 = sphi 0, %s412
      %s414 = sphi 0, %s412
      %s415 = sphi 0, %s414
      %s429 = sphi 0, %s415
      %s437 = sphi 0, %s439
      %s440 = sphi 0, %s437
      %s441 = sphi 0, %s440
      %s457 = sphi 0, %s441
    $region4: #{tpu_custom_call.1} parent=1 // loop_header_branch
      %42 = sbr.rel (%p40) target = $region8
    $region5: #{tpu_custom_call.1} parent=1 // loop_body
      %s44 = ssub.s32 %s39, 1
      %s45 = ssub.s32 %s39, 2
      %s52 = sadd.s32 1, %s47
      %p53 = scmp.ge.s32.totalorder %s52, 2
      %s54 = scalar_select %p53, 0, %s52
      %s55 = sadd.s32 1, %s46
      %s56 = scalar_select %p53, %s55, %s46
      %p57 = scmp.ge.s32.totalorder %s56, 2
      %s58 = scalar_select %p57, 0, %s56
      %s59 = ssub.s32 %s46, %s58
      %p60 = scmp.eq.s32.totalorder %s59, 0
      %s62 = sadd.s32 %s61, 1
      %s63 = scalar_select %p60, %s61, %s62
      %p66 = pneg %p60
      %p67 = scmp.eq.s32.totalorder %s39, 3
      %p68 = por %p66, %p67
      %p69 = scmp.ne.s32.totalorder %s61, %s64
      %p70 = scmp.eq.s32.totalorder %s39, 0
      %p71 = por %p69, %p70
      %p72 = scmp.ne.s32.totalorder %s61, %s64
      %p73 = scmp.eq.s32.totalorder %s44, 3
      %p74 = por %p72, %p73
      %p75 = scmp.ne.s32.totalorder %s64, %s65
      %p76 = scmp.eq.s32.totalorder %s44, 0
      %p77 = por %p75, %p76
      %p78 = scmp.ne.s32.totalorder %s64, %s65
      %p79 = scmp.eq.s32.totalorder %s45, 3
      %p80 = por %p78, %p79
      %p82 = scmp.ne.s32.totalorder %s65, %s81
      %p83 = scmp.eq.s32.totalorder %s45, 0
      %p84 = por %p82, %p83
      %s85 = ssub.s32 %s46, %s58
      %s86 = ssub.s32 %s47, %s54
      %s87 = sor.u32 %s85, %s86
      %p88 = scmp.eq.s32.totalorder %s87, 0
      %s90 = sadd.s32 %s89, 1
      %s91 = scalar_select %p88, %s89, %s90
      %p94 = pneg %p88
      %p95 = scmp.eq.s32.totalorder %s39, 3
      %p96 = por %p94, %p95
      %p97 = scmp.ne.s32.totalorder %s89, %s92
      %p98 = scmp.eq.s32.totalorder %s39, 0
      %p99 = por %p97, %p98
      %p100 = scmp.ne.s32.totalorder %s89, %s92
      %p101 = scmp.eq.s32.totalorder %s44, 3
      %p102 = por %p100, %p101
      %p103 = scmp.ne.s32.totalorder %s92, %s93
      %p104 = scmp.eq.s32.totalorder %s44, 0
      %p105 = por %p103, %p104
      %p106 = scmp.ne.s32.totalorder %s92, %s93
      %p107 = scmp.eq.s32.totalorder %s45, 3
      %p108 = por %p106, %p107
      %p110 = scmp.ne.s32.totalorder %s93, %s109
      %p111 = scmp.eq.s32.totalorder %s45, 0
      %p112 = por %p110, %p111
      %s113 = ssub.s32 %s46, %s58
      %p114 = scmp.eq.s32.totalorder %s113, 0
      %s116 = sadd.s32 %s115, 1
      %s117 = scalar_select %p114, %s115, %s116
      %p120 = pneg %p114
      %p121 = scmp.eq.s32.totalorder %s39, 3
      %p122 = por %p120, %p121
      %p123 = scmp.ne.s32.totalorder %s115, %s118
      %p124 = scmp.eq.s32.totalorder %s39, 0
      %p125 = por %p123, %p124
      %p126 = scmp.ne.s32.totalorder %s115, %s118
      %p127 = scmp.eq.s32.totalorder %s44, 3
      %p128 = por %p126, %p127
      %p129 = scmp.ne.s32.totalorder %s118, %s119
      %p130 = scmp.eq.s32.totalorder %s44, 0
      %p131 = por %p129, %p130
      %p132 = scmp.ne.s32.totalorder %s118, %s119
      %p133 = scmp.eq.s32.totalorder %s45, 3
      %p134 = por %p132, %p133
      %p136 = scmp.ne.s32.totalorder %s119, %s135
      %p137 = scmp.eq.s32.totalorder %s45, 0
      %p138 = por %p136, %p137
      %s140 = sadd.s32 %s139, 1
      %p143 = scmp.eq.s32.totalorder %s39, 3
      %p144 = scmp.ne.s32.totalorder %s139, %s141
      %p145 = scmp.eq.s32.totalorder %s39, 0
      %p146 = por %p144, %p145
      %p147 = scmp.ne.s32.totalorder %s139, %s141
      %p148 = scmp.eq.s32.totalorder %s44, 3
      %p149 = por %p147, %p148
      %p150 = scmp.ne.s32.totalorder %s141, %s142
      %p151 = scmp.eq.s32.totalorder %s44, 0
      %p152 = por %p150, %p151
      %p153 = scmp.ne.s32.totalorder %s141, %s142
      %p154 = scmp.eq.s32.totalorder %s45, 3
      %p155 = por %p153, %p154
      %p157 = scmp.ne.s32.totalorder %s142, %s156
      %p158 = scmp.eq.s32.totalorder %s45, 0
      %p159 = por %p157, %p158
      %s161 = sadd.s32 %s160, 1
      %p164 = scmp.eq.s32.totalorder %s39, 3
      %p165 = scmp.ne.s32.totalorder %s160, %s162
      %p166 = scmp.eq.s32.totalorder %s39, 0
      %p167 = por %p165, %p166
      %p168 = scmp.ne.s32.totalorder %s160, %s162
      %p169 = scmp.eq.s32.totalorder %s44, 3
      %p170 = por %p168, %p169
      %p171 = scmp.ne.s32.totalorder %s162, %s163
      %p172 = scmp.eq.s32.totalorder %s44, 0
      %p173 = por %p171, %p172
      %p174 = scmp.ne.s32.totalorder %s162, %s163
      %p175 = scmp.eq.s32.totalorder %s45, 3
      %p176 = por %p174, %p175
      %p178 = scmp.ne.s32.totalorder %s163, %s177
      %p179 = scmp.eq.s32.totalorder %s45, 0
      %p180 = por %p178, %p179
      %s182 = sadd.s32 %s181, 1
      %p185 = scmp.eq.s32.totalorder %s39, 3
      %p186 = scmp.ne.s32.totalorder %s181, %s183
      %p187 = scmp.eq.s32.totalorder %s39, 0
      %p188 = por %p186, %p187
      %p189 = scmp.ne.s32.totalorder %s181, %s183
      %p190 = scmp.eq.s32.totalorder %s44, 3
      %p191 = por %p189, %p190
      %p192 = scmp.ne.s32.totalorder %s183, %s184
      %p193 = scmp.eq.s32.totalorder %s44, 0
      %p194 = por %p192, %p193
      %p195 = scmp.ne.s32.totalorder %s183, %s184
      %p196 = scmp.eq.s32.totalorder %s45, 3
      %p197 = por %p195, %p196
      %p199 = scmp.ne.s32.totalorder %s184, %s198
      %p200 = scmp.eq.s32.totalorder %s45, 0
      %p201 = por %p199, %p200
      %s203 = sadd.s32 %s202, 1
      %p206 = scmp.eq.s32.totalorder %s39, 3
      %p207 = scmp.ne.s32.totalorder %s202, %s204
      %p208 = scmp.eq.s32.totalorder %s39, 0
      %p209 = por %p207, %p208
      %p210 = scmp.ne.s32.totalorder %s202, %s204
      %p211 = scmp.eq.s32.totalorder %s44, 3
      %p212 = por %p210, %p211
      %p213 = scmp.ne.s32.totalorder %s204, %s205
      %p214 = scmp.eq.s32.totalorder %s44, 0
      %p215 = por %p213, %p214
      %p216 = scmp.ne.s32.totalorder %s204, %s205
      %p217 = scmp.eq.s32.totalorder %s45, 3
      %p218 = por %p216, %p217
      %p220 = scmp.ne.s32.totalorder %s205, %s219
      %p221 = scmp.eq.s32.totalorder %s45, 0
      %p222 = por %p220, %p221
      %s224 = sadd.s32 %s223, 1
      %p227 = scmp.eq.s32.totalorder %s39, 3
      %p228 = scmp.ne.s32.totalorder %s223, %s225
      %p229 = scmp.eq.s32.totalorder %s39, 0
      %p230 = por %p228, %p229
      %p231 = scmp.ne.s32.totalorder %s223, %s225
      %p232 = scmp.eq.s32.totalorder %s44, 3
      %p233 = por %p231, %p232
      %p234 = scmp.ne.s32.totalorder %s225, %s226
      %p235 = scmp.eq.s32.totalorder %s44, 0
      %p236 = por %p234, %p235
      %p237 = scmp.ne.s32.totalorder %s225, %s226
      %p238 = scmp.eq.s32.totalorder %s45, 3
      %p239 = por %p237, %p238
      %p241 = scmp.ne.s32.totalorder %s226, %s240
      %p242 = scmp.eq.s32.totalorder %s45, 0
      %p243 = por %p241, %p242
      %s245 = sadd.s32 %s244, 1
      %p248 = scmp.eq.s32.totalorder %s39, 3
      %p249 = scmp.ne.s32.totalorder %s244, %s246
      %p250 = scmp.eq.s32.totalorder %s39, 0
      %p251 = por %p249, %p250
      %p252 = scmp.ne.s32.totalorder %s244, %s246
      %p253 = scmp.eq.s32.totalorder %s44, 3
      %p254 = por %p252, %p253
      %p255 = scmp.ne.s32.totalorder %s246, %s247
      %p256 = scmp.eq.s32.totalorder %s44, 0
      %p257 = por %p255, %p256
      %p258 = scmp.ne.s32.totalorder %s246, %s247
      %p259 = scmp.eq.s32.totalorder %s45, 3
      %p260 = por %p258, %p259
      %p262 = scmp.ne.s32.totalorder %s247, %s261
      %p263 = scmp.eq.s32.totalorder %s45, 0
      %p264 = por %p262, %p263
      %s266 = sadd.s32 %s265, 1
      %p269 = scmp.eq.s32.totalorder %s39, 3
      %p270 = scmp.ne.s32.totalorder %s265, %s267
      %p271 = scmp.eq.s32.totalorder %s39, 0
      %p272 = por %p270, %p271
      %p273 = scmp.ne.s32.totalorder %s265, %s267
      %p274 = scmp.eq.s32.totalorder %s44, 3
      %p275 = por %p273, %p274
      %p276 = scmp.ne.s32.totalorder %s267, %s268
      %p277 = scmp.eq.s32.totalorder %s44, 0
      %p278 = por %p276, %p277
      %p279 = scmp.ne.s32.totalorder %s267, %s268
      %p280 = scmp.eq.s32.totalorder %s45, 3
      %p281 = por %p279, %p280
      %p283 = scmp.ne.s32.totalorder %s268, %s282
      %p284 = scmp.eq.s32.totalorder %s45, 0
      %p285 = por %p283, %p284
      %s287 = sadd.s32 %s286, 1
      %p290 = scmp.eq.s32.totalorder %s39, 3
      %p291 = scmp.ne.s32.totalorder %s286, %s288
      %p292 = scmp.eq.s32.totalorder %s39, 0
      %p293 = por %p291, %p292
      %p294 = scmp.ne.s32.totalorder %s286, %s288
      %p295 = scmp.eq.s32.totalorder %s44, 3
      %p296 = por %p294, %p295
      %p297 = scmp.ne.s32.totalorder %s288, %s289
      %p298 = scmp.eq.s32.totalorder %s44, 0
      %p299 = por %p297, %p298
      %p300 = scmp.ne.s32.totalorder %s288, %s289
      %p301 = scmp.eq.s32.totalorder %s45, 3
      %p302 = por %p300, %p301
      %p304 = scmp.ne.s32.totalorder %s289, %s303
      %p305 = scmp.eq.s32.totalorder %s45, 0
      %p306 = por %p304, %p305
      %s308 = sadd.s32 %s307, 1
      %p311 = scmp.eq.s32.totalorder %s39, 3
      %p312 = scmp.ne.s32.totalorder %s307, %s309
      %p313 = scmp.eq.s32.totalorder %s39, 0
      %p314 = por %p312, %p313
      %p315 = scmp.ne.s32.totalorder %s307, %s309
      %p316 = scmp.eq.s32.totalorder %s44, 3
      %p317 = por %p315, %p316
      %p318 = scmp.ne.s32.totalorder %s309, %s310
      %p319 = scmp.eq.s32.totalorder %s44, 0
      %p320 = por %p318, %p319
      %p321 = scmp.ne.s32.totalorder %s309, %s310
      %p322 = scmp.eq.s32.totalorder %s45, 3
      %p323 = por %p321, %p322
      %p325 = scmp.ne.s32.totalorder %s310, %s324
      %p326 = scmp.eq.s32.totalorder %s45, 0
      %p327 = por %p325, %p326
      %s329 = sadd.s32 %s328, 1
      %p332 = scmp.eq.s32.totalorder %s39, 3
      %p333 = scmp.ne.s32.totalorder %s328, %s330
      %p334 = scmp.eq.s32.totalorder %s39, 0
      %p335 = por %p333, %p334
      %p336 = scmp.ne.s32.totalorder %s328, %s330
      %p337 = scmp.eq.s32.totalorder %s44, 3
      %p338 = por %p336, %p337
      %p339 = scmp.ne.s32.totalorder %s330, %s331
      %p340 = scmp.eq.s32.totalorder %s44, 0
      %p341 = por %p339, %p340
      %p342 = scmp.ne.s32.totalorder %s330, %s331
      %p343 = scmp.eq.s32.totalorder %s45, 3
      %p344 = por %p342, %p343
      %p346 = scmp.ne.s32.totalorder %s331, %s345
      %p347 = scmp.eq.s32.totalorder %s45, 0
      %p348 = por %p346, %p347
      %s350 = sadd.s32 %s349, 1
      %p353 = scmp.eq.s32.totalorder %s39, 3
      %p354 = scmp.ne.s32.totalorder %s349, %s351
      %p355 = scmp.eq.s32.totalorder %s39, 0
      %p356 = por %p354, %p355
      %p357 = scmp.ne.s32.totalorder %s349, %s351
      %p358 = scmp.eq.s32.totalorder %s44, 3
      %p359 = por %p357, %p358
      %p360 = scmp.ne.s32.totalorder %s351, %s352
      %p361 = scmp.eq.s32.totalorder %s44, 0
      %p362 = por %p360, %p361
      %p363 = scmp.ne.s32.totalorder %s351, %s352
      %p364 = scmp.eq.s32.totalorder %s45, 3
      %p365 = por %p363, %p364
      %p367 = scmp.ne.s32.totalorder %s352, %s366
      %p368 = scmp.eq.s32.totalorder %s45, 0
      %p369 = por %p367, %p368
      %s371 = sadd.s32 %s370, 1
      %p374 = scmp.eq.s32.totalorder %s39, 3
      %p375 = scmp.ne.s32.totalorder %s370, %s372
      %p376 = scmp.eq.s32.totalorder %s39, 0
      %p377 = por %p375, %p376
      %p378 = scmp.ne.s32.totalorder %s370, %s372
      %p379 = scmp.eq.s32.totalorder %s44, 3
      %p380 = por %p378, %p379
      %p381 = scmp.ne.s32.totalorder %s372, %s373
      %p382 = scmp.eq.s32.totalorder %s44, 0
      %p383 = por %p381, %p382
      %p384 = scmp.ne.s32.totalorder %s372, %s373
      %p385 = scmp.eq.s32.totalorder %s45, 3
      %p386 = por %p384, %p385
      %p388 = scmp.ne.s32.totalorder %s373, %s387
      %p389 = scmp.eq.s32.totalorder %s45, 0
      %p390 = por %p388, %p389
      %s392 = sadd.s32 %s391, 1
      %p395 = scmp.eq.s32.totalorder %s39, 3
      %p396 = scmp.ne.s32.totalorder %s391, %s393
      %p397 = scmp.eq.s32.totalorder %s39, 0
      %p398 = por %p396, %p397
      %p399 = scmp.ne.s32.totalorder %s391, %s393
      %p400 = scmp.eq.s32.totalorder %s44, 3
      %p401 = por %p399, %p400
      %p402 = scmp.ne.s32.totalorder %s393, %s394
      %p403 = scmp.eq.s32.totalorder %s44, 0
      %p404 = por %p402, %p403
      %p405 = scmp.ne.s32.totalorder %s393, %s394
      %p406 = scmp.eq.s32.totalorder %s45, 3
      %p407 = por %p405, %p406
      %p409 = scmp.ne.s32.totalorder %s394, %s408
      %p410 = scmp.eq.s32.totalorder %s45, 0
      %p411 = por %p409, %p410
      %s413 = sadd.s32 %s412, 1
      %p416 = scmp.eq.s32.totalorder %s39, 3
      %p417 = scmp.ne.s32.totalorder %s412, %s414
      %p418 = scmp.eq.s32.totalorder %s39, 0
      %p419 = por %p417, %p418
      %p420 = scmp.ne.s32.totalorder %s412, %s414
      %p421 = scmp.eq.s32.totalorder %s44, 3
      %p422 = por %p420, %p421
      %p423 = scmp.ne.s32.totalorder %s414, %s415
      %p424 = scmp.eq.s32.totalorder %s44, 0
      %p425 = por %p423, %p424
      %p426 = scmp.ne.s32.totalorder %s414, %s415
      %p427 = scmp.eq.s32.totalorder %s45, 3
      %p428 = por %p426, %p427
      %p430 = scmp.ne.s32.totalorder %s415, %s429
      %p431 = scmp.eq.s32.totalorder %s45, 0
      %p432 = por %p430, %p431
      %s433 = ssub.s32 %s46, %s58
      %s434 = ssub.s32 %s47, %s54
      %s435 = sor.u32 %s433, %s434
      %p436 = scmp.eq.s32.totalorder %s435, 0
      %s438 = sadd.s32 %s437, 1
      %s439 = scalar_select %p436, %s437, %s438
      %p442 = pneg %p436
      %p443 = scmp.eq.s32.totalorder %s39, 3
      %p444 = por %p442, %p443
      %p445 = scmp.ne.s32.totalorder %s437, %s440
      %p446 = scmp.eq.s32.totalorder %s39, 0
      %p447 = por %p445, %p446
      %p448 = scmp.ne.s32.totalorder %s437, %s440
      %p449 = scmp.eq.s32.totalorder %s44, 3
      %p450 = por %p448, %p449
      %p451 = scmp.ne.s32.totalorder %s440, %s441
      %p452 = scmp.eq.s32.totalorder %s44, 0
      %p453 = por %p451, %p452
      %p454 = scmp.ne.s32.totalorder %s440, %s441
      %p455 = scmp.eq.s32.totalorder %s45, 3
      %p456 = por %p454, %p455
      %p458 = scmp.ne.s32.totalorder %s441, %s457
      %p459 = scmp.eq.s32.totalorder %s45, 0
      %p460 = por %p458, %p459
      %p461 = scmp.le.s32.totalorder 1, %s39
      %p462 = scmp.lt.s32.totalorder %s39, 5
      %p463 = pnand %p461, %p462
      %p464 = pneg %p463
      // Predicated region
      $region9: #{tpu_custom_call.1} parent=5 // pred_check
        _
      $region10: #{tpu_custom_call.1} parent=5 // pred_check_branch
        %466 = sbr.rel (%p463) target = $region12
      $region11: #{tpu_custom_call.1} parent=5 // pred_region
        %s467 = ssub.s32 %s39, 1
        // Predicated region
        $region13: #{tpu_custom_call.1} parent=11 // pred_check
          %p468 = pneg %p152
        $region14: #{tpu_custom_call.1} parent=11 // pred_check_branch
          %470 = sbr.rel (%p468) target = $region16
        $region15: #{tpu_custom_call.1} parent=11 // pred_region
          %s472 = ssub.s32 24576, 24576
          %473 = vsyncadd [#allocation9], %s472
          %s474 = sshll.u32 [#allocation8], 4
          %s475 = int_to_ptr.vmem [resolvable:$true] %s474
          %480 = dma.hbm_to_vmem [thread:$0]  %s3, 24576, %s475, [#allocation9], 768, 768, 48
        $region16: #{tpu_custom_call.1} parent=11 // pred_fallthru
          _
        // Predicated region
        $region17: #{tpu_custom_call.1} parent=11 // pred_check
          %p481 = pneg %p173
        $region18: #{tpu_custom_call.1} parent=11 // pred_check_branch
          %483 = sbr.rel (%p481) target = $region20
        $region19: #{tpu_custom_call.1} parent=11 // pred_region
          %s485 = ssub.s32 192, 192
          %486 = vsyncadd [#allocation9], %s485
          %s488 = sshll.u32 [#allocation10], 4
          %s489 = int_to_ptr.vmem [resolvable:$true] %s488
          %491 = dma.hbm_to_vmem [thread:$0]  %s4, 192, %s489, [#allocation9]
        $region20: #{tpu_custom_call.1} parent=11 // pred_fallthru
          _
        // Predicated region
        $region21: #{tpu_custom_call.1} parent=11 // pred_check
          %p492 = pneg %p194
        $region22: #{tpu_custom_call.1} parent=11 // pred_check_branch
          %494 = sbr.rel (%p492) target = $region24
        $region23: #{tpu_custom_call.1} parent=11 // pred_region
          %s496 = ssub.s32 4096, 4096
          %497 = vsyncadd [#allocation12], %s496
          %s498 = sshll.u32 [#allocation11], 4
          %s499 = int_to_ptr.vmem [resolvable:$true] %s498
          %504 = dma.hbm_to_vmem [thread:$0]  %s5, 4096, %s499, [#allocation12], 128, 128, 8
        $region24: #{tpu_custom_call.1} parent=11 // pred_fallthru
          _
        // Predicated region
        $region25: #{tpu_custom_call.1} parent=11 // pred_check
          %p505 = pneg %p215
        $region26: #{tpu_custom_call.1} parent=11 // pred_check_branch
          %507 = sbr.rel (%p505) target = $region28
        $region27: #{tpu_custom_call.1} parent=11 // pred_region
          %s509 = ssub.s32 32, 32
          %510 = vsyncadd [#allocation12], %s509
          %s512 = sshll.u32 [#allocation13], 4
          %s513 = int_to_ptr.vmem [resolvable:$true] %s512
          %515 = dma.hbm_to_vmem [thread:$0]  %s6, 32, %s513, [#allocation12]
        $region28: #{tpu_custom_call.1} parent=11 // pred_fallthru
          _
        // Predicated region
        $region29: #{tpu_custom_call.1} parent=11 // pred_check
          %p516 = pneg %p236
        $region30: #{tpu_custom_call.1} parent=11 // pred_check_branch
          %518 = sbr.rel (%p516) target = $region32
        $region31: #{tpu_custom_call.1} parent=11 // pred_region
          %s520 = ssub.s32 4096, 4096
          %521 = vsyncadd [#allocation15], %s520
          %s522 = sshll.u32 [#allocation14], 4
          %s523 = int_to_ptr.vmem [resolvable:$true] %s522
          %528 = dma.hbm_to_vmem [thread:$0]  %s7, 4096, %s523, [#allocation15], 128, 128, 8
        $region32: #{tpu_custom_call.1} parent=11 // pred_fallthru
          _
        // Predicated region
        $region33: #{tpu_custom_call.1} parent=11 // pred_check
          %p529 = pneg %p257
        $region34: #{tpu_custom_call.1} parent=11 // pred_check_branch
          %531 = sbr.rel (%p529) target = $region36
        $region35: #{tpu_custom_call.1} parent=11 // pred_region
          %s533 = ssub.s32 32, 32
          %534 = vsyncadd [#allocation15], %s533
          %s536 = sshll.u32 [#allocation16], 4
          %s537 = int_to_ptr.vmem [resolvable:$true] %s536
          %539 = dma.hbm_to_vmem [thread:$0]  %s8, 32, %s537, [#allocation15]
        $region36: #{tpu_custom_call.1} parent=11 // pred_fallthru
          _
        // Predicated region
        $region37: #{tpu_custom_call.1} parent=11 // pred_check
          %p540 = pneg %p278
        $region38: #{tpu_custom_call.1} parent=11 // pred_check_branch
          %542 = sbr.rel (%p540) target = $region40
        $region39: #{tpu_custom_call.1} parent=11 // pred_region
          %s544 = ssub.s32 4096, 4096
          %545 = vsyncadd [#allocation18], %s544
          %s546 = sshll.u32 [#allocation17], 4
          %s547 = int_to_ptr.vmem [resolvable:$true] %s546
          %552 = dma.hbm_to_vmem [thread:$0]  %s9, 4096, %s547, [#allocation18], 128, 128, 8
        $region40: #{tpu_custom_call.1} parent=11 // pred_fallthru
          _
        // Predicated region
        $region41: #{tpu_custom_call.1} parent=11 // pred_check
          %p553 = pneg %p299
        $region42: #{tpu_custom_call.1} parent=11 // pred_check_branch
          %555 = sbr.rel (%p553) target = $region44
        $region43: #{tpu_custom_call.1} parent=11 // pred_region
          %s557 = ssub.s32 32, 32
          %558 = vsyncadd [#allocation18], %s557
          %s560 = sshll.u32 [#allocation19], 4
          %s561 = int_to_ptr.vmem [resolvable:$true] %s560
          %563 = dma.hbm_to_vmem [thread:$0]  %s10, 32, %s561, [#allocation18]
        $region44: #{tpu_custom_call.1} parent=11 // pred_fallthru
          _
        // Predicated region
        $region45: #{tpu_custom_call.1} parent=11 // pred_check
          %p564 = pneg %p320
        $region46: #{tpu_custom_call.1} parent=11 // pred_check_branch
          %566 = sbr.rel (%p564) target = $region48
        $region47: #{tpu_custom_call.1} parent=11 // pred_region
          %s568 = ssub.s32 4096, 4096
          %569 = vsyncadd [#allocation21], %s568
          %s570 = sshll.u32 [#allocation20], 4
          %s571 = int_to_ptr.vmem [resolvable:$true] %s570
          %576 = dma.hbm_to_vmem [thread:$0]  %s11, 4096, %s571, [#allocation21], 128, 128, 8
        $region48: #{tpu_custom_call.1} parent=11 // pred_fallthru
          _
        // Predicated region
        $region49: #{tpu_custom_call.1} parent=11 // pred_check
          %p577 = pneg %p341
        $region50: #{tpu_custom_call.1} parent=11 // pred_check_branch
          %579 = sbr.rel (%p577) target = $region52
        $region51: #{tpu_custom_call.1} parent=11 // pred_region
          %s581 = ssub.s32 32, 32
          %582 = vsyncadd [#allocation21], %s581
          %s584 = sshll.u32 [#allocation22], 4
          %s585 = int_to_ptr.vmem [resolvable:$true] %s584
          %587 = dma.hbm_to_vmem [thread:$0]  %s12, 32, %s585, [#allocation21]
        $region52: #{tpu_custom_call.1} parent=11 // pred_fallthru
          _
        // Predicated region
        $region53: #{tpu_custom_call.1} parent=11 // pred_check
          %p588 = pneg %p362
        $region54: #{tpu_custom_call.1} parent=11 // pred_check_branch
          %590 = sbr.rel (%p588) target = $region56
        $region55: #{tpu_custom_call.1} parent=11 // pred_region
          %s592 = ssub.s32 16384, 16384
          %593 = vsyncadd [#allocation24], %s592
          %s594 = sshll.u32 [#allocation23], 4
          %s595 = int_to_ptr.vmem [resolvable:$true] %s594
          %600 = dma.hbm_to_vmem [thread:$0]  %s13, 16384, %s595, [#allocation24], 512, 512, 32
        $region56: #{tpu_custom_call.1} parent=11 // pred_fallthru
          _
        // Predicated region
        $region57: #{tpu_custom_call.1} parent=11 // pred_check
          %p601 = pneg %p383
        $region58: #{tpu_custom_call.1} parent=11 // pred_check_branch
          %603 = sbr.rel (%p601) target = $region60
        $region59: #{tpu_custom_call.1} parent=11 // pred_region
          %s605 = ssub.s32 128, 128
          %606 = vsyncadd [#allocation24], %s605
          %s608 = sshll.u32 [#allocation25], 4
          %s609 = int_to_ptr.vmem [resolvable:$true] %s608
          %611 = dma.hbm_to_vmem [thread:$0]  %s14, 128, %s609, [#allocation24]
        $region60: #{tpu_custom_call.1} parent=11 // pred_fallthru
          _
        // Predicated region
        $region61: #{tpu_custom_call.1} parent=11 // pred_check
          %p612 = pneg %p404
        $region62: #{tpu_custom_call.1} parent=11 // pred_check_branch
          %614 = sbr.rel (%p612) target = $region64
        $region63: #{tpu_custom_call.1} parent=11 // pred_region
          %s616 = ssub.s32 16384, 16384
          %617 = vsyncadd [#allocation27], %s616
          %s618 = sshll.u32 [#allocation26], 4
          %s619 = int_to_ptr.vmem [resolvable:$true] %s618
          %624 = dma.hbm_to_vmem [thread:$0]  %s15, 16384, %s619, [#allocation27], 128, 128, 8
        $region64: #{tpu_custom_call.1} parent=11 // pred_fallthru
          _
        // Predicated region
        $region65: #{tpu_custom_call.1} parent=11 // pred_check
          %p625 = pneg %p425
        $region66: #{tpu_custom_call.1} parent=11 // pred_check_branch
          %627 = sbr.rel (%p625) target = $region68
        $region67: #{tpu_custom_call.1} parent=11 // pred_region
          %s629 = ssub.s32 32, 32
          %630 = vsyncadd [#allocation27], %s629
          %s632 = sshll.u32 [#allocation28], 4
          %s633 = int_to_ptr.vmem [resolvable:$true] %s632
          %635 = dma.hbm_to_vmem [thread:$0]  %s16, 32, %s633, [#allocation27]
        $region68: #{tpu_custom_call.1} parent=11 // pred_fallthru
          _
      $region12: #{tpu_custom_call.1} parent=5 // pred_fallthru
        _
      %p636 = scmp.lt.s32.totalorder %s39, 4
      // Predicated region
      $region69: #{tpu_custom_call.1} parent=5 // pred_check
        %p637 = pneg %p636
      $region70: #{tpu_custom_call.1} parent=5 // pred_check_branch
        %639 = sbr.rel (%p637) target = $region72
      $region71: #{tpu_custom_call.1} parent=5 // pred_region
        // Predicated region
        $region73: #{tpu_custom_call.1} parent=71 // pred_check
          %p640 = pneg %p71
        $region74: #{tpu_custom_call.1} parent=71 // pred_check_branch
          %642 = sbr.rel (%p640) target = $region76
        $region75: #{tpu_custom_call.1} parent=71 // pred_region
          %s643 = sand.u32 %s61, 1
          %s644 = scalar_lea.sflag [#allocation3], %s643
          %s645 = sand.u32 %s61, 1
          %s646 = smul.addr %s645, 128
          %s647 = scalar_lea.vmem [#allocation2], %s646
          %s649 = ssub.s32 2048, 2048
          %650 = vsyncadd %s644, %s649
          %s651 = smul.addr %s46, 16
          %s652 = smul.addr %s651, 128
          %s653 = scalar_lea.hbm %s0, %s652
          %s654 = sshll.u32 %s647, 4
          %s655 = int_to_ptr.vmem [resolvable:$true] %s654
          %660 = dma.hbm_to_vmem [thread:$0]  %s653, 2048, %s655, %s644, 256, 256, 16
        $region76: #{tpu_custom_call.1} parent=71 // pred_fallthru
          _
        // Predicated region
        $region77: #{tpu_custom_call.1} parent=71 // pred_check
          %p661 = pneg %p99
        $region78: #{tpu_custom_call.1} parent=71 // pred_check_branch
          %663 = sbr.rel (%p661) target = $region80
        $region79: #{tpu_custom_call.1} parent=71 // pred_region
          %s664 = sand.u32 %s39, 1
          %s665 = scalar_lea.sflag [#allocation6], %s664
          %s666 = sand.u32 %s89, 1
          %s667 = smul.addr %s666, 64
          %s668 = scalar_lea.vmem [#allocation5], %s667
          %s669 = smul.u32 4, %s47
          %s671 = ssub.s32 1024, 1024
          %672 = vsyncadd %s665, %s671
          %s673 = smul.addr %s669, 2
          %s674 = smul.addr %s46, 16
          %s675 = sadd.s32 %s673, %s674
          %s676 = smul.addr %s675, 128
          %s677 = scalar_lea.hbm %s1, %s676
          %s678 = sshll.u32 %s668, 4
          %s679 = int_to_ptr.vmem [resolvable:$true] %s678
          %684 = dma.hbm_to_vmem [thread:$0]  %s677, 1024, %s679, %s665, 256, 256, 16
        $region80: #{tpu_custom_call.1} parent=71 // pred_fallthru
          _
        // Predicated region
        $region81: #{tpu_custom_call.1} parent=71 // pred_check
          %p685 = pneg %p125
        $region82: #{tpu_custom_call.1} parent=71 // pred_check_branch
          %687 = sbr.rel (%p685) target = $region84
        $region83: #{tpu_custom_call.1} parent=71 // pred_region
          %s688 = sand.u32 %s39, 1
          %s689 = scalar_lea.sflag [#allocation6], %s688
          %s690 = sand.u32 %s115, 1
          %s691 = smul.addr %s690, 2
          %s692 = scalar_lea.vmem [#allocation7], %s691
          %s694 = ssub.s32 32, 32
          %695 = vsyncadd %s689, %s694
          %s696 = smul.addr %s46, 2
          %s697 = smul.addr %s696, 16
          %s698 = scalar_lea.hbm %s2, %s697
          %s700 = sshll.u32 %s692, 4
          %s701 = int_to_ptr.vmem [resolvable:$true] %s700
          %703 = dma.hbm_to_vmem [thread:$0]  %s698, 32, %s701, %s689
        $region84: #{tpu_custom_call.1} parent=71 // pred_fallthru
          _
      $region72: #{tpu_custom_call.1} parent=5 // pred_fallthru
        _
      %p704 = scmp.le.s32.totalorder 1, %s39
      %p705 = scmp.lt.s32.totalorder %s39, 5
      %p706 = pnand %p704, %p705
      %p707 = pneg %p706
      // Predicated region
      $region85: #{tpu_custom_call.1} parent=5 // pred_check
        _
      $region86: #{tpu_custom_call.1} parent=5 // pred_check_branch
        %709 = sbr.rel (%p706) target = $region88
      $region87: #{tpu_custom_call.1} parent=5 // pred_region
        %s710 = ssub.s32 %s39, 1
        %s711 = sand.u32 %s64, 1
        %s712 = scalar_lea.sflag [#allocation3], %s711
        %s713 = sand.u32 %s64, 1
        %s714 = smul.addr %s713, 128
        %s715 = scalar_lea.vmem [#allocation2], %s714
        // Predicated region
        $region89: #{tpu_custom_call.1} parent=87 // pred_check
          %p716 = pneg %p77
        $region90: #{tpu_custom_call.1} parent=87 // pred_check_branch
          %718 = sbr.rel (%p716) target = $region92
        $region91: #{tpu_custom_call.1} parent=87 // pred_region
          %719 = dma.done %s712, 2048
        $region92: #{tpu_custom_call.1} parent=87 // pred_fallthru
          _
        %s720 = sand.u32 %s44, 1
        %s721 = scalar_lea.sflag [#allocation6], %s720
        %s722 = sand.u32 %s92, 1
        %s723 = smul.addr %s722, 64
        %s724 = scalar_lea.vmem [#allocation5], %s723
        // Predicated region
        $region93: #{tpu_custom_call.1} parent=87 // pred_check
          %p725 = pneg %p105
        $region94: #{tpu_custom_call.1} parent=87 // pred_check_branch
          %727 = sbr.rel (%p725) target = $region96
        $region95: #{tpu_custom_call.1} parent=87 // pred_region
          %728 = dma.done %s721, 1024
        $region96: #{tpu_custom_call.1} parent=87 // pred_fallthru
          _
        %s729 = sand.u32 %s44, 1
        %s730 = scalar_lea.sflag [#allocation6], %s729
        %s731 = sand.u32 %s118, 1
        %s732 = smul.addr %s731, 2
        %s733 = scalar_lea.vmem [#allocation7], %s732
        // Predicated region
        $region97: #{tpu_custom_call.1} parent=87 // pred_check
          %p734 = pneg %p131
        $region98: #{tpu_custom_call.1} parent=87 // pred_check_branch
          %736 = sbr.rel (%p734) target = $region100
        $region99: #{tpu_custom_call.1} parent=87 // pred_region
          %737 = dma.done %s730, 32
        $region100: #{tpu_custom_call.1} parent=87 // pred_fallthru
          _
        // Predicated region
        $region101: #{tpu_custom_call.1} parent=87 // pred_check
          %p738 = pneg %p152
        $region102: #{tpu_custom_call.1} parent=87 // pred_check_branch
          %740 = sbr.rel (%p738) target = $region104
        $region103: #{tpu_custom_call.1} parent=87 // pred_region
          %741 = dma.done [#allocation9], 24576
        $region104: #{tpu_custom_call.1} parent=87 // pred_fallthru
          _
        // Predicated region
        $region105: #{tpu_custom_call.1} parent=87 // pred_check
          %p742 = pneg %p173
        $region106: #{tpu_custom_call.1} parent=87 // pred_check_branch
          %744 = sbr.rel (%p742) target = $region108
        $region107: #{tpu_custom_call.1} parent=87 // pred_region
          %745 = dma.done [#allocation9], 192
        $region108: #{tpu_custom_call.1} parent=87 // pred_fallthru
          _
        // Predicated region
        $region109: #{tpu_custom_call.1} parent=87 // pred_check
          %p746 = pneg %p194
        $region110: #{tpu_custom_call.1} parent=87 // pred_check_branch
          %748 = sbr.rel (%p746) target = $region112
        $region111: #{tpu_custom_call.1} parent=87 // pred_region
          %749 = dma.done [#allocation12], 4096
        $region112: #{tpu_custom_call.1} parent=87 // pred_fallthru
          _
        // Predicated region
        $region113: #{tpu_custom_call.1} parent=87 // pred_check
          %p750 = pneg %p215
        $region114: #{tpu_custom_call.1} parent=87 // pred_check_branch
          %752 = sbr.rel (%p750) target = $region116
        $region115: #{tpu_custom_call.1} parent=87 // pred_region
          %753 = dma.done [#allocation12], 32
        $region116: #{tpu_custom_call.1} parent=87 // pred_fallthru
          _
        // Predicated region
        $region117: #{tpu_custom_call.1} parent=87 // pred_check
          %p754 = pneg %p236
        $region118: #{tpu_custom_call.1} parent=87 // pred_check_branch
          %756 = sbr.rel (%p754) target = $region120
        $region119: #{tpu_custom_call.1} parent=87 // pred_region
          %757 = dma.done [#allocation15], 4096
        $region120: #{tpu_custom_call.1} parent=87 // pred_fallthru
          _
        // Predicated region
        $region121: #{tpu_custom_call.1} parent=87 // pred_check
          %p758 = pneg %p257
        $region122: #{tpu_custom_call.1} parent=87 // pred_check_branch
          %760 = sbr.rel (%p758) target = $region124
        $region123: #{tpu_custom_call.1} parent=87 // pred_region
          %761 = dma.done [#allocation15], 32
        $region124: #{tpu_custom_call.1} parent=87 // pred_fallthru
          _
        // Predicated region
        $region125: #{tpu_custom_call.1} parent=87 // pred_check
          %p762 = pneg %p278
        $region126: #{tpu_custom_call.1} parent=87 // pred_check_branch
          %764 = sbr.rel (%p762) target = $region128
        $region127: #{tpu_custom_call.1} parent=87 // pred_region
          %765 = dma.done [#allocation18], 4096
        $region128: #{tpu_custom_call.1} parent=87 // pred_fallthru
          _
        // Predicated region
        $region129: #{tpu_custom_call.1} parent=87 // pred_check
          %p766 = pneg %p299
        $region130: #{tpu_custom_call.1} parent=87 // pred_check_branch
          %768 = sbr.rel (%p766) target = $region132
        $region131: #{tpu_custom_call.1} parent=87 // pred_region
          %769 = dma.done [#allocation18], 32
        $region132: #{tpu_custom_call.1} parent=87 // pred_fallthru
          _
        // Predicated region
        $region133: #{tpu_custom_call.1} parent=87 // pred_check
          %p770 = pneg %p320
        $region134: #{tpu_custom_call.1} parent=87 // pred_check_branch
          %772 = sbr.rel (%p770) target = $region136
        $region135: #{tpu_custom_call.1} parent=87 // pred_region
          %773 = dma.done [#allocation21], 4096
        $region136: #{tpu_custom_call.1} parent=87 // pred_fallthru
          _
        // Predicated region
        $region137: #{tpu_custom_call.1} parent=87 // pred_check
          %p774 = pneg %p341
        $region138: #{tpu_custom_call.1} parent=87 // pred_check_branch
          %776 = sbr.rel (%p774) target = $region140
        $region139: #{tpu_custom_call.1} parent=87 // pred_region
          %777 = dma.done [#allocation21], 32
        $region140: #{tpu_custom_call.1} parent=87 // pred_fallthru
          _
        // Predicated region
        $region141: #{tpu_custom_call.1} parent=87 // pred_check
          %p778 = pneg %p362
        $region142: #{tpu_custom_call.1} parent=87 // pred_check_branch
          %780 = sbr.rel (%p778) target = $region144
        $region143: #{tpu_custom_call.1} parent=87 // pred_region
          %781 = dma.done [#allocation24], 16384
        $region144: #{tpu_custom_call.1} parent=87 // pred_fallthru
          _
        // Predicated region
        $region145: #{tpu_custom_call.1} parent=87 // pred_check
          %p782 = pneg %p383
        $region146: #{tpu_custom_call.1} parent=87 // pred_check_branch
          %784 = sbr.rel (%p782) target = $region148
        $region147: #{tpu_custom_call.1} parent=87 // pred_region
          %785 = dma.done [#allocation24], 128
        $region148: #{tpu_custom_call.1} parent=87 // pred_fallthru
          _
        // Predicated region
        $region149: #{tpu_custom_call.1} parent=87 // pred_check
          %p786 = pneg %p404
        $region150: #{tpu_custom_call.1} parent=87 // pred_check_branch
          %788 = sbr.rel (%p786) target = $region152
        $region151: #{tpu_custom_call.1} parent=87 // pred_region
          %789 = dma.done [#allocation27], 16384
        $region152: #{tpu_custom_call.1} parent=87 // pred_fallthru
          _
        // Predicated region
        $region153: #{tpu_custom_call.1} parent=87 // pred_check
          %p790 = pneg %p425
        $region154: #{tpu_custom_call.1} parent=87 // pred_check_branch
          %792 = sbr.rel (%p790) target = $region156
        $region155: #{tpu_custom_call.1} parent=87 // pred_region
          %793 = dma.done [#allocation27], 32
        $region156: #{tpu_custom_call.1} parent=87 // pred_fallthru
          _
        %s794 = sand.u32 %s64, 1
        %s795 = scalar_lea.sflag [#allocation3], %s794
        %s796 = sand.u32 %s64, 1
        %s797 = smul.addr %s796, 128
        %s798 = scalar_lea.vmem [#allocation2], %s797
        %p799 = pneg %p77
        %p800 = pneg %p74
        %s801 = sand.u32 %s44, 1
        %s802 = scalar_lea.sflag [#allocation6], %s801
        %s803 = sand.u32 %s92, 1
        %s804 = smul.addr %s803, 64
        %s805 = scalar_lea.vmem [#allocation5], %s804
        %p806 = pneg %p105
        %p807 = pneg %p102
        %s808 = sand.u32 %s44, 1
        %s809 = scalar_lea.sflag [#allocation6], %s808
        %s810 = sand.u32 %s118, 1
        %s811 = smul.addr %s810, 2
        %s812 = scalar_lea.vmem [#allocation7], %s811
        %p813 = pneg %p131
        %p814 = pneg %p128
        %p815 = pneg %p152
        %p816 = pneg %p149
        %p817 = pneg %p173
        %p818 = pneg %p170
        %p819 = pneg %p194
        %p820 = pneg %p191
        %p821 = pneg %p215
        %p822 = pneg %p212
        %p823 = pneg %p236
        %p824 = pneg %p233
        %p825 = pneg %p257
        %p826 = pneg %p254
        %p827 = pneg %p278
        %p828 = pneg %p275
        %p829 = pneg %p299
        %p830 = pneg %p296
        %p831 = pneg %p320
        %p832 = pneg %p317
        %p833 = pneg %p341
        %p834 = pneg %p338
        %p835 = pneg %p362
        %p836 = pneg %p359
        %p837 = pneg %p383
        %p838 = pneg %p380
        %p839 = pneg %p404
        %p840 = pneg %p401
        %p841 = pneg %p425
        %p842 = pneg %p422
        %p843 = pneg %p453
        %p844 = pneg %p450
        %s845 = sand.u32 %s440, 1
        %s846 = scalar_lea.sflag [#allocation4], %s845
        %s847 = sand.u32 %s440, 1
        %s848 = smul.addr %s847, 64
        %s849 = scalar_lea.vmem [#allocation29], %s848
        %s850 = smul.u32 4, %s49
        %s851 = smul.u32 4, %s49
        %v853 = vld [vmem:[%s715] sm:$0xff]
        %v854 = vld [vmem:[%s715 + $0x8] sm:$0xff]
        %v855 = vld [vmem:[%s715 + $0x10] sm:$0xff]
        %v856 = vld [vmem:[%s715 + $0x18] sm:$0xff]
        %v857 = vld [vmem:[%s715 + $0x20] sm:$0xff]
        %v858 = vld [vmem:[%s715 + $0x28] sm:$0xff]
        %v859 = vld [vmem:[%s715 + $0x30] sm:$0xff]
        %v860 = vld [vmem:[%s715 + $0x38] sm:$0xff]
        %v861 = vld [vmem:[%s715 + $0x40] sm:$0xff]
        %v862 = vld [vmem:[%s715 + $0x48] sm:$0xff]
        %v863 = vld [vmem:[%s715 + $0x50] sm:$0xff]
        %v864 = vld [vmem:[%s715 + $0x58] sm:$0xff]
        %v865 = vld [vmem:[%s715 + $0x60] sm:$0xff]
        %v866 = vld [vmem:[%s715 + $0x68] sm:$0xff]
        %v867 = vld [vmem:[%s715 + $0x70] sm:$0xff]
        %v868 = vld [vmem:[%s715 + $0x78] sm:$0xff]
        %v869 = vld [vmem:[%s724] sm:$0xff]
        %v870 = vld [vmem:[%s724 + $0x8] sm:$0xff]
        %v871 = vld [vmem:[%s724 + $0x10] sm:$0xff]
        %v872 = vld [vmem:[%s724 + $0x18] sm:$0xff]
        %v873 = vld [vmem:[%s724 + $0x20] sm:$0xff]
        %v874 = vld [vmem:[%s724 + $0x28] sm:$0xff]
        %v875 = vld [vmem:[%s724 + $0x30] sm:$0xff]
        %v876 = vld [vmem:[%s724 + $0x38] sm:$0xff]
        %v877 = vld [vmem:[%s733] sm:$0x3]
        %v878 = vsub.f32 0.0, %v877
        %v879 = vmul.f32 %v878, 1.442695
        %v880 = vpow.pop %v879
        %v881 = vadd.f32 %v880, 1.0
        %v882 = vrcp.pop %v881
        %v883 = vmul.f32 %v877, %v882
        %v885 = vlaneseq
        %v886 = vshrl.u32 %v885, 7
        %v887 = vsub.s32 0, %v886
        %v888 = vrot.slane %v883, %v887
        %v889 = vlaneseq
        %v890 = vshrl.u32 %v889, 7
        %v891 = vsub.s32 1, %v890
        %v892 = vrot.slane %v883, %v891
        %v895 = vpack.c.bf16 %v888, %v888
        %v896 = vpack.c.bf16 %v892, %v892
        %v897 = vld [vmem:[#allocation8] sm:$0xff]
        %v898 = vld [vmem:[#allocation8 + $0x8] sm:$0xff]
        %v899 = vld [vmem:[#allocation8 + $0x10] sm:$0xff]
        %v900 = vld [vmem:[#allocation8 + $0x18] sm:$0xff]
        %v901 = vld [vmem:[#allocation8 + $0x20] sm:$0xff]
        %v902 = vld [vmem:[#allocation8 + $0x28] sm:$0xff]
        %v903 = vld [vmem:[#allocation8 + $0x30] sm:$0xff]
        %v904 = vld [vmem:[#allocation8 + $0x38] sm:$0xff]
        %v905 = vld [vmem:[#allocation8 + $0x40] sm:$0xff]
        %v906 = vld [vmem:[#allocation8 + $0x48] sm:$0xff]
        %v907 = vld [vmem:[#allocation8 + $0x50] sm:$0xff]
        %v908 = vld [vmem:[#allocation8 + $0x58] sm:$0xff]
        %v909 = vld [vmem:[#allocation8 + $0x60] sm:$0xff]
        %v910 = vld [vmem:[#allocation8 + $0x68] sm:$0xff]
        %v911 = vld [vmem:[#allocation8 + $0x70] sm:$0xff]
        %v912 = vld [vmem:[#allocation8 + $0x78] sm:$0xff]
        %v913 = vld [vmem:[#allocation8 + $0x80] sm:$0xff]
        %v914 = vld [vmem:[#allocation8 + $0x88] sm:$0xff]
        %v915 = vld [vmem:[#allocation8 + $0x90] sm:$0xff]
        %v916 = vld [vmem:[#allocation8 + $0x98] sm:$0xff]
        %v917 = vld [vmem:[#allocation8 + $0xa0] sm:$0xff]
        %v918 = vld [vmem:[#allocation8 + $0xa8] sm:$0xff]
        %v919 = vld [vmem:[#allocation8 + $0xb0] sm:$0xff]
        %v920 = vld [vmem:[#allocation8 + $0xb8] sm:$0xff]
        %v921 = vld [vmem:[#allocation8 + $0xc0] sm:$0xff]
        %v922 = vld [vmem:[#allocation8 + $0xc8] sm:$0xff]
        %v923 = vld [vmem:[#allocation8 + $0xd0] sm:$0xff]
        %v924 = vld [vmem:[#allocation8 + $0xd8] sm:$0xff]
        %v925 = vld [vmem:[#allocation8 + $0xe0] sm:$0xff]
        %v926 = vld [vmem:[#allocation8 + $0xe8] sm:$0xff]
        %v927 = vld [vmem:[#allocation8 + $0xf0] sm:$0xff]
        %v928 = vld [vmem:[#allocation8 + $0xf8] sm:$0xff]
        %v929 = vld [vmem:[#allocation8 + $0x100] sm:$0xff]
        %v930 = vld [vmem:[#allocation8 + $0x108] sm:$0xff]
        %v931 = vld [vmem:[#allocation8 + $0x110] sm:$0xff]
        %v932 = vld [vmem:[#allocation8 + $0x118] sm:$0xff]
        %v933 = vld [vmem:[#allocation8 + $0x120] sm:$0xff]
        %v934 = vld [vmem:[#allocation8 + $0x128] sm:$0xff]
        %v935 = vld [vmem:[#allocation8 + $0x130] sm:$0xff]
        %v936 = vld [vmem:[#allocation8 + $0x138] sm:$0xff]
        %v937 = vld [vmem:[#allocation8 + $0x140] sm:$0xff]
        %v938 = vld [vmem:[#allocation8 + $0x148] sm:$0xff]
        %v939 = vld [vmem:[#allocation8 + $0x150] sm:$0xff]
        %v940 = vld [vmem:[#allocation8 + $0x158] sm:$0xff]
        %v941 = vld [vmem:[#allocation8 + $0x160] sm:$0xff]
        %v942 = vld [vmem:[#allocation8 + $0x168] sm:$0xff]
        %v943 = vld [vmem:[#allocation8 + $0x170] sm:$0xff]
        %v944 = vld [vmem:[#allocation8 + $0x178] sm:$0xff]
        %v945 = vld [vmem:[#allocation8 + $0x180] sm:$0xff]
        %v946 = vld [vmem:[#allocation8 + $0x188] sm:$0xff]
        %v947 = vld [vmem:[#allocation8 + $0x190] sm:$0xff]
        %v948 = vld [vmem:[#allocation8 + $0x198] sm:$0xff]
        %v949 = vld [vmem:[#allocation8 + $0x1a0] sm:$0xff]
        %v950 = vld [vmem:[#allocation8 + $0x1a8] sm:$0xff]
        %v951 = vld [vmem:[#allocation8 + $0x1b0] sm:$0xff]
        %v952 = vld [vmem:[#allocation8 + $0x1b8] sm:$0xff]
        %v953 = vld [vmem:[#allocation8 + $0x1c0] sm:$0xff]
        %v954 = vld [vmem:[#allocation8 + $0x1c8] sm:$0xff]
        %v955 = vld [vmem:[#allocation8 + $0x1d0] sm:$0xff]
        %v956 = vld [vmem:[#allocation8 + $0x1d8] sm:$0xff]
        %v957 = vld [vmem:[#allocation8 + $0x1e0] sm:$0xff]
        %v958 = vld [vmem:[#allocation8 + $0x1e8] sm:$0xff]
        %v959 = vld [vmem:[#allocation8 + $0x1f0] sm:$0xff]
        %v960 = vld [vmem:[#allocation8 + $0x1f8] sm:$0xff]
        %v961 = vld [vmem:[#allocation8 + $0x200] sm:$0xff]
        %v962 = vld [vmem:[#allocation8 + $0x208] sm:$0xff]
        %v963 = vld [vmem:[#allocation8 + $0x210] sm:$0xff]
        %v964 = vld [vmem:[#allocation8 + $0x218] sm:$0xff]
        %v965 = vld [vmem:[#allocation8 + $0x220] sm:$0xff]
        %v966 = vld [vmem:[#allocation8 + $0x228] sm:$0xff]
        %v967 = vld [vmem:[#allocation8 + $0x230] sm:$0xff]
        %v968 = vld [vmem:[#allocation8 + $0x238] sm:$0xff]
        %v969 = vld [vmem:[#allocation8 + $0x240] sm:$0xff]
        %v970 = vld [vmem:[#allocation8 + $0x248] sm:$0xff]
        %v971 = vld [vmem:[#allocation8 + $0x250] sm:$0xff]
        %v972 = vld [vmem:[#allocation8 + $0x258] sm:$0xff]
        %v973 = vld [vmem:[#allocation8 + $0x260] sm:$0xff]
        %v974 = vld [vmem:[#allocation8 + $0x268] sm:$0xff]
        %v975 = vld [vmem:[#allocation8 + $0x270] sm:$0xff]
        %v976 = vld [vmem:[#allocation8 + $0x278] sm:$0xff]
        %v977 = vld [vmem:[#allocation8 + $0x280] sm:$0xff]
        %v978 = vld [vmem:[#allocation8 + $0x288] sm:$0xff]
        %v979 = vld [vmem:[#allocation8 + $0x290] sm:$0xff]
        %v980 = vld [vmem:[#allocation8 + $0x298] sm:$0xff]
        %v981 = vld [vmem:[#allocation8 + $0x2a0] sm:$0xff]
        %v982 = vld [vmem:[#allocation8 + $0x2a8] sm:$0xff]
        %v983 = vld [vmem:[#allocation8 + $0x2b0] sm:$0xff]
        %v984 = vld [vmem:[#allocation8 + $0x2b8] sm:$0xff]
        %v985 = vld [vmem:[#allocation8 + $0x2c0] sm:$0xff]
        %v986 = vld [vmem:[#allocation8 + $0x2c8] sm:$0xff]
        %v987 = vld [vmem:[#allocation8 + $0x2d0] sm:$0xff]
        %v988 = vld [vmem:[#allocation8 + $0x2d8] sm:$0xff]
        %v989 = vld [vmem:[#allocation8 + $0x2e0] sm:$0xff]
        %v990 = vld [vmem:[#allocation8 + $0x2e8] sm:$0xff]
        %v991 = vld [vmem:[#allocation8 + $0x2f0] sm:$0xff]
        %v992 = vld [vmem:[#allocation8 + $0x2f8] sm:$0xff]
        %v993 = vld [vmem:[#allocation8 + $0x300] sm:$0xff]
        %v994 = vld [vmem:[#allocation8 + $0x308] sm:$0xff]
        %v995 = vld [vmem:[#allocation8 + $0x310] sm:$0xff]
        %v996 = vld [vmem:[#allocation8 + $0x318] sm:$0xff]
        %v997 = vld [vmem:[#allocation8 + $0x320] sm:$0xff]
        %v998 = vld [vmem:[#allocation8 + $0x328] sm:$0xff]
        %v999 = vld [vmem:[#allocation8 + $0x330] sm:$0xff]
        %v1000 = vld [vmem:[#allocation8 + $0x338] sm:$0xff]
        %v1001 = vld [vmem:[#allocation8 + $0x340] sm:$0xff]
        %v1002 = vld [vmem:[#allocation8 + $0x348] sm:$0xff]
        %v1003 = vld [vmem:[#allocation8 + $0x350] sm:$0xff]
        %v1004 = vld [vmem:[#allocation8 + $0x358] sm:$0xff]
        %v1005 = vld [vmem:[#allocation8 + $0x360] sm:$0xff]
        %v1006 = vld [vmem:[#allocation8 + $0x368] sm:$0xff]
        %v1007 = vld [vmem:[#allocation8 + $0x370] sm:$0xff]
        %v1008 = vld [vmem:[#allocation8 + $0x378] sm:$0xff]
        %v1009 = vld [vmem:[#allocation8 + $0x380] sm:$0xff]
        %v1010 = vld [vmem:[#allocation8 + $0x388] sm:$0xff]
        %v1011 = vld [vmem:[#allocation8 + $0x390] sm:$0xff]
        %v1012 = vld [vmem:[#allocation8 + $0x398] sm:$0xff]
        %v1013 = vld [vmem:[#allocation8 + $0x3a0] sm:$0xff]
        %v1014 = vld [vmem:[#allocation8 + $0x3a8] sm:$0xff]
        %v1015 = vld [vmem:[#allocation8 + $0x3b0] sm:$0xff]
        %v1016 = vld [vmem:[#allocation8 + $0x3b8] sm:$0xff]
        %v1017 = vld [vmem:[#allocation8 + $0x3c0] sm:$0xff]
        %v1018 = vld [vmem:[#allocation8 + $0x3c8] sm:$0xff]
        %v1019 = vld [vmem:[#allocation8 + $0x3d0] sm:$0xff]
        %v1020 = vld [vmem:[#allocation8 + $0x3d8] sm:$0xff]
        %v1021 = vld [vmem:[#allocation8 + $0x3e0] sm:$0xff]
        %v1022 = vld [vmem:[#allocation8 + $0x3e8] sm:$0xff]
        %v1023 = vld [vmem:[#allocation8 + $0x3f0] sm:$0xff]
        %v1024 = vld [vmem:[#allocation8 + $0x3f8] sm:$0xff]
        %v1025 = vld [vmem:[#allocation8 + $0x400] sm:$0xff]
        %v1026 = vld [vmem:[#allocation8 + $0x408] sm:$0xff]
        %v1027 = vld [vmem:[#allocation8 + $0x410] sm:$0xff]
        %v1028 = vld [vmem:[#allocation8 + $0x418] sm:$0xff]
        %v1029 = vld [vmem:[#allocation8 + $0x420] sm:$0xff]
        %v1030 = vld [vmem:[#allocation8 + $0x428] sm:$0xff]
        %v1031 = vld [vmem:[#allocation8 + $0x430] sm:$0xff]
        %v1032 = vld [vmem:[#allocation8 + $0x438] sm:$0xff]
        %v1033 = vld [vmem:[#allocation8 + $0x440] sm:$0xff]
        %v1034 = vld [vmem:[#allocation8 + $0x448] sm:$0xff]
        %v1035 = vld [vmem:[#allocation8 + $0x450] sm:$0xff]
        %v1036 = vld [vmem:[#allocation8 + $0x458] sm:$0xff]
        %v1037 = vld [vmem:[#allocation8 + $0x460] sm:$0xff]
        %v1038 = vld [vmem:[#allocation8 + $0x468] sm:$0xff]
        %v1039 = vld [vmem:[#allocation8 + $0x470] sm:$0xff]
        %v1040 = vld [vmem:[#allocation8 + $0x478] sm:$0xff]
        %v1041 = vld [vmem:[#allocation8 + $0x480] sm:$0xff]
        %v1042 = vld [vmem:[#allocation8 + $0x488] sm:$0xff]
        %v1043 = vld [vmem:[#allocation8 + $0x490] sm:$0xff]
        %v1044 = vld [vmem:[#allocation8 + $0x498] sm:$0xff]
        %v1045 = vld [vmem:[#allocation8 + $0x4a0] sm:$0xff]
        %v1046 = vld [vmem:[#allocation8 + $0x4a8] sm:$0xff]
        %v1047 = vld [vmem:[#allocation8 + $0x4b0] sm:$0xff]
        %v1048 = vld [vmem:[#allocation8 + $0x4b8] sm:$0xff]
        %v1049 = vld [vmem:[#allocation8 + $0x4c0] sm:$0xff]
        %v1050 = vld [vmem:[#allocation8 + $0x4c8] sm:$0xff]
        %v1051 = vld [vmem:[#allocation8 + $0x4d0] sm:$0xff]
        %v1052 = vld [vmem:[#allocation8 + $0x4d8] sm:$0xff]
        %v1053 = vld [vmem:[#allocation8 + $0x4e0] sm:$0xff]
        %v1054 = vld [vmem:[#allocation8 + $0x4e8] sm:$0xff]
        %v1055 = vld [vmem:[#allocation8 + $0x4f0] sm:$0xff]
        %v1056 = vld [vmem:[#allocation8 + $0x4f8] sm:$0xff]
        %v1057 = vld [vmem:[#allocation8 + $0x500] sm:$0xff]
        %v1058 = vld [vmem:[#allocation8 + $0x508] sm:$0xff]
        %v1059 = vld [vmem:[#allocation8 + $0x510] sm:$0xff]
        %v1060 = vld [vmem:[#allocation8 + $0x518] sm:$0xff]
        %v1061 = vld [vmem:[#allocation8 + $0x520] sm:$0xff]
        %v1062 = vld [vmem:[#allocation8 + $0x528] sm:$0xff]
        %v1063 = vld [vmem:[#allocation8 + $0x530] sm:$0xff]
        %v1064 = vld [vmem:[#allocation8 + $0x538] sm:$0xff]
        %v1065 = vld [vmem:[#allocation8 + $0x540] sm:$0xff]
        %v1066 = vld [vmem:[#allocation8 + $0x548] sm:$0xff]
        %v1067 = vld [vmem:[#allocation8 + $0x550] sm:$0xff]
        %v1068 = vld [vmem:[#allocation8 + $0x558] sm:$0xff]
        %v1069 = vld [vmem:[#allocation8 + $0x560] sm:$0xff]
        %v1070 = vld [vmem:[#allocation8 + $0x568] sm:$0xff]
        %v1071 = vld [vmem:[#allocation8 + $0x570] sm:$0xff]
        %v1072 = vld [vmem:[#allocation8 + $0x578] sm:$0xff]
        %v1073 = vld [vmem:[#allocation8 + $0x580] sm:$0xff]
        %v1074 = vld [vmem:[#allocation8 + $0x588] sm:$0xff]
        %v1075 = vld [vmem:[#allocation8 + $0x590] sm:$0xff]
        %v1076 = vld [vmem:[#allocation8 + $0x598] sm:$0xff]
        %v1077 = vld [vmem:[#allocation8 + $0x5a0] sm:$0xff]
        %v1078 = vld [vmem:[#allocation8 + $0x5a8] sm:$0xff]
        %v1079 = vld [vmem:[#allocation8 + $0x5b0] sm:$0xff]
        %v1080 = vld [vmem:[#allocation8 + $0x5b8] sm:$0xff]
        %v1081 = vld [vmem:[#allocation8 + $0x5c0] sm:$0xff]
        %v1082 = vld [vmem:[#allocation8 + $0x5c8] sm:$0xff]
        %v1083 = vld [vmem:[#allocation8 + $0x5d0] sm:$0xff]
        %v1084 = vld [vmem:[#allocation8 + $0x5d8] sm:$0xff]
        %v1085 = vld [vmem:[#allocation8 + $0x5e0] sm:$0xff]
        %v1086 = vld [vmem:[#allocation8 + $0x5e8] sm:$0xff]
        %v1087 = vld [vmem:[#allocation8 + $0x5f0] sm:$0xff]
        %v1088 = vld [vmem:[#allocation8 + $0x5f8] sm:$0xff]
        %v1089 = vld [vmem:[#allocation10] sm:$0xff]
        %v1090 = vld [vmem:[#allocation10 + $0x8] sm:$0xf]
        %v1283 = vunpack.c.l.b16 %v897
        %v1284 = vunpack.c.h.b16 %v897
        %v1285 = vunpack.c.l.b16 %v898
        %v1286 = vunpack.c.h.b16 %v898
        %v1287 = vunpack.c.l.b16 %v899
        %v1288 = vunpack.c.h.b16 %v899
        %v1289 = vunpack.c.l.b16 %v900
        %v1290 = vunpack.c.h.b16 %v900
        %v1291 = vunpack.c.l.b16 %v901
        %v1292 = vunpack.c.h.b16 %v901
        %v1293 = vunpack.c.l.b16 %v902
        %v1294 = vunpack.c.h.b16 %v902
        %v1295 = vunpack.c.l.b16 %v903
        %v1296 = vunpack.c.h.b16 %v903
        %v1297 = vunpack.c.l.b16 %v904
        %v1298 = vunpack.c.h.b16 %v904
        %v1299 = vunpack.c.l.b16 %v905
        %v1300 = vunpack.c.h.b16 %v905
        %v1301 = vunpack.c.l.b16 %v906
        %v1302 = vunpack.c.h.b16 %v906
        %v1303 = vunpack.c.l.b16 %v907
        %v1304 = vunpack.c.h.b16 %v907
        %v1305 = vunpack.c.l.b16 %v908
        %v1306 = vunpack.c.h.b16 %v908
        %v1307 = vunpack.c.l.b16 %v909
        %v1308 = vunpack.c.h.b16 %v909
        %v1309 = vunpack.c.l.b16 %v910
        %v1310 = vunpack.c.h.b16 %v910
        %v1311 = vunpack.c.l.b16 %v911
        %v1312 = vunpack.c.h.b16 %v911
        %v1313 = vunpack.c.l.b16 %v912
        %v1314 = vunpack.c.h.b16 %v912
        %v1315 = vunpack.c.l.b16 %v913
        %v1316 = vunpack.c.h.b16 %v913
        %v1317 = vunpack.c.l.b16 %v914
        %v1318 = vunpack.c.h.b16 %v914
        %v1319 = vunpack.c.l.b16 %v915
        %v1320 = vunpack.c.h.b16 %v915
        %v1321 = vunpack.c.l.b16 %v916
        %v1322 = vunpack.c.h.b16 %v916
        %v1323 = vunpack.c.l.b16 %v917
        %v1324 = vunpack.c.h.b16 %v917
        %v1325 = vunpack.c.l.b16 %v918
        %v1326 = vunpack.c.h.b16 %v918
        %v1327 = vunpack.c.l.b16 %v919
        %v1328 = vunpack.c.h.b16 %v919
        %v1329 = vunpack.c.l.b16 %v920
        %v1330 = vunpack.c.h.b16 %v920
        %v1331 = vunpack.c.l.b16 %v921
        %v1332 = vunpack.c.h.b16 %v921
        %v1333 = vunpack.c.l.b16 %v922
        %v1334 = vunpack.c.h.b16 %v922
        %v1335 = vunpack.c.l.b16 %v923
        %v1336 = vunpack.c.h.b16 %v923
        %v1337 = vunpack.c.l.b16 %v924
        %v1338 = vunpack.c.h.b16 %v924
        %v1339 = vunpack.c.l.b16 %v925
        %v1340 = vunpack.c.h.b16 %v925
        %v1341 = vunpack.c.l.b16 %v926
        %v1342 = vunpack.c.h.b16 %v926
        %v1343 = vunpack.c.l.b16 %v927
        %v1344 = vunpack.c.h.b16 %v927
        %v1345 = vunpack.c.l.b16 %v928
        %v1346 = vunpack.c.h.b16 %v928
        %v1347 = vunpack.c.l.b16 %v929
        %v1348 = vunpack.c.h.b16 %v929
        %v1349 = vunpack.c.l.b16 %v930
        %v1350 = vunpack.c.h.b16 %v930
        %v1351 = vunpack.c.l.b16 %v931
        %v1352 = vunpack.c.h.b16 %v931
        %v1353 = vunpack.c.l.b16 %v932
        %v1354 = vunpack.c.h.b16 %v932
        %v1355 = vunpack.c.l.b16 %v933
        %v1356 = vunpack.c.h.b16 %v933
        %v1357 = vunpack.c.l.b16 %v934
        %v1358 = vunpack.c.h.b16 %v934
        %v1359 = vunpack.c.l.b16 %v935
        %v1360 = vunpack.c.h.b16 %v935
        %v1361 = vunpack.c.l.b16 %v936
        %v1362 = vunpack.c.h.b16 %v936
        %v1363 = vunpack.c.l.b16 %v937
        %v1364 = vunpack.c.h.b16 %v937
        %v1365 = vunpack.c.l.b16 %v938
        %v1366 = vunpack.c.h.b16 %v938
        %v1367 = vunpack.c.l.b16 %v939
        %v1368 = vunpack.c.h.b16 %v939
        %v1369 = vunpack.c.l.b16 %v940
        %v1370 = vunpack.c.h.b16 %v940
        %v1371 = vunpack.c.l.b16 %v941
        %v1372 = vunpack.c.h.b16 %v941
        %v1373 = vunpack.c.l.b16 %v942
        %v1374 = vunpack.c.h.b16 %v942
        %v1375 = vunpack.c.l.b16 %v943
        %v1376 = vunpack.c.h.b16 %v943
        %v1377 = vunpack.c.l.b16 %v944
        %v1378 = vunpack.c.h.b16 %v944
        %v1379 = vunpack.c.l.b16 %v945
        %v1380 = vunpack.c.h.b16 %v945
        %v1381 = vunpack.c.l.b16 %v946
        %v1382 = vunpack.c.h.b16 %v946
        %v1383 = vunpack.c.l.b16 %v947
        %v1384 = vunpack.c.h.b16 %v947
        %v1385 = vunpack.c.l.b16 %v948
        %v1386 = vunpack.c.h.b16 %v948
        %v1387 = vunpack.c.l.b16 %v949
        %v1388 = vunpack.c.h.b16 %v949
        %v1389 = vunpack.c.l.b16 %v950
        %v1390 = vunpack.c.h.b16 %v950
        %v1391 = vunpack.c.l.b16 %v951
        %v1392 = vunpack.c.h.b16 %v951
        %v1393 = vunpack.c.l.b16 %v952
        %v1394 = vunpack.c.h.b16 %v952
        %v1395 = vunpack.c.l.b16 %v953
        %v1396 = vunpack.c.h.b16 %v953
        %v1397 = vunpack.c.l.b16 %v954
        %v1398 = vunpack.c.h.b16 %v954
        %v1399 = vunpack.c.l.b16 %v955
        %v1400 = vunpack.c.h.b16 %v955
        %v1401 = vunpack.c.l.b16 %v956
        %v1402 = vunpack.c.h.b16 %v956
        %v1403 = vunpack.c.l.b16 %v957
        %v1404 = vunpack.c.h.b16 %v957
        %v1405 = vunpack.c.l.b16 %v958
        %v1406 = vunpack.c.h.b16 %v958
        %v1407 = vunpack.c.l.b16 %v959
        %v1408 = vunpack.c.h.b16 %v959
        %v1409 = vunpack.c.l.b16 %v960
        %v1410 = vunpack.c.h.b16 %v960
        %v1411 = vunpack.c.l.b16 %v961
        %v1412 = vunpack.c.h.b16 %v961
        %v1413 = vunpack.c.l.b16 %v962
        %v1414 = vunpack.c.h.b16 %v962
        %v1415 = vunpack.c.l.b16 %v963
        %v1416 = vunpack.c.h.b16 %v963
        %v1417 = vunpack.c.l.b16 %v964
        %v1418 = vunpack.c.h.b16 %v964
        %v1419 = vunpack.c.l.b16 %v965
        %v1420 = vunpack.c.h.b16 %v965
        %v1421 = vunpack.c.l.b16 %v966
        %v1422 = vunpack.c.h.b16 %v966
        %v1423 = vunpack.c.l.b16 %v967
        %v1424 = vunpack.c.h.b16 %v967
        %v1425 = vunpack.c.l.b16 %v968
        %v1426 = vunpack.c.h.b16 %v968
        %v1427 = vunpack.c.l.b16 %v969
        %v1428 = vunpack.c.h.b16 %v969
        %v1429 = vunpack.c.l.b16 %v970
        %v1430 = vunpack.c.h.b16 %v970
        %v1431 = vunpack.c.l.b16 %v971
        %v1432 = vunpack.c.h.b16 %v971
        %v1433 = vunpack.c.l.b16 %v972
        %v1434 = vunpack.c.h.b16 %v972
        %v1435 = vunpack.c.l.b16 %v973
        %v1436 = vunpack.c.h.b16 %v973
        %v1437 = vunpack.c.l.b16 %v974
        %v1438 = vunpack.c.h.b16 %v974
        %v1439 = vunpack.c.l.b16 %v975
        %v1440 = vunpack.c.h.b16 %v975
        %v1441 = vunpack.c.l.b16 %v976
        %v1442 = vunpack.c.h.b16 %v976
        %v1443 = vunpack.c.l.b16 %v977
        %v1444 = vunpack.c.h.b16 %v977
        %v1445 = vunpack.c.l.b16 %v978
        %v1446 = vunpack.c.h.b16 %v978
        %v1447 = vunpack.c.l.b16 %v979
        %v1448 = vunpack.c.h.b16 %v979
        %v1449 = vunpack.c.l.b16 %v980
        %v1450 = vunpack.c.h.b16 %v980
        %v1451 = vunpack.c.l.b16 %v981
        %v1452 = vunpack.c.h.b16 %v981
        %v1453 = vunpack.c.l.b16 %v982
        %v1454 = vunpack.c.h.b16 %v982
        %v1455 = vunpack.c.l.b16 %v983
        %v1456 = vunpack.c.h.b16 %v983
        %v1457 = vunpack.c.l.b16 %v984
        %v1458 = vunpack.c.h.b16 %v984
        %v1459 = vunpack.c.l.b16 %v985
        %v1460 = vunpack.c.h.b16 %v985
        %v1461 = vunpack.c.l.b16 %v986
        %v1462 = vunpack.c.h.b16 %v986
        %v1463 = vunpack.c.l.b16 %v987
        %v1464 = vunpack.c.h.b16 %v987
        %v1465 = vunpack.c.l.b16 %v988
        %v1466 = vunpack.c.h.b16 %v988
        %v1467 = vunpack.c.l.b16 %v989
        %v1468 = vunpack.c.h.b16 %v989
        %v1469 = vunpack.c.l.b16 %v990
        %v1470 = vunpack.c.h.b16 %v990
        %v1471 = vunpack.c.l.b16 %v991
        %v1472 = vunpack.c.h.b16 %v991
        %v1473 = vunpack.c.l.b16 %v992
        %v1474 = vunpack.c.h.b16 %v992
        %v1475 = vunpack.c.l.b16 %v993
        %v1476 = vunpack.c.h.b16 %v993
        %v1477 = vunpack.c.l.b16 %v994
        %v1478 = vunpack.c.h.b16 %v994
        %v1479 = vunpack.c.l.b16 %v995
        %v1480 = vunpack.c.h.b16 %v995
        %v1481 = vunpack.c.l.b16 %v996
        %v1482 = vunpack.c.h.b16 %v996
        %v1483 = vunpack.c.l.b16 %v997
        %v1484 = vunpack.c.h.b16 %v997
        %v1485 = vunpack.c.l.b16 %v998
        %v1486 = vunpack.c.h.b16 %v998
        %v1487 = vunpack.c.l.b16 %v999
        %v1488 = vunpack.c.h.b16 %v999
        %v1489 = vunpack.c.l.b16 %v1000
        %v1490 = vunpack.c.h.b16 %v1000
        %v1491 = vunpack.c.l.b16 %v1001
        %v1492 = vunpack.c.h.b16 %v1001
        %v1493 = vunpack.c.l.b16 %v1002
        %v1494 = vunpack.c.h.b16 %v1002
        %v1495 = vunpack.c.l.b16 %v1003
        %v1496 = vunpack.c.h.b16 %v1003
        %v1497 = vunpack.c.l.b16 %v1004
        %v1498 = vunpack.c.h.b16 %v1004
        %v1499 = vunpack.c.l.b16 %v1005
        %v1500 = vunpack.c.h.b16 %v1005
        %v1501 = vunpack.c.l.b16 %v1006
        %v1502 = vunpack.c.h.b16 %v1006
        %v1503 = vunpack.c.l.b16 %v1007
        %v1504 = vunpack.c.h.b16 %v1007
        %v1505 = vunpack.c.l.b16 %v1008
        %v1506 = vunpack.c.h.b16 %v1008
        %v1507 = vunpack.c.l.b16 %v1009
        %v1508 = vunpack.c.h.b16 %v1009
        %v1509 = vunpack.c.l.b16 %v1010
        %v1510 = vunpack.c.h.b16 %v1010
        %v1511 = vunpack.c.l.b16 %v1011
        %v1512 = vunpack.c.h.b16 %v1011
        %v1513 = vunpack.c.l.b16 %v1012
        %v1514 = vunpack.c.h.b16 %v1012
        %v1515 = vunpack.c.l.b16 %v1013
        %v1516 = vunpack.c.h.b16 %v1013
        %v1517 = vunpack.c.l.b16 %v1014
        %v1518 = vunpack.c.h.b16 %v1014
        %v1519 = vunpack.c.l.b16 %v1015
        %v1520 = vunpack.c.h.b16 %v1015
        %v1521 = vunpack.c.l.b16 %v1016
        %v1522 = vunpack.c.h.b16 %v1016
        %v1523 = vunpack.c.l.b16 %v1017
        %v1524 = vunpack.c.h.b16 %v1017
        %v1525 = vunpack.c.l.b16 %v1018
        %v1526 = vunpack.c.h.b16 %v1018
        %v1527 = vunpack.c.l.b16 %v1019
        %v1528 = vunpack.c.h.b16 %v1019
        %v1529 = vunpack.c.l.b16 %v1020
        %v1530 = vunpack.c.h.b16 %v1020
        %v1531 = vunpack.c.l.b16 %v1021
        %v1532 = vunpack.c.h.b16 %v1021
        %v1533 = vunpack.c.l.b16 %v1022
        %v1534 = vunpack.c.h.b16 %v1022
        %v1535 = vunpack.c.l.b16 %v1023
        %v1536 = vunpack.c.h.b16 %v1023
        %v1537 = vunpack.c.l.b16 %v1024
        %v1538 = vunpack.c.h.b16 %v1024
        %v1539 = vunpack.c.l.b16 %v1025
        %v1540 = vunpack.c.h.b16 %v1025
        %v1541 = vunpack.c.l.b16 %v1026
        %v1542 = vunpack.c.h.b16 %v1026
        %v1543 = vunpack.c.l.b16 %v1027
        %v1544 = vunpack.c.h.b16 %v1027
        %v1545 = vunpack.c.l.b16 %v1028
        %v1546 = vunpack.c.h.b16 %v1028
        %v1547 = vunpack.c.l.b16 %v1029
        %v1548 = vunpack.c.h.b16 %v1029
        %v1549 = vunpack.c.l.b16 %v1030
        %v1550 = vunpack.c.h.b16 %v1030
        %v1551 = vunpack.c.l.b16 %v1031
        %v1552 = vunpack.c.h.b16 %v1031
        %v1553 = vunpack.c.l.b16 %v1032
        %v1554 = vunpack.c.h.b16 %v1032
        %v1555 = vunpack.c.l.b16 %v1033
        %v1556 = vunpack.c.h.b16 %v1033
        %v1557 = vunpack.c.l.b16 %v1034
        %v1558 = vunpack.c.h.b16 %v1034
        %v1559 = vunpack.c.l.b16 %v1035
        %v1560 = vunpack.c.h.b16 %v1035
        %v1561 = vunpack.c.l.b16 %v1036
        %v1562 = vunpack.c.h.b16 %v1036
        %v1563 = vunpack.c.l.b16 %v1037
        %v1564 = vunpack.c.h.b16 %v1037
        %v1565 = vunpack.c.l.b16 %v1038
        %v1566 = vunpack.c.h.b16 %v1038
        %v1567 = vunpack.c.l.b16 %v1039
        %v1568 = vunpack.c.h.b16 %v1039
        %v1569 = vunpack.c.l.b16 %v1040
        %v1570 = vunpack.c.h.b16 %v1040
        %v1571 = vunpack.c.l.b16 %v1041
        %v1572 = vunpack.c.h.b16 %v1041
        %v1573 = vunpack.c.l.b16 %v1042
        %v1574 = vunpack.c.h.b16 %v1042
        %v1575 = vunpack.c.l.b16 %v1043
        %v1576 = vunpack.c.h.b16 %v1043
        %v1577 = vunpack.c.l.b16 %v1044
        %v1578 = vunpack.c.h.b16 %v1044
        %v1579 = vunpack.c.l.b16 %v1045
        %v1580 = vunpack.c.h.b16 %v1045
        %v1581 = vunpack.c.l.b16 %v1046
        %v1582 = vunpack.c.h.b16 %v1046
        %v1583 = vunpack.c.l.b16 %v1047
        %v1584 = vunpack.c.h.b16 %v1047
        %v1585 = vunpack.c.l.b16 %v1048
        %v1586 = vunpack.c.h.b16 %v1048
        %v1587 = vunpack.c.l.b16 %v1049
        %v1588 = vunpack.c.h.b16 %v1049
        %v1589 = vunpack.c.l.b16 %v1050
        %v1590 = vunpack.c.h.b16 %v1050
        %v1591 = vunpack.c.l.b16 %v1051
        %v1592 = vunpack.c.h.b16 %v1051
        %v1593 = vunpack.c.l.b16 %v1052
        %v1594 = vunpack.c.h.b16 %v1052
        %v1595 = vunpack.c.l.b16 %v1053
        %v1596 = vunpack.c.h.b16 %v1053
        %v1597 = vunpack.c.l.b16 %v1054
        %v1598 = vunpack.c.h.b16 %v1054
        %v1599 = vunpack.c.l.b16 %v1055
        %v1600 = vunpack.c.h.b16 %v1055
        %v1601 = vunpack.c.l.b16 %v1056
        %v1602 = vunpack.c.h.b16 %v1056
        %v1603 = vunpack.c.l.b16 %v1057
        %v1604 = vunpack.c.h.b16 %v1057
        %v1605 = vunpack.c.l.b16 %v1058
        %v1606 = vunpack.c.h.b16 %v1058
        %v1607 = vunpack.c.l.b16 %v1059
        %v1608 = vunpack.c.h.b16 %v1059
        %v1609 = vunpack.c.l.b16 %v1060
        %v1610 = vunpack.c.h.b16 %v1060
        %v1611 = vunpack.c.l.b16 %v1061
        %v1612 = vunpack.c.h.b16 %v1061
        %v1613 = vunpack.c.l.b16 %v1062
        %v1614 = vunpack.c.h.b16 %v1062
        %v1615 = vunpack.c.l.b16 %v1063
        %v1616 = vunpack.c.h.b16 %v1063
        %v1617 = vunpack.c.l.b16 %v1064
        %v1618 = vunpack.c.h.b16 %v1064
        %v1619 = vunpack.c.l.b16 %v1065
        %v1620 = vunpack.c.h.b16 %v1065
        %v1621 = vunpack.c.l.b16 %v1066
        %v1622 = vunpack.c.h.b16 %v1066
        %v1623 = vunpack.c.l.b16 %v1067
        %v1624 = vunpack.c.h.b16 %v1067
        %v1625 = vunpack.c.l.b16 %v1068
        %v1626 = vunpack.c.h.b16 %v1068
        %v1627 = vunpack.c.l.b16 %v1069
        %v1628 = vunpack.c.h.b16 %v1069
        %v1629 = vunpack.c.l.b16 %v1070
        %v1630 = vunpack.c.h.b16 %v1070
        %v1631 = vunpack.c.l.b16 %v1071
        %v1632 = vunpack.c.h.b16 %v1071
        %v1633 = vunpack.c.l.b16 %v1072
        %v1634 = vunpack.c.h.b16 %v1072
        %v1635 = vunpack.c.l.b16 %v1073
        %v1636 = vunpack.c.h.b16 %v1073
        %v1637 = vunpack.c.l.b16 %v1074
        %v1638 = vunpack.c.h.b16 %v1074
        %v1639 = vunpack.c.l.b16 %v1075
        %v1640 = vunpack.c.h.b16 %v1075
        %v1641 = vunpack.c.l.b16 %v1076
        %v1642 = vunpack.c.h.b16 %v1076
        %v1643 = vunpack.c.l.b16 %v1077
        %v1644 = vunpack.c.h.b16 %v1077
        %v1645 = vunpack.c.l.b16 %v1078
        %v1646 = vunpack.c.h.b16 %v1078
        %v1647 = vunpack.c.l.b16 %v1079
        %v1648 = vunpack.c.h.b16 %v1079
        %v1649 = vunpack.c.l.b16 %v1080
        %v1650 = vunpack.c.h.b16 %v1080
        %v1651 = vunpack.c.l.b16 %v1081
        %v1652 = vunpack.c.h.b16 %v1081
        %v1653 = vunpack.c.l.b16 %v1082
        %v1654 = vunpack.c.h.b16 %v1082
        %v1655 = vunpack.c.l.b16 %v1083
        %v1656 = vunpack.c.h.b16 %v1083
        %v1657 = vunpack.c.l.b16 %v1084
        %v1658 = vunpack.c.h.b16 %v1084
        %v1659 = vunpack.c.l.b16 %v1085
        %v1660 = vunpack.c.h.b16 %v1085
        %v1661 = vunpack.c.l.b16 %v1086
        %v1662 = vunpack.c.h.b16 %v1086
        %v1663 = vunpack.c.l.b16 %v1087
        %v1664 = vunpack.c.h.b16 %v1087
        %v1665 = vunpack.c.l.b16 %v1088
        %v1666 = vunpack.c.h.b16 %v1088
        %v1667 = vpack.c.b16 %v1295, %v1283
        %v1668 = vpack.c.b16 %v1296, %v1284
        %v1669 = vpack.c.b16 %v1297, %v1285
        %v1670 = vpack.c.b16 %v1298, %v1286
        %v1671 = vpack.c.b16 %v1299, %v1287
        %v1672 = vpack.c.b16 %v1300, %v1288
        %v1673 = vpack.c.b16 %v1301, %v1289
        %v1674 = vpack.c.b16 %v1302, %v1290
        %v1675 = vpack.c.b16 %v1303, %v1291
        %v1676 = vpack.c.b16 %v1304, %v1292
        %v1677 = vpack.c.b16 %v1305, %v1293
        %v1678 = vpack.c.b16 %v1306, %v1294
        %v1679 = vpack.c.b16 %v1319, %v1307
        %v1680 = vpack.c.b16 %v1320, %v1308
        %v1681 = vpack.c.b16 %v1321, %v1309
        %v1682 = vpack.c.b16 %v1322, %v1310
        %v1683 = vpack.c.b16 %v1323, %v1311
        %v1684 = vpack.c.b16 %v1324, %v1312
        %v1685 = vpack.c.b16 %v1325, %v1313
        %v1686 = vpack.c.b16 %v1326, %v1314
        %v1687 = vpack.c.b16 %v1327, %v1315
        %v1688 = vpack.c.b16 %v1328, %v1316
        %v1689 = vpack.c.b16 %v1329, %v1317
        %v1690 = vpack.c.b16 %v1330, %v1318
        %v1691 = vpack.c.b16 %v1343, %v1331
        %v1692 = vpack.c.b16 %v1344, %v1332
        %v1693 = vpack.c.b16 %v1345, %v1333
        %v1694 = vpack.c.b16 %v1346, %v1334
        %v1695 = vpack.c.b16 %v1347, %v1335
        %v1696 = vpack.c.b16 %v1348, %v1336
        %v1697 = vpack.c.b16 %v1349, %v1337
        %v1698 = vpack.c.b16 %v1350, %v1338
        %v1699 = vpack.c.b16 %v1351, %v1339
        %v1700 = vpack.c.b16 %v1352, %v1340
        %v1701 = vpack.c.b16 %v1353, %v1341
        %v1702 = vpack.c.b16 %v1354, %v1342
        %v1703 = vpack.c.b16 %v1367, %v1355
        %v1704 = vpack.c.b16 %v1368, %v1356
        %v1705 = vpack.c.b16 %v1369, %v1357
        %v1706 = vpack.c.b16 %v1370, %v1358
        %v1707 = vpack.c.b16 %v1371, %v1359
        %v1708 = vpack.c.b16 %v1372, %v1360
        %v1709 = vpack.c.b16 %v1373, %v1361
        %v1710 = vpack.c.b16 %v1374, %v1362
        %v1711 = vpack.c.b16 %v1375, %v1363
        %v1712 = vpack.c.b16 %v1376, %v1364
        %v1713 = vpack.c.b16 %v1377, %v1365
        %v1714 = vpack.c.b16 %v1378, %v1366
        %v1715 = vpack.c.b16 %v1391, %v1379
        %v1716 = vpack.c.b16 %v1392, %v1380
        %v1717 = vpack.c.b16 %v1393, %v1381
        %v1718 = vpack.c.b16 %v1394, %v1382
        %v1719 = vpack.c.b16 %v1395, %v1383
        %v1720 = vpack.c.b16 %v1396, %v1384
        %v1721 = vpack.c.b16 %v1397, %v1385
        %v1722 = vpack.c.b16 %v1398, %v1386
        %v1723 = vpack.c.b16 %v1399, %v1387
        %v1724 = vpack.c.b16 %v1400, %v1388
        %v1725 = vpack.c.b16 %v1401, %v1389
        %v1726 = vpack.c.b16 %v1402, %v1390
        %v1727 = vpack.c.b16 %v1415, %v1403
        %v1728 = vpack.c.b16 %v1416, %v1404
        %v1729 = vpack.c.b16 %v1417, %v1405
        %v1730 = vpack.c.b16 %v1418, %v1406
        %v1731 = vpack.c.b16 %v1419, %v1407
        %v1732 = vpack.c.b16 %v1420, %v1408
        %v1733 = vpack.c.b16 %v1421, %v1409
        %v1734 = vpack.c.b16 %v1422, %v1410
        %v1735 = vpack.c.b16 %v1423, %v1411
        %v1736 = vpack.c.b16 %v1424, %v1412
        %v1737 = vpack.c.b16 %v1425, %v1413
        %v1738 = vpack.c.b16 %v1426, %v1414
        %v1739 = vpack.c.b16 %v1439, %v1427
        %v1740 = vpack.c.b16 %v1440, %v1428
        %v1741 = vpack.c.b16 %v1441, %v1429
        %v1742 = vpack.c.b16 %v1442, %v1430
        %v1743 = vpack.c.b16 %v1443, %v1431
        %v1744 = vpack.c.b16 %v1444, %v1432
        %v1745 = vpack.c.b16 %v1445, %v1433
        %v1746 = vpack.c.b16 %v1446, %v1434
        %v1747 = vpack.c.b16 %v1447, %v1435
        %v1748 = vpack.c.b16 %v1448, %v1436
        %v1749 = vpack.c.b16 %v1449, %v1437
        %v1750 = vpack.c.b16 %v1450, %v1438
        %v1751 = vpack.c.b16 %v1463, %v1451
        %v1752 = vpack.c.b16 %v1464, %v1452
        %v1753 = vpack.c.b16 %v1465, %v1453
        %v1754 = vpack.c.b16 %v1466, %v1454
        %v1755 = vpack.c.b16 %v1467, %v1455
        %v1756 = vpack.c.b16 %v1468, %v1456
        %v1757 = vpack.c.b16 %v1469, %v1457
        %v1758 = vpack.c.b16 %v1470, %v1458
        %v1759 = vpack.c.b16 %v1471, %v1459
        %v1760 = vpack.c.b16 %v1472, %v1460
        %v1761 = vpack.c.b16 %v1473, %v1461
        %v1762 = vpack.c.b16 %v1474, %v1462
        %v1763 = vpack.c.b16 %v1487, %v1475
        %v1764 = vpack.c.b16 %v1488, %v1476
        %v1765 = vpack.c.b16 %v1489, %v1477
        %v1766 = vpack.c.b16 %v1490, %v1478
        %v1767 = vpack.c.b16 %v1491, %v1479
        %v1768 = vpack.c.b16 %v1492, %v1480
        %v1769 = vpack.c.b16 %v1493, %v1481
        %v1770 = vpack.c.b16 %v1494, %v1482
        %v1771 = vpack.c.b16 %v1495, %v1483
        %v1772 = vpack.c.b16 %v1496, %v1484
        %v1773 = vpack.c.b16 %v1497, %v1485
        %v1774 = vpack.c.b16 %v1498, %v1486
        %v1775 = vpack.c.b16 %v1511, %v1499
        %v1776 = vpack.c.b16 %v1512, %v1500
        %v1777 = vpack.c.b16 %v1513, %v1501
        %v1778 = vpack.c.b16 %v1514, %v1502
        %v1779 = vpack.c.b16 %v1515, %v1503
        %v1780 = vpack.c.b16 %v1516, %v1504
        %v1781 = vpack.c.b16 %v1517, %v1505
        %v1782 = vpack.c.b16 %v1518, %v1506
        %v1783 = vpack.c.b16 %v1519, %v1507
        %v1784 = vpack.c.b16 %v1520, %v1508
        %v1785 = vpack.c.b16 %v1521, %v1509
        %v1786 = vpack.c.b16 %v1522, %v1510
        %v1787 = vpack.c.b16 %v1535, %v1523
        %v1788 = vpack.c.b16 %v1536, %v1524
        %v1789 = vpack.c.b16 %v1537, %v1525
        %v1790 = vpack.c.b16 %v1538, %v1526
        %v1791 = vpack.c.b16 %v1539, %v1527
        %v1792 = vpack.c.b16 %v1540, %v1528
        %v1793 = vpack.c.b16 %v1541, %v1529
        %v1794 = vpack.c.b16 %v1542, %v1530
        %v1795 = vpack.c.b16 %v1543, %v1531
        %v1796 = vpack.c.b16 %v1544, %v1532
        %v1797 = vpack.c.b16 %v1545, %v1533
        %v1798 = vpack.c.b16 %v1546, %v1534
        %v1799 = vpack.c.b16 %v1559, %v1547
        %v1800 = vpack.c.b16 %v1560, %v1548
        %v1801 = vpack.c.b16 %v1561, %v1549
        %v1802 = vpack.c.b16 %v1562, %v1550
        %v1803 = vpack.c.b16 %v1563, %v1551
        %v1804 = vpack.c.b16 %v1564, %v1552
        %v1805 = vpack.c.b16 %v1565, %v1553
        %v1806 = vpack.c.b16 %v1566, %v1554
        %v1807 = vpack.c.b16 %v1567, %v1555
        %v1808 = vpack.c.b16 %v1568, %v1556
        %v1809 = vpack.c.b16 %v1569, %v1557
        %v1810 = vpack.c.b16 %v1570, %v1558
        %v1811 = vpack.c.b16 %v1583, %v1571
        %v1812 = vpack.c.b16 %v1584, %v1572
        %v1813 = vpack.c.b16 %v1585, %v1573
        %v1814 = vpack.c.b16 %v1586, %v1574
        %v1815 = vpack.c.b16 %v1587, %v1575
        %v1816 = vpack.c.b16 %v1588, %v1576
        %v1817 = vpack.c.b16 %v1589, %v1577
        %v1818 = vpack.c.b16 %v1590, %v1578
        %v1819 = vpack.c.b16 %v1591, %v1579
        %v1820 = vpack.c.b16 %v1592, %v1580
        %v1821 = vpack.c.b16 %v1593, %v1581
        %v1822 = vpack.c.b16 %v1594, %v1582
        %v1823 = vpack.c.b16 %v1607, %v1595
        %v1824 = vpack.c.b16 %v1608, %v1596
        %v1825 = vpack.c.b16 %v1609, %v1597
        %v1826 = vpack.c.b16 %v1610, %v1598
        %v1827 = vpack.c.b16 %v1611, %v1599
        %v1828 = vpack.c.b16 %v1612, %v1600
        %v1829 = vpack.c.b16 %v1613, %v1601
        %v1830 = vpack.c.b16 %v1614, %v1602
        %v1831 = vpack.c.b16 %v1615, %v1603
        %v1832 = vpack.c.b16 %v1616, %v1604
        %v1833 = vpack.c.b16 %v1617, %v1605
        %v1834 = vpack.c.b16 %v1618, %v1606
        %v1835 = vpack.c.b16 %v1631, %v1619
        %v1836 = vpack.c.b16 %v1632, %v1620
        %v1837 = vpack.c.b16 %v1633, %v1621
        %v1838 = vpack.c.b16 %v1634, %v1622
        %v1839 = vpack.c.b16 %v1635, %v1623
        %v1840 = vpack.c.b16 %v1636, %v1624
        %v1841 = vpack.c.b16 %v1637, %v1625
        %v1842 = vpack.c.b16 %v1638, %v1626
        %v1843 = vpack.c.b16 %v1639, %v1627
        %v1844 = vpack.c.b16 %v1640, %v1628
        %v1845 = vpack.c.b16 %v1641, %v1629
        %v1846 = vpack.c.b16 %v1642, %v1630
        %v1847 = vpack.c.b16 %v1655, %v1643
        %v1848 = vpack.c.b16 %v1656, %v1644
        %v1849 = vpack.c.b16 %v1657, %v1645
        %v1850 = vpack.c.b16 %v1658, %v1646
        %v1851 = vpack.c.b16 %v1659, %v1647
        %v1852 = vpack.c.b16 %v1660, %v1648
        %v1853 = vpack.c.b16 %v1661, %v1649
        %v1854 = vpack.c.b16 %v1662, %v1650
        %v1855 = vpack.c.b16 %v1663, %v1651
        %v1856 = vpack.c.b16 %v1664, %v1652
        %v1857 = vpack.c.b16 %v1665, %v1653
        %v1858 = vpack.c.b16 %v1666, %v1654
        %v2053 = vlaneseq
        %v2054 = vshrl.u32 %v2053, 7
        %v2055 = vsub.s32 0, %v2054
        %v2056 = vrot.slane %v1089, %v2055
        %v2057 = vlaneseq
        %v2058 = vshrl.u32 %v2057, 7
        %v2059 = vsub.s32 1, %v2058
        %v2060 = vrot.slane %v1089, %v2059
        %v2061 = vlaneseq
        %v2062 = vshrl.u32 %v2061, 7
        %v2063 = vsub.s32 2, %v2062
        %v2064 = vrot.slane %v1089, %v2063
        %v2065 = vlaneseq
        %v2066 = vshrl.u32 %v2065, 7
        %v2067 = vsub.s32 3, %v2066
        %v2068 = vrot.slane %v1089, %v2067
        %v2069 = vlaneseq
        %v2070 = vshrl.u32 %v2069, 7
        %v2071 = vsub.s32 4, %v2070
        %v2072 = vrot.slane %v1089, %v2071
        %v2073 = vlaneseq
        %v2074 = vshrl.u32 %v2073, 7
        %v2075 = vsub.s32 5, %v2074
        %v2076 = vrot.slane %v1089, %v2075
        %v2077 = vlaneseq
        %v2078 = vshrl.u32 %v2077, 7
        %v2079 = vsub.s32 6, %v2078
        %v2080 = vrot.slane %v1089, %v2079
        %v2081 = vlaneseq
        %v2082 = vshrl.u32 %v2081, 7
        %v2083 = vsub.s32 7, %v2082
        %v2084 = vrot.slane %v1089, %v2083
        %v2085 = vlaneseq
        %v2086 = vshrl.u32 %v2085, 7
        %v2087 = vsub.s32 0, %v2086
        %v2088 = vrot.slane %v1090, %v2087
        %v2089 = vlaneseq
        %v2090 = vshrl.u32 %v2089, 7
        %v2091 = vsub.s32 1, %v2090
        %v2092 = vrot.slane %v1090, %v2091
        %v2093 = vlaneseq
        %v2094 = vshrl.u32 %v2093, 7
        %v2095 = vsub.s32 2, %v2094
        %v2096 = vrot.slane %v1090, %v2095
        %v2097 = vlaneseq
        %v2098 = vshrl.u32 %v2097, 7
        %v2099 = vsub.s32 3, %v2098
        %v2100 = vrot.slane %v1090, %v2099
        %2113 = vmatprep.subr.bf16.mxu0 %v1668
        %2114 = vmatpush1.bf16.msra.mxu0 %v1667
        %2115 = vmatprep.subr.bf16.mxu0 %v1680
        %2116 = vmatpush1.bf16.msra.mxu0 %v1679
        %2117 = vmatprep.subr.bf16.mxu0 %v1692
        %2118 = vmatpush1.bf16.msra.mxu0 %v1691
        %2119 = vmatprep.subr.bf16.mxu0 %v1704
        %2120 = vmatpush1.bf16.msra.mxu0 %v1703
        %2121 = vmatprep.subr.bf16.mxu0 %v1716
        %2122 = vmatpush1.bf16.msra.mxu0 %v1715
        %2123 = vmatprep.subr.bf16.mxu0 %v1728
        %2124 = vmatpush1.bf16.msra.mxu0 %v1727
        %2125 = vmatprep.subr.bf16.mxu0 %v1740
        %2126 = vmatpush1.bf16.msra.mxu0 %v1739
        %2127 = vmatprep.subr.bf16.mxu0 %v1752
        %2128 = vmatpush1.bf16.msra.mxu0 %v1751
        %2129 = vmatprep.subr.bf16.mxu0 %v1764
        %2130 = vmatpush1.bf16.msra.mxu0 %v1763
        %2131 = vmatprep.subr.bf16.mxu0 %v1776
        %2132 = vmatpush1.bf16.msra.mxu0 %v1775
        %2133 = vmatprep.subr.bf16.mxu0 %v1788
        %2134 = vmatpush1.bf16.msra.mxu0 %v1787
        %2135 = vmatprep.subr.bf16.mxu0 %v1800
        %2136 = vmatpush1.bf16.msra.mxu0 %v1799
        %2137 = vmatprep.subr.bf16.mxu0 %v1812
        %2138 = vmatpush1.bf16.msra.mxu0 %v1811
        %2139 = vmatprep.subr.bf16.mxu0 %v1824
        %2140 = vmatpush1.bf16.msra.mxu0 %v1823
        %2141 = vmatprep.subr.bf16.mxu0 %v1836
        %2142 = vmatpush1.bf16.msra.mxu0 %v1835
        %2143 = vmatprep.subr.bf16.mxu0 %v1848
        %2144 = vmatpush1.bf16.msra.mxu0 %v1847
        %2145 = vmatprep.mubr.bf16.mxu0 %v896
        %2146 = vmatmul.mubr.bf16.gmra.mrb[0].mxu0 %v895
        %v2147 = vpop.f32.mrb[0].mxu0
        %v2148 = vadd.f32 %v2056, %v2147
        %v2149 = vpop.f32.mrb[0].mxu0
        %v2150 = vadd.f32 %v2060, %v2149
        %v2151 = vpop.f32.mrb[0].mxu0
        %v2152 = vpop.f32.mrb[0].mxu0
        %2153 = vdwg.mxu0
        %2154 = vmatprep.subr.bf16.mxu0 %v1670
        %2155 = vmatpush1.bf16.msra.mxu0 %v1669
        %2156 = vmatprep.subr.bf16.mxu0 %v1682
        %2157 = vmatpush1.bf16.msra.mxu0 %v1681
        %2158 = vmatprep.subr.bf16.mxu0 %v1694
        %2159 = vmatpush1.bf16.msra.mxu0 %v1693
        %2160 = vmatprep.subr.bf16.mxu0 %v1706
        %2161 = vmatpush1.bf16.msra.mxu0 %v1705
        %2162 = vmatprep.subr.bf16.mxu0 %v1718
        %2163 = vmatpush1.bf16.msra.mxu0 %v1717
        %2164 = vmatprep.subr.bf16.mxu0 %v1730
        %2165 = vmatpush1.bf16.msra.mxu0 %v1729
        %2166 = vmatprep.subr.bf16.mxu0 %v1742
        %2167 = vmatpush1.bf16.msra.mxu0 %v1741
        %2168 = vmatprep.subr.bf16.mxu0 %v1754
        %2169 = vmatpush1.bf16.msra.mxu0 %v1753
        %2170 = vmatprep.subr.bf16.mxu0 %v1766
        %2171 = vmatpush1.bf16.msra.mxu0 %v1765
        %2172 = vmatprep.subr.bf16.mxu0 %v1778
        %2173 = vmatpush1.bf16.msra.mxu0 %v1777
        %2174 = vmatprep.subr.bf16.mxu0 %v1790
        %2175 = vmatpush1.bf16.msra.mxu0 %v1789
        %2176 = vmatprep.subr.bf16.mxu0 %v1802
        %2177 = vmatpush1.bf16.msra.mxu0 %v1801
        %2178 = vmatprep.subr.bf16.mxu0 %v1814
        %2179 = vmatpush1.bf16.msra.mxu0 %v1813
        %2180 = vmatprep.subr.bf16.mxu0 %v1826
        %2181 = vmatpush1.bf16.msra.mxu0 %v1825
        %2182 = vmatprep.subr.bf16.mxu0 %v1838
        %2183 = vmatpush1.bf16.msra.mxu0 %v1837
        %2184 = vmatprep.subr.bf16.mxu0 %v1850
        %2185 = vmatpush1.bf16.msra.mxu0 %v1849
        %2186 = vmatprep.mubr.bf16.mxu0 %v896
        %2187 = vmatmul.mubr.bf16.gmra.mrb[0].mxu0 %v895
        %v2188 = vpop.f32.mrb[0].mxu0
        %v2189 = vadd.f32 %v2064, %v2188
        %v2190 = vpop.f32.mrb[0].mxu0
        %v2191 = vadd.f32 %v2068, %v2190
        %v2192 = vpop.f32.mrb[0].mxu0
        %v2193 = vpop.f32.mrb[0].mxu0
        %2194 = vdwg.mxu0
        %2195 = vmatprep.subr.bf16.mxu0 %v1672
        %2196 = vmatpush1.bf16.msra.mxu0 %v1671
        %2197 = vmatprep.subr.bf16.mxu0 %v1684
        %2198 = vmatpush1.bf16.msra.mxu0 %v1683
        %2199 = vmatprep.subr.bf16.mxu0 %v1696
        %2200 = vmatpush1.bf16.msra.mxu0 %v1695
        %2201 = vmatprep.subr.bf16.mxu0 %v1708
        %2202 = vmatpush1.bf16.msra.mxu0 %v1707
        %2203 = vmatprep.subr.bf16.mxu0 %v1720
        %2204 = vmatpush1.bf16.msra.mxu0 %v1719
        %2205 = vmatprep.subr.bf16.mxu0 %v1732
        %2206 = vmatpush1.bf16.msra.mxu0 %v1731
        %2207 = vmatprep.subr.bf16.mxu0 %v1744
        %2208 = vmatpush1.bf16.msra.mxu0 %v1743
        %2209 = vmatprep.subr.bf16.mxu0 %v1756
        %2210 = vmatpush1.bf16.msra.mxu0 %v1755
        %2211 = vmatprep.subr.bf16.mxu0 %v1768
        %2212 = vmatpush1.bf16.msra.mxu0 %v1767
        %2213 = vmatprep.subr.bf16.mxu0 %v1780
        %2214 = vmatpush1.bf16.msra.mxu0 %v1779
        %2215 = vmatprep.subr.bf16.mxu0 %v1792
        %2216 = vmatpush1.bf16.msra.mxu0 %v1791
        %2217 = vmatprep.subr.bf16.mxu0 %v1804
        %2218 = vmatpush1.bf16.msra.mxu0 %v1803
        %2219 = vmatprep.subr.bf16.mxu0 %v1816
        %2220 = vmatpush1.bf16.msra.mxu0 %v1815
        %2221 = vmatprep.subr.bf16.mxu0 %v1828
        %2222 = vmatpush1.bf16.msra.mxu0 %v1827
        %2223 = vmatprep.subr.bf16.mxu0 %v1840
        %2224 = vmatpush1.bf16.msra.mxu0 %v1839
        %2225 = vmatprep.subr.bf16.mxu0 %v1852
        %2226 = vmatpush1.bf16.msra.mxu0 %v1851
        %2227 = vmatprep.mubr.bf16.mxu0 %v896
        %2228 = vmatmul.mubr.bf16.gmra.mrb[0].mxu0 %v895
        %v2229 = vpop.f32.mrb[0].mxu0
        %v2230 = vadd.f32 %v2072, %v2229
        %v2231 = vpop.f32.mrb[0].mxu0
        %v2232 = vadd.f32 %v2076, %v2231
        %v2233 = vpop.f32.mrb[0].mxu0
        %v2234 = vpop.f32.mrb[0].mxu0
        %2235 = vdwg.mxu0
        %2236 = vmatprep.subr.bf16.mxu0 %v1674
        %2237 = vmatpush1.bf16.msra.mxu0 %v1673
        %2238 = vmatprep.subr.bf16.mxu0 %v1686
        %2239 = vmatpush1.bf16.msra.mxu0 %v1685
        %2240 = vmatprep.subr.bf16.mxu0 %v1698
        %2241 = vmatpush1.bf16.msra.mxu0 %v1697
        %2242 = vmatprep.subr.bf16.mxu0 %v1710
        %2243 = vmatpush1.bf16.msra.mxu0 %v1709
        %2244 = vmatprep.subr.bf16.mxu0 %v1722
        %2245 = vmatpush1.bf16.msra.mxu0 %v1721
        %2246 = vmatprep.subr.bf16.mxu0 %v1734
        %2247 = vmatpush1.bf16.msra.mxu0 %v1733
        %2248 = vmatprep.subr.bf16.mxu0 %v1746
        %2249 = vmatpush1.bf16.msra.mxu0 %v1745
        %2250 = vmatprep.subr.bf16.mxu0 %v1758
        %2251 = vmatpush1.bf16.msra.mxu0 %v1757
        %2252 = vmatprep.subr.bf16.mxu0 %v1770
        %2253 = vmatpush1.bf16.msra.mxu0 %v1769
        %2254 = vmatprep.subr.bf16.mxu0 %v1782
        %2255 = vmatpush1.bf16.msra.mxu0 %v1781
        %2256 = vmatprep.subr.bf16.mxu0 %v1794
        %2257 = vmatpush1.bf16.msra.mxu0 %v1793
        %2258 = vmatprep.subr.bf16.mxu0 %v1806
        %2259 = vmatpush1.bf16.msra.mxu0 %v1805
        %2260 = vmatprep.subr.bf16.mxu0 %v1818
        %2261 = vmatpush1.bf16.msra.mxu0 %v1817
        %2262 = vmatprep.subr.bf16.mxu0 %v1830
        %2263 = vmatpush1.bf16.msra.mxu0 %v1829
        %2264 = vmatprep.subr.bf16.mxu0 %v1842
        %2265 = vmatpush1.bf16.msra.mxu0 %v1841
        %2266 = vmatprep.subr.bf16.mxu0 %v1854
        %2267 = vmatpush1.bf16.msra.mxu0 %v1853
        %2268 = vmatprep.mubr.bf16.mxu0 %v896
        %2269 = vmatmul.mubr.bf16.gmra.mrb[0].mxu0 %v895
        %v2270 = vpop.f32.mrb[0].mxu0
        %v2271 = vadd.f32 %v2080, %v2270
        %v2272 = vpop.f32.mrb[0].mxu0
        %v2273 = vadd.f32 %v2084, %v2272
        %v2274 = vpop.f32.mrb[0].mxu0
        %v2275 = vpop.f32.mrb[0].mxu0
        %2276 = vdwg.mxu0
        %2277 = vmatprep.subr.bf16.mxu0 %v1676
        %2278 = vmatpush1.bf16.msra.mxu0 %v1675
        %2279 = vmatprep.subr.bf16.mxu0 %v1688
        %2280 = vmatpush1.bf16.msra.mxu0 %v1687
        %2281 = vmatprep.subr.bf16.mxu0 %v1700
        %2282 = vmatpush1.bf16.msra.mxu0 %v1699
        %2283 = vmatprep.subr.bf16.mxu0 %v1712
        %2284 = vmatpush1.bf16.msra.mxu0 %v1711
        %2285 = vmatprep.subr.bf16.mxu0 %v1724
        %2286 = vmatpush1.bf16.msra.mxu0 %v1723
        %2287 = vmatprep.subr.bf16.mxu0 %v1736
        %2288 = vmatpush1.bf16.msra.mxu0 %v1735
        %2289 = vmatprep.subr.bf16.mxu0 %v1748
        %2290 = vmatpush1.bf16.msra.mxu0 %v1747
        %2291 = vmatprep.subr.bf16.mxu0 %v1760
        %2292 = vmatpush1.bf16.msra.mxu0 %v1759
        %2293 = vmatprep.subr.bf16.mxu0 %v1772
        %2294 = vmatpush1.bf16.msra.mxu0 %v1771
        %2295 = vmatprep.subr.bf16.mxu0 %v1784
        %2296 = vmatpush1.bf16.msra.mxu0 %v1783
        %2297 = vmatprep.subr.bf16.mxu0 %v1796
        %2298 = vmatpush1.bf16.msra.mxu0 %v1795
        %2299 = vmatprep.subr.bf16.mxu0 %v1808
        %2300 = vmatpush1.bf16.msra.mxu0 %v1807
        %2301 = vmatprep.subr.bf16.mxu0 %v1820
        %2302 = vmatpush1.bf16.msra.mxu0 %v1819
        %2303 = vmatprep.subr.bf16.mxu0 %v1832
        %2304 = vmatpush1.bf16.msra.mxu0 %v1831
        %2305 = vmatprep.subr.bf16.mxu0 %v1844
        %2306 = vmatpush1.bf16.msra.mxu0 %v1843
        %2307 = vmatprep.subr.bf16.mxu0 %v1856
        %2308 = vmatpush1.bf16.msra.mxu0 %v1855
        %2309 = vmatprep.mubr.bf16.mxu0 %v896
        %2310 = vmatmul.mubr.bf16.gmra.mrb[0].mxu0 %v895
        %v2311 = vpop.f32.mrb[0].mxu0
        %v2312 = vadd.f32 %v2088, %v2311
        %v2313 = vpop.f32.mrb[0].mxu0
        %v2314 = vadd.f32 %v2092, %v2313
        %v2315 = vpop.f32.mrb[0].mxu0
        %v2316 = vpop.f32.mrb[0].mxu0
        %2317 = vdwg.mxu0
        %2318 = vmatprep.subr.bf16.mxu0 %v1678
        %2319 = vmatpush1.bf16.msra.mxu0 %v1677
        %2320 = vmatprep.subr.bf16.mxu0 %v1690
        %2321 = vmatpush1.bf16.msra.mxu0 %v1689
        %2322 = vmatprep.subr.bf16.mxu0 %v1702
        %2323 = vmatpush1.bf16.msra.mxu0 %v1701
        %2324 = vmatprep.subr.bf16.mxu0 %v1714
        %2325 = vmatpush1.bf16.msra.mxu0 %v1713
        %2326 = vmatprep.subr.bf16.mxu0 %v1726
        %2327 = vmatpush1.bf16.msra.mxu0 %v1725
        %2328 = vmatprep.subr.bf16.mxu0 %v1738
        %2329 = vmatpush1.bf16.msra.mxu0 %v1737
        %2330 = vmatprep.subr.bf16.mxu0 %v1750
        %2331 = vmatpush1.bf16.msra.mxu0 %v1749
        %2332 = vmatprep.subr.bf16.mxu0 %v1762
        %2333 = vmatpush1.bf16.msra.mxu0 %v1761
        %2334 = vmatprep.subr.bf16.mxu0 %v1774
        %2335 = vmatpush1.bf16.msra.mxu0 %v1773
        %2336 = vmatprep.subr.bf16.mxu0 %v1786
        %2337 = vmatpush1.bf16.msra.mxu0 %v1785
        %2338 = vmatprep.subr.bf16.mxu0 %v1798
        %2339 = vmatpush1.bf16.msra.mxu0 %v1797
        %2340 = vmatprep.subr.bf16.mxu0 %v1810
        %2341 = vmatpush1.bf16.msra.mxu0 %v1809
        %2342 = vmatprep.subr.bf16.mxu0 %v1822
        %2343 = vmatpush1.bf16.msra.mxu0 %v1821
        %2344 = vmatprep.subr.bf16.mxu0 %v1834
        %2345 = vmatpush1.bf16.msra.mxu0 %v1833
        %2346 = vmatprep.subr.bf16.mxu0 %v1846
        %2347 = vmatpush1.bf16.msra.mxu0 %v1845
        %2348 = vmatprep.subr.bf16.mxu0 %v1858
        %2349 = vmatpush1.bf16.msra.mxu0 %v1857
        %2350 = vmatprep.mubr.bf16.mxu0 %v896
        %2351 = vmatmul.mubr.bf16.gmra.mrb[0].mxu0 %v895
        %v2352 = vpop.f32.mrb[0].mxu0
        %v2353 = vadd.f32 %v2096, %v2352
        %v2354 = vpop.f32.mrb[0].mxu0
        %v2355 = vadd.f32 %v2100, %v2354
        %v2356 = vpop.f32.mrb[0].mxu0
        %v2357 = vpop.f32.mrb[0].mxu0
        %2358 = vdwg.mxu0
        %v2359 = vadd.f32 %v2189, 1.0
        %v2360 = vadd.f32 %v2191, 1.0
        %v2361 = vadd.f32 %v2312, 1.0
        %v2362 = vadd.f32 %v2314, 1.0
        %v2363 = vadd.f32 %v853, %v854
        %2364 = vadd.xlane.f32.xlu0 %v2363
        %v2365 = vpop.xlane.xlu0 %2364
        %v2366 = vadd.f32 %v855, %v856
        %2367 = vadd.xlane.f32.xlu0 %v2366
        %v2368 = vpop.xlane.xlu0 %2367
        %v2369 = vadd.f32 %v857, %v858
        %2370 = vadd.xlane.f32.xlu0 %v2369
        %v2371 = vpop.xlane.xlu0 %2370
        %v2372 = vadd.f32 %v859, %v860
        %2373 = vadd.xlane.f32.xlu0 %v2372
        %v2374 = vpop.xlane.xlu0 %2373
        %v2375 = vadd.f32 %v861, %v862
        %2376 = vadd.xlane.f32.xlu0 %v2375
        %v2377 = vpop.xlane.xlu0 %2376
        %v2378 = vadd.f32 %v863, %v864
        %2379 = vadd.xlane.f32.xlu0 %v2378
        %v2380 = vpop.xlane.xlu0 %2379
        %v2381 = vadd.f32 %v865, %v866
        %2382 = vadd.xlane.f32.xlu0 %v2381
        %v2383 = vpop.xlane.xlu0 %2382
        %v2384 = vadd.f32 %v867, %v868
        %2385 = vadd.xlane.f32.xlu0 %v2384
        %v2386 = vpop.xlane.xlu0 %2385
        %v2387 = vrcp.pop 256.0
        %v2388 = vmul.f32 %v2365, %v2387
        %v2389 = vmul.f32 %v2368, %v2387
        %v2390 = vmul.f32 %v2371, %v2387
        %v2391 = vmul.f32 %v2374, %v2387
        %v2392 = vmul.f32 %v2377, %v2387
        %v2393 = vmul.f32 %v2380, %v2387
        %v2394 = vmul.f32 %v2383, %v2387
        %v2395 = vmul.f32 %v2386, %v2387
        %v2396 = vmul.f32 %v853, %v853
        %v2397 = vmul.f32 %v854, %v854
        %v2398 = vmul.f32 %v855, %v855
        %v2399 = vmul.f32 %v856, %v856
        %v2400 = vmul.f32 %v857, %v857
        %v2401 = vmul.f32 %v858, %v858
        %v2402 = vmul.f32 %v859, %v859
        %v2403 = vmul.f32 %v860, %v860
        %v2404 = vmul.f32 %v861, %v861
        %v2405 = vmul.f32 %v862, %v862
        %v2406 = vmul.f32 %v863, %v863
        %v2407 = vmul.f32 %v864, %v864
        %v2408 = vmul.f32 %v865, %v865
        %v2409 = vmul.f32 %v866, %v866
        %v2410 = vmul.f32 %v867, %v867
        %v2411 = vmul.f32 %v868, %v868
        %v2412 = vadd.f32 %v2396, %v2397
        %2413 = vadd.xlane.f32.xlu0 %v2412
        %v2414 = vpop.xlane.xlu0 %2413
        %v2415 = vadd.f32 %v2398, %v2399
        %2416 = vadd.xlane.f32.xlu0 %v2415
        %v2417 = vpop.xlane.xlu0 %2416
        %v2418 = vadd.f32 %v2400, %v2401
        %2419 = vadd.xlane.f32.xlu0 %v2418
        %v2420 = vpop.xlane.xlu0 %2419
        %v2421 = vadd.f32 %v2402, %v2403
        %2422 = vadd.xlane.f32.xlu0 %v2421
        %v2423 = vpop.xlane.xlu0 %2422
        %v2424 = vadd.f32 %v2404, %v2405
        %2425 = vadd.xlane.f32.xlu0 %v2424
        %v2426 = vpop.xlane.xlu0 %2425
        %v2427 = vadd.f32 %v2406, %v2407
        %2428 = vadd.xlane.f32.xlu0 %v2427
        %v2429 = vpop.xlane.xlu0 %2428
        %v2430 = vadd.f32 %v2408, %v2409
        %2431 = vadd.xlane.f32.xlu0 %v2430
        %v2432 = vpop.xlane.xlu0 %2431
        %v2433 = vadd.f32 %v2410, %v2411
        %2434 = vadd.xlane.f32.xlu0 %v2433
        %v2435 = vpop.xlane.xlu0 %2434
        %v2436 = vmul.f32 %v2414, %v2387
        %v2437 = vmul.f32 %v2417, %v2387
        %v2438 = vmul.f32 %v2420, %v2387
        %v2439 = vmul.f32 %v2423, %v2387
        %v2440 = vmul.f32 %v2426, %v2387
        %v2441 = vmul.f32 %v2429, %v2387
        %v2442 = vmul.f32 %v2432, %v2387
        %v2443 = vmul.f32 %v2435, %v2387
        %v2444 = vmul.f32 %v2388, %v2388
        %v2445 = vmul.f32 %v2389, %v2389
        %v2446 = vmul.f32 %v2390, %v2390
        %v2447 = vmul.f32 %v2391, %v2391
        %v2448 = vmul.f32 %v2392, %v2392
        %v2449 = vmul.f32 %v2393, %v2393
        %v2450 = vmul.f32 %v2394, %v2394
        %v2451 = vmul.f32 %v2395, %v2395
        %v2452 = vsub.f32 %v2436, %v2444
        %v2453 = vsub.f32 %v2437, %v2445
        %v2454 = vsub.f32 %v2438, %v2446
        %v2455 = vsub.f32 %v2439, %v2447
        %v2456 = vsub.f32 %v2440, %v2448
        %v2457 = vsub.f32 %v2441, %v2449
        %v2458 = vsub.f32 %v2442, %v2450
        %v2459 = vsub.f32 %v2443, %v2451
        %v2460 = vsub.f32 %v853, %v2388
        %v2461 = vsub.f32 %v854, %v2388
        %v2462 = vsub.f32 %v855, %v2389
        %v2463 = vsub.f32 %v856, %v2389
        %v2464 = vsub.f32 %v857, %v2390
        %v2465 = vsub.f32 %v858, %v2390
        %v2466 = vsub.f32 %v859, %v2391
        %v2467 = vsub.f32 %v860, %v2391
        %v2468 = vsub.f32 %v861, %v2392
        %v2469 = vsub.f32 %v862, %v2392
        %v2470 = vsub.f32 %v863, %v2393
        %v2471 = vsub.f32 %v864, %v2393
        %v2472 = vsub.f32 %v865, %v2394
        %v2473 = vsub.f32 %v866, %v2394
        %v2474 = vsub.f32 %v867, %v2395
        %v2475 = vsub.f32 %v868, %v2395
        %v2476 = vadd.f32 %v2452, 1e-06
        %v2477 = vadd.f32 %v2453, 1e-06
        %v2478 = vadd.f32 %v2454, 1e-06
        %v2479 = vadd.f32 %v2455, 1e-06
        %v2480 = vadd.f32 %v2456, 1e-06
        %v2481 = vadd.f32 %v2457, 1e-06
        %v2482 = vadd.f32 %v2458, 1e-06
        %v2483 = vadd.f32 %v2459, 1e-06
        %v2484 = vrsqrt.pop %v2476
        %v2485 = vrsqrt.pop %v2477
        %v2486 = vrsqrt.pop %v2478
        %v2487 = vrsqrt.pop %v2479
        %v2488 = vrsqrt.pop %v2480
        %v2489 = vrsqrt.pop %v2481
        %v2490 = vrsqrt.pop %v2482
        %v2491 = vrsqrt.pop %v2483
        %v2492 = vmul.f32 %v2460, %v2484
        %v2493 = vmul.f32 %v2461, %v2484
        %v2494 = vmul.f32 %v2462, %v2485
        %v2495 = vmul.f32 %v2463, %v2485
        %v2496 = vmul.f32 %v2464, %v2486
        %v2497 = vmul.f32 %v2465, %v2486
        %v2498 = vmul.f32 %v2466, %v2487
        %v2499 = vmul.f32 %v2467, %v2487
        %v2500 = vmul.f32 %v2468, %v2488
        %v2501 = vmul.f32 %v2469, %v2488
        %v2502 = vmul.f32 %v2470, %v2489
        %v2503 = vmul.f32 %v2471, %v2489
        %v2504 = vmul.f32 %v2472, %v2490
        %v2505 = vmul.f32 %v2473, %v2490
        %v2506 = vmul.f32 %v2474, %v2491
        %v2507 = vmul.f32 %v2475, %v2491
        %v2508 = vlaneseq
        %v2509 = vshrl.u32 %v2508, 7
        %v2510 = vsub.s32 0, %v2509
        %v2511 = vrot.slane %v2359, %v2510
        %v2512 = vlaneseq
        %v2513 = vshrl.u32 %v2512, 7
        %v2514 = vsub.s32 0, %v2513
        %v2515 = vrot.slane %v2360, %v2514
        %v2516 = vmul.f32 %v2492, %v2511
        %v2517 = vmul.f32 %v2493, %v2515
        %v2518 = vmul.f32 %v2494, %v2511
        %v2519 = vmul.f32 %v2495, %v2515
        %v2520 = vmul.f32 %v2496, %v2511
        %v2521 = vmul.f32 %v2497, %v2515
        %v2522 = vmul.f32 %v2498, %v2511
        %v2523 = vmul.f32 %v2499, %v2515
        %v2524 = vmul.f32 %v2500, %v2511
        %v2525 = vmul.f32 %v2501, %v2515
        %v2526 = vmul.f32 %v2502, %v2511
        %v2527 = vmul.f32 %v2503, %v2515
        %v2528 = vmul.f32 %v2504, %v2511
        %v2529 = vmul.f32 %v2505, %v2515
        %v2530 = vmul.f32 %v2506, %v2511
        %v2531 = vmul.f32 %v2507, %v2515
        %v2532 = vlaneseq
        %v2533 = vshrl.u32 %v2532, 7
        %v2534 = vsub.s32 0, %v2533
        %v2535 = vrot.slane %v2148, %v2534
        %v2536 = vlaneseq
        %v2537 = vshrl.u32 %v2536, 7
        %v2538 = vsub.s32 0, %v2537
        %v2539 = vrot.slane %v2150, %v2538
        %v2540 = vadd.f32 %v2516, %v2535
        %v2541 = vadd.f32 %v2517, %v2539
        %v2542 = vadd.f32 %v2518, %v2535
        %v2543 = vadd.f32 %v2519, %v2539
        %v2544 = vadd.f32 %v2520, %v2535
        %v2545 = vadd.f32 %v2521, %v2539
        %v2546 = vadd.f32 %v2522, %v2535
        %v2547 = vadd.f32 %v2523, %v2539
        %v2548 = vadd.f32 %v2524, %v2535
        %v2549 = vadd.f32 %v2525, %v2539
        %v2550 = vadd.f32 %v2526, %v2535
        %v2551 = vadd.f32 %v2527, %v2539
        %v2552 = vadd.f32 %v2528, %v2535
        %v2553 = vadd.f32 %v2529, %v2539
        %v2554 = vadd.f32 %v2530, %v2535
        %v2555 = vadd.f32 %v2531, %v2539
        %v2556 = vpack.c.bf16 %v2542, %v2540
        %v2557 = vpack.c.bf16 %v2543, %v2541
        %v2558 = vpack.c.bf16 %v2546, %v2544
        %v2559 = vpack.c.bf16 %v2547, %v2545
        %v2560 = vpack.c.bf16 %v2550, %v2548
        %v2561 = vpack.c.bf16 %v2551, %v2549
        %v2562 = vpack.c.bf16 %v2554, %v2552
        %v2563 = vpack.c.bf16 %v2555, %v2553
        %v2564 = vld [vmem:[#allocation14] sm:$0xff]
        %v2565 = vld [vmem:[#allocation14 + $0x8] sm:$0xff]
        %v2566 = vld [vmem:[#allocation14 + $0x10] sm:$0xff]
        %v2567 = vld [vmem:[#allocation14 + $0x18] sm:$0xff]
        %v2568 = vld [vmem:[#allocation14 + $0x20] sm:$0xff]
        %v2569 = vld [vmem:[#allocation14 + $0x28] sm:$0xff]
        %v2570 = vld [vmem:[#allocation14 + $0x30] sm:$0xff]
        %v2571 = vld [vmem:[#allocation14 + $0x38] sm:$0xff]
        %v2572 = vld [vmem:[#allocation14 + $0x40] sm:$0xff]
        %v2573 = vld [vmem:[#allocation14 + $0x48] sm:$0xff]
        %v2574 = vld [vmem:[#allocation14 + $0x50] sm:$0xff]
        %v2575 = vld [vmem:[#allocation14 + $0x58] sm:$0xff]
        %v2576 = vld [vmem:[#allocation14 + $0x60] sm:$0xff]
        %v2577 = vld [vmem:[#allocation14 + $0x68] sm:$0xff]
        %v2578 = vld [vmem:[#allocation14 + $0x70] sm:$0xff]
        %v2579 = vld [vmem:[#allocation14 + $0x78] sm:$0xff]
        %v2580 = vld [vmem:[#allocation14 + $0x80] sm:$0xff]
        %v2581 = vld [vmem:[#allocation14 + $0x88] sm:$0xff]
        %v2582 = vld [vmem:[#allocation14 + $0x90] sm:$0xff]
        %v2583 = vld [vmem:[#allocation14 + $0x98] sm:$0xff]
        %v2584 = vld [vmem:[#allocation14 + $0xa0] sm:$0xff]
        %v2585 = vld [vmem:[#allocation14 + $0xa8] sm:$0xff]
        %v2586 = vld [vmem:[#allocation14 + $0xb0] sm:$0xff]
        %v2587 = vld [vmem:[#allocation14 + $0xb8] sm:$0xff]
        %v2588 = vld [vmem:[#allocation14 + $0xc0] sm:$0xff]
        %v2589 = vld [vmem:[#allocation14 + $0xc8] sm:$0xff]
        %v2590 = vld [vmem:[#allocation14 + $0xd0] sm:$0xff]
        %v2591 = vld [vmem:[#allocation14 + $0xd8] sm:$0xff]
        %v2592 = vld [vmem:[#allocation14 + $0xe0] sm:$0xff]
        %v2593 = vld [vmem:[#allocation14 + $0xe8] sm:$0xff]
        %v2594 = vld [vmem:[#allocation14 + $0xf0] sm:$0xff]
        %v2595 = vld [vmem:[#allocation14 + $0xf8] sm:$0xff]
        %v2596 = vld [vmem:[#allocation16] sm:$0x3]
        %v2598 = vlaneseq
        %v2599 = vshrl.u32 %v2598, 7
        %v2600 = vsub.s32 0, %v2599
        %v2601 = vrot.slane %v2596, %v2600
        %v2602 = vlaneseq
        %v2603 = vshrl.u32 %v2602, 7
        %v2604 = vsub.s32 1, %v2603
        %v2605 = vrot.slane %v2596, %v2604
        %v2640 = vunpack.c.l.b16 %v2564
        %v2641 = vunpack.c.h.b16 %v2564
        %v2642 = vunpack.c.l.b16 %v2565
        %v2643 = vunpack.c.h.b16 %v2565
        %v2644 = vunpack.c.l.b16 %v2566
        %v2645 = vunpack.c.h.b16 %v2566
        %v2646 = vunpack.c.l.b16 %v2567
        %v2647 = vunpack.c.h.b16 %v2567
        %v2648 = vunpack.c.l.b16 %v2568
        %v2649 = vunpack.c.h.b16 %v2568
        %v2650 = vunpack.c.l.b16 %v2569
        %v2651 = vunpack.c.h.b16 %v2569
        %v2652 = vunpack.c.l.b16 %v2570
        %v2653 = vunpack.c.h.b16 %v2570
        %v2654 = vunpack.c.l.b16 %v2571
        %v2655 = vunpack.c.h.b16 %v2571
        %v2656 = vunpack.c.l.b16 %v2572
        %v2657 = vunpack.c.h.b16 %v2572
        %v2658 = vunpack.c.l.b16 %v2573
        %v2659 = vunpack.c.h.b16 %v2573
        %v2660 = vunpack.c.l.b16 %v2574
        %v2661 = vunpack.c.h.b16 %v2574
        %v2662 = vunpack.c.l.b16 %v2575
        %v2663 = vunpack.c.h.b16 %v2575
        %v2664 = vunpack.c.l.b16 %v2576
        %v2665 = vunpack.c.h.b16 %v2576
        %v2666 = vunpack.c.l.b16 %v2577
        %v2667 = vunpack.c.h.b16 %v2577
        %v2668 = vunpack.c.l.b16 %v2578
        %v2669 = vunpack.c.h.b16 %v2578
        %v2670 = vunpack.c.l.b16 %v2579
        %v2671 = vunpack.c.h.b16 %v2579
        %v2672 = vunpack.c.l.b16 %v2580
        %v2673 = vunpack.c.h.b16 %v2580
        %v2674 = vunpack.c.l.b16 %v2581
        %v2675 = vunpack.c.h.b16 %v2581
        %v2676 = vunpack.c.l.b16 %v2582
        %v2677 = vunpack.c.h.b16 %v2582
        %v2678 = vunpack.c.l.b16 %v2583
        %v2679 = vunpack.c.h.b16 %v2583
        %v2680 = vunpack.c.l.b16 %v2584
        %v2681 = vunpack.c.h.b16 %v2584
        %v2682 = vunpack.c.l.b16 %v2585
        %v2683 = vunpack.c.h.b16 %v2585
        %v2684 = vunpack.c.l.b16 %v2586
        %v2685 = vunpack.c.h.b16 %v2586
        %v2686 = vunpack.c.l.b16 %v2587
        %v2687 = vunpack.c.h.b16 %v2587
        %v2688 = vunpack.c.l.b16 %v2588
        %v2689 = vunpack.c.h.b16 %v2588
        %v2690 = vunpack.c.l.b16 %v2589
        %v2691 = vunpack.c.h.b16 %v2589
        %v2692 = vunpack.c.l.b16 %v2590
        %v2693 = vunpack.c.h.b16 %v2590
        %v2694 = vunpack.c.l.b16 %v2591
        %v2695 = vunpack.c.h.b16 %v2591
        %v2696 = vunpack.c.l.b16 %v2592
        %v2697 = vunpack.c.h.b16 %v2592
        %v2698 = vunpack.c.l.b16 %v2593
        %v2699 = vunpack.c.h.b16 %v2593
        %v2700 = vunpack.c.l.b16 %v2594
        %v2701 = vunpack.c.h.b16 %v2594
        %v2702 = vunpack.c.l.b16 %v2595
        %v2703 = vunpack.c.h.b16 %v2595
        %v2704 = vpack.c.b16 %v2642, %v2640
        %v2705 = vpack.c.b16 %v2643, %v2641
        %v2706 = vpack.c.b16 %v2646, %v2644
        %v2707 = vpack.c.b16 %v2647, %v2645
        %v2708 = vpack.c.b16 %v2650, %v2648
        %v2709 = vpack.c.b16 %v2651, %v2649
        %v2710 = vpack.c.b16 %v2654, %v2652
        %v2711 = vpack.c.b16 %v2655, %v2653
        %v2712 = vpack.c.b16 %v2658, %v2656
        %v2713 = vpack.c.b16 %v2659, %v2657
        %v2714 = vpack.c.b16 %v2662, %v2660
        %v2715 = vpack.c.b16 %v2663, %v2661
        %v2716 = vpack.c.b16 %v2666, %v2664
        %v2717 = vpack.c.b16 %v2667, %v2665
        %v2718 = vpack.c.b16 %v2670, %v2668
        %v2719 = vpack.c.b16 %v2671, %v2669
        %v2720 = vpack.c.b16 %v2674, %v2672
        %v2721 = vpack.c.b16 %v2675, %v2673
        %v2722 = vpack.c.b16 %v2678, %v2676
        %v2723 = vpack.c.b16 %v2679, %v2677
        %v2724 = vpack.c.b16 %v2682, %v2680
        %v2725 = vpack.c.b16 %v2683, %v2681
        %v2726 = vpack.c.b16 %v2686, %v2684
        %v2727 = vpack.c.b16 %v2687, %v2685
        %v2728 = vpack.c.b16 %v2690, %v2688
        %v2729 = vpack.c.b16 %v2691, %v2689
        %v2730 = vpack.c.b16 %v2694, %v2692
        %v2731 = vpack.c.b16 %v2695, %v2693
        %v2732 = vpack.c.b16 %v2698, %v2696
        %v2733 = vpack.c.b16 %v2699, %v2697
        %v2734 = vpack.c.b16 %v2702, %v2700
        %v2735 = vpack.c.b16 %v2703, %v2701
        %2768 = vmatprep.subr.bf16.mxu0 %v2705
        %2769 = vmatpush1.bf16.msra.mxu0 %v2704
        %2770 = vmatprep.subr.bf16.mxu0 %v2707
        %2771 = vmatpush1.bf16.msra.mxu0 %v2706
        %2772 = vmatprep.subr.bf16.mxu0 %v2709
        %2773 = vmatpush1.bf16.msra.mxu0 %v2708
        %2774 = vmatprep.subr.bf16.mxu0 %v2711
        %2775 = vmatpush1.bf16.msra.mxu0 %v2710
        %2776 = vmatprep.subr.bf16.mxu0 %v2713
        %2777 = vmatpush1.bf16.msra.mxu0 %v2712
        %2778 = vmatprep.subr.bf16.mxu0 %v2715
        %2779 = vmatpush1.bf16.msra.mxu0 %v2714
        %2780 = vmatprep.subr.bf16.mxu0 %v2717
        %2781 = vmatpush1.bf16.msra.mxu0 %v2716
        %2782 = vmatprep.subr.bf16.mxu0 %v2719
        %2783 = vmatpush1.bf16.msra.mxu0 %v2718
        %2784 = vmatprep.subr.bf16.mxu0 %v2721
        %2785 = vmatpush1.bf16.msra.mxu0 %v2720
        %2786 = vmatprep.subr.bf16.mxu0 %v2723
        %2787 = vmatpush1.bf16.msra.mxu0 %v2722
        %2788 = vmatprep.subr.bf16.mxu0 %v2725
        %2789 = vmatpush1.bf16.msra.mxu0 %v2724
        %2790 = vmatprep.subr.bf16.mxu0 %v2727
        %2791 = vmatpush1.bf16.msra.mxu0 %v2726
        %2792 = vmatprep.subr.bf16.mxu0 %v2729
        %2793 = vmatpush1.bf16.msra.mxu0 %v2728
        %2794 = vmatprep.subr.bf16.mxu0 %v2731
        %2795 = vmatpush1.bf16.msra.mxu0 %v2730
        %2796 = vmatprep.subr.bf16.mxu0 %v2733
        %2797 = vmatpush1.bf16.msra.mxu0 %v2732
        %2798 = vmatprep.subr.bf16.mxu0 %v2735
        %2799 = vmatpush1.bf16.msra.mxu0 %v2734
        %2800 = vmatprep.mubr.bf16.mxu0 %v2557
        %2801 = vmatmul.mubr.bf16.gmra.mrb[0].mxu0 %v2556
        %v2802 = vpop.f32.mrb[0].mxu0
        %v2803 = vadd.f32 %v2601, %v2802
        %v2804 = vpop.f32.mrb[0].mxu0
        %v2805 = vadd.f32 %v2605, %v2804
        %v2806 = vpop.f32.mrb[0].mxu0
        %v2807 = vadd.f32 %v2601, %v2806
        %v2808 = vpop.f32.mrb[0].mxu0
        %v2809 = vadd.f32 %v2605, %v2808
        %2810 = vmatprep.mubr.bf16.mxu0 %v2559
        %2811 = vmatmul.mubr.bf16.gmra.mrb[0].mxu0 %v2558
        %v2812 = vpop.f32.mrb[0].mxu0
        %v2813 = vadd.f32 %v2601, %v2812
        %v2814 = vpop.f32.mrb[0].mxu0
        %v2815 = vadd.f32 %v2605, %v2814
        %v2816 = vpop.f32.mrb[0].mxu0
        %v2817 = vadd.f32 %v2601, %v2816
        %v2818 = vpop.f32.mrb[0].mxu0
        %v2819 = vadd.f32 %v2605, %v2818
        %2820 = vmatprep.mubr.bf16.mxu0 %v2561
        %2821 = vmatmul.mubr.bf16.gmra.mrb[0].mxu0 %v2560
        %v2822 = vpop.f32.mrb[0].mxu0
        %v2823 = vadd.f32 %v2601, %v2822
        %v2824 = vpop.f32.mrb[0].mxu0
        %v2825 = vadd.f32 %v2605, %v2824
        %v2826 = vpop.f32.mrb[0].mxu0
        %v2827 = vadd.f32 %v2601, %v2826
        %v2828 = vpop.f32.mrb[0].mxu0
        %v2829 = vadd.f32 %v2605, %v2828
        %2830 = vmatprep.mubr.bf16.mxu0 %v2563
        %2831 = vmatmul.mubr.bf16.gmra.mrb[0].mxu0 %v2562
        %v2832 = vpop.f32.mrb[0].mxu0
        %v2833 = vadd.f32 %v2601, %v2832
        %v2834 = vpop.f32.mrb[0].mxu0
        %v2835 = vadd.f32 %v2605, %v2834
        %v2836 = vpop.f32.mrb[0].mxu0
        %v2837 = vadd.f32 %v2601, %v2836
        %v2838 = vpop.f32.mrb[0].mxu0
        %v2839 = vadd.f32 %v2605, %v2838
        %2840 = vdwg.mxu0
        %v2841 = vld [vmem:[#allocation17] sm:$0xff]
        %v2842 = vld [vmem:[#allocation17 + $0x8] sm:$0xff]
        %v2843 = vld [vmem:[#allocation17 + $0x10] sm:$0xff]
        %v2844 = vld [vmem:[#allocation17 + $0x18] sm:$0xff]
        %v2845 = vld [vmem:[#allocation17 + $0x20] sm:$0xff]
        %v2846 = vld [vmem:[#allocation17 + $0x28] sm:$0xff]
        %v2847 = vld [vmem:[#allocation17 + $0x30] sm:$0xff]
        %v2848 = vld [vmem:[#allocation17 + $0x38] sm:$0xff]
        %v2849 = vld [vmem:[#allocation17 + $0x40] sm:$0xff]
        %v2850 = vld [vmem:[#allocation17 + $0x48] sm:$0xff]
        %v2851 = vld [vmem:[#allocation17 + $0x50] sm:$0xff]
        %v2852 = vld [vmem:[#allocation17 + $0x58] sm:$0xff]
        %v2853 = vld [vmem:[#allocation17 + $0x60] sm:$0xff]
        %v2854 = vld [vmem:[#allocation17 + $0x68] sm:$0xff]
        %v2855 = vld [vmem:[#allocation17 + $0x70] sm:$0xff]
        %v2856 = vld [vmem:[#allocation17 + $0x78] sm:$0xff]
        %v2857 = vld [vmem:[#allocation17 + $0x80] sm:$0xff]
        %v2858 = vld [vmem:[#allocation17 + $0x88] sm:$0xff]
        %v2859 = vld [vmem:[#allocation17 + $0x90] sm:$0xff]
        %v2860 = vld [vmem:[#allocation17 + $0x98] sm:$0xff]
        %v2861 = vld [vmem:[#allocation17 + $0xa0] sm:$0xff]
        %v2862 = vld [vmem:[#allocation17 + $0xa8] sm:$0xff]
        %v2863 = vld [vmem:[#allocation17 + $0xb0] sm:$0xff]
        %v2864 = vld [vmem:[#allocation17 + $0xb8] sm:$0xff]
        %v2865 = vld [vmem:[#allocation17 + $0xc0] sm:$0xff]
        %v2866 = vld [vmem:[#allocation17 + $0xc8] sm:$0xff]
        %v2867 = vld [vmem:[#allocation17 + $0xd0] sm:$0xff]
        %v2868 = vld [vmem:[#allocation17 + $0xd8] sm:$0xff]
        %v2869 = vld [vmem:[#allocation17 + $0xe0] sm:$0xff]
        %v2870 = vld [vmem:[#allocation17 + $0xe8] sm:$0xff]
        %v2871 = vld [vmem:[#allocation17 + $0xf0] sm:$0xff]
        %v2872 = vld [vmem:[#allocation17 + $0xf8] sm:$0xff]
        %v2873 = vld [vmem:[#allocation19] sm:$0x3]
        %v2875 = vlaneseq
        %v2876 = vshrl.u32 %v2875, 7
        %v2877 = vsub.s32 0, %v2876
        %v2878 = vrot.slane %v2873, %v2877
        %v2879 = vlaneseq
        %v2880 = vshrl.u32 %v2879, 7
        %v2881 = vsub.s32 1, %v2880
        %v2882 = vrot.slane %v2873, %v2881
        %v2917 = vunpack.c.l.b16 %v2841
        %v2918 = vunpack.c.h.b16 %v2841
        %v2919 = vunpack.c.l.b16 %v2842
        %v2920 = vunpack.c.h.b16 %v2842
        %v2921 = vunpack.c.l.b16 %v2843
        %v2922 = vunpack.c.h.b16 %v2843
        %v2923 = vunpack.c.l.b16 %v2844
        %v2924 = vunpack.c.h.b16 %v2844
        %v2925 = vunpack.c.l.b16 %v2845
        %v2926 = vunpack.c.h.b16 %v2845
        %v2927 = vunpack.c.l.b16 %v2846
        %v2928 = vunpack.c.h.b16 %v2846
        %v2929 = vunpack.c.l.b16 %v2847
        %v2930 = vunpack.c.h.b16 %v2847
        %v2931 = vunpack.c.l.b16 %v2848
        %v2932 = vunpack.c.h.b16 %v2848
        %v2933 = vunpack.c.l.b16 %v2849
        %v2934 = vunpack.c.h.b16 %v2849
        %v2935 = vunpack.c.l.b16 %v2850
        %v2936 = vunpack.c.h.b16 %v2850
        %v2937 = vunpack.c.l.b16 %v2851
        %v2938 = vunpack.c.h.b16 %v2851
        %v2939 = vunpack.c.l.b16 %v2852
        %v2940 = vunpack.c.h.b16 %v2852
        %v2941 = vunpack.c.l.b16 %v2853
        %v2942 = vunpack.c.h.b16 %v2853
        %v2943 = vunpack.c.l.b16 %v2854
        %v2944 = vunpack.c.h.b16 %v2854
        %v2945 = vunpack.c.l.b16 %v2855
        %v2946 = vunpack.c.h.b16 %v2855
        %v2947 = vunpack.c.l.b16 %v2856
        %v2948 = vunpack.c.h.b16 %v2856
        %v2949 = vunpack.c.l.b16 %v2857
        %v2950 = vunpack.c.h.b16 %v2857
        %v2951 = vunpack.c.l.b16 %v2858
        %v2952 = vunpack.c.h.b16 %v2858
        %v2953 = vunpack.c.l.b16 %v2859
        %v2954 = vunpack.c.h.b16 %v2859
        %v2955 = vunpack.c.l.b16 %v2860
        %v2956 = vunpack.c.h.b16 %v2860
        %v2957 = vunpack.c.l.b16 %v2861
        %v2958 = vunpack.c.h.b16 %v2861
        %v2959 = vunpack.c.l.b16 %v2862
        %v2960 = vunpack.c.h.b16 %v2862
        %v2961 = vunpack.c.l.b16 %v2863
        %v2962 = vunpack.c.h.b16 %v2863
        %v2963 = vunpack.c.l.b16 %v2864
        %v2964 = vunpack.c.h.b16 %v2864
        %v2965 = vunpack.c.l.b16 %v2865
        %v2966 = vunpack.c.h.b16 %v2865
        %v2967 = vunpack.c.l.b16 %v2866
        %v2968 = vunpack.c.h.b16 %v2866
        %v2969 = vunpack.c.l.b16 %v2867
        %v2970 = vunpack.c.h.b16 %v2867
        %v2971 = vunpack.c.l.b16 %v2868
        %v2972 = vunpack.c.h.b16 %v2868
        %v2973 = vunpack.c.l.b16 %v2869
        %v2974 = vunpack.c.h.b16 %v2869
        %v2975 = vunpack.c.l.b16 %v2870
        %v2976 = vunpack.c.h.b16 %v2870
        %v2977 = vunpack.c.l.b16 %v2871
        %v2978 = vunpack.c.h.b16 %v2871
        %v2979 = vunpack.c.l.b16 %v2872
        %v2980 = vunpack.c.h.b16 %v2872
        %v2981 = vpack.c.b16 %v2919, %v2917
        %v2982 = vpack.c.b16 %v2920, %v2918
        %v2983 = vpack.c.b16 %v2923, %v2921
        %v2984 = vpack.c.b16 %v2924, %v2922
        %v2985 = vpack.c.b16 %v2927, %v2925
        %v2986 = vpack.c.b16 %v2928, %v2926
        %v2987 = vpack.c.b16 %v2931, %v2929
        %v2988 = vpack.c.b16 %v2932, %v2930
        %v2989 = vpack.c.b16 %v2935, %v2933
        %v2990 = vpack.c.b16 %v2936, %v2934
        %v2991 = vpack.c.b16 %v2939, %v2937
        %v2992 = vpack.c.b16 %v2940, %v2938
        %v2993 = vpack.c.b16 %v2943, %v2941
        %v2994 = vpack.c.b16 %v2944, %v2942
        %v2995 = vpack.c.b16 %v2947, %v2945
        %v2996 = vpack.c.b16 %v2948, %v2946
        %v2997 = vpack.c.b16 %v2951, %v2949
        %v2998 = vpack.c.b16 %v2952, %v2950
        %v2999 = vpack.c.b16 %v2955, %v2953
        %v3000 = vpack.c.b16 %v2956, %v2954
        %v3001 = vpack.c.b16 %v2959, %v2957
        %v3002 = vpack.c.b16 %v2960, %v2958
        %v3003 = vpack.c.b16 %v2963, %v2961
        %v3004 = vpack.c.b16 %v2964, %v2962
        %v3005 = vpack.c.b16 %v2967, %v2965
        %v3006 = vpack.c.b16 %v2968, %v2966
        %v3007 = vpack.c.b16 %v2971, %v2969
        %v3008 = vpack.c.b16 %v2972, %v2970
        %v3009 = vpack.c.b16 %v2975, %v2973
        %v3010 = vpack.c.b16 %v2976, %v2974
        %v3011 = vpack.c.b16 %v2979, %v2977
        %v3012 = vpack.c.b16 %v2980, %v2978
        %3045 = vmatprep.subr.bf16.mxu0 %v2982
        %3046 = vmatpush1.bf16.msra.mxu0 %v2981
        %3047 = vmatprep.subr.bf16.mxu0 %v2984
        %3048 = vmatpush1.bf16.msra.mxu0 %v2983
        %3049 = vmatprep.subr.bf16.mxu0 %v2986
        %3050 = vmatpush1.bf16.msra.mxu0 %v2985
        %3051 = vmatprep.subr.bf16.mxu0 %v2988
        %3052 = vmatpush1.bf16.msra.mxu0 %v2987
        %3053 = vmatprep.subr.bf16.mxu0 %v2990
        %3054 = vmatpush1.bf16.msra.mxu0 %v2989
        %3055 = vmatprep.subr.bf16.mxu0 %v2992
        %3056 = vmatpush1.bf16.msra.mxu0 %v2991
        %3057 = vmatprep.subr.bf16.mxu0 %v2994
        %3058 = vmatpush1.bf16.msra.mxu0 %v2993
        %3059 = vmatprep.subr.bf16.mxu0 %v2996
        %3060 = vmatpush1.bf16.msra.mxu0 %v2995
        %3061 = vmatprep.subr.bf16.mxu0 %v2998
        %3062 = vmatpush1.bf16.msra.mxu0 %v2997
        %3063 = vmatprep.subr.bf16.mxu0 %v3000
        %3064 = vmatpush1.bf16.msra.mxu0 %v2999
        %3065 = vmatprep.subr.bf16.mxu0 %v3002
        %3066 = vmatpush1.bf16.msra.mxu0 %v3001
        %3067 = vmatprep.subr.bf16.mxu0 %v3004
        %3068 = vmatpush1.bf16.msra.mxu0 %v3003
        %3069 = vmatprep.subr.bf16.mxu0 %v3006
        %3070 = vmatpush1.bf16.msra.mxu0 %v3005
        %3071 = vmatprep.subr.bf16.mxu0 %v3008
        %3072 = vmatpush1.bf16.msra.mxu0 %v3007
        %3073 = vmatprep.subr.bf16.mxu0 %v3010
        %3074 = vmatpush1.bf16.msra.mxu0 %v3009
        %3075 = vmatprep.subr.bf16.mxu0 %v3012
        %3076 = vmatpush1.bf16.msra.mxu0 %v3011
        %3077 = vmatprep.mubr.bf16.mxu0 %v2557
        %3078 = vmatmul.mubr.bf16.gmra.mrb[0].mxu0 %v2556
        %v3079 = vpop.f32.mrb[0].mxu0
        %v3080 = vadd.f32 %v2878, %v3079
        %v3081 = vpop.f32.mrb[0].mxu0
        %v3082 = vadd.f32 %v2882, %v3081
        %v3083 = vpop.f32.mrb[0].mxu0
        %v3084 = vadd.f32 %v2878, %v3083
        %v3085 = vpop.f32.mrb[0].mxu0
        %v3086 = vadd.f32 %v2882, %v3085
        %3087 = vmatprep.mubr.bf16.mxu0 %v2559
        %3088 = vmatmul.mubr.bf16.gmra.mrb[0].mxu0 %v2558
        %v3089 = vpop.f32.mrb[0].mxu0
        %v3090 = vadd.f32 %v2878, %v3089
        %v3091 = vpop.f32.mrb[0].mxu0
        %v3092 = vadd.f32 %v2882, %v3091
        %v3093 = vpop.f32.mrb[0].mxu0
        %v3094 = vadd.f32 %v2878, %v3093
        %v3095 = vpop.f32.mrb[0].mxu0
        %v3096 = vadd.f32 %v2882, %v3095
        %3097 = vmatprep.mubr.bf16.mxu0 %v2561
        %3098 = vmatmul.mubr.bf16.gmra.mrb[0].mxu0 %v2560
        %v3099 = vpop.f32.mrb[0].mxu0
        %v3100 = vadd.f32 %v2878, %v3099
        %v3101 = vpop.f32.mrb[0].mxu0
        %v3102 = vadd.f32 %v2882, %v3101
        %v3103 = vpop.f32.mrb[0].mxu0
        %v3104 = vadd.f32 %v2878, %v3103
        %v3105 = vpop.f32.mrb[0].mxu0
        %v3106 = vadd.f32 %v2882, %v3105
        %3107 = vmatprep.mubr.bf16.mxu0 %v2563
        %3108 = vmatmul.mubr.bf16.gmra.mrb[0].mxu0 %v2562
        %v3109 = vpop.f32.mrb[0].mxu0
        %v3110 = vadd.f32 %v2878, %v3109
        %v3111 = vpop.f32.mrb[0].mxu0
        %v3112 = vadd.f32 %v2882, %v3111
        %v3113 = vpop.f32.mrb[0].mxu0
        %v3114 = vadd.f32 %v2878, %v3113
        %v3115 = vpop.f32.mrb[0].mxu0
        %v3116 = vadd.f32 %v2882, %v3115
        %3117 = vdwg.mxu0
        %v3118 = vpack.c.bf16 %v2807, %v2803
        %v3119 = vpack.c.bf16 %v2809, %v2805
        %v3120 = vpack.c.bf16 %v2817, %v2813
        %v3121 = vpack.c.bf16 %v2819, %v2815
        %v3122 = vpack.c.bf16 %v2827, %v2823
        %v3123 = vpack.c.bf16 %v2829, %v2825
        %v3124 = vpack.c.bf16 %v2837, %v2833
        %v3125 = vpack.c.bf16 %v2839, %v2835
        %v3128 = vpack.i.b16 %v3119, %v3118
        %v3130 = vshrl.u32 %v3118, 16
        %v3131 = vshrl.u32 %v3119, 16
        %v3132 = vpack.i.b16 %v3131, %v3130
        %v3135 = vpack.i.b16 0, 0
        %v3137 = vshrl.u32 0, 16
        %v3138 = vpack.i.b16 %v3137, %v3137
        %v3142 = vpack.i.b16 %v3121, %v3120
        %v3144 = vshrl.u32 %v3120, 16
        %v3145 = vshrl.u32 %v3121, 16
        %v3146 = vpack.i.b16 %v3145, %v3144
        %v3150 = vpack.i.b16 %v3123, %v3122
        %v3152 = vshrl.u32 %v3122, 16
        %v3153 = vshrl.u32 %v3123, 16
        %v3154 = vpack.i.b16 %v3153, %v3152
        %v3158 = vpack.i.b16 %v3125, %v3124
        %v3160 = vshrl.u32 %v3124, 16
        %v3161 = vshrl.u32 %v3125, 16
        %v3162 = vpack.i.b16 %v3161, %v3160
        %v3164 = vcombine.high %v3128, %v3135
        %v3166 = vunpack.c.l.s4 1983009808
        %v3167 = vunpack.c.0.s8 %v3166
        %v3168 = vlaneseq
        %v3169 = vshrl.u32 %v3168, 7
        %v3170 = vsub.s32 %v3167, %v3169
        %v3171 = vrot.slane %v3128, %v3170
        %v3173 = vunpack.c.l.s4 1983009808
        %v3174 = vunpack.c.0.s8 %v3173
        %v3175 = vlaneseq
        %v3176 = vshrl.u32 %v3175, 7
        %v3177 = vsub.s32 %v3174, %v3176
        %v3178 = vrot.slane %v3164, %v3177
        %v3179 = vcombine.high %v3171, 0
        %v3181 = vunpack.c.l.s4 1934713408
        %v3182 = vunpack.c.0.s8 %v3181
        %v3183 = vlaneseq
        %v3184 = vshrl.u32 %v3183, 7
        %v3185 = vsub.s32 %v3182, %v3184
        %v3186 = vrot.slane %v3171, %v3185
        %v3188 = vunpack.c.l.s4 1934713408
        %v3189 = vunpack.c.0.s8 %v3188
        %v3190 = vlaneseq
        %v3191 = vshrl.u32 %v3190, 7
        %v3192 = vsub.s32 %v3189, %v3191
        %v3193 = vrot.slane %v3179, %v3192
        %v3194 = vcombine.high %v3178, 0
        %v3196 = vunpack.c.l.s4 1934713408
        %v3197 = vunpack.c.0.s8 %v3196
        %v3198 = vlaneseq
        %v3199 = vshrl.u32 %v3198, 7
        %v3200 = vsub.s32 %v3197, %v3199
        %v3201 = vrot.slane %v3178, %v3200
        %v3203 = vunpack.c.l.s4 1934713408
        %v3204 = vunpack.c.0.s8 %v3203
        %v3205 = vlaneseq
        %v3206 = vshrl.u32 %v3205, 7
        %v3207 = vsub.s32 %v3204, %v3206
        %v3208 = vrot.slane %v3194, %v3207
        %v3209 = vcombine.high %v3186, 0
        %v3210 = vcombine.high %v3193, 0
        %v3211 = vcombine.high %v3201, 0
        %v3212 = vcombine.high %v3208, 0
        %v3213 = vcombine.high %v3132, %v3138
        %v3215 = vunpack.c.l.s4 1983009808
        %v3216 = vunpack.c.0.s8 %v3215
        %v3217 = vlaneseq
        %v3218 = vshrl.u32 %v3217, 7
        %v3219 = vsub.s32 %v3216, %v3218
        %v3220 = vrot.slane %v3132, %v3219
        %v3222 = vunpack.c.l.s4 1983009808
        %v3223 = vunpack.c.0.s8 %v3222
        %v3224 = vlaneseq
        %v3225 = vshrl.u32 %v3224, 7
        %v3226 = vsub.s32 %v3223, %v3225
        %v3227 = vrot.slane %v3213, %v3226
        %v3228 = vcombine.high %v3220, 0
        %v3230 = vunpack.c.l.s4 1934713408
        %v3231 = vunpack.c.0.s8 %v3230
        %v3232 = vlaneseq
        %v3233 = vshrl.u32 %v3232, 7
        %v3234 = vsub.s32 %v3231, %v3233
        %v3235 = vrot.slane %v3220, %v3234
        %v3237 = vunpack.c.l.s4 1934713408
        %v3238 = vunpack.c.0.s8 %v3237
        %v3239 = vlaneseq
        %v3240 = vshrl.u32 %v3239, 7
        %v3241 = vsub.s32 %v3238, %v3240
        %v3242 = vrot.slane %v3228, %v3241
        %v3243 = vcombine.high %v3227, 0
        %v3245 = vunpack.c.l.s4 1934713408
        %v3246 = vunpack.c.0.s8 %v3245
        %v3247 = vlaneseq
        %v3248 = vshrl.u32 %v3247, 7
        %v3249 = vsub.s32 %v3246, %v3248
        %v3250 = vrot.slane %v3227, %v3249
        %v3252 = vunpack.c.l.s4 1934713408
        %v3253 = vunpack.c.0.s8 %v3252
        %v3254 = vlaneseq
        %v3255 = vshrl.u32 %v3254, 7
        %v3256 = vsub.s32 %v3253, %v3255
        %v3257 = vrot.slane %v3243, %v3256
        %v3258 = vcombine.high %v3235, 0
        %v3259 = vcombine.high %v3242, 0
        %v3260 = vcombine.high %v3250, 0
        %v3261 = vcombine.high %v3257, 0
        %v3262 = vcombine.high %v3142, %v3135
        %v3264 = vunpack.c.l.s4 1983009808
        %v3265 = vunpack.c.0.s8 %v3264
        %v3266 = vlaneseq
        %v3267 = vshrl.u32 %v3266, 7
        %v3268 = vsub.s32 %v3265, %v3267
        %v3269 = vrot.slane %v3142, %v3268
        %v3271 = vunpack.c.l.s4 1983009808
        %v3272 = vunpack.c.0.s8 %v3271
        %v3273 = vlaneseq
        %v3274 = vshrl.u32 %v3273, 7
        %v3275 = vsub.s32 %v3272, %v3274
        %v3276 = vrot.slane %v3262, %v3275
        %v3277 = vcombine.high %v3269, 0
        %v3279 = vunpack.c.l.s4 1934713408
        %v3280 = vunpack.c.0.s8 %v3279
        %v3281 = vlaneseq
        %v3282 = vshrl.u32 %v3281, 7
        %v3283 = vsub.s32 %v3280, %v3282
        %v3284 = vrot.slane %v3269, %v3283
        %v3286 = vunpack.c.l.s4 1934713408
        %v3287 = vunpack.c.0.s8 %v3286
        %v3288 = vlaneseq
        %v3289 = vshrl.u32 %v3288, 7
        %v3290 = vsub.s32 %v3287, %v3289
        %v3291 = vrot.slane %v3277, %v3290
        %v3292 = vcombine.high %v3276, 0
        %v3294 = vunpack.c.l.s4 1934713408
        %v3295 = vunpack.c.0.s8 %v3294
        %v3296 = vlaneseq
        %v3297 = vshrl.u32 %v3296, 7
        %v3298 = vsub.s32 %v3295, %v3297
        %v3299 = vrot.slane %v3276, %v3298
        %v3301 = vunpack.c.l.s4 1934713408
        %v3302 = vunpack.c.0.s8 %v3301
        %v3303 = vlaneseq
        %v3304 = vshrl.u32 %v3303, 7
        %v3305 = vsub.s32 %v3302, %v3304
        %v3306 = vrot.slane %v3292, %v3305
        %v3307 = vcombine.high %v3284, 0
        %v3308 = vcombine.high %v3291, 0
        %v3309 = vcombine.high %v3299, 0
        %v3310 = vcombine.high %v3306, 0
        %v3311 = vcombine.high %v3146, %v3138
        %v3313 = vunpack.c.l.s4 1983009808
        %v3314 = vunpack.c.0.s8 %v3313
        %v3315 = vlaneseq
        %v3316 = vshrl.u32 %v3315, 7
        %v3317 = vsub.s32 %v3314, %v3316
        %v3318 = vrot.slane %v3146, %v3317
        %v3320 = vunpack.c.l.s4 1983009808
        %v3321 = vunpack.c.0.s8 %v3320
        %v3322 = vlaneseq
        %v3323 = vshrl.u32 %v3322, 7
        %v3324 = vsub.s32 %v3321, %v3323
        %v3325 = vrot.slane %v3311, %v3324
        %v3326 = vcombine.high %v3318, 0
        %v3328 = vunpack.c.l.s4 1934713408
        %v3329 = vunpack.c.0.s8 %v3328
        %v3330 = vlaneseq
        %v3331 = vshrl.u32 %v3330, 7
        %v3332 = vsub.s32 %v3329, %v3331
        %v3333 = vrot.slane %v3318, %v3332
        %v3335 = vunpack.c.l.s4 1934713408
        %v3336 = vunpack.c.0.s8 %v3335
        %v3337 = vlaneseq
        %v3338 = vshrl.u32 %v3337, 7
        %v3339 = vsub.s32 %v3336, %v3338
        %v3340 = vrot.slane %v3326, %v3339
        %v3341 = vcombine.high %v3325, 0
        %v3343 = vunpack.c.l.s4 1934713408
        %v3344 = vunpack.c.0.s8 %v3343
        %v3345 = vlaneseq
        %v3346 = vshrl.u32 %v3345, 7
        %v3347 = vsub.s32 %v3344, %v3346
        %v3348 = vrot.slane %v3325, %v3347
        %v3350 = vunpack.c.l.s4 1934713408
        %v3351 = vunpack.c.0.s8 %v3350
        %v3352 = vlaneseq
        %v3353 = vshrl.u32 %v3352, 7
        %v3354 = vsub.s32 %v3351, %v3353
        %v3355 = vrot.slane %v3341, %v3354
        %v3356 = vcombine.high %v3333, 0
        %v3357 = vcombine.high %v3340, 0
        %v3358 = vcombine.high %v3348, 0
        %v3359 = vcombine.high %v3355, 0
        %v3360 = vcombine.high %v3150, %v3135
        %v3362 = vunpack.c.l.s4 1983009808
        %v3363 = vunpack.c.0.s8 %v3362
        %v3364 = vlaneseq
        %v3365 = vshrl.u32 %v3364, 7
        %v3366 = vsub.s32 %v3363, %v3365
        %v3367 = vrot.slane %v3150, %v3366
        %v3369 = vunpack.c.l.s4 1983009808
        %v3370 = vunpack.c.0.s8 %v3369
        %v3371 = vlaneseq
        %v3372 = vshrl.u32 %v3371, 7
        %v3373 = vsub.s32 %v3370, %v3372
        %v3374 = vrot.slane %v3360, %v3373
        %v3375 = vcombine.high %v3367, 0
        %v3377 = vunpack.c.l.s4 1934713408
        %v3378 = vunpack.c.0.s8 %v3377
        %v3379 = vlaneseq
        %v3380 = vshrl.u32 %v3379, 7
        %v3381 = vsub.s32 %v3378, %v3380
        %v3382 = vrot.slane %v3367, %v3381
        %v3384 = vunpack.c.l.s4 1934713408
        %v3385 = vunpack.c.0.s8 %v3384
        %v3386 = vlaneseq
        %v3387 = vshrl.u32 %v3386, 7
        %v3388 = vsub.s32 %v3385, %v3387
        %v3389 = vrot.slane %v3375, %v3388
        %v3390 = vcombine.high %v3374, 0
        %v3392 = vunpack.c.l.s4 1934713408
        %v3393 = vunpack.c.0.s8 %v3392
        %v3394 = vlaneseq
        %v3395 = vshrl.u32 %v3394, 7
        %v3396 = vsub.s32 %v3393, %v3395
        %v3397 = vrot.slane %v3374, %v3396
        %v3399 = vunpack.c.l.s4 1934713408
        %v3400 = vunpack.c.0.s8 %v3399
        %v3401 = vlaneseq
        %v3402 = vshrl.u32 %v3401, 7
        %v3403 = vsub.s32 %v3400, %v3402
        %v3404 = vrot.slane %v3390, %v3403
        %v3405 = vcombine.high %v3382, 0
        %v3406 = vcombine.high %v3389, 0
        %v3407 = vcombine.high %v3397, 0
        %v3408 = vcombine.high %v3404, 0
        %v3409 = vcombine.high %v3154, %v3138
        %v3411 = vunpack.c.l.s4 1983009808
        %v3412 = vunpack.c.0.s8 %v3411
        %v3413 = vlaneseq
        %v3414 = vshrl.u32 %v3413, 7
        %v3415 = vsub.s32 %v3412, %v3414
        %v3416 = vrot.slane %v3154, %v3415
        %v3418 = vunpack.c.l.s4 1983009808
        %v3419 = vunpack.c.0.s8 %v3418
        %v3420 = vlaneseq
        %v3421 = vshrl.u32 %v3420, 7
        %v3422 = vsub.s32 %v3419, %v3421
        %v3423 = vrot.slane %v3409, %v3422
        %v3424 = vcombine.high %v3416, 0
        %v3426 = vunpack.c.l.s4 1934713408
        %v3427 = vunpack.c.0.s8 %v3426
        %v3428 = vlaneseq
        %v3429 = vshrl.u32 %v3428, 7
        %v3430 = vsub.s32 %v3427, %v3429
        %v3431 = vrot.slane %v3416, %v3430
        %v3433 = vunpack.c.l.s4 1934713408
        %v3434 = vunpack.c.0.s8 %v3433
        %v3435 = vlaneseq
        %v3436 = vshrl.u32 %v3435, 7
        %v3437 = vsub.s32 %v3434, %v3436
        %v3438 = vrot.slane %v3424, %v3437
        %v3439 = vcombine.high %v3423, 0
        %v3441 = vunpack.c.l.s4 1934713408
        %v3442 = vunpack.c.0.s8 %v3441
        %v3443 = vlaneseq
        %v3444 = vshrl.u32 %v3443, 7
        %v3445 = vsub.s32 %v3442, %v3444
        %v3446 = vrot.slane %v3423, %v3445
        %v3448 = vunpack.c.l.s4 1934713408
        %v3449 = vunpack.c.0.s8 %v3448
        %v3450 = vlaneseq
        %v3451 = vshrl.u32 %v3450, 7
        %v3452 = vsub.s32 %v3449, %v3451
        %v3453 = vrot.slane %v3439, %v3452
        %v3454 = vcombine.high %v3431, 0
        %v3455 = vcombine.high %v3438, 0
        %v3456 = vcombine.high %v3446, 0
        %v3457 = vcombine.high %v3453, 0
        %v3458 = vcombine.high %v3158, %v3135
        %v3460 = vunpack.c.l.s4 1983009808
        %v3461 = vunpack.c.0.s8 %v3460
        %v3462 = vlaneseq
        %v3463 = vshrl.u32 %v3462, 7
        %v3464 = vsub.s32 %v3461, %v3463
        %v3465 = vrot.slane %v3158, %v3464
        %v3467 = vunpack.c.l.s4 1983009808
        %v3468 = vunpack.c.0.s8 %v3467
        %v3469 = vlaneseq
        %v3470 = vshrl.u32 %v3469, 7
        %v3471 = vsub.s32 %v3468, %v3470
        %v3472 = vrot.slane %v3458, %v3471
        %v3473 = vcombine.high %v3465, 0
        %v3475 = vunpack.c.l.s4 1934713408
        %v3476 = vunpack.c.0.s8 %v3475
        %v3477 = vlaneseq
        %v3478 = vshrl.u32 %v3477, 7
        %v3479 = vsub.s32 %v3476, %v3478
        %v3480 = vrot.slane %v3465, %v3479
        %v3482 = vunpack.c.l.s4 1934713408
        %v3483 = vunpack.c.0.s8 %v3482
        %v3484 = vlaneseq
        %v3485 = vshrl.u32 %v3484, 7
        %v3486 = vsub.s32 %v3483, %v3485
        %v3487 = vrot.slane %v3473, %v3486
        %v3488 = vcombine.high %v3472, 0
        %v3490 = vunpack.c.l.s4 1934713408
        %v3491 = vunpack.c.0.s8 %v3490
        %v3492 = vlaneseq
        %v3493 = vshrl.u32 %v3492, 7
        %v3494 = vsub.s32 %v3491, %v3493
        %v3495 = vrot.slane %v3472, %v3494
        %v3497 = vunpack.c.l.s4 1934713408
        %v3498 = vunpack.c.0.s8 %v3497
        %v3499 = vlaneseq
        %v3500 = vshrl.u32 %v3499, 7
        %v3501 = vsub.s32 %v3498, %v3500
        %v3502 = vrot.slane %v3488, %v3501
        %v3503 = vcombine.high %v3480, 0
        %v3504 = vcombine.high %v3487, 0
        %v3505 = vcombine.high %v3495, 0
        %v3506 = vcombine.high %v3502, 0
        %v3507 = vcombine.high %v3162, %v3138
        %v3509 = vunpack.c.l.s4 1983009808
        %v3510 = vunpack.c.0.s8 %v3509
        %v3511 = vlaneseq
        %v3512 = vshrl.u32 %v3511, 7
        %v3513 = vsub.s32 %v3510, %v3512
        %v3514 = vrot.slane %v3162, %v3513
        %v3516 = vunpack.c.l.s4 1983009808
        %v3517 = vunpack.c.0.s8 %v3516
        %v3518 = vlaneseq
        %v3519 = vshrl.u32 %v3518, 7
        %v3520 = vsub.s32 %v3517, %v3519
        %v3521 = vrot.slane %v3507, %v3520
        %v3522 = vcombine.high %v3514, 0
        %v3524 = vunpack.c.l.s4 1934713408
        %v3525 = vunpack.c.0.s8 %v3524
        %v3526 = vlaneseq
        %v3527 = vshrl.u32 %v3526, 7
        %v3528 = vsub.s32 %v3525, %v3527
        %v3529 = vrot.slane %v3514, %v3528
        %v3531 = vunpack.c.l.s4 1934713408
        %v3532 = vunpack.c.0.s8 %v3531
        %v3533 = vlaneseq
        %v3534 = vshrl.u32 %v3533, 7
        %v3535 = vsub.s32 %v3532, %v3534
        %v3536 = vrot.slane %v3522, %v3535
        %v3537 = vcombine.high %v3521, 0
        %v3539 = vunpack.c.l.s4 1934713408
        %v3540 = vunpack.c.0.s8 %v3539
        %v3541 = vlaneseq
        %v3542 = vshrl.u32 %v3541, 7
        %v3543 = vsub.s32 %v3540, %v3542
        %v3544 = vrot.slane %v3521, %v3543
        %v3546 = vunpack.c.l.s4 1934713408
        %v3547 = vunpack.c.0.s8 %v3546
        %v3548 = vlaneseq
        %v3549 = vshrl.u32 %v3548, 7
        %v3550 = vsub.s32 %v3547, %v3549
        %v3551 = vrot.slane %v3537, %v3550
        %v3552 = vcombine.high %v3529, 0
        %v3553 = vcombine.high %v3536, 0
        %v3554 = vcombine.high %v3544, 0
        %v3555 = vcombine.high %v3551, 0
        %v3556 = vcombine.low %v3186, %v3193
        %v3558 = vunpack.c.l.s4 1983009808
        %v3559 = vunpack.c.0.s8 %v3558
        %v3560 = vlaneseq
        %v3561 = vshrl.u32 %v3560, 7
        %v3562 = vsub.s32 %v3559, %v3561
        %v3563 = vrot.slane %v3556, %v3562
        %v3564 = vcombine.low %v3209, %v3210
        %v3566 = vunpack.c.l.s4 1983009808
        %v3567 = vunpack.c.0.s8 %v3566
        %v3568 = vlaneseq
        %v3569 = vshrl.u32 %v3568, 7
        %v3570 = vsub.s32 %v3567, %v3569
        %v3571 = vrot.slane %v3564, %v3570
        %v3572 = vcombine.low %v3201, %v3208
        %v3574 = vunpack.c.l.s4 1983009808
        %v3575 = vunpack.c.0.s8 %v3574
        %v3576 = vlaneseq
        %v3577 = vshrl.u32 %v3576, 7
        %v3578 = vsub.s32 %v3575, %v3577
        %v3579 = vrot.slane %v3572, %v3578
        %v3580 = vcombine.low %v3211, %v3212
        %v3582 = vunpack.c.l.s4 1983009808
        %v3583 = vunpack.c.0.s8 %v3582
        %v3584 = vlaneseq
        %v3585 = vshrl.u32 %v3584, 7
        %v3586 = vsub.s32 %v3583, %v3585
        %v3587 = vrot.slane %v3580, %v3586
        %v3588 = vcombine.low %v3563, %v3571
        %v3590 = vunpack.c.l.s4 1934713408
        %v3591 = vunpack.c.0.s8 %v3590
        %v3592 = vlaneseq
        %v3593 = vshrl.u32 %v3592, 7
        %v3594 = vsub.s32 %v3591, %v3593
        %v3595 = vrot.slane %v3588, %v3594
        %v3596 = vcombine.low %v3579, %v3587
        %v3598 = vunpack.c.l.s4 1934713408
        %v3599 = vunpack.c.0.s8 %v3598
        %v3600 = vlaneseq
        %v3601 = vshrl.u32 %v3600, 7
        %v3602 = vsub.s32 %v3599, %v3601
        %v3603 = vrot.slane %v3596, %v3602
        %v3604 = vcombine.low %v3595, %v3603
        %v3605 = vcombine.low %v3235, %v3242
        %v3607 = vunpack.c.l.s4 1983009808
        %v3608 = vunpack.c.0.s8 %v3607
        %v3609 = vlaneseq
        %v3610 = vshrl.u32 %v3609, 7
        %v3611 = vsub.s32 %v3608, %v3610
        %v3612 = vrot.slane %v3605, %v3611
        %v3613 = vcombine.low %v3258, %v3259
        %v3615 = vunpack.c.l.s4 1983009808
        %v3616 = vunpack.c.0.s8 %v3615
        %v3617 = vlaneseq
        %v3618 = vshrl.u32 %v3617, 7
        %v3619 = vsub.s32 %v3616, %v3618
        %v3620 = vrot.slane %v3613, %v3619
        %v3621 = vcombine.low %v3250, %v3257
        %v3623 = vunpack.c.l.s4 1983009808
        %v3624 = vunpack.c.0.s8 %v3623
        %v3625 = vlaneseq
        %v3626 = vshrl.u32 %v3625, 7
        %v3627 = vsub.s32 %v3624, %v3626
        %v3628 = vrot.slane %v3621, %v3627
        %v3629 = vcombine.low %v3260, %v3261
        %v3631 = vunpack.c.l.s4 1983009808
        %v3632 = vunpack.c.0.s8 %v3631
        %v3633 = vlaneseq
        %v3634 = vshrl.u32 %v3633, 7
        %v3635 = vsub.s32 %v3632, %v3634
        %v3636 = vrot.slane %v3629, %v3635
        %v3637 = vcombine.low %v3612, %v3620
        %v3639 = vunpack.c.l.s4 1934713408
        %v3640 = vunpack.c.0.s8 %v3639
        %v3641 = vlaneseq
        %v3642 = vshrl.u32 %v3641, 7
        %v3643 = vsub.s32 %v3640, %v3642
        %v3644 = vrot.slane %v3637, %v3643
        %v3645 = vcombine.low %v3628, %v3636
        %v3647 = vunpack.c.l.s4 1934713408
        %v3648 = vunpack.c.0.s8 %v3647
        %v3649 = vlaneseq
        %v3650 = vshrl.u32 %v3649, 7
        %v3651 = vsub.s32 %v3648, %v3650
        %v3652 = vrot.slane %v3645, %v3651
        %v3653 = vcombine.low %v3644, %v3652
        %v3654 = vcombine.low %v3284, %v3291
        %v3656 = vunpack.c.l.s4 1983009808
        %v3657 = vunpack.c.0.s8 %v3656
        %v3658 = vlaneseq
        %v3659 = vshrl.u32 %v3658, 7
        %v3660 = vsub.s32 %v3657, %v3659
        %v3661 = vrot.slane %v3654, %v3660
        %v3662 = vcombine.low %v3307, %v3308
        %v3664 = vunpack.c.l.s4 1983009808
        %v3665 = vunpack.c.0.s8 %v3664
        %v3666 = vlaneseq
        %v3667 = vshrl.u32 %v3666, 7
        %v3668 = vsub.s32 %v3665, %v3667
        %v3669 = vrot.slane %v3662, %v3668
        %v3670 = vcombine.low %v3299, %v3306
        %v3672 = vunpack.c.l.s4 1983009808
        %v3673 = vunpack.c.0.s8 %v3672
        %v3674 = vlaneseq
        %v3675 = vshrl.u32 %v3674, 7
        %v3676 = vsub.s32 %v3673, %v3675
        %v3677 = vrot.slane %v3670, %v3676
        %v3678 = vcombine.low %v3309, %v3310
        %v3680 = vunpack.c.l.s4 1983009808
        %v3681 = vunpack.c.0.s8 %v3680
        %v3682 = vlaneseq
        %v3683 = vshrl.u32 %v3682, 7
        %v3684 = vsub.s32 %v3681, %v3683
        %v3685 = vrot.slane %v3678, %v3684
        %v3686 = vcombine.low %v3661, %v3669
        %v3688 = vunpack.c.l.s4 1934713408
        %v3689 = vunpack.c.0.s8 %v3688
        %v3690 = vlaneseq
        %v3691 = vshrl.u32 %v3690, 7
        %v3692 = vsub.s32 %v3689, %v3691
        %v3693 = vrot.slane %v3686, %v3692
        %v3694 = vcombine.low %v3677, %v3685
        %v3696 = vunpack.c.l.s4 1934713408
        %v3697 = vunpack.c.0.s8 %v3696
        %v3698 = vlaneseq
        %v3699 = vshrl.u32 %v3698, 7
        %v3700 = vsub.s32 %v3697, %v3699
        %v3701 = vrot.slane %v3694, %v3700
        %v3702 = vcombine.low %v3693, %v3701
        %v3703 = vcombine.low %v3333, %v3340
        %v3705 = vunpack.c.l.s4 1983009808
        %v3706 = vunpack.c.0.s8 %v3705
        %v3707 = vlaneseq
        %v3708 = vshrl.u32 %v3707, 7
        %v3709 = vsub.s32 %v3706, %v3708
        %v3710 = vrot.slane %v3703, %v3709
        %v3711 = vcombine.low %v3356, %v3357
        %v3713 = vunpack.c.l.s4 1983009808
        %v3714 = vunpack.c.0.s8 %v3713
        %v3715 = vlaneseq
        %v3716 = vshrl.u32 %v3715, 7
        %v3717 = vsub.s32 %v3714, %v3716
        %v3718 = vrot.slane %v3711, %v3717
        %v3719 = vcombine.low %v3348, %v3355
        %v3721 = vunpack.c.l.s4 1983009808
        %v3722 = vunpack.c.0.s8 %v3721
        %v3723 = vlaneseq
        %v3724 = vshrl.u32 %v3723, 7
        %v3725 = vsub.s32 %v3722, %v3724
        %v3726 = vrot.slane %v3719, %v3725
        %v3727 = vcombine.low %v3358, %v3359
        %v3729 = vunpack.c.l.s4 1983009808
        %v3730 = vunpack.c.0.s8 %v3729
        %v3731 = vlaneseq
        %v3732 = vshrl.u32 %v3731, 7
        %v3733 = vsub.s32 %v3730, %v3732
        %v3734 = vrot.slane %v3727, %v3733
        %v3735 = vcombine.low %v3710, %v3718
        %v3737 = vunpack.c.l.s4 1934713408
        %v3738 = vunpack.c.0.s8 %v3737
        %v3739 = vlaneseq
        %v3740 = vshrl.u32 %v3739, 7
        %v3741 = vsub.s32 %v3738, %v3740
        %v3742 = vrot.slane %v3735, %v3741
        %v3743 = vcombine.low %v3726, %v3734
        %v3745 = vunpack.c.l.s4 1934713408
        %v3746 = vunpack.c.0.s8 %v3745
        %v3747 = vlaneseq
        %v3748 = vshrl.u32 %v3747, 7
        %v3749 = vsub.s32 %v3746, %v3748
        %v3750 = vrot.slane %v3743, %v3749
        %v3751 = vcombine.low %v3742, %v3750
        %v3752 = vcombine.low %v3382, %v3389
        %v3754 = vunpack.c.l.s4 1983009808
        %v3755 = vunpack.c.0.s8 %v3754
        %v3756 = vlaneseq
        %v3757 = vshrl.u32 %v3756, 7
        %v3758 = vsub.s32 %v3755, %v3757
        %v3759 = vrot.slane %v3752, %v3758
        %v3760 = vcombine.low %v3405, %v3406
        %v3762 = vunpack.c.l.s4 1983009808
        %v3763 = vunpack.c.0.s8 %v3762
        %v3764 = vlaneseq
        %v3765 = vshrl.u32 %v3764, 7
        %v3766 = vsub.s32 %v3763, %v3765
        %v3767 = vrot.slane %v3760, %v3766
        %v3768 = vcombine.low %v3397, %v3404
        %v3770 = vunpack.c.l.s4 1983009808
        %v3771 = vunpack.c.0.s8 %v3770
        %v3772 = vlaneseq
        %v3773 = vshrl.u32 %v3772, 7
        %v3774 = vsub.s32 %v3771, %v3773
        %v3775 = vrot.slane %v3768, %v3774
        %v3776 = vcombine.low %v3407, %v3408
        %v3778 = vunpack.c.l.s4 1983009808
        %v3779 = vunpack.c.0.s8 %v3778
        %v3780 = vlaneseq
        %v3781 = vshrl.u32 %v3780, 7
        %v3782 = vsub.s32 %v3779, %v3781
        %v3783 = vrot.slane %v3776, %v3782
        %v3784 = vcombine.low %v3759, %v3767
        %v3786 = vunpack.c.l.s4 1934713408
        %v3787 = vunpack.c.0.s8 %v3786
        %v3788 = vlaneseq
        %v3789 = vshrl.u32 %v3788, 7
        %v3790 = vsub.s32 %v3787, %v3789
        %v3791 = vrot.slane %v3784, %v3790
        %v3792 = vcombine.low %v3775, %v3783
        %v3794 = vunpack.c.l.s4 1934713408
        %v3795 = vunpack.c.0.s8 %v3794
        %v3796 = vlaneseq
        %v3797 = vshrl.u32 %v3796, 7
        %v3798 = vsub.s32 %v3795, %v3797
        %v3799 = vrot.slane %v3792, %v3798
        %v3800 = vcombine.low %v3791, %v3799
        %v3801 = vcombine.low %v3431, %v3438
        %v3803 = vunpack.c.l.s4 1983009808
        %v3804 = vunpack.c.0.s8 %v3803
        %v3805 = vlaneseq
        %v3806 = vshrl.u32 %v3805, 7
        %v3807 = vsub.s32 %v3804, %v3806
        %v3808 = vrot.slane %v3801, %v3807
        %v3809 = vcombine.low %v3454, %v3455
        %v3811 = vunpack.c.l.s4 1983009808
        %v3812 = vunpack.c.0.s8 %v3811
        %v3813 = vlaneseq
        %v3814 = vshrl.u32 %v3813, 7
        %v3815 = vsub.s32 %v3812, %v3814
        %v3816 = vrot.slane %v3809, %v3815
        %v3817 = vcombine.low %v3446, %v3453
        %v3819 = vunpack.c.l.s4 1983009808
        %v3820 = vunpack.c.0.s8 %v3819
        %v3821 = vlaneseq
        %v3822 = vshrl.u32 %v3821, 7
        %v3823 = vsub.s32 %v3820, %v3822
        %v3824 = vrot.slane %v3817, %v3823
        %v3825 = vcombine.low %v3456, %v3457
        %v3827 = vunpack.c.l.s4 1983009808
        %v3828 = vunpack.c.0.s8 %v3827
        %v3829 = vlaneseq
        %v3830 = vshrl.u32 %v3829, 7
        %v3831 = vsub.s32 %v3828, %v3830
        %v3832 = vrot.slane %v3825, %v3831
        %v3833 = vcombine.low %v3808, %v3816
        %v3835 = vunpack.c.l.s4 1934713408
        %v3836 = vunpack.c.0.s8 %v3835
        %v3837 = vlaneseq
        %v3838 = vshrl.u32 %v3837, 7
        %v3839 = vsub.s32 %v3836, %v3838
        %v3840 = vrot.slane %v3833, %v3839
        %v3841 = vcombine.low %v3824, %v3832
        %v3843 = vunpack.c.l.s4 1934713408
        %v3844 = vunpack.c.0.s8 %v3843
        %v3845 = vlaneseq
        %v3846 = vshrl.u32 %v3845, 7
        %v3847 = vsub.s32 %v3844, %v3846
        %v3848 = vrot.slane %v3841, %v3847
        %v3849 = vcombine.low %v3840, %v3848
        %v3850 = vcombine.low %v3480, %v3487
        %v3852 = vunpack.c.l.s4 1983009808
        %v3853 = vunpack.c.0.s8 %v3852
        %v3854 = vlaneseq
        %v3855 = vshrl.u32 %v3854, 7
        %v3856 = vsub.s32 %v3853, %v3855
        %v3857 = vrot.slane %v3850, %v3856
        %v3858 = vcombine.low %v3503, %v3504
        %v3860 = vunpack.c.l.s4 1983009808
        %v3861 = vunpack.c.0.s8 %v3860
        %v3862 = vlaneseq
        %v3863 = vshrl.u32 %v3862, 7
        %v3864 = vsub.s32 %v3861, %v3863
        %v3865 = vrot.slane %v3858, %v3864
        %v3866 = vcombine.low %v3495, %v3502
        %v3868 = vunpack.c.l.s4 1983009808
        %v3869 = vunpack.c.0.s8 %v3868
        %v3870 = vlaneseq
        %v3871 = vshrl.u32 %v3870, 7
        %v3872 = vsub.s32 %v3869, %v3871
        %v3873 = vrot.slane %v3866, %v3872
        %v3874 = vcombine.low %v3505, %v3506
        %v3876 = vunpack.c.l.s4 1983009808
        %v3877 = vunpack.c.0.s8 %v3876
        %v3878 = vlaneseq
        %v3879 = vshrl.u32 %v3878, 7
        %v3880 = vsub.s32 %v3877, %v3879
        %v3881 = vrot.slane %v3874, %v3880
        %v3882 = vcombine.low %v3857, %v3865
        %v3884 = vunpack.c.l.s4 1934713408
        %v3885 = vunpack.c.0.s8 %v3884
        %v3886 = vlaneseq
        %v3887 = vshrl.u32 %v3886, 7
        %v3888 = vsub.s32 %v3885, %v3887
        %v3889 = vrot.slane %v3882, %v3888
        %v3890 = vcombine.low %v3873, %v3881
        %v3892 = vunpack.c.l.s4 1934713408
        %v3893 = vunpack.c.0.s8 %v3892
        %v3894 = vlaneseq
        %v3895 = vshrl.u32 %v3894, 7
        %v3896 = vsub.s32 %v3893, %v3895
        %v3897 = vrot.slane %v3890, %v3896
        %v3898 = vcombine.low %v3889, %v3897
        %v3899 = vcombine.low %v3529, %v3536
        %v3901 = vunpack.c.l.s4 1983009808
        %v3902 = vunpack.c.0.s8 %v3901
        %v3903 = vlaneseq
        %v3904 = vshrl.u32 %v3903, 7
        %v3905 = vsub.s32 %v3902, %v3904
        %v3906 = vrot.slane %v3899, %v3905
        %v3907 = vcombine.low %v3552, %v3553
        %v3909 = vunpack.c.l.s4 1983009808
        %v3910 = vunpack.c.0.s8 %v3909
        %v3911 = vlaneseq
        %v3912 = vshrl.u32 %v3911, 7
        %v3913 = vsub.s32 %v3910, %v3912
        %v3914 = vrot.slane %v3907, %v3913
        %v3915 = vcombine.low %v3544, %v3551
        %v3917 = vunpack.c.l.s4 1983009808
        %v3918 = vunpack.c.0.s8 %v3917
        %v3919 = vlaneseq
        %v3920 = vshrl.u32 %v3919, 7
        %v3921 = vsub.s32 %v3918, %v3920
        %v3922 = vrot.slane %v3915, %v3921
        %v3923 = vcombine.low %v3554, %v3555
        %v3925 = vunpack.c.l.s4 1983009808
        %v3926 = vunpack.c.0.s8 %v3925
        %v3927 = vlaneseq
        %v3928 = vshrl.u32 %v3927, 7
        %v3929 = vsub.s32 %v3926, %v3928
        %v3930 = vrot.slane %v3923, %v3929
        %v3931 = vcombine.low %v3906, %v3914
        %v3933 = vunpack.c.l.s4 1934713408
        %v3934 = vunpack.c.0.s8 %v3933
        %v3935 = vlaneseq
        %v3936 = vshrl.u32 %v3935, 7
        %v3937 = vsub.s32 %v3934, %v3936
        %v3938 = vrot.slane %v3931, %v3937
        %v3939 = vcombine.low %v3922, %v3930
        %v3941 = vunpack.c.l.s4 1934713408
        %v3942 = vunpack.c.0.s8 %v3941
        %v3943 = vlaneseq
        %v3944 = vshrl.u32 %v3943, 7
        %v3945 = vsub.s32 %v3942, %v3944
        %v3946 = vrot.slane %v3939, %v3945
        %v3947 = vcombine.low %v3938, %v3946
        %v3950 = vpack.i.b16 %v3653, %v3604
        %v3952 = vshrl.u32 %v3604, 16
        %v3953 = vshrl.u32 %v3653, 16
        %v3954 = vpack.i.b16 %v3953, %v3952
        %v3958 = vpack.i.b16 %v3751, %v3702
        %v3960 = vshrl.u32 %v3702, 16
        %v3961 = vshrl.u32 %v3751, 16
        %v3962 = vpack.i.b16 %v3961, %v3960
        %v3966 = vpack.i.b16 %v3849, %v3800
        %v3968 = vshrl.u32 %v3800, 16
        %v3969 = vshrl.u32 %v3849, 16
        %v3970 = vpack.i.b16 %v3969, %v3968
        %v3974 = vpack.i.b16 %v3947, %v3898
        %v3976 = vshrl.u32 %v3898, 16
        %v3977 = vshrl.u32 %v3947, 16
        %v3978 = vpack.i.b16 %v3977, %v3976
        %v3980 = vpack.c.bf16 %v3084, %v3080
        %v3981 = vpack.c.bf16 %v3086, %v3082
        %v3982 = vpack.c.bf16 %v3094, %v3090
        %v3983 = vpack.c.bf16 %v3096, %v3092
        %v3984 = vpack.c.bf16 %v3104, %v3100
        %v3985 = vpack.c.bf16 %v3106, %v3102
        %v3986 = vpack.c.bf16 %v3114, %v3110
        %v3987 = vpack.c.bf16 %v3116, %v3112
        %v3990 = vpack.i.b16 %v3981, %v3980
        %v3992 = vshrl.u32 %v3980, 16
        %v3993 = vshrl.u32 %v3981, 16
        %v3994 = vpack.i.b16 %v3993, %v3992
        %v3998 = vpack.i.b16 %v3983, %v3982
        %v4000 = vshrl.u32 %v3982, 16
        %v4001 = vshrl.u32 %v3983, 16
        %v4002 = vpack.i.b16 %v4001, %v4000
        %v4006 = vpack.i.b16 %v3985, %v3984
        %v4008 = vshrl.u32 %v3984, 16
        %v4009 = vshrl.u32 %v3985, 16
        %v4010 = vpack.i.b16 %v4009, %v4008
        %v4014 = vpack.i.b16 %v3987, %v3986
        %v4016 = vshrl.u32 %v3986, 16
        %v4017 = vshrl.u32 %v3987, 16
        %v4018 = vpack.i.b16 %v4017, %v4016
        %v4020 = vcombine.high %v3990, %v3135
        %v4022 = vunpack.c.l.s4 1983009808
        %v4023 = vunpack.c.0.s8 %v4022
        %v4024 = vlaneseq
        %v4025 = vshrl.u32 %v4024, 7
        %v4026 = vsub.s32 %v4023, %v4025
        %v4027 = vrot.slane %v3990, %v4026
        %v4029 = vunpack.c.l.s4 1983009808
        %v4030 = vunpack.c.0.s8 %v4029
        %v4031 = vlaneseq
        %v4032 = vshrl.u32 %v4031, 7
        %v4033 = vsub.s32 %v4030, %v4032
        %v4034 = vrot.slane %v4020, %v4033
        %v4035 = vcombine.high %v4027, 0
        %v4037 = vunpack.c.l.s4 1934713408
        %v4038 = vunpack.c.0.s8 %v4037
        %v4039 = vlaneseq
        %v4040 = vshrl.u32 %v4039, 7
        %v4041 = vsub.s32 %v4038, %v4040
        %v4042 = vrot.slane %v4027, %v4041
        %v4044 = vunpack.c.l.s4 1934713408
        %v4045 = vunpack.c.0.s8 %v4044
        %v4046 = vlaneseq
        %v4047 = vshrl.u32 %v4046, 7
        %v4048 = vsub.s32 %v4045, %v4047
        %v4049 = vrot.slane %v4035, %v4048
        %v4050 = vcombine.high %v4034, 0
        %v4052 = vunpack.c.l.s4 1934713408
        %v4053 = vunpack.c.0.s8 %v4052
        %v4054 = vlaneseq
        %v4055 = vshrl.u32 %v4054, 7
        %v4056 = vsub.s32 %v4053, %v4055
        %v4057 = vrot.slane %v4034, %v4056
        %v4059 = vunpack.c.l.s4 1934713408
        %v4060 = vunpack.c.0.s8 %v4059
        %v4061 = vlaneseq
        %v4062 = vshrl.u32 %v4061, 7
        %v4063 = vsub.s32 %v4060, %v4062
        %v4064 = vrot.slane %v4050, %v4063
        %v4065 = vcombine.high %v4042, 0
        %v4066 = vcombine.high %v4049, 0
        %v4067 = vcombine.high %v4057, 0
        %v4068 = vcombine.high %v4064, 0
        %v4069 = vcombine.high %v3994, %v3138
        %v4071 = vunpack.c.l.s4 1983009808
        %v4072 = vunpack.c.0.s8 %v4071
        %v4073 = vlaneseq
        %v4074 = vshrl.u32 %v4073, 7
        %v4075 = vsub.s32 %v4072, %v4074
        %v4076 = vrot.slane %v3994, %v4075
        %v4078 = vunpack.c.l.s4 1983009808
        %v4079 = vunpack.c.0.s8 %v4078
        %v4080 = vlaneseq
        %v4081 = vshrl.u32 %v4080, 7
        %v4082 = vsub.s32 %v4079, %v4081
        %v4083 = vrot.slane %v4069, %v4082
        %v4084 = vcombine.high %v4076, 0
        %v4086 = vunpack.c.l.s4 1934713408
        %v4087 = vunpack.c.0.s8 %v4086
        %v4088 = vlaneseq
        %v4089 = vshrl.u32 %v4088, 7
        %v4090 = vsub.s32 %v4087, %v4089
        %v4091 = vrot.slane %v4076, %v4090
        %v4093 = vunpack.c.l.s4 1934713408
        %v4094 = vunpack.c.0.s8 %v4093
        %v4095 = vlaneseq
        %v4096 = vshrl.u32 %v4095, 7
        %v4097 = vsub.s32 %v4094, %v4096
        %v4098 = vrot.slane %v4084, %v4097
        %v4099 = vcombine.high %v4083, 0
        %v4101 = vunpack.c.l.s4 1934713408
        %v4102 = vunpack.c.0.s8 %v4101
        %v4103 = vlaneseq
        %v4104 = vshrl.u32 %v4103, 7
        %v4105 = vsub.s32 %v4102, %v4104
        %v4106 = vrot.slane %v4083, %v4105
        %v4108 = vunpack.c.l.s4 1934713408
        %v4109 = vunpack.c.0.s8 %v4108
        %v4110 = vlaneseq
        %v4111 = vshrl.u32 %v4110, 7
        %v4112 = vsub.s32 %v4109, %v4111
        %v4113 = vrot.slane %v4099, %v4112
        %v4114 = vcombine.high %v4091, 0
        %v4115 = vcombine.high %v4098, 0
        %v4116 = vcombine.high %v4106, 0
        %v4117 = vcombine.high %v4113, 0
        %v4118 = vcombine.high %v3998, %v3135
        %v4120 = vunpack.c.l.s4 1983009808
        %v4121 = vunpack.c.0.s8 %v4120
        %v4122 = vlaneseq
        %v4123 = vshrl.u32 %v4122, 7
        %v4124 = vsub.s32 %v4121, %v4123
        %v4125 = vrot.slane %v3998, %v4124
        %v4127 = vunpack.c.l.s4 1983009808
        %v4128 = vunpack.c.0.s8 %v4127
        %v4129 = vlaneseq
        %v4130 = vshrl.u32 %v4129, 7
        %v4131 = vsub.s32 %v4128, %v4130
        %v4132 = vrot.slane %v4118, %v4131
        %v4133 = vcombine.high %v4125, 0
        %v4135 = vunpack.c.l.s4 1934713408
        %v4136 = vunpack.c.0.s8 %v4135
        %v4137 = vlaneseq
        %v4138 = vshrl.u32 %v4137, 7
        %v4139 = vsub.s32 %v4136, %v4138
        %v4140 = vrot.slane %v4125, %v4139
        %v4142 = vunpack.c.l.s4 1934713408
        %v4143 = vunpack.c.0.s8 %v4142
        %v4144 = vlaneseq
        %v4145 = vshrl.u32 %v4144, 7
        %v4146 = vsub.s32 %v4143, %v4145
        %v4147 = vrot.slane %v4133, %v4146
        %v4148 = vcombine.high %v4132, 0
        %v4150 = vunpack.c.l.s4 1934713408
        %v4151 = vunpack.c.0.s8 %v4150
        %v4152 = vlaneseq
        %v4153 = vshrl.u32 %v4152, 7
        %v4154 = vsub.s32 %v4151, %v4153
        %v4155 = vrot.slane %v4132, %v4154
        %v4157 = vunpack.c.l.s4 1934713408
        %v4158 = vunpack.c.0.s8 %v4157
        %v4159 = vlaneseq
        %v4160 = vshrl.u32 %v4159, 7
        %v4161 = vsub.s32 %v4158, %v4160
        %v4162 = vrot.slane %v4148, %v4161
        %v4163 = vcombine.high %v4140, 0
        %v4164 = vcombine.high %v4147, 0
        %v4165 = vcombine.high %v4155, 0
        %v4166 = vcombine.high %v4162, 0
        %v4167 = vcombine.high %v4002, %v3138
        %v4169 = vunpack.c.l.s4 1983009808
        %v4170 = vunpack.c.0.s8 %v4169
        %v4171 = vlaneseq
        %v4172 = vshrl.u32 %v4171, 7
        %v4173 = vsub.s32 %v4170, %v4172
        %v4174 = vrot.slane %v4002, %v4173
        %v4176 = vunpack.c.l.s4 1983009808
        %v4177 = vunpack.c.0.s8 %v4176
        %v4178 = vlaneseq
        %v4179 = vshrl.u32 %v4178, 7
        %v4180 = vsub.s32 %v4177, %v4179
        %v4181 = vrot.slane %v4167, %v4180
        %v4182 = vcombine.high %v4174, 0
        %v4184 = vunpack.c.l.s4 1934713408
        %v4185 = vunpack.c.0.s8 %v4184
        %v4186 = vlaneseq
        %v4187 = vshrl.u32 %v4186, 7
        %v4188 = vsub.s32 %v4185, %v4187
        %v4189 = vrot.slane %v4174, %v4188
        %v4191 = vunpack.c.l.s4 1934713408
        %v4192 = vunpack.c.0.s8 %v4191
        %v4193 = vlaneseq
        %v4194 = vshrl.u32 %v4193, 7
        %v4195 = vsub.s32 %v4192, %v4194
        %v4196 = vrot.slane %v4182, %v4195
        %v4197 = vcombine.high %v4181, 0
        %v4199 = vunpack.c.l.s4 1934713408
        %v4200 = vunpack.c.0.s8 %v4199
        %v4201 = vlaneseq
        %v4202 = vshrl.u32 %v4201, 7
        %v4203 = vsub.s32 %v4200, %v4202
        %v4204 = vrot.slane %v4181, %v4203
        %v4206 = vunpack.c.l.s4 1934713408
        %v4207 = vunpack.c.0.s8 %v4206
        %v4208 = vlaneseq
        %v4209 = vshrl.u32 %v4208, 7
        %v4210 = vsub.s32 %v4207, %v4209
        %v4211 = vrot.slane %v4197, %v4210
        %v4212 = vcombine.high %v4189, 0
        %v4213 = vcombine.high %v4196, 0
        %v4214 = vcombine.high %v4204, 0
        %v4215 = vcombine.high %v4211, 0
        %v4216 = vcombine.high %v4006, %v3135
        %v4218 = vunpack.c.l.s4 1983009808
        %v4219 = vunpack.c.0.s8 %v4218
        %v4220 = vlaneseq
        %v4221 = vshrl.u32 %v4220, 7
        %v4222 = vsub.s32 %v4219, %v4221
        %v4223 = vrot.slane %v4006, %v4222
        %v4225 = vunpack.c.l.s4 1983009808
        %v4226 = vunpack.c.0.s8 %v4225
        %v4227 = vlaneseq
        %v4228 = vshrl.u32 %v4227, 7
        %v4229 = vsub.s32 %v4226, %v4228
        %v4230 = vrot.slane %v4216, %v4229
        %v4231 = vcombine.high %v4223, 0
        %v4233 = vunpack.c.l.s4 1934713408
        %v4234 = vunpack.c.0.s8 %v4233
        %v4235 = vlaneseq
        %v4236 = vshrl.u32 %v4235, 7
        %v4237 = vsub.s32 %v4234, %v4236
        %v4238 = vrot.slane %v4223, %v4237
        %v4240 = vunpack.c.l.s4 1934713408
        %v4241 = vunpack.c.0.s8 %v4240
        %v4242 = vlaneseq
        %v4243 = vshrl.u32 %v4242, 7
        %v4244 = vsub.s32 %v4241, %v4243
        %v4245 = vrot.slane %v4231, %v4244
        %v4246 = vcombine.high %v4230, 0
        %v4248 = vunpack.c.l.s4 1934713408
        %v4249 = vunpack.c.0.s8 %v4248
        %v4250 = vlaneseq
        %v4251 = vshrl.u32 %v4250, 7
        %v4252 = vsub.s32 %v4249, %v4251
        %v4253 = vrot.slane %v4230, %v4252
        %v4255 = vunpack.c.l.s4 1934713408
        %v4256 = vunpack.c.0.s8 %v4255
        %v4257 = vlaneseq
        %v4258 = vshrl.u32 %v4257, 7
        %v4259 = vsub.s32 %v4256, %v4258
        %v4260 = vrot.slane %v4246, %v4259
        %v4261 = vcombine.high %v4238, 0
        %v4262 = vcombine.high %v4245, 0
        %v4263 = vcombine.high %v4253, 0
        %v4264 = vcombine.high %v4260, 0
        %v4265 = vcombine.high %v4010, %v3138
        %v4267 = vunpack.c.l.s4 1983009808
        %v4268 = vunpack.c.0.s8 %v4267
        %v4269 = vlaneseq
        %v4270 = vshrl.u32 %v4269, 7
        %v4271 = vsub.s32 %v4268, %v4270
        %v4272 = vrot.slane %v4010, %v4271
        %v4274 = vunpack.c.l.s4 1983009808
        %v4275 = vunpack.c.0.s8 %v4274
        %v4276 = vlaneseq
        %v4277 = vshrl.u32 %v4276, 7
        %v4278 = vsub.s32 %v4275, %v4277
        %v4279 = vrot.slane %v4265, %v4278
        %v4280 = vcombine.high %v4272, 0
        %v4282 = vunpack.c.l.s4 1934713408
        %v4283 = vunpack.c.0.s8 %v4282
        %v4284 = vlaneseq
        %v4285 = vshrl.u32 %v4284, 7
        %v4286 = vsub.s32 %v4283, %v4285
        %v4287 = vrot.slane %v4272, %v4286
        %v4289 = vunpack.c.l.s4 1934713408
        %v4290 = vunpack.c.0.s8 %v4289
        %v4291 = vlaneseq
        %v4292 = vshrl.u32 %v4291, 7
        %v4293 = vsub.s32 %v4290, %v4292
        %v4294 = vrot.slane %v4280, %v4293
        %v4295 = vcombine.high %v4279, 0
        %v4297 = vunpack.c.l.s4 1934713408
        %v4298 = vunpack.c.0.s8 %v4297
        %v4299 = vlaneseq
        %v4300 = vshrl.u32 %v4299, 7
        %v4301 = vsub.s32 %v4298, %v4300
        %v4302 = vrot.slane %v4279, %v4301
        %v4304 = vunpack.c.l.s4 1934713408
        %v4305 = vunpack.c.0.s8 %v4304
        %v4306 = vlaneseq
        %v4307 = vshrl.u32 %v4306, 7
        %v4308 = vsub.s32 %v4305, %v4307
        %v4309 = vrot.slane %v4295, %v4308
        %v4310 = vcombine.high %v4287, 0
        %v4311 = vcombine.high %v4294, 0
        %v4312 = vcombine.high %v4302, 0
        %v4313 = vcombine.high %v4309, 0
        %v4314 = vcombine.high %v4014, %v3135
        %v4316 = vunpack.c.l.s4 1983009808
        %v4317 = vunpack.c.0.s8 %v4316
        %v4318 = vlaneseq
        %v4319 = vshrl.u32 %v4318, 7
        %v4320 = vsub.s32 %v4317, %v4319
        %v4321 = vrot.slane %v4014, %v4320
        %v4323 = vunpack.c.l.s4 1983009808
        %v4324 = vunpack.c.0.s8 %v4323
        %v4325 = vlaneseq
        %v4326 = vshrl.u32 %v4325, 7
        %v4327 = vsub.s32 %v4324, %v4326
        %v4328 = vrot.slane %v4314, %v4327
        %v4329 = vcombine.high %v4321, 0
        %v4331 = vunpack.c.l.s4 1934713408
        %v4332 = vunpack.c.0.s8 %v4331
        %v4333 = vlaneseq
        %v4334 = vshrl.u32 %v4333, 7
        %v4335 = vsub.s32 %v4332, %v4334
        %v4336 = vrot.slane %v4321, %v4335
        %v4338 = vunpack.c.l.s4 1934713408
        %v4339 = vunpack.c.0.s8 %v4338
        %v4340 = vlaneseq
        %v4341 = vshrl.u32 %v4340, 7
        %v4342 = vsub.s32 %v4339, %v4341
        %v4343 = vrot.slane %v4329, %v4342
        %v4344 = vcombine.high %v4328, 0
        %v4346 = vunpack.c.l.s4 1934713408
        %v4347 = vunpack.c.0.s8 %v4346
        %v4348 = vlaneseq
        %v4349 = vshrl.u32 %v4348, 7
        %v4350 = vsub.s32 %v4347, %v4349
        %v4351 = vrot.slane %v4328, %v4350
        %v4353 = vunpack.c.l.s4 1934713408
        %v4354 = vunpack.c.0.s8 %v4353
        %v4355 = vlaneseq
        %v4356 = vshrl.u32 %v4355, 7
        %v4357 = vsub.s32 %v4354, %v4356
        %v4358 = vrot.slane %v4344, %v4357
        %v4359 = vcombine.high %v4336, 0
        %v4360 = vcombine.high %v4343, 0
        %v4361 = vcombine.high %v4351, 0
        %v4362 = vcombine.high %v4358, 0
        %v4363 = vcombine.high %v4018, %v3138
        %v4365 = vunpack.c.l.s4 1983009808
        %v4366 = vunpack.c.0.s8 %v4365
        %v4367 = vlaneseq
        %v4368 = vshrl.u32 %v4367, 7
        %v4369 = vsub.s32 %v4366, %v4368
        %v4370 = vrot.slane %v4018, %v4369
        %v4372 = vunpack.c.l.s4 1983009808
        %v4373 = vunpack.c.0.s8 %v4372
        %v4374 = vlaneseq
        %v4375 = vshrl.u32 %v4374, 7
        %v4376 = vsub.s32 %v4373, %v4375
        %v4377 = vrot.slane %v4363, %v4376
        %v4378 = vcombine.high %v4370, 0
        %v4380 = vunpack.c.l.s4 1934713408
        %v4381 = vunpack.c.0.s8 %v4380
        %v4382 = vlaneseq
        %v4383 = vshrl.u32 %v4382, 7
        %v4384 = vsub.s32 %v4381, %v4383
        %v4385 = vrot.slane %v4370, %v4384
        %v4387 = vunpack.c.l.s4 1934713408
        %v4388 = vunpack.c.0.s8 %v4387
        %v4389 = vlaneseq
        %v4390 = vshrl.u32 %v4389, 7
        %v4391 = vsub.s32 %v4388, %v4390
        %v4392 = vrot.slane %v4378, %v4391
        %v4393 = vcombine.high %v4377, 0
        %v4395 = vunpack.c.l.s4 1934713408
        %v4396 = vunpack.c.0.s8 %v4395
        %v4397 = vlaneseq
        %v4398 = vshrl.u32 %v4397, 7
        %v4399 = vsub.s32 %v4396, %v4398
        %v4400 = vrot.slane %v4377, %v4399
        %v4402 = vunpack.c.l.s4 1934713408
        %v4403 = vunpack.c.0.s8 %v4402
        %v4404 = vlaneseq
        %v4405 = vshrl.u32 %v4404, 7
        %v4406 = vsub.s32 %v4403, %v4405
        %v4407 = vrot.slane %v4393, %v4406
        %v4408 = vcombine.high %v4385, 0
        %v4409 = vcombine.high %v4392, 0
        %v4410 = vcombine.high %v4400, 0
        %v4411 = vcombine.high %v4407, 0
        %v4412 = vcombine.low %v4042, %v4049
        %v4414 = vunpack.c.l.s4 1983009808
        %v4415 = vunpack.c.0.s8 %v4414
        %v4416 = vlaneseq
        %v4417 = vshrl.u32 %v4416, 7
        %v4418 = vsub.s32 %v4415, %v4417
        %v4419 = vrot.slane %v4412, %v4418
        %v4420 = vcombine.low %v4065, %v4066
        %v4422 = vunpack.c.l.s4 1983009808
        %v4423 = vunpack.c.0.s8 %v4422
        %v4424 = vlaneseq
        %v4425 = vshrl.u32 %v4424, 7
        %v4426 = vsub.s32 %v4423, %v4425
        %v4427 = vrot.slane %v4420, %v4426
        %v4428 = vcombine.low %v4057, %v4064
        %v4430 = vunpack.c.l.s4 1983009808
        %v4431 = vunpack.c.0.s8 %v4430
        %v4432 = vlaneseq
        %v4433 = vshrl.u32 %v4432, 7
        %v4434 = vsub.s32 %v4431, %v4433
        %v4435 = vrot.slane %v4428, %v4434
        %v4436 = vcombine.low %v4067, %v4068
        %v4438 = vunpack.c.l.s4 1983009808
        %v4439 = vunpack.c.0.s8 %v4438
        %v4440 = vlaneseq
        %v4441 = vshrl.u32 %v4440, 7
        %v4442 = vsub.s32 %v4439, %v4441
        %v4443 = vrot.slane %v4436, %v4442
        %v4444 = vcombine.low %v4419, %v4427
        %v4446 = vunpack.c.l.s4 1934713408
        %v4447 = vunpack.c.0.s8 %v4446
        %v4448 = vlaneseq
        %v4449 = vshrl.u32 %v4448, 7
        %v4450 = vsub.s32 %v4447, %v4449
        %v4451 = vrot.slane %v4444, %v4450
        %v4452 = vcombine.low %v4435, %v4443
        %v4454 = vunpack.c.l.s4 1934713408
        %v4455 = vunpack.c.0.s8 %v4454
        %v4456 = vlaneseq
        %v4457 = vshrl.u32 %v4456, 7
        %v4458 = vsub.s32 %v4455, %v4457
        %v4459 = vrot.slane %v4452, %v4458
        %v4460 = vcombine.low %v4451, %v4459
        %v4461 = vcombine.low %v4091, %v4098
        %v4463 = vunpack.c.l.s4 1983009808
        %v4464 = vunpack.c.0.s8 %v4463
        %v4465 = vlaneseq
        %v4466 = vshrl.u32 %v4465, 7
        %v4467 = vsub.s32 %v4464, %v4466
        %v4468 = vrot.slane %v4461, %v4467
        %v4469 = vcombine.low %v4114, %v4115
        %v4471 = vunpack.c.l.s4 1983009808
        %v4472 = vunpack.c.0.s8 %v4471
        %v4473 = vlaneseq
        %v4474 = vshrl.u32 %v4473, 7
        %v4475 = vsub.s32 %v4472, %v4474
        %v4476 = vrot.slane %v4469, %v4475
        %v4477 = vcombine.low %v4106, %v4113
        %v4479 = vunpack.c.l.s4 1983009808
        %v4480 = vunpack.c.0.s8 %v4479
        %v4481 = vlaneseq
        %v4482 = vshrl.u32 %v4481, 7
        %v4483 = vsub.s32 %v4480, %v4482
        %v4484 = vrot.slane %v4477, %v4483
        %v4485 = vcombine.low %v4116, %v4117
        %v4487 = vunpack.c.l.s4 1983009808
        %v4488 = vunpack.c.0.s8 %v4487
        %v4489 = vlaneseq
        %v4490 = vshrl.u32 %v4489, 7
        %v4491 = vsub.s32 %v4488, %v4490
        %v4492 = vrot.slane %v4485, %v4491
        %v4493 = vcombine.low %v4468, %v4476
        %v4495 = vunpack.c.l.s4 1934713408
        %v4496 = vunpack.c.0.s8 %v4495
        %v4497 = vlaneseq
        %v4498 = vshrl.u32 %v4497, 7
        %v4499 = vsub.s32 %v4496, %v4498
        %v4500 = vrot.slane %v4493, %v4499
        %v4501 = vcombine.low %v4484, %v4492
        %v4503 = vunpack.c.l.s4 1934713408
        %v4504 = vunpack.c.0.s8 %v4503
        %v4505 = vlaneseq
        %v4506 = vshrl.u32 %v4505, 7
        %v4507 = vsub.s32 %v4504, %v4506
        %v4508 = vrot.slane %v4501, %v4507
        %v4509 = vcombine.low %v4500, %v4508
        %v4510 = vcombine.low %v4140, %v4147
        %v4512 = vunpack.c.l.s4 1983009808
        %v4513 = vunpack.c.0.s8 %v4512
        %v4514 = vlaneseq
        %v4515 = vshrl.u32 %v4514, 7
        %v4516 = vsub.s32 %v4513, %v4515
        %v4517 = vrot.slane %v4510, %v4516
        %v4518 = vcombine.low %v4163, %v4164
        %v4520 = vunpack.c.l.s4 1983009808
        %v4521 = vunpack.c.0.s8 %v4520
        %v4522 = vlaneseq
        %v4523 = vshrl.u32 %v4522, 7
        %v4524 = vsub.s32 %v4521, %v4523
        %v4525 = vrot.slane %v4518, %v4524
        %v4526 = vcombine.low %v4155, %v4162
        %v4528 = vunpack.c.l.s4 1983009808
        %v4529 = vunpack.c.0.s8 %v4528
        %v4530 = vlaneseq
        %v4531 = vshrl.u32 %v4530, 7
        %v4532 = vsub.s32 %v4529, %v4531
        %v4533 = vrot.slane %v4526, %v4532
        %v4534 = vcombine.low %v4165, %v4166
        %v4536 = vunpack.c.l.s4 1983009808
        %v4537 = vunpack.c.0.s8 %v4536
        %v4538 = vlaneseq
        %v4539 = vshrl.u32 %v4538, 7
        %v4540 = vsub.s32 %v4537, %v4539
        %v4541 = vrot.slane %v4534, %v4540
        %v4542 = vcombine.low %v4517, %v4525
        %v4544 = vunpack.c.l.s4 1934713408
        %v4545 = vunpack.c.0.s8 %v4544
        %v4546 = vlaneseq
        %v4547 = vshrl.u32 %v4546, 7
        %v4548 = vsub.s32 %v4545, %v4547
        %v4549 = vrot.slane %v4542, %v4548
        %v4550 = vcombine.low %v4533, %v4541
        %v4552 = vunpack.c.l.s4 1934713408
        %v4553 = vunpack.c.0.s8 %v4552
        %v4554 = vlaneseq
        %v4555 = vshrl.u32 %v4554, 7
        %v4556 = vsub.s32 %v4553, %v4555
        %v4557 = vrot.slane %v4550, %v4556
        %v4558 = vcombine.low %v4549, %v4557
        %v4559 = vcombine.low %v4189, %v4196
        %v4561 = vunpack.c.l.s4 1983009808
        %v4562 = vunpack.c.0.s8 %v4561
        %v4563 = vlaneseq
        %v4564 = vshrl.u32 %v4563, 7
        %v4565 = vsub.s32 %v4562, %v4564
        %v4566 = vrot.slane %v4559, %v4565
        %v4567 = vcombine.low %v4212, %v4213
        %v4569 = vunpack.c.l.s4 1983009808
        %v4570 = vunpack.c.0.s8 %v4569
        %v4571 = vlaneseq
        %v4572 = vshrl.u32 %v4571, 7
        %v4573 = vsub.s32 %v4570, %v4572
        %v4574 = vrot.slane %v4567, %v4573
        %v4575 = vcombine.low %v4204, %v4211
        %v4577 = vunpack.c.l.s4 1983009808
        %v4578 = vunpack.c.0.s8 %v4577
        %v4579 = vlaneseq
        %v4580 = vshrl.u32 %v4579, 7
        %v4581 = vsub.s32 %v4578, %v4580
        %v4582 = vrot.slane %v4575, %v4581
        %v4583 = vcombine.low %v4214, %v4215
        %v4585 = vunpack.c.l.s4 1983009808
        %v4586 = vunpack.c.0.s8 %v4585
        %v4587 = vlaneseq
        %v4588 = vshrl.u32 %v4587, 7
        %v4589 = vsub.s32 %v4586, %v4588
        %v4590 = vrot.slane %v4583, %v4589
        %v4591 = vcombine.low %v4566, %v4574
        %v4593 = vunpack.c.l.s4 1934713408
        %v4594 = vunpack.c.0.s8 %v4593
        %v4595 = vlaneseq
        %v4596 = vshrl.u32 %v4595, 7
        %v4597 = vsub.s32 %v4594, %v4596
        %v4598 = vrot.slane %v4591, %v4597
        %v4599 = vcombine.low %v4582, %v4590
        %v4601 = vunpack.c.l.s4 1934713408
        %v4602 = vunpack.c.0.s8 %v4601
        %v4603 = vlaneseq
        %v4604 = vshrl.u32 %v4603, 7
        %v4605 = vsub.s32 %v4602, %v4604
        %v4606 = vrot.slane %v4599, %v4605
        %v4607 = vcombine.low %v4598, %v4606
        %v4608 = vcombine.low %v4238, %v4245
        %v4610 = vunpack.c.l.s4 1983009808
        %v4611 = vunpack.c.0.s8 %v4610
        %v4612 = vlaneseq
        %v4613 = vshrl.u32 %v4612, 7
        %v4614 = vsub.s32 %v4611, %v4613
        %v4615 = vrot.slane %v4608, %v4614
        %v4616 = vcombine.low %v4261, %v4262
        %v4618 = vunpack.c.l.s4 1983009808
        %v4619 = vunpack.c.0.s8 %v4618
        %v4620 = vlaneseq
        %v4621 = vshrl.u32 %v4620, 7
        %v4622 = vsub.s32 %v4619, %v4621
        %v4623 = vrot.slane %v4616, %v4622
        %v4624 = vcombine.low %v4253, %v4260
        %v4626 = vunpack.c.l.s4 1983009808
        %v4627 = vunpack.c.0.s8 %v4626
        %v4628 = vlaneseq
        %v4629 = vshrl.u32 %v4628, 7
        %v4630 = vsub.s32 %v4627, %v4629
        %v4631 = vrot.slane %v4624, %v4630
        %v4632 = vcombine.low %v4263, %v4264
        %v4634 = vunpack.c.l.s4 1983009808
        %v4635 = vunpack.c.0.s8 %v4634
        %v4636 = vlaneseq
        %v4637 = vshrl.u32 %v4636, 7
        %v4638 = vsub.s32 %v4635, %v4637
        %v4639 = vrot.slane %v4632, %v4638
        %v4640 = vcombine.low %v4615, %v4623
        %v4642 = vunpack.c.l.s4 1934713408
        %v4643 = vunpack.c.0.s8 %v4642
        %v4644 = vlaneseq
        %v4645 = vshrl.u32 %v4644, 7
        %v4646 = vsub.s32 %v4643, %v4645
        %v4647 = vrot.slane %v4640, %v4646
        %v4648 = vcombine.low %v4631, %v4639
        %v4650 = vunpack.c.l.s4 1934713408
        %v4651 = vunpack.c.0.s8 %v4650
        %v4652 = vlaneseq
        %v4653 = vshrl.u32 %v4652, 7
        %v4654 = vsub.s32 %v4651, %v4653
        %v4655 = vrot.slane %v4648, %v4654
        %v4656 = vcombine.low %v4647, %v4655
        %v4657 = vcombine.low %v4287, %v4294
        %v4659 = vunpack.c.l.s4 1983009808
        %v4660 = vunpack.c.0.s8 %v4659
        %v4661 = vlaneseq
        %v4662 = vshrl.u32 %v4661, 7
        %v4663 = vsub.s32 %v4660, %v4662
        %v4664 = vrot.slane %v4657, %v4663
        %v4665 = vcombine.low %v4310, %v4311
        %v4667 = vunpack.c.l.s4 1983009808
        %v4668 = vunpack.c.0.s8 %v4667
        %v4669 = vlaneseq
        %v4670 = vshrl.u32 %v4669, 7
        %v4671 = vsub.s32 %v4668, %v4670
        %v4672 = vrot.slane %v4665, %v4671
        %v4673 = vcombine.low %v4302, %v4309
        %v4675 = vunpack.c.l.s4 1983009808
        %v4676 = vunpack.c.0.s8 %v4675
        %v4677 = vlaneseq
        %v4678 = vshrl.u32 %v4677, 7
        %v4679 = vsub.s32 %v4676, %v4678
        %v4680 = vrot.slane %v4673, %v4679
        %v4681 = vcombine.low %v4312, %v4313
        %v4683 = vunpack.c.l.s4 1983009808
        %v4684 = vunpack.c.0.s8 %v4683
        %v4685 = vlaneseq
        %v4686 = vshrl.u32 %v4685, 7
        %v4687 = vsub.s32 %v4684, %v4686
        %v4688 = vrot.slane %v4681, %v4687
        %v4689 = vcombine.low %v4664, %v4672
        %v4691 = vunpack.c.l.s4 1934713408
        %v4692 = vunpack.c.0.s8 %v4691
        %v4693 = vlaneseq
        %v4694 = vshrl.u32 %v4693, 7
        %v4695 = vsub.s32 %v4692, %v4694
        %v4696 = vrot.slane %v4689, %v4695
        %v4697 = vcombine.low %v4680, %v4688
        %v4699 = vunpack.c.l.s4 1934713408
        %v4700 = vunpack.c.0.s8 %v4699
        %v4701 = vlaneseq
        %v4702 = vshrl.u32 %v4701, 7
        %v4703 = vsub.s32 %v4700, %v4702
        %v4704 = vrot.slane %v4697, %v4703
        %v4705 = vcombine.low %v4696, %v4704
        %v4706 = vcombine.low %v4336, %v4343
        %v4708 = vunpack.c.l.s4 1983009808
        %v4709 = vunpack.c.0.s8 %v4708
        %v4710 = vlaneseq
        %v4711 = vshrl.u32 %v4710, 7
        %v4712 = vsub.s32 %v4709, %v4711
        %v4713 = vrot.slane %v4706, %v4712
        %v4714 = vcombine.low %v4359, %v4360
        %v4716 = vunpack.c.l.s4 1983009808
        %v4717 = vunpack.c.0.s8 %v4716
        %v4718 = vlaneseq
        %v4719 = vshrl.u32 %v4718, 7
        %v4720 = vsub.s32 %v4717, %v4719
        %v4721 = vrot.slane %v4714, %v4720
        %v4722 = vcombine.low %v4351, %v4358
        %v4724 = vunpack.c.l.s4 1983009808
        %v4725 = vunpack.c.0.s8 %v4724
        %v4726 = vlaneseq
        %v4727 = vshrl.u32 %v4726, 7
        %v4728 = vsub.s32 %v4725, %v4727
        %v4729 = vrot.slane %v4722, %v4728
        %v4730 = vcombine.low %v4361, %v4362
        %v4732 = vunpack.c.l.s4 1983009808
        %v4733 = vunpack.c.0.s8 %v4732
        %v4734 = vlaneseq
        %v4735 = vshrl.u32 %v4734, 7
        %v4736 = vsub.s32 %v4733, %v4735
        %v4737 = vrot.slane %v4730, %v4736
        %v4738 = vcombine.low %v4713, %v4721
        %v4740 = vunpack.c.l.s4 1934713408
        %v4741 = vunpack.c.0.s8 %v4740
        %v4742 = vlaneseq
        %v4743 = vshrl.u32 %v4742, 7
        %v4744 = vsub.s32 %v4741, %v4743
        %v4745 = vrot.slane %v4738, %v4744
        %v4746 = vcombine.low %v4729, %v4737
        %v4748 = vunpack.c.l.s4 1934713408
        %v4749 = vunpack.c.0.s8 %v4748
        %v4750 = vlaneseq
        %v4751 = vshrl.u32 %v4750, 7
        %v4752 = vsub.s32 %v4749, %v4751
        %v4753 = vrot.slane %v4746, %v4752
        %v4754 = vcombine.low %v4745, %v4753
        %v4755 = vcombine.low %v4385, %v4392
        %v4757 = vunpack.c.l.s4 1983009808
        %v4758 = vunpack.c.0.s8 %v4757
        %v4759 = vlaneseq
        %v4760 = vshrl.u32 %v4759, 7
        %v4761 = vsub.s32 %v4758, %v4760
        %v4762 = vrot.slane %v4755, %v4761
        %v4763 = vcombine.low %v4408, %v4409
        %v4765 = vunpack.c.l.s4 1983009808
        %v4766 = vunpack.c.0.s8 %v4765
        %v4767 = vlaneseq
        %v4768 = vshrl.u32 %v4767, 7
        %v4769 = vsub.s32 %v4766, %v4768
        %v4770 = vrot.slane %v4763, %v4769
        %v4771 = vcombine.low %v4400, %v4407
        %v4773 = vunpack.c.l.s4 1983009808
        %v4774 = vunpack.c.0.s8 %v4773
        %v4775 = vlaneseq
        %v4776 = vshrl.u32 %v4775, 7
        %v4777 = vsub.s32 %v4774, %v4776
        %v4778 = vrot.slane %v4771, %v4777
        %v4779 = vcombine.low %v4410, %v4411
        %v4781 = vunpack.c.l.s4 1983009808
        %v4782 = vunpack.c.0.s8 %v4781
        %v4783 = vlaneseq
        %v4784 = vshrl.u32 %v4783, 7
        %v4785 = vsub.s32 %v4782, %v4784
        %v4786 = vrot.slane %v4779, %v4785
        %v4787 = vcombine.low %v4762, %v4770
        %v4789 = vunpack.c.l.s4 1934713408
        %v4790 = vunpack.c.0.s8 %v4789
        %v4791 = vlaneseq
        %v4792 = vshrl.u32 %v4791, 7
        %v4793 = vsub.s32 %v4790, %v4792
        %v4794 = vrot.slane %v4787, %v4793
        %v4795 = vcombine.low %v4778, %v4786
        %v4797 = vunpack.c.l.s4 1934713408
        %v4798 = vunpack.c.0.s8 %v4797
        %v4799 = vlaneseq
        %v4800 = vshrl.u32 %v4799, 7
        %v4801 = vsub.s32 %v4798, %v4800
        %v4802 = vrot.slane %v4795, %v4801
        %v4803 = vcombine.low %v4794, %v4802
        %v4806 = vpack.i.b16 %v4509, %v4460
        %v4808 = vshrl.u32 %v4460, 16
        %v4809 = vshrl.u32 %v4509, 16
        %v4810 = vpack.i.b16 %v4809, %v4808
        %v4814 = vpack.i.b16 %v4607, %v4558
        %v4816 = vshrl.u32 %v4558, 16
        %v4817 = vshrl.u32 %v4607, 16
        %v4818 = vpack.i.b16 %v4817, %v4816
        %v4822 = vpack.i.b16 %v4705, %v4656
        %v4824 = vshrl.u32 %v4656, 16
        %v4825 = vshrl.u32 %v4705, 16
        %v4826 = vpack.i.b16 %v4825, %v4824
        %v4830 = vpack.i.b16 %v4803, %v4754
        %v4832 = vshrl.u32 %v4754, 16
        %v4833 = vshrl.u32 %v4803, 16
        %v4834 = vpack.i.b16 %v4833, %v4832
        %v4836 = vadd.f32 %v869, %v870
        %4837 = vadd.xlane.f32.xlu0 %v4836
        %v4838 = vpop.xlane.xlu0 %4837
        %v4839 = vadd.f32 %v871, %v872
        %4840 = vadd.xlane.f32.xlu0 %v4839
        %v4841 = vpop.xlane.xlu0 %4840
        %v4842 = vadd.f32 %v873, %v874
        %4843 = vadd.xlane.f32.xlu0 %v4842
        %v4844 = vpop.xlane.xlu0 %4843
        %v4845 = vadd.f32 %v875, %v876
        %4846 = vadd.xlane.f32.xlu0 %v4845
        %v4847 = vpop.xlane.xlu0 %4846
        %v4848 = vmul.f32 %v4838, %v2387
        %v4849 = vmul.f32 %v4841, %v2387
        %v4850 = vmul.f32 %v4844, %v2387
        %v4851 = vmul.f32 %v4847, %v2387
        %v4852 = vmul.f32 %v869, %v869
        %v4853 = vmul.f32 %v870, %v870
        %v4854 = vmul.f32 %v871, %v871
        %v4855 = vmul.f32 %v872, %v872
        %v4856 = vmul.f32 %v873, %v873
        %v4857 = vmul.f32 %v874, %v874
        %v4858 = vmul.f32 %v875, %v875
        %v4859 = vmul.f32 %v876, %v876
        %v4860 = vadd.f32 %v4852, %v4853
        %4861 = vadd.xlane.f32.xlu0 %v4860
        %v4862 = vpop.xlane.xlu0 %4861
        %v4863 = vadd.f32 %v4854, %v4855
        %4864 = vadd.xlane.f32.xlu0 %v4863
        %v4865 = vpop.xlane.xlu0 %4864
        %v4866 = vadd.f32 %v4856, %v4857
        %4867 = vadd.xlane.f32.xlu0 %v4866
        %v4868 = vpop.xlane.xlu0 %4867
        %v4869 = vadd.f32 %v4858, %v4859
        %4870 = vadd.xlane.f32.xlu0 %v4869
        %v4871 = vpop.xlane.xlu0 %4870
        %v4872 = vmul.f32 %v4862, %v2387
        %v4873 = vmul.f32 %v4865, %v2387
        %v4874 = vmul.f32 %v4868, %v2387
        %v4875 = vmul.f32 %v4871, %v2387
        %v4876 = vmul.f32 %v4848, %v4848
        %v4877 = vmul.f32 %v4849, %v4849
        %v4878 = vmul.f32 %v4850, %v4850
        %v4879 = vmul.f32 %v4851, %v4851
        %v4880 = vsub.f32 %v4872, %v4876
        %v4881 = vsub.f32 %v4873, %v4877
        %v4882 = vsub.f32 %v4874, %v4878
        %v4883 = vsub.f32 %v4875, %v4879
        %v4884 = vsub.f32 %v869, %v4848
        %v4885 = vsub.f32 %v870, %v4848
        %v4886 = vsub.f32 %v871, %v4849
        %v4887 = vsub.f32 %v872, %v4849
        %v4888 = vsub.f32 %v873, %v4850
        %v4889 = vsub.f32 %v874, %v4850
        %v4890 = vsub.f32 %v875, %v4851
        %v4891 = vsub.f32 %v876, %v4851
        %v4892 = vadd.f32 %v4880, 1e-06
        %v4893 = vadd.f32 %v4881, 1e-06
        %v4894 = vadd.f32 %v4882, 1e-06
        %v4895 = vadd.f32 %v4883, 1e-06
        %v4896 = vrsqrt.pop %v4892
        %v4897 = vrsqrt.pop %v4893
        %v4898 = vrsqrt.pop %v4894
        %v4899 = vrsqrt.pop %v4895
        %v4900 = vmul.f32 %v4884, %v4896
        %v4901 = vmul.f32 %v4885, %v4896
        %v4902 = vmul.f32 %v4886, %v4897
        %v4903 = vmul.f32 %v4887, %v4897
        %v4904 = vmul.f32 %v4888, %v4898
        %v4905 = vmul.f32 %v4889, %v4898
        %v4906 = vmul.f32 %v4890, %v4899
        %v4907 = vmul.f32 %v4891, %v4899
        %v4908 = vmul.f32 %v4900, %v2511
        %v4909 = vmul.f32 %v4901, %v2515
        %v4910 = vmul.f32 %v4902, %v2511
        %v4911 = vmul.f32 %v4903, %v2515
        %v4912 = vmul.f32 %v4904, %v2511
        %v4913 = vmul.f32 %v4905, %v2515
        %v4914 = vmul.f32 %v4906, %v2511
        %v4915 = vmul.f32 %v4907, %v2515
        %v4916 = vadd.f32 %v4908, %v2535
        %v4917 = vadd.f32 %v4909, %v2539
        %v4918 = vadd.f32 %v4910, %v2535
        %v4919 = vadd.f32 %v4911, %v2539
        %v4920 = vadd.f32 %v4912, %v2535
        %v4921 = vadd.f32 %v4913, %v2539
        %v4922 = vadd.f32 %v4914, %v2535
        %v4923 = vadd.f32 %v4915, %v2539
        %v4924 = vpack.c.bf16 %v4918, %v4916
        %v4925 = vpack.c.bf16 %v4919, %v4917
        %v4926 = vpack.c.bf16 %v4922, %v4920
        %v4927 = vpack.c.bf16 %v4923, %v4921
        %v4928 = vld [vmem:[#allocation11] sm:$0xff]
        %v4929 = vld [vmem:[#allocation11 + $0x8] sm:$0xff]
        %v4930 = vld [vmem:[#allocation11 + $0x10] sm:$0xff]
        %v4931 = vld [vmem:[#allocation11 + $0x18] sm:$0xff]
        %v4932 = vld [vmem:[#allocation11 + $0x20] sm:$0xff]
        %v4933 = vld [vmem:[#allocation11 + $0x28] sm:$0xff]
        %v4934 = vld [vmem:[#allocation11 + $0x30] sm:$0xff]
        %v4935 = vld [vmem:[#allocation11 + $0x38] sm:$0xff]
        %v4936 = vld [vmem:[#allocation11 + $0x40] sm:$0xff]
        %v4937 = vld [vmem:[#allocation11 + $0x48] sm:$0xff]
        %v4938 = vld [vmem:[#allocation11 + $0x50] sm:$0xff]
        %v4939 = vld [vmem:[#allocation11 + $0x58] sm:$0xff]
        %v4940 = vld [vmem:[#allocation11 + $0x60] sm:$0xff]
        %v4941 = vld [vmem:[#allocation11 + $0x68] sm:$0xff]
        %v4942 = vld [vmem:[#allocation11 + $0x70] sm:$0xff]
        %v4943 = vld [vmem:[#allocation11 + $0x78] sm:$0xff]
        %v4944 = vld [vmem:[#allocation11 + $0x80] sm:$0xff]
        %v4945 = vld [vmem:[#allocation11 + $0x88] sm:$0xff]
        %v4946 = vld [vmem:[#allocation11 + $0x90] sm:$0xff]
        %v4947 = vld [vmem:[#allocation11 + $0x98] sm:$0xff]
        %v4948 = vld [vmem:[#allocation11 + $0xa0] sm:$0xff]
        %v4949 = vld [vmem:[#allocation11 + $0xa8] sm:$0xff]
        %v4950 = vld [vmem:[#allocation11 + $0xb0] sm:$0xff]
        %v4951 = vld [vmem:[#allocation11 + $0xb8] sm:$0xff]
        %v4952 = vld [vmem:[#allocation11 + $0xc0] sm:$0xff]
        %v4953 = vld [vmem:[#allocation11 + $0xc8] sm:$0xff]
        %v4954 = vld [vmem:[#allocation11 + $0xd0] sm:$0xff]
        %v4955 = vld [vmem:[#allocation11 + $0xd8] sm:$0xff]
        %v4956 = vld [vmem:[#allocation11 + $0xe0] sm:$0xff]
        %v4957 = vld [vmem:[#allocation11 + $0xe8] sm:$0xff]
        %v4958 = vld [vmem:[#allocation11 + $0xf0] sm:$0xff]
        %v4959 = vld [vmem:[#allocation11 + $0xf8] sm:$0xff]
        %v4960 = vld [vmem:[#allocation13] sm:$0x3]
        %v4962 = vlaneseq
        %v4963 = vshrl.u32 %v4962, 7
        %v4964 = vsub.s32 0, %v4963
        %v4965 = vrot.slane %v4960, %v4964
        %v4966 = vlaneseq
        %v4967 = vshrl.u32 %v4966, 7
        %v4968 = vsub.s32 1, %v4967
        %v4969 = vrot.slane %v4960, %v4968
        %v5004 = vunpack.c.l.b16 %v4928
        %v5005 = vunpack.c.h.b16 %v4928
        %v5006 = vunpack.c.l.b16 %v4929
        %v5007 = vunpack.c.h.b16 %v4929
        %v5008 = vunpack.c.l.b16 %v4930
        %v5009 = vunpack.c.h.b16 %v4930
        %v5010 = vunpack.c.l.b16 %v4931
        %v5011 = vunpack.c.h.b16 %v4931
        %v5012 = vunpack.c.l.b16 %v4932
        %v5013 = vunpack.c.h.b16 %v4932
        %v5014 = vunpack.c.l.b16 %v4933
        %v5015 = vunpack.c.h.b16 %v4933
        %v5016 = vunpack.c.l.b16 %v4934
        %v5017 = vunpack.c.h.b16 %v4934
        %v5018 = vunpack.c.l.b16 %v4935
        %v5019 = vunpack.c.h.b16 %v4935
        %v5020 = vunpack.c.l.b16 %v4936
        %v5021 = vunpack.c.h.b16 %v4936
        %v5022 = vunpack.c.l.b16 %v4937
        %v5023 = vunpack.c.h.b16 %v4937
        %v5024 = vunpack.c.l.b16 %v4938
        %v5025 = vunpack.c.h.b16 %v4938
        %v5026 = vunpack.c.l.b16 %v4939
        %v5027 = vunpack.c.h.b16 %v4939
        %v5028 = vunpack.c.l.b16 %v4940
        %v5029 = vunpack.c.h.b16 %v4940
        %v5030 = vunpack.c.l.b16 %v4941
        %v5031 = vunpack.c.h.b16 %v4941
        %v5032 = vunpack.c.l.b16 %v4942
        %v5033 = vunpack.c.h.b16 %v4942
        %v5034 = vunpack.c.l.b16 %v4943
        %v5035 = vunpack.c.h.b16 %v4943
        %v5036 = vunpack.c.l.b16 %v4944
        %v5037 = vunpack.c.h.b16 %v4944
        %v5038 = vunpack.c.l.b16 %v4945
        %v5039 = vunpack.c.h.b16 %v4945
        %v5040 = vunpack.c.l.b16 %v4946
        %v5041 = vunpack.c.h.b16 %v4946
        %v5042 = vunpack.c.l.b16 %v4947
        %v5043 = vunpack.c.h.b16 %v4947
        %v5044 = vunpack.c.l.b16 %v4948
        %v5045 = vunpack.c.h.b16 %v4948
        %v5046 = vunpack.c.l.b16 %v4949
        %v5047 = vunpack.c.h.b16 %v4949
        %v5048 = vunpack.c.l.b16 %v4950
        %v5049 = vunpack.c.h.b16 %v4950
        %v5050 = vunpack.c.l.b16 %v4951
        %v5051 = vunpack.c.h.b16 %v4951
        %v5052 = vunpack.c.l.b16 %v4952
        %v5053 = vunpack.c.h.b16 %v4952
        %v5054 = vunpack.c.l.b16 %v4953
        %v5055 = vunpack.c.h.b16 %v4953
        %v5056 = vunpack.c.l.b16 %v4954
        %v5057 = vunpack.c.h.b16 %v4954
        %v5058 = vunpack.c.l.b16 %v4955
        %v5059 = vunpack.c.h.b16 %v4955
        %v5060 = vunpack.c.l.b16 %v4956
        %v5061 = vunpack.c.h.b16 %v4956
        %v5062 = vunpack.c.l.b16 %v4957
        %v5063 = vunpack.c.h.b16 %v4957
        %v5064 = vunpack.c.l.b16 %v4958
        %v5065 = vunpack.c.h.b16 %v4958
        %v5066 = vunpack.c.l.b16 %v4959
        %v5067 = vunpack.c.h.b16 %v4959
        %v5068 = vpack.c.b16 %v5006, %v5004
        %v5069 = vpack.c.b16 %v5007, %v5005
        %v5070 = vpack.c.b16 %v5010, %v5008
        %v5071 = vpack.c.b16 %v5011, %v5009
        %v5072 = vpack.c.b16 %v5014, %v5012
        %v5073 = vpack.c.b16 %v5015, %v5013
        %v5074 = vpack.c.b16 %v5018, %v5016
        %v5075 = vpack.c.b16 %v5019, %v5017
        %v5076 = vpack.c.b16 %v5022, %v5020
        %v5077 = vpack.c.b16 %v5023, %v5021
        %v5078 = vpack.c.b16 %v5026, %v5024
        %v5079 = vpack.c.b16 %v5027, %v5025
        %v5080 = vpack.c.b16 %v5030, %v5028
        %v5081 = vpack.c.b16 %v5031, %v5029
        %v5082 = vpack.c.b16 %v5034, %v5032
        %v5083 = vpack.c.b16 %v5035, %v5033
        %v5084 = vpack.c.b16 %v5038, %v5036
        %v5085 = vpack.c.b16 %v5039, %v5037
        %v5086 = vpack.c.b16 %v5042, %v5040
        %v5087 = vpack.c.b16 %v5043, %v5041
        %v5088 = vpack.c.b16 %v5046, %v5044
        %v5089 = vpack.c.b16 %v5047, %v5045
        %v5090 = vpack.c.b16 %v5050, %v5048
        %v5091 = vpack.c.b16 %v5051, %v5049
        %v5092 = vpack.c.b16 %v5054, %v5052
        %v5093 = vpack.c.b16 %v5055, %v5053
        %v5094 = vpack.c.b16 %v5058, %v5056
        %v5095 = vpack.c.b16 %v5059, %v5057
        %v5096 = vpack.c.b16 %v5062, %v5060
        %v5097 = vpack.c.b16 %v5063, %v5061
        %v5098 = vpack.c.b16 %v5066, %v5064
        %v5099 = vpack.c.b16 %v5067, %v5065
        %5132 = vmatprep.subr.bf16.mxu0 %v5069
        %5133 = vmatpush1.bf16.msra.mxu0 %v5068
        %5134 = vmatprep.subr.bf16.mxu0 %v5071
        %5135 = vmatpush1.bf16.msra.mxu0 %v5070
        %5136 = vmatprep.subr.bf16.mxu0 %v5073
        %5137 = vmatpush1.bf16.msra.mxu0 %v5072
        %5138 = vmatprep.subr.bf16.mxu0 %v5075
        %5139 = vmatpush1.bf16.msra.mxu0 %v5074
        %5140 = vmatprep.subr.bf16.mxu0 %v5077
        %5141 = vmatpush1.bf16.msra.mxu0 %v5076
        %5142 = vmatprep.subr.bf16.mxu0 %v5079
        %5143 = vmatpush1.bf16.msra.mxu0 %v5078
        %5144 = vmatprep.subr.bf16.mxu0 %v5081
        %5145 = vmatpush1.bf16.msra.mxu0 %v5080
        %5146 = vmatprep.subr.bf16.mxu0 %v5083
        %5147 = vmatpush1.bf16.msra.mxu0 %v5082
        %5148 = vmatprep.subr.bf16.mxu0 %v5085
        %5149 = vmatpush1.bf16.msra.mxu0 %v5084
        %5150 = vmatprep.subr.bf16.mxu0 %v5087
        %5151 = vmatpush1.bf16.msra.mxu0 %v5086
        %5152 = vmatprep.subr.bf16.mxu0 %v5089
        %5153 = vmatpush1.bf16.msra.mxu0 %v5088
        %5154 = vmatprep.subr.bf16.mxu0 %v5091
        %5155 = vmatpush1.bf16.msra.mxu0 %v5090
        %5156 = vmatprep.subr.bf16.mxu0 %v5093
        %5157 = vmatpush1.bf16.msra.mxu0 %v5092
        %5158 = vmatprep.subr.bf16.mxu0 %v5095
        %5159 = vmatpush1.bf16.msra.mxu0 %v5094
        %5160 = vmatprep.subr.bf16.mxu0 %v5097
        %5161 = vmatpush1.bf16.msra.mxu0 %v5096
        %5162 = vmatprep.subr.bf16.mxu0 %v5099
        %5163 = vmatpush1.bf16.msra.mxu0 %v5098
        %5164 = vmatprep.mubr.bf16.mxu0 %v4925
        %5165 = vmatmul.mubr.bf16.gmra.mrb[0].mxu0 %v4924
        %v5166 = vpop.f32.mrb[0].mxu0
        %v5167 = vadd.f32 %v4965, %v5166
        %v5168 = vpop.f32.mrb[0].mxu0
        %v5169 = vadd.f32 %v4969, %v5168
        %v5170 = vpop.f32.mrb[0].mxu0
        %v5171 = vadd.f32 %v4965, %v5170
        %v5172 = vpop.f32.mrb[0].mxu0
        %v5173 = vadd.f32 %v4969, %v5172
        %5174 = vmatprep.mubr.bf16.mxu0 %v4927
        %5175 = vmatmul.mubr.bf16.gmra.mrb[0].mxu0 %v4926
        %v5176 = vpop.f32.mrb[0].mxu0
        %v5177 = vadd.f32 %v4965, %v5176
        %v5178 = vpop.f32.mrb[0].mxu0
        %v5179 = vadd.f32 %v4969, %v5178
        %v5180 = vpop.f32.mrb[0].mxu0
        %v5181 = vadd.f32 %v4965, %v5180
        %v5182 = vpop.f32.mrb[0].mxu0
        %v5183 = vadd.f32 %v4969, %v5182
        %5184 = vdwg.mxu0
        %v5185 = vmul.f32 %v5167, 0.088388346
        %v5186 = vmul.f32 %v5169, 0.088388346
        %v5187 = vmul.f32 %v5171, 0.088388346
        %v5188 = vmul.f32 %v5173, 0.088388346
        %v5189 = vmul.f32 %v5177, 0.088388346
        %v5190 = vmul.f32 %v5179, 0.088388346
        %v5191 = vmul.f32 %v5181, 0.088388346
        %v5192 = vmul.f32 %v5183, 0.088388346
        %v5193 = vpack.c.bf16 %v5187, %v5185
        %v5194 = vpack.c.bf16 %v5188, %v5186
        %v5195 = vpack.c.bf16 %v5191, %v5189
        %v5196 = vpack.c.bf16 %v5192, %v5190
        %v5199 = vpack.i.b16 %v5194, %v5193
        %v5201 = vshrl.u32 %v5193, 16
        %v5202 = vshrl.u32 %v5194, 16
        %v5203 = vpack.i.b16 %v5202, %v5201
        %v5207 = vpack.i.b16 %v5196, %v5195
        %v5209 = vshrl.u32 %v5195, 16
        %v5210 = vshrl.u32 %v5196, 16
        %v5211 = vpack.i.b16 %v5210, %v5209
        %v5213 = vcombine.high %v5199, %v3135
        %v5215 = vunpack.c.l.s4 1983009808
        %v5216 = vunpack.c.0.s8 %v5215
        %v5217 = vlaneseq
        %v5218 = vshrl.u32 %v5217, 7
        %v5219 = vsub.s32 %v5216, %v5218
        %v5220 = vrot.slane %v5199, %v5219
        %v5222 = vunpack.c.l.s4 1983009808
        %v5223 = vunpack.c.0.s8 %v5222
        %v5224 = vlaneseq
        %v5225 = vshrl.u32 %v5224, 7
        %v5226 = vsub.s32 %v5223, %v5225
        %v5227 = vrot.slane %v5213, %v5226
        %v5228 = vcombine.high %v5220, 0
        %v5230 = vunpack.c.l.s4 1934713408
        %v5231 = vunpack.c.0.s8 %v5230
        %v5232 = vlaneseq
        %v5233 = vshrl.u32 %v5232, 7
        %v5234 = vsub.s32 %v5231, %v5233
        %v5235 = vrot.slane %v5220, %v5234
        %v5237 = vunpack.c.l.s4 1934713408
        %v5238 = vunpack.c.0.s8 %v5237
        %v5239 = vlaneseq
        %v5240 = vshrl.u32 %v5239, 7
        %v5241 = vsub.s32 %v5238, %v5240
        %v5242 = vrot.slane %v5228, %v5241
        %v5243 = vcombine.high %v5227, 0
        %v5245 = vunpack.c.l.s4 1934713408
        %v5246 = vunpack.c.0.s8 %v5245
        %v5247 = vlaneseq
        %v5248 = vshrl.u32 %v5247, 7
        %v5249 = vsub.s32 %v5246, %v5248
        %v5250 = vrot.slane %v5227, %v5249
        %v5252 = vunpack.c.l.s4 1934713408
        %v5253 = vunpack.c.0.s8 %v5252
        %v5254 = vlaneseq
        %v5255 = vshrl.u32 %v5254, 7
        %v5256 = vsub.s32 %v5253, %v5255
        %v5257 = vrot.slane %v5243, %v5256
        %v5258 = vcombine.high %v5235, 0
        %v5259 = vcombine.high %v5242, 0
        %v5260 = vcombine.high %v5250, 0
        %v5261 = vcombine.high %v5257, 0
        %v5262 = vcombine.high %v5203, %v3138
        %v5264 = vunpack.c.l.s4 1983009808
        %v5265 = vunpack.c.0.s8 %v5264
        %v5266 = vlaneseq
        %v5267 = vshrl.u32 %v5266, 7
        %v5268 = vsub.s32 %v5265, %v5267
        %v5269 = vrot.slane %v5203, %v5268
        %v5271 = vunpack.c.l.s4 1983009808
        %v5272 = vunpack.c.0.s8 %v5271
        %v5273 = vlaneseq
        %v5274 = vshrl.u32 %v5273, 7
        %v5275 = vsub.s32 %v5272, %v5274
        %v5276 = vrot.slane %v5262, %v5275
        %v5277 = vcombine.high %v5269, 0
        %v5279 = vunpack.c.l.s4 1934713408
        %v5280 = vunpack.c.0.s8 %v5279
        %v5281 = vlaneseq
        %v5282 = vshrl.u32 %v5281, 7
        %v5283 = vsub.s32 %v5280, %v5282
        %v5284 = vrot.slane %v5269, %v5283
        %v5286 = vunpack.c.l.s4 1934713408
        %v5287 = vunpack.c.0.s8 %v5286
        %v5288 = vlaneseq
        %v5289 = vshrl.u32 %v5288, 7
        %v5290 = vsub.s32 %v5287, %v5289
        %v5291 = vrot.slane %v5277, %v5290
        %v5292 = vcombine.high %v5276, 0
        %v5294 = vunpack.c.l.s4 1934713408
        %v5295 = vunpack.c.0.s8 %v5294
        %v5296 = vlaneseq
        %v5297 = vshrl.u32 %v5296, 7
        %v5298 = vsub.s32 %v5295, %v5297
        %v5299 = vrot.slane %v5276, %v5298
        %v5301 = vunpack.c.l.s4 1934713408
        %v5302 = vunpack.c.0.s8 %v5301
        %v5303 = vlaneseq
        %v5304 = vshrl.u32 %v5303, 7
        %v5305 = vsub.s32 %v5302, %v5304
        %v5306 = vrot.slane %v5292, %v5305
        %v5307 = vcombine.high %v5284, 0
        %v5308 = vcombine.high %v5291, 0
        %v5309 = vcombine.high %v5299, 0
        %v5310 = vcombine.high %v5306, 0
        %v5311 = vcombine.high %v5207, %v3135
        %v5313 = vunpack.c.l.s4 1983009808
        %v5314 = vunpack.c.0.s8 %v5313
        %v5315 = vlaneseq
        %v5316 = vshrl.u32 %v5315, 7
        %v5317 = vsub.s32 %v5314, %v5316
        %v5318 = vrot.slane %v5207, %v5317
        %v5320 = vunpack.c.l.s4 1983009808
        %v5321 = vunpack.c.0.s8 %v5320
        %v5322 = vlaneseq
        %v5323 = vshrl.u32 %v5322, 7
        %v5324 = vsub.s32 %v5321, %v5323
        %v5325 = vrot.slane %v5311, %v5324
        %v5326 = vcombine.high %v5318, 0
        %v5328 = vunpack.c.l.s4 1934713408
        %v5329 = vunpack.c.0.s8 %v5328
        %v5330 = vlaneseq
        %v5331 = vshrl.u32 %v5330, 7
        %v5332 = vsub.s32 %v5329, %v5331
        %v5333 = vrot.slane %v5318, %v5332
        %v5335 = vunpack.c.l.s4 1934713408
        %v5336 = vunpack.c.0.s8 %v5335
        %v5337 = vlaneseq
        %v5338 = vshrl.u32 %v5337, 7
        %v5339 = vsub.s32 %v5336, %v5338
        %v5340 = vrot.slane %v5326, %v5339
        %v5341 = vcombine.high %v5325, 0
        %v5343 = vunpack.c.l.s4 1934713408
        %v5344 = vunpack.c.0.s8 %v5343
        %v5345 = vlaneseq
        %v5346 = vshrl.u32 %v5345, 7
        %v5347 = vsub.s32 %v5344, %v5346
        %v5348 = vrot.slane %v5325, %v5347
        %v5350 = vunpack.c.l.s4 1934713408
        %v5351 = vunpack.c.0.s8 %v5350
        %v5352 = vlaneseq
        %v5353 = vshrl.u32 %v5352, 7
        %v5354 = vsub.s32 %v5351, %v5353
        %v5355 = vrot.slane %v5341, %v5354
        %v5356 = vcombine.high %v5333, 0
        %v5357 = vcombine.high %v5340, 0
        %v5358 = vcombine.high %v5348, 0
        %v5359 = vcombine.high %v5355, 0
        %v5360 = vcombine.high %v5211, %v3138
        %v5362 = vunpack.c.l.s4 1983009808
        %v5363 = vunpack.c.0.s8 %v5362
        %v5364 = vlaneseq
        %v5365 = vshrl.u32 %v5364, 7
        %v5366 = vsub.s32 %v5363, %v5365
        %v5367 = vrot.slane %v5211, %v5366
        %v5369 = vunpack.c.l.s4 1983009808
        %v5370 = vunpack.c.0.s8 %v5369
        %v5371 = vlaneseq
        %v5372 = vshrl.u32 %v5371, 7
        %v5373 = vsub.s32 %v5370, %v5372
        %v5374 = vrot.slane %v5360, %v5373
        %v5375 = vcombine.high %v5367, 0
        %v5377 = vunpack.c.l.s4 1934713408
        %v5378 = vunpack.c.0.s8 %v5377
        %v5379 = vlaneseq
        %v5380 = vshrl.u32 %v5379, 7
        %v5381 = vsub.s32 %v5378, %v5380
        %v5382 = vrot.slane %v5367, %v5381
        %v5384 = vunpack.c.l.s4 1934713408
        %v5385 = vunpack.c.0.s8 %v5384
        %v5386 = vlaneseq
        %v5387 = vshrl.u32 %v5386, 7
        %v5388 = vsub.s32 %v5385, %v5387
        %v5389 = vrot.slane %v5375, %v5388
        %v5390 = vcombine.high %v5374, 0
        %v5392 = vunpack.c.l.s4 1934713408
        %v5393 = vunpack.c.0.s8 %v5392
        %v5394 = vlaneseq
        %v5395 = vshrl.u32 %v5394, 7
        %v5396 = vsub.s32 %v5393, %v5395
        %v5397 = vrot.slane %v5374, %v5396
        %v5399 = vunpack.c.l.s4 1934713408
        %v5400 = vunpack.c.0.s8 %v5399
        %v5401 = vlaneseq
        %v5402 = vshrl.u32 %v5401, 7
        %v5403 = vsub.s32 %v5400, %v5402
        %v5404 = vrot.slane %v5390, %v5403
        %v5405 = vcombine.high %v5382, 0
        %v5406 = vcombine.high %v5389, 0
        %v5407 = vcombine.high %v5397, 0
        %v5408 = vcombine.high %v5404, 0
        %v5409 = vcombine.low %v5235, %v5242
        %v5411 = vunpack.c.l.s4 1983009808
        %v5412 = vunpack.c.0.s8 %v5411
        %v5413 = vlaneseq
        %v5414 = vshrl.u32 %v5413, 7
        %v5415 = vsub.s32 %v5412, %v5414
        %v5416 = vrot.slane %v5409, %v5415
        %v5417 = vcombine.low %v5258, %v5259
        %v5419 = vunpack.c.l.s4 1983009808
        %v5420 = vunpack.c.0.s8 %v5419
        %v5421 = vlaneseq
        %v5422 = vshrl.u32 %v5421, 7
        %v5423 = vsub.s32 %v5420, %v5422
        %v5424 = vrot.slane %v5417, %v5423
        %v5425 = vcombine.low %v5250, %v5257
        %v5427 = vunpack.c.l.s4 1983009808
        %v5428 = vunpack.c.0.s8 %v5427
        %v5429 = vlaneseq
        %v5430 = vshrl.u32 %v5429, 7
        %v5431 = vsub.s32 %v5428, %v5430
        %v5432 = vrot.slane %v5425, %v5431
        %v5433 = vcombine.low %v5260, %v5261
        %v5435 = vunpack.c.l.s4 1983009808
        %v5436 = vunpack.c.0.s8 %v5435
        %v5437 = vlaneseq
        %v5438 = vshrl.u32 %v5437, 7
        %v5439 = vsub.s32 %v5436, %v5438
        %v5440 = vrot.slane %v5433, %v5439
        %v5441 = vcombine.low %v5416, %v5424
        %v5443 = vunpack.c.l.s4 1934713408
        %v5444 = vunpack.c.0.s8 %v5443
        %v5445 = vlaneseq
        %v5446 = vshrl.u32 %v5445, 7
        %v5447 = vsub.s32 %v5444, %v5446
        %v5448 = vrot.slane %v5441, %v5447
        %v5449 = vcombine.low %v5432, %v5440
        %v5451 = vunpack.c.l.s4 1934713408
        %v5452 = vunpack.c.0.s8 %v5451
        %v5453 = vlaneseq
        %v5454 = vshrl.u32 %v5453, 7
        %v5455 = vsub.s32 %v5452, %v5454
        %v5456 = vrot.slane %v5449, %v5455
        %v5457 = vcombine.low %v5448, %v5456
        %v5458 = vcombine.low %v5284, %v5291
        %v5460 = vunpack.c.l.s4 1983009808
        %v5461 = vunpack.c.0.s8 %v5460
        %v5462 = vlaneseq
        %v5463 = vshrl.u32 %v5462, 7
        %v5464 = vsub.s32 %v5461, %v5463
        %v5465 = vrot.slane %v5458, %v5464
        %v5466 = vcombine.low %v5307, %v5308
        %v5468 = vunpack.c.l.s4 1983009808
        %v5469 = vunpack.c.0.s8 %v5468
        %v5470 = vlaneseq
        %v5471 = vshrl.u32 %v5470, 7
        %v5472 = vsub.s32 %v5469, %v5471
        %v5473 = vrot.slane %v5466, %v5472
        %v5474 = vcombine.low %v5299, %v5306
        %v5476 = vunpack.c.l.s4 1983009808
        %v5477 = vunpack.c.0.s8 %v5476
        %v5478 = vlaneseq
        %v5479 = vshrl.u32 %v5478, 7
        %v5480 = vsub.s32 %v5477, %v5479
        %v5481 = vrot.slane %v5474, %v5480
        %v5482 = vcombine.low %v5309, %v5310
        %v5484 = vunpack.c.l.s4 1983009808
        %v5485 = vunpack.c.0.s8 %v5484
        %v5486 = vlaneseq
        %v5487 = vshrl.u32 %v5486, 7
        %v5488 = vsub.s32 %v5485, %v5487
        %v5489 = vrot.slane %v5482, %v5488
        %v5490 = vcombine.low %v5465, %v5473
        %v5492 = vunpack.c.l.s4 1934713408
        %v5493 = vunpack.c.0.s8 %v5492
        %v5494 = vlaneseq
        %v5495 = vshrl.u32 %v5494, 7
        %v5496 = vsub.s32 %v5493, %v5495
        %v5497 = vrot.slane %v5490, %v5496
        %v5498 = vcombine.low %v5481, %v5489
        %v5500 = vunpack.c.l.s4 1934713408
        %v5501 = vunpack.c.0.s8 %v5500
        %v5502 = vlaneseq
        %v5503 = vshrl.u32 %v5502, 7
        %v5504 = vsub.s32 %v5501, %v5503
        %v5505 = vrot.slane %v5498, %v5504
        %v5506 = vcombine.low %v5497, %v5505
        %v5507 = vcombine.low %v5333, %v5340
        %v5509 = vunpack.c.l.s4 1983009808
        %v5510 = vunpack.c.0.s8 %v5509
        %v5511 = vlaneseq
        %v5512 = vshrl.u32 %v5511, 7
        %v5513 = vsub.s32 %v5510, %v5512
        %v5514 = vrot.slane %v5507, %v5513
        %v5515 = vcombine.low %v5356, %v5357
        %v5517 = vunpack.c.l.s4 1983009808
        %v5518 = vunpack.c.0.s8 %v5517
        %v5519 = vlaneseq
        %v5520 = vshrl.u32 %v5519, 7
        %v5521 = vsub.s32 %v5518, %v5520
        %v5522 = vrot.slane %v5515, %v5521
        %v5523 = vcombine.low %v5348, %v5355
        %v5525 = vunpack.c.l.s4 1983009808
        %v5526 = vunpack.c.0.s8 %v5525
        %v5527 = vlaneseq
        %v5528 = vshrl.u32 %v5527, 7
        %v5529 = vsub.s32 %v5526, %v5528
        %v5530 = vrot.slane %v5523, %v5529
        %v5531 = vcombine.low %v5358, %v5359
        %v5533 = vunpack.c.l.s4 1983009808
        %v5534 = vunpack.c.0.s8 %v5533
        %v5535 = vlaneseq
        %v5536 = vshrl.u32 %v5535, 7
        %v5537 = vsub.s32 %v5534, %v5536
        %v5538 = vrot.slane %v5531, %v5537
        %v5539 = vcombine.low %v5514, %v5522
        %v5541 = vunpack.c.l.s4 1934713408
        %v5542 = vunpack.c.0.s8 %v5541
        %v5543 = vlaneseq
        %v5544 = vshrl.u32 %v5543, 7
        %v5545 = vsub.s32 %v5542, %v5544
        %v5546 = vrot.slane %v5539, %v5545
        %v5547 = vcombine.low %v5530, %v5538
        %v5549 = vunpack.c.l.s4 1934713408
        %v5550 = vunpack.c.0.s8 %v5549
        %v5551 = vlaneseq
        %v5552 = vshrl.u32 %v5551, 7
        %v5553 = vsub.s32 %v5550, %v5552
        %v5554 = vrot.slane %v5547, %v5553
        %v5555 = vcombine.low %v5546, %v5554
        %v5556 = vcombine.low %v5382, %v5389
        %v5558 = vunpack.c.l.s4 1983009808
        %v5559 = vunpack.c.0.s8 %v5558
        %v5560 = vlaneseq
        %v5561 = vshrl.u32 %v5560, 7
        %v5562 = vsub.s32 %v5559, %v5561
        %v5563 = vrot.slane %v5556, %v5562
        %v5564 = vcombine.low %v5405, %v5406
        %v5566 = vunpack.c.l.s4 1983009808
        %v5567 = vunpack.c.0.s8 %v5566
        %v5568 = vlaneseq
        %v5569 = vshrl.u32 %v5568, 7
        %v5570 = vsub.s32 %v5567, %v5569
        %v5571 = vrot.slane %v5564, %v5570
        %v5572 = vcombine.low %v5397, %v5404
        %v5574 = vunpack.c.l.s4 1983009808
        %v5575 = vunpack.c.0.s8 %v5574
        %v5576 = vlaneseq
        %v5577 = vshrl.u32 %v5576, 7
        %v5578 = vsub.s32 %v5575, %v5577
        %v5579 = vrot.slane %v5572, %v5578
        %v5580 = vcombine.low %v5407, %v5408
        %v5582 = vunpack.c.l.s4 1983009808
        %v5583 = vunpack.c.0.s8 %v5582
        %v5584 = vlaneseq
        %v5585 = vshrl.u32 %v5584, 7
        %v5586 = vsub.s32 %v5583, %v5585
        %v5587 = vrot.slane %v5580, %v5586
        %v5588 = vcombine.low %v5563, %v5571
        %v5590 = vunpack.c.l.s4 1934713408
        %v5591 = vunpack.c.0.s8 %v5590
        %v5592 = vlaneseq
        %v5593 = vshrl.u32 %v5592, 7
        %v5594 = vsub.s32 %v5591, %v5593
        %v5595 = vrot.slane %v5588, %v5594
        %v5596 = vcombine.low %v5579, %v5587
        %v5598 = vunpack.c.l.s4 1934713408
        %v5599 = vunpack.c.0.s8 %v5598
        %v5600 = vlaneseq
        %v5601 = vshrl.u32 %v5600, 7
        %v5602 = vsub.s32 %v5599, %v5601
        %v5603 = vrot.slane %v5596, %v5602
        %v5604 = vcombine.low %v5595, %v5603
        %v5607 = vpack.i.b16 %v5506, %v5457
        %v5609 = vshrl.u32 %v5457, 16
        %v5610 = vshrl.u32 %v5506, 16
        %v5611 = vpack.i.b16 %v5610, %v5609
        %v5615 = vpack.i.b16 %v5604, %v5555
        %v5617 = vshrl.u32 %v5555, 16
        %v5618 = vshrl.u32 %v5604, 16
        %v5619 = vpack.i.b16 %v5618, %v5617
        %5621 = vmatprep.subr.bf16.mxu0 0
        %5622 = vmatpush1.bf16.xpose.msra.mxu0 %v3950
        %5623 = vmatprep.subr.bf16.mxu0 0
        %5624 = vmatpush1.bf16.xpose.msra.mxu0 %v3958
        %5625 = vmatprep.subr.bf16.mxu0 0
        %5626 = vmatpush1.bf16.xpose.msra.mxu0 %v3966
        %5627 = vmatprep.subr.bf16.mxu0 0
        %5628 = vmatpush1.bf16.xpose.msra.mxu0 %v3974
        %5629 = vmatprep.subr.bf16.mxu0 0
        %5630 = vmatpush1.bf16.xpose.msra.mxu0 0
        %5631 = vmatprep.subr.bf16.mxu0 0
        %5632 = vmatpush1.bf16.xpose.msra.mxu0 0
        %5633 = vmatprep.subr.bf16.mxu0 0
        %5634 = vmatpush1.bf16.xpose.msra.mxu0 0
        %5635 = vmatprep.subr.bf16.mxu0 0
        %5636 = vmatpush1.bf16.xpose.msra.mxu0 0
        %5637 = vmatprep.subr.bf16.mxu0 0
        %5638 = vmatpush1.bf16.xpose.msra.mxu0 0
        %5639 = vmatprep.subr.bf16.mxu0 0
        %5640 = vmatpush1.bf16.xpose.msra.mxu0 0
        %5641 = vmatprep.subr.bf16.mxu0 0
        %5642 = vmatpush1.bf16.xpose.msra.mxu0 0
        %5643 = vmatprep.subr.bf16.mxu0 0
        %5644 = vmatpush1.bf16.xpose.msra.mxu0 0
        %5645 = vmatprep.subr.bf16.mxu0 0
        %5646 = vmatpush1.bf16.xpose.msra.mxu0 0
        %5647 = vmatprep.subr.bf16.mxu0 0
        %5648 = vmatpush1.bf16.xpose.msra.mxu0 0
        %5649 = vmatprep.subr.bf16.mxu0 0
        %5650 = vmatpush1.bf16.xpose.msra.mxu0 0
        %5651 = vmatprep.subr.bf16.mxu0 0
        %5652 = vmatpush1.bf16.xpose.msra.mxu0 0
        %5653 = vmatprep.mubr.bf16.mxu0 0
        %5654 = vmatmul.mubr.bf16.gmra.mrb[0].mxu0 %v5607
        %v5655 = vpop.f32.mrb[0].mxu0
        %v5656 = vadd.f32 0.0, %v5655
        %v5657 = vpop.f32.mrb[0].mxu0
        %v5658 = vpop.f32.mrb[0].mxu0
        %v5659 = vadd.f32 0.0, %v5658
        %v5660 = vpop.f32.mrb[0].mxu0
        %5661 = vmatprep.mubr.bf16.mxu0 0
        %5662 = vmatmul.mubr.bf16.gmra.mrb[0].mxu0 %v5615
        %v5663 = vpop.f32.mrb[0].mxu0
        %v5664 = vadd.f32 0.0, %v5663
        %v5665 = vpop.f32.mrb[0].mxu0
        %v5666 = vpop.f32.mrb[0].mxu0
        %v5667 = vadd.f32 0.0, %v5666
        %v5668 = vpop.f32.mrb[0].mxu0
        %5669 = vdwg.mxu0
        %5670 = vmatprep.subr.bf16.mxu0 0
        %5671 = vmatpush1.bf16.xpose.msra.mxu0 %v3954
        %5672 = vmatprep.subr.bf16.mxu0 0
        %5673 = vmatpush1.bf16.xpose.msra.mxu0 %v3962
        %5674 = vmatprep.subr.bf16.mxu0 0
        %5675 = vmatpush1.bf16.xpose.msra.mxu0 %v3970
        %5676 = vmatprep.subr.bf16.mxu0 0
        %5677 = vmatpush1.bf16.xpose.msra.mxu0 %v3978
        %5678 = vmatprep.subr.bf16.mxu0 0
        %5679 = vmatpush1.bf16.xpose.msra.mxu0 0
        %5680 = vmatprep.subr.bf16.mxu0 0
        %5681 = vmatpush1.bf16.xpose.msra.mxu0 0
        %5682 = vmatprep.subr.bf16.mxu0 0
        %5683 = vmatpush1.bf16.xpose.msra.mxu0 0
        %5684 = vmatprep.subr.bf16.mxu0 0
        %5685 = vmatpush1.bf16.xpose.msra.mxu0 0
        %5686 = vmatprep.subr.bf16.mxu0 0
        %5687 = vmatpush1.bf16.xpose.msra.mxu0 0
        %5688 = vmatprep.subr.bf16.mxu0 0
        %5689 = vmatpush1.bf16.xpose.msra.mxu0 0
        %5690 = vmatprep.subr.bf16.mxu0 0
        %5691 = vmatpush1.bf16.xpose.msra.mxu0 0
        %5692 = vmatprep.subr.bf16.mxu0 0
        %5693 = vmatpush1.bf16.xpose.msra.mxu0 0
        %5694 = vmatprep.subr.bf16.mxu0 0
        %5695 = vmatpush1.bf16.xpose.msra.mxu0 0
        %5696 = vmatprep.subr.bf16.mxu0 0
        %5697 = vmatpush1.bf16.xpose.msra.mxu0 0
        %5698 = vmatprep.subr.bf16.mxu0 0
        %5699 = vmatpush1.bf16.xpose.msra.mxu0 0
        %5700 = vmatprep.subr.bf16.mxu0 0
        %5701 = vmatpush1.bf16.xpose.msra.mxu0 0
        %5702 = vmatprep.mubr.bf16.mxu0 0
        %5703 = vmatmul.mubr.bf16.gmra.mrb[0].mxu0 %v5611
        %v5704 = vpop.f32.mrb[0].mxu0
        %v5705 = vadd.f32 0.0, %v5704
        %v5706 = vpop.f32.mrb[0].mxu0
        %v5707 = vpop.f32.mrb[0].mxu0
        %v5708 = vadd.f32 0.0, %v5707
        %v5709 = vpop.f32.mrb[0].mxu0
        %5710 = vmatprep.mubr.bf16.mxu0 0
        %5711 = vmatmul.mubr.bf16.gmra.mrb[0].mxu0 %v5619
        %v5712 = vpop.f32.mrb[0].mxu0
        %v5713 = vadd.f32 0.0, %v5712
        %v5714 = vpop.f32.mrb[0].mxu0
        %v5715 = vpop.f32.mrb[0].mxu0
        %v5716 = vadd.f32 0.0, %v5715
        %v5717 = vpop.f32.mrb[0].mxu0
        %5718 = vdwg.mxu0
        %vm5719 = vcmask 523264
        %v5720 = vsel %vm5719, %v5656, -inf
        %5721 = vmax.xlane.f32.xlu0 %v5720
        %v5722 = vpop.xlane.xlu0 %5721
        %v5723 = vsel %vm5719, %v5659, -inf
        %5724 = vmax.xlane.f32.xlu0 %v5723
        %v5725 = vpop.xlane.xlu0 %5724
        %v5726 = vsel %vm5719, %v5664, -inf
        %5727 = vmax.xlane.f32.xlu0 %v5726
        %v5728 = vpop.xlane.xlu0 %5727
        %v5729 = vsel %vm5719, %v5667, -inf
        %5730 = vmax.xlane.f32.xlu0 %v5729
        %v5731 = vpop.xlane.xlu0 %5730
        %v5732 = vsel %vm5719, %v5705, -inf
        %5733 = vmax.xlane.f32.xlu0 %v5732
        %v5734 = vpop.xlane.xlu0 %5733
        %v5735 = vsel %vm5719, %v5708, -inf
        %5736 = vmax.xlane.f32.xlu0 %v5735
        %v5737 = vpop.xlane.xlu0 %5736
        %v5738 = vsel %vm5719, %v5713, -inf
        %5739 = vmax.xlane.f32.xlu0 %v5738
        %v5740 = vpop.xlane.xlu0 %5739
        %v5741 = vsel %vm5719, %v5716, -inf
        %5742 = vmax.xlane.f32.xlu0 %v5741
        %v5743 = vpop.xlane.xlu0 %5742
        %v5744 = vsub.f32 %v5656, %v5722
        %v5745 = vsub.f32 %v5659, %v5725
        %v5746 = vsub.f32 %v5664, %v5728
        %v5747 = vsub.f32 %v5667, %v5731
        %v5748 = vsub.f32 %v5705, %v5734
        %v5749 = vsub.f32 %v5708, %v5737
        %v5750 = vsub.f32 %v5713, %v5740
        %v5751 = vsub.f32 %v5716, %v5743
        %v5752 = vmul.f32 %v5744, 1.442695
        %v5753 = vpow.pop %v5752
        %v5754 = vmul.f32 %v5745, 1.442695
        %v5755 = vpow.pop %v5754
        %v5756 = vmul.f32 %v5746, 1.442695
        %v5757 = vpow.pop %v5756
        %v5758 = vmul.f32 %v5747, 1.442695
        %v5759 = vpow.pop %v5758
        %v5760 = vmul.f32 %v5748, 1.442695
        %v5761 = vpow.pop %v5760
        %v5762 = vmul.f32 %v5749, 1.442695
        %v5763 = vpow.pop %v5762
        %v5764 = vmul.f32 %v5750, 1.442695
        %v5765 = vpow.pop %v5764
        %v5766 = vmul.f32 %v5751, 1.442695
        %v5767 = vpow.pop %v5766
        %v5768 = vsel %vm5719, %v5753, 0.0
        %5769 = vadd.xlane.f32.xlu0 %v5768
        %v5770 = vpop.xlane.xlu0 %5769
        %v5771 = vsel %vm5719, %v5755, 0.0
        %5772 = vadd.xlane.f32.xlu0 %v5771
        %v5773 = vpop.xlane.xlu0 %5772
        %v5774 = vsel %vm5719, %v5757, 0.0
        %5775 = vadd.xlane.f32.xlu0 %v5774
        %v5776 = vpop.xlane.xlu0 %5775
        %v5777 = vsel %vm5719, %v5759, 0.0
        %5778 = vadd.xlane.f32.xlu0 %v5777
        %v5779 = vpop.xlane.xlu0 %5778
        %v5780 = vsel %vm5719, %v5761, 0.0
        %5781 = vadd.xlane.f32.xlu0 %v5780
        %v5782 = vpop.xlane.xlu0 %5781
        %v5783 = vsel %vm5719, %v5763, 0.0
        %5784 = vadd.xlane.f32.xlu0 %v5783
        %v5785 = vpop.xlane.xlu0 %5784
        %v5786 = vsel %vm5719, %v5765, 0.0
        %5787 = vadd.xlane.f32.xlu0 %v5786
        %v5788 = vpop.xlane.xlu0 %5787
        %v5789 = vsel %vm5719, %v5767, 0.0
        %5790 = vadd.xlane.f32.xlu0 %v5789
        %v5791 = vpop.xlane.xlu0 %5790
        %v5792 = vrcp.pop %v5770
        %v5793 = vrcp.pop %v5773
        %v5794 = vrcp.pop %v5776
        %v5795 = vrcp.pop %v5779
        %v5796 = vrcp.pop %v5782
        %v5797 = vrcp.pop %v5785
        %v5798 = vrcp.pop %v5788
        %v5799 = vrcp.pop %v5791
        %v5800 = vmul.f32 %v5753, %v5792
        %v5801 = vmul.f32 %v5755, %v5793
        %v5802 = vmul.f32 %v5757, %v5794
        %v5803 = vmul.f32 %v5759, %v5795
        %v5804 = vmul.f32 %v5761, %v5796
        %v5805 = vmul.f32 %v5763, %v5797
        %v5806 = vmul.f32 %v5765, %v5798
        %v5807 = vmul.f32 %v5767, %v5799
        %v5808 = vpack.c.bf16 %v5801, %v5800
        %v5809 = vpack.c.bf16 %v5803, %v5802
        %v5810 = vpack.c.bf16 %v5805, %v5804
        %v5811 = vpack.c.bf16 %v5807, %v5806
        %v5813 = vsel %vm5719, %v5808, 0
        %v5816 = vsel %vm5719, %v5809, 0
        %5818 = vmatprep.subr.bf16.mxu0 0
        %5819 = vmatpush1.bf16.msra.mxu0 %v4806
        %5820 = vmatprep.subr.bf16.mxu0 0
        %5821 = vmatpush1.bf16.msra.mxu0 %v4814
        %5822 = vmatprep.subr.bf16.mxu0 0
        %5823 = vmatpush1.bf16.msra.mxu0 %v4822
        %5824 = vmatprep.subr.bf16.mxu0 0
        %5825 = vmatpush1.bf16.msra.mxu0 %v4830
        %5826 = vmatprep.subr.bf16.mxu0 0
        %5827 = vmatpush1.bf16.msra.mxu0 0
        %5828 = vmatprep.subr.bf16.mxu0 0
        %5829 = vmatpush1.bf16.msra.mxu0 0
        %5830 = vmatprep.subr.bf16.mxu0 0
        %5831 = vmatpush1.bf16.msra.mxu0 0
        %5832 = vmatprep.subr.bf16.mxu0 0
        %5833 = vmatpush1.bf16.msra.mxu0 0
        %5834 = vmatprep.subr.bf16.mxu0 0
        %5835 = vmatpush1.bf16.msra.mxu0 0
        %5836 = vmatprep.subr.bf16.mxu0 0
        %5837 = vmatpush1.bf16.msra.mxu0 0
        %5838 = vmatprep.subr.bf16.mxu0 0
        %5839 = vmatpush1.bf16.msra.mxu0 0
        %5840 = vmatprep.subr.bf16.mxu0 0
        %5841 = vmatpush1.bf16.msra.mxu0 0
        %5842 = vmatprep.subr.bf16.mxu0 0
        %5843 = vmatpush1.bf16.msra.mxu0 0
        %5844 = vmatprep.subr.bf16.mxu0 0
        %5845 = vmatpush1.bf16.msra.mxu0 0
        %5846 = vmatprep.subr.bf16.mxu0 0
        %5847 = vmatpush1.bf16.msra.mxu0 0
        %5848 = vmatprep.subr.bf16.mxu0 0
        %5849 = vmatpush1.bf16.msra.mxu0 0
        %5850 = vmatprep.mubr.bf16.mxu0 0
        %5851 = vmatmul.mubr.bf16.gmra.mrb[0].mxu0 %v5813
        %v5852 = vpop.f32.mrb[0].mxu0
        %v5853 = vadd.f32 0.0, %v5852
        %v5854 = vpop.f32.mrb[0].mxu0
        %v5855 = vpop.f32.mrb[0].mxu0
        %v5856 = vadd.f32 0.0, %v5855
        %v5857 = vpop.f32.mrb[0].mxu0
        %5858 = vmatprep.mubr.bf16.mxu0 0
        %5859 = vmatmul.mubr.bf16.gmra.mrb[0].mxu0 %v5816
        %v5860 = vpop.f32.mrb[0].mxu0
        %v5861 = vadd.f32 0.0, %v5860
        %v5862 = vpop.f32.mrb[0].mxu0
        %v5863 = vpop.f32.mrb[0].mxu0
        %v5864 = vadd.f32 0.0, %v5863
        %v5865 = vpop.f32.mrb[0].mxu0
        %5866 = vdwg.mxu0
        %v5868 = vsel %vm5719, %v5810, 0
        %v5871 = vsel %vm5719, %v5811, 0
        %5873 = vmatprep.subr.bf16.mxu0 0
        %5874 = vmatpush1.bf16.msra.mxu0 %v4810
        %5875 = vmatprep.subr.bf16.mxu0 0
        %5876 = vmatpush1.bf16.msra.mxu0 %v4818
        %5877 = vmatprep.subr.bf16.mxu0 0
        %5878 = vmatpush1.bf16.msra.mxu0 %v4826
        %5879 = vmatprep.subr.bf16.mxu0 0
        %5880 = vmatpush1.bf16.msra.mxu0 %v4834
        %5881 = vmatprep.subr.bf16.mxu0 0
        %5882 = vmatpush1.bf16.msra.mxu0 0
        %5883 = vmatprep.subr.bf16.mxu0 0
        %5884 = vmatpush1.bf16.msra.mxu0 0
        %5885 = vmatprep.subr.bf16.mxu0 0
        %5886 = vmatpush1.bf16.msra.mxu0 0
        %5887 = vmatprep.subr.bf16.mxu0 0
        %5888 = vmatpush1.bf16.msra.mxu0 0
        %5889 = vmatprep.subr.bf16.mxu0 0
        %5890 = vmatpush1.bf16.msra.mxu0 0
        %5891 = vmatprep.subr.bf16.mxu0 0
        %5892 = vmatpush1.bf16.msra.mxu0 0
        %5893 = vmatprep.subr.bf16.mxu0 0
        %5894 = vmatpush1.bf16.msra.mxu0 0
        %5895 = vmatprep.subr.bf16.mxu0 0
        %5896 = vmatpush1.bf16.msra.mxu0 0
        %5897 = vmatprep.subr.bf16.mxu0 0
        %5898 = vmatpush1.bf16.msra.mxu0 0
        %5899 = vmatprep.subr.bf16.mxu0 0
        %5900 = vmatpush1.bf16.msra.mxu0 0
        %5901 = vmatprep.subr.bf16.mxu0 0
        %5902 = vmatpush1.bf16.msra.mxu0 0
        %5903 = vmatprep.subr.bf16.mxu0 0
        %5904 = vmatpush1.bf16.msra.mxu0 0
        %5905 = vmatprep.mubr.bf16.mxu0 0
        %5906 = vmatmul.mubr.bf16.gmra.mrb[0].mxu0 %v5868
        %v5907 = vpop.f32.mrb[0].mxu0
        %v5908 = vadd.f32 0.0, %v5907
        %v5909 = vpop.f32.mrb[0].mxu0
        %v5910 = vpop.f32.mrb[0].mxu0
        %v5911 = vadd.f32 0.0, %v5910
        %v5912 = vpop.f32.mrb[0].mxu0
        %5913 = vmatprep.mubr.bf16.mxu0 0
        %5914 = vmatmul.mubr.bf16.gmra.mrb[0].mxu0 %v5871
        %v5915 = vpop.f32.mrb[0].mxu0
        %v5916 = vadd.f32 0.0, %v5915
        %v5917 = vpop.f32.mrb[0].mxu0
        %v5918 = vpop.f32.mrb[0].mxu0
        %v5919 = vadd.f32 0.0, %v5918
        %v5920 = vpop.f32.mrb[0].mxu0
        %5921 = vdwg.mxu0
        %v5922 = vpack.c.bf16 %v5856, %v5853
        %v5923 = vpack.c.bf16 %v5864, %v5861
        %v5924 = vpack.c.bf16 %v5911, %v5908
        %v5925 = vpack.c.bf16 %v5919, %v5916
        %v5928 = vpack.i.b16 %v5924, %v5922
        %v5930 = vshrl.u32 %v5922, 16
        %v5931 = vshrl.u32 %v5924, 16
        %v5932 = vpack.i.b16 %v5931, %v5930
        %v5936 = vpack.i.b16 %v5925, %v5923
        %v5938 = vshrl.u32 %v5923, 16
        %v5939 = vshrl.u32 %v5925, 16
        %v5940 = vpack.i.b16 %v5939, %v5938
        %v5942 = vcombine.high %v5928, %v3135
        %v5944 = vunpack.c.l.s4 1983009808
        %v5945 = vunpack.c.0.s8 %v5944
        %v5946 = vlaneseq
        %v5947 = vshrl.u32 %v5946, 7
        %v5948 = vsub.s32 %v5945, %v5947
        %v5949 = vrot.slane %v5928, %v5948
        %v5951 = vunpack.c.l.s4 1983009808
        %v5952 = vunpack.c.0.s8 %v5951
        %v5953 = vlaneseq
        %v5954 = vshrl.u32 %v5953, 7
        %v5955 = vsub.s32 %v5952, %v5954
        %v5956 = vrot.slane %v5942, %v5955
        %v5957 = vcombine.high %v5949, 0
        %v5959 = vunpack.c.l.s4 1934713408
        %v5960 = vunpack.c.0.s8 %v5959
        %v5961 = vlaneseq
        %v5962 = vshrl.u32 %v5961, 7
        %v5963 = vsub.s32 %v5960, %v5962
        %v5964 = vrot.slane %v5949, %v5963
        %v5966 = vunpack.c.l.s4 1934713408
        %v5967 = vunpack.c.0.s8 %v5966
        %v5968 = vlaneseq
        %v5969 = vshrl.u32 %v5968, 7
        %v5970 = vsub.s32 %v5967, %v5969
        %v5971 = vrot.slane %v5957, %v5970
        %v5972 = vcombine.high %v5956, 0
        %v5974 = vunpack.c.l.s4 1934713408
        %v5975 = vunpack.c.0.s8 %v5974
        %v5976 = vlaneseq
        %v5977 = vshrl.u32 %v5976, 7
        %v5978 = vsub.s32 %v5975, %v5977
        %v5979 = vrot.slane %v5956, %v5978
        %v5981 = vunpack.c.l.s4 1934713408
        %v5982 = vunpack.c.0.s8 %v5981
        %v5983 = vlaneseq
        %v5984 = vshrl.u32 %v5983, 7
        %v5985 = vsub.s32 %v5982, %v5984
        %v5986 = vrot.slane %v5972, %v5985
        %v5987 = vcombine.high %v5964, 0
        %v5988 = vcombine.high %v5971, 0
        %v5989 = vcombine.high %v5979, 0
        %v5990 = vcombine.high %v5986, 0
        %v5991 = vcombine.high %v5932, %v3138
        %v5993 = vunpack.c.l.s4 1983009808
        %v5994 = vunpack.c.0.s8 %v5993
        %v5995 = vlaneseq
        %v5996 = vshrl.u32 %v5995, 7
        %v5997 = vsub.s32 %v5994, %v5996
        %v5998 = vrot.slane %v5932, %v5997
        %v6000 = vunpack.c.l.s4 1983009808
        %v6001 = vunpack.c.0.s8 %v6000
        %v6002 = vlaneseq
        %v6003 = vshrl.u32 %v6002, 7
        %v6004 = vsub.s32 %v6001, %v6003
        %v6005 = vrot.slane %v5991, %v6004
        %v6006 = vcombine.high %v5998, 0
        %v6008 = vunpack.c.l.s4 1934713408
        %v6009 = vunpack.c.0.s8 %v6008
        %v6010 = vlaneseq
        %v6011 = vshrl.u32 %v6010, 7
        %v6012 = vsub.s32 %v6009, %v6011
        %v6013 = vrot.slane %v5998, %v6012
        %v6015 = vunpack.c.l.s4 1934713408
        %v6016 = vunpack.c.0.s8 %v6015
        %v6017 = vlaneseq
        %v6018 = vshrl.u32 %v6017, 7
        %v6019 = vsub.s32 %v6016, %v6018
        %v6020 = vrot.slane %v6006, %v6019
        %v6021 = vcombine.high %v6005, 0
        %v6023 = vunpack.c.l.s4 1934713408
        %v6024 = vunpack.c.0.s8 %v6023
        %v6025 = vlaneseq
        %v6026 = vshrl.u32 %v6025, 7
        %v6027 = vsub.s32 %v6024, %v6026
        %v6028 = vrot.slane %v6005, %v6027
        %v6030 = vunpack.c.l.s4 1934713408
        %v6031 = vunpack.c.0.s8 %v6030
        %v6032 = vlaneseq
        %v6033 = vshrl.u32 %v6032, 7
        %v6034 = vsub.s32 %v6031, %v6033
        %v6035 = vrot.slane %v6021, %v6034
        %v6036 = vcombine.high %v6013, 0
        %v6037 = vcombine.high %v6020, 0
        %v6038 = vcombine.high %v6028, 0
        %v6039 = vcombine.high %v6035, 0
        %v6040 = vcombine.high %v5936, %v3135
        %v6042 = vunpack.c.l.s4 1983009808
        %v6043 = vunpack.c.0.s8 %v6042
        %v6044 = vlaneseq
        %v6045 = vshrl.u32 %v6044, 7
        %v6046 = vsub.s32 %v6043, %v6045
        %v6047 = vrot.slane %v5936, %v6046
        %v6049 = vunpack.c.l.s4 1983009808
        %v6050 = vunpack.c.0.s8 %v6049
        %v6051 = vlaneseq
        %v6052 = vshrl.u32 %v6051, 7
        %v6053 = vsub.s32 %v6050, %v6052
        %v6054 = vrot.slane %v6040, %v6053
        %v6055 = vcombine.high %v6047, 0
        %v6057 = vunpack.c.l.s4 1934713408
        %v6058 = vunpack.c.0.s8 %v6057
        %v6059 = vlaneseq
        %v6060 = vshrl.u32 %v6059, 7
        %v6061 = vsub.s32 %v6058, %v6060
        %v6062 = vrot.slane %v6047, %v6061
        %v6064 = vunpack.c.l.s4 1934713408
        %v6065 = vunpack.c.0.s8 %v6064
        %v6066 = vlaneseq
        %v6067 = vshrl.u32 %v6066, 7
        %v6068 = vsub.s32 %v6065, %v6067
        %v6069 = vrot.slane %v6055, %v6068
        %v6070 = vcombine.high %v6054, 0
        %v6072 = vunpack.c.l.s4 1934713408
        %v6073 = vunpack.c.0.s8 %v6072
        %v6074 = vlaneseq
        %v6075 = vshrl.u32 %v6074, 7
        %v6076 = vsub.s32 %v6073, %v6075
        %v6077 = vrot.slane %v6054, %v6076
        %v6079 = vunpack.c.l.s4 1934713408
        %v6080 = vunpack.c.0.s8 %v6079
        %v6081 = vlaneseq
        %v6082 = vshrl.u32 %v6081, 7
        %v6083 = vsub.s32 %v6080, %v6082
        %v6084 = vrot.slane %v6070, %v6083
        %v6085 = vcombine.high %v6062, 0
        %v6086 = vcombine.high %v6069, 0
        %v6087 = vcombine.high %v6077, 0
        %v6088 = vcombine.high %v6084, 0
        %v6089 = vcombine.high %v5940, %v3138
        %v6091 = vunpack.c.l.s4 1983009808
        %v6092 = vunpack.c.0.s8 %v6091
        %v6093 = vlaneseq
        %v6094 = vshrl.u32 %v6093, 7
        %v6095 = vsub.s32 %v6092, %v6094
        %v6096 = vrot.slane %v5940, %v6095
        %v6098 = vunpack.c.l.s4 1983009808
        %v6099 = vunpack.c.0.s8 %v6098
        %v6100 = vlaneseq
        %v6101 = vshrl.u32 %v6100, 7
        %v6102 = vsub.s32 %v6099, %v6101
        %v6103 = vrot.slane %v6089, %v6102
        %v6104 = vcombine.high %v6096, 0
        %v6106 = vunpack.c.l.s4 1934713408
        %v6107 = vunpack.c.0.s8 %v6106
        %v6108 = vlaneseq
        %v6109 = vshrl.u32 %v6108, 7
        %v6110 = vsub.s32 %v6107, %v6109
        %v6111 = vrot.slane %v6096, %v6110
        %v6113 = vunpack.c.l.s4 1934713408
        %v6114 = vunpack.c.0.s8 %v6113
        %v6115 = vlaneseq
        %v6116 = vshrl.u32 %v6115, 7
        %v6117 = vsub.s32 %v6114, %v6116
        %v6118 = vrot.slane %v6104, %v6117
        %v6119 = vcombine.high %v6103, 0
        %v6121 = vunpack.c.l.s4 1934713408
        %v6122 = vunpack.c.0.s8 %v6121
        %v6123 = vlaneseq
        %v6124 = vshrl.u32 %v6123, 7
        %v6125 = vsub.s32 %v6122, %v6124
        %v6126 = vrot.slane %v6103, %v6125
        %v6128 = vunpack.c.l.s4 1934713408
        %v6129 = vunpack.c.0.s8 %v6128
        %v6130 = vlaneseq
        %v6131 = vshrl.u32 %v6130, 7
        %v6132 = vsub.s32 %v6129, %v6131
        %v6133 = vrot.slane %v6119, %v6132
        %v6134 = vcombine.high %v6111, 0
        %v6135 = vcombine.high %v6118, 0
        %v6136 = vcombine.high %v6126, 0
        %v6137 = vcombine.high %v6133, 0
        %v6138 = vcombine.low %v5964, %v5971
        %v6140 = vunpack.c.l.s4 1983009808
        %v6141 = vunpack.c.0.s8 %v6140
        %v6142 = vlaneseq
        %v6143 = vshrl.u32 %v6142, 7
        %v6144 = vsub.s32 %v6141, %v6143
        %v6145 = vrot.slane %v6138, %v6144
        %v6146 = vcombine.low %v5987, %v5988
        %v6148 = vunpack.c.l.s4 1983009808
        %v6149 = vunpack.c.0.s8 %v6148
        %v6150 = vlaneseq
        %v6151 = vshrl.u32 %v6150, 7
        %v6152 = vsub.s32 %v6149, %v6151
        %v6153 = vrot.slane %v6146, %v6152
        %v6154 = vcombine.low %v5979, %v5986
        %v6156 = vunpack.c.l.s4 1983009808
        %v6157 = vunpack.c.0.s8 %v6156
        %v6158 = vlaneseq
        %v6159 = vshrl.u32 %v6158, 7
        %v6160 = vsub.s32 %v6157, %v6159
        %v6161 = vrot.slane %v6154, %v6160
        %v6162 = vcombine.low %v5989, %v5990
        %v6164 = vunpack.c.l.s4 1983009808
        %v6165 = vunpack.c.0.s8 %v6164
        %v6166 = vlaneseq
        %v6167 = vshrl.u32 %v6166, 7
        %v6168 = vsub.s32 %v6165, %v6167
        %v6169 = vrot.slane %v6162, %v6168
        %v6170 = vcombine.low %v6145, %v6153
        %v6172 = vunpack.c.l.s4 1934713408
        %v6173 = vunpack.c.0.s8 %v6172
        %v6174 = vlaneseq
        %v6175 = vshrl.u32 %v6174, 7
        %v6176 = vsub.s32 %v6173, %v6175
        %v6177 = vrot.slane %v6170, %v6176
        %v6178 = vcombine.low %v6161, %v6169
        %v6180 = vunpack.c.l.s4 1934713408
        %v6181 = vunpack.c.0.s8 %v6180
        %v6182 = vlaneseq
        %v6183 = vshrl.u32 %v6182, 7
        %v6184 = vsub.s32 %v6181, %v6183
        %v6185 = vrot.slane %v6178, %v6184
        %v6186 = vcombine.low %v6177, %v6185
        %v6187 = vcombine.low %v6013, %v6020
        %v6189 = vunpack.c.l.s4 1983009808
        %v6190 = vunpack.c.0.s8 %v6189
        %v6191 = vlaneseq
        %v6192 = vshrl.u32 %v6191, 7
        %v6193 = vsub.s32 %v6190, %v6192
        %v6194 = vrot.slane %v6187, %v6193
        %v6195 = vcombine.low %v6036, %v6037
        %v6197 = vunpack.c.l.s4 1983009808
        %v6198 = vunpack.c.0.s8 %v6197
        %v6199 = vlaneseq
        %v6200 = vshrl.u32 %v6199, 7
        %v6201 = vsub.s32 %v6198, %v6200
        %v6202 = vrot.slane %v6195, %v6201
        %v6203 = vcombine.low %v6028, %v6035
        %v6205 = vunpack.c.l.s4 1983009808
        %v6206 = vunpack.c.0.s8 %v6205
        %v6207 = vlaneseq
        %v6208 = vshrl.u32 %v6207, 7
        %v6209 = vsub.s32 %v6206, %v6208
        %v6210 = vrot.slane %v6203, %v6209
        %v6211 = vcombine.low %v6038, %v6039
        %v6213 = vunpack.c.l.s4 1983009808
        %v6214 = vunpack.c.0.s8 %v6213
        %v6215 = vlaneseq
        %v6216 = vshrl.u32 %v6215, 7
        %v6217 = vsub.s32 %v6214, %v6216
        %v6218 = vrot.slane %v6211, %v6217
        %v6219 = vcombine.low %v6194, %v6202
        %v6221 = vunpack.c.l.s4 1934713408
        %v6222 = vunpack.c.0.s8 %v6221
        %v6223 = vlaneseq
        %v6224 = vshrl.u32 %v6223, 7
        %v6225 = vsub.s32 %v6222, %v6224
        %v6226 = vrot.slane %v6219, %v6225
        %v6227 = vcombine.low %v6210, %v6218
        %v6229 = vunpack.c.l.s4 1934713408
        %v6230 = vunpack.c.0.s8 %v6229
        %v6231 = vlaneseq
        %v6232 = vshrl.u32 %v6231, 7
        %v6233 = vsub.s32 %v6230, %v6232
        %v6234 = vrot.slane %v6227, %v6233
        %v6235 = vcombine.low %v6226, %v6234
        %v6236 = vcombine.low %v6062, %v6069
        %v6238 = vunpack.c.l.s4 1983009808
        %v6239 = vunpack.c.0.s8 %v6238
        %v6240 = vlaneseq
        %v6241 = vshrl.u32 %v6240, 7
        %v6242 = vsub.s32 %v6239, %v6241
        %v6243 = vrot.slane %v6236, %v6242
        %v6244 = vcombine.low %v6085, %v6086
        %v6246 = vunpack.c.l.s4 1983009808
        %v6247 = vunpack.c.0.s8 %v6246
        %v6248 = vlaneseq
        %v6249 = vshrl.u32 %v6248, 7
        %v6250 = vsub.s32 %v6247, %v6249
        %v6251 = vrot.slane %v6244, %v6250
        %v6252 = vcombine.low %v6077, %v6084
        %v6254 = vunpack.c.l.s4 1983009808
        %v6255 = vunpack.c.0.s8 %v6254
        %v6256 = vlaneseq
        %v6257 = vshrl.u32 %v6256, 7
        %v6258 = vsub.s32 %v6255, %v6257
        %v6259 = vrot.slane %v6252, %v6258
        %v6260 = vcombine.low %v6087, %v6088
        %v6262 = vunpack.c.l.s4 1983009808
        %v6263 = vunpack.c.0.s8 %v6262
        %v6264 = vlaneseq
        %v6265 = vshrl.u32 %v6264, 7
        %v6266 = vsub.s32 %v6263, %v6265
        %v6267 = vrot.slane %v6260, %v6266
        %v6268 = vcombine.low %v6243, %v6251
        %v6270 = vunpack.c.l.s4 1934713408
        %v6271 = vunpack.c.0.s8 %v6270
        %v6272 = vlaneseq
        %v6273 = vshrl.u32 %v6272, 7
        %v6274 = vsub.s32 %v6271, %v6273
        %v6275 = vrot.slane %v6268, %v6274
        %v6276 = vcombine.low %v6259, %v6267
        %v6278 = vunpack.c.l.s4 1934713408
        %v6279 = vunpack.c.0.s8 %v6278
        %v6280 = vlaneseq
        %v6281 = vshrl.u32 %v6280, 7
        %v6282 = vsub.s32 %v6279, %v6281
        %v6283 = vrot.slane %v6276, %v6282
        %v6284 = vcombine.low %v6275, %v6283
        %v6285 = vcombine.low %v6111, %v6118
        %v6287 = vunpack.c.l.s4 1983009808
        %v6288 = vunpack.c.0.s8 %v6287
        %v6289 = vlaneseq
        %v6290 = vshrl.u32 %v6289, 7
        %v6291 = vsub.s32 %v6288, %v6290
        %v6292 = vrot.slane %v6285, %v6291
        %v6293 = vcombine.low %v6134, %v6135
        %v6295 = vunpack.c.l.s4 1983009808
        %v6296 = vunpack.c.0.s8 %v6295
        %v6297 = vlaneseq
        %v6298 = vshrl.u32 %v6297, 7
        %v6299 = vsub.s32 %v6296, %v6298
        %v6300 = vrot.slane %v6293, %v6299
        %v6301 = vcombine.low %v6126, %v6133
        %v6303 = vunpack.c.l.s4 1983009808
        %v6304 = vunpack.c.0.s8 %v6303
        %v6305 = vlaneseq
        %v6306 = vshrl.u32 %v6305, 7
        %v6307 = vsub.s32 %v6304, %v6306
        %v6308 = vrot.slane %v6301, %v6307
        %v6309 = vcombine.low %v6136, %v6137
        %v6311 = vunpack.c.l.s4 1983009808
        %v6312 = vunpack.c.0.s8 %v6311
        %v6313 = vlaneseq
        %v6314 = vshrl.u32 %v6313, 7
        %v6315 = vsub.s32 %v6312, %v6314
        %v6316 = vrot.slane %v6309, %v6315
        %v6317 = vcombine.low %v6292, %v6300
        %v6319 = vunpack.c.l.s4 1934713408
        %v6320 = vunpack.c.0.s8 %v6319
        %v6321 = vlaneseq
        %v6322 = vshrl.u32 %v6321, 7
        %v6323 = vsub.s32 %v6320, %v6322
        %v6324 = vrot.slane %v6317, %v6323
        %v6325 = vcombine.low %v6308, %v6316
        %v6327 = vunpack.c.l.s4 1934713408
        %v6328 = vunpack.c.0.s8 %v6327
        %v6329 = vlaneseq
        %v6330 = vshrl.u32 %v6329, 7
        %v6331 = vsub.s32 %v6328, %v6330
        %v6332 = vrot.slane %v6325, %v6331
        %v6333 = vcombine.low %v6324, %v6332
        %v6336 = vpack.i.b16 %v6235, %v6186
        %v6338 = vshrl.u32 %v6186, 16
        %v6339 = vshrl.u32 %v6235, 16
        %v6340 = vpack.i.b16 %v6339, %v6338
        %v6344 = vpack.i.b16 %v6333, %v6284
        %v6346 = vshrl.u32 %v6284, 16
        %v6347 = vshrl.u32 %v6333, 16
        %v6348 = vpack.i.b16 %v6347, %v6346
        %v6350 = vld [vmem:[#allocation20] sm:$0xff]
        %v6351 = vld [vmem:[#allocation20 + $0x8] sm:$0xff]
        %v6352 = vld [vmem:[#allocation20 + $0x10] sm:$0xff]
        %v6353 = vld [vmem:[#allocation20 + $0x18] sm:$0xff]
        %v6354 = vld [vmem:[#allocation20 + $0x20] sm:$0xff]
        %v6355 = vld [vmem:[#allocation20 + $0x28] sm:$0xff]
        %v6356 = vld [vmem:[#allocation20 + $0x30] sm:$0xff]
        %v6357 = vld [vmem:[#allocation20 + $0x38] sm:$0xff]
        %v6358 = vld [vmem:[#allocation20 + $0x40] sm:$0xff]
        %v6359 = vld [vmem:[#allocation20 + $0x48] sm:$0xff]
        %v6360 = vld [vmem:[#allocation20 + $0x50] sm:$0xff]
        %v6361 = vld [vmem:[#allocation20 + $0x58] sm:$0xff]
        %v6362 = vld [vmem:[#allocation20 + $0x60] sm:$0xff]
        %v6363 = vld [vmem:[#allocation20 + $0x68] sm:$0xff]
        %v6364 = vld [vmem:[#allocation20 + $0x70] sm:$0xff]
        %v6365 = vld [vmem:[#allocation20 + $0x78] sm:$0xff]
        %v6366 = vld [vmem:[#allocation20 + $0x80] sm:$0xff]
        %v6367 = vld [vmem:[#allocation20 + $0x88] sm:$0xff]
        %v6368 = vld [vmem:[#allocation20 + $0x90] sm:$0xff]
        %v6369 = vld [vmem:[#allocation20 + $0x98] sm:$0xff]
        %v6370 = vld [vmem:[#allocation20 + $0xa0] sm:$0xff]
        %v6371 = vld [vmem:[#allocation20 + $0xa8] sm:$0xff]
        %v6372 = vld [vmem:[#allocation20 + $0xb0] sm:$0xff]
        %v6373 = vld [vmem:[#allocation20 + $0xb8] sm:$0xff]
        %v6374 = vld [vmem:[#allocation20 + $0xc0] sm:$0xff]
        %v6375 = vld [vmem:[#allocation20 + $0xc8] sm:$0xff]
        %v6376 = vld [vmem:[#allocation20 + $0xd0] sm:$0xff]
        %v6377 = vld [vmem:[#allocation20 + $0xd8] sm:$0xff]
        %v6378 = vld [vmem:[#allocation20 + $0xe0] sm:$0xff]
        %v6379 = vld [vmem:[#allocation20 + $0xe8] sm:$0xff]
        %v6380 = vld [vmem:[#allocation20 + $0xf0] sm:$0xff]
        %v6381 = vld [vmem:[#allocation20 + $0xf8] sm:$0xff]
        %v6382 = vld [vmem:[#allocation22] sm:$0x3]
        %v6384 = vlaneseq
        %v6385 = vshrl.u32 %v6384, 7
        %v6386 = vsub.s32 0, %v6385
        %v6387 = vrot.slane %v6382, %v6386
        %v6388 = vlaneseq
        %v6389 = vshrl.u32 %v6388, 7
        %v6390 = vsub.s32 1, %v6389
        %v6391 = vrot.slane %v6382, %v6390
        %v6426 = vunpack.c.l.b16 %v6350
        %v6427 = vunpack.c.h.b16 %v6350
        %v6428 = vunpack.c.l.b16 %v6351
        %v6429 = vunpack.c.h.b16 %v6351
        %v6430 = vunpack.c.l.b16 %v6352
        %v6431 = vunpack.c.h.b16 %v6352
        %v6432 = vunpack.c.l.b16 %v6353
        %v6433 = vunpack.c.h.b16 %v6353
        %v6434 = vunpack.c.l.b16 %v6354
        %v6435 = vunpack.c.h.b16 %v6354
        %v6436 = vunpack.c.l.b16 %v6355
        %v6437 = vunpack.c.h.b16 %v6355
        %v6438 = vunpack.c.l.b16 %v6356
        %v6439 = vunpack.c.h.b16 %v6356
        %v6440 = vunpack.c.l.b16 %v6357
        %v6441 = vunpack.c.h.b16 %v6357
        %v6442 = vunpack.c.l.b16 %v6358
        %v6443 = vunpack.c.h.b16 %v6358
        %v6444 = vunpack.c.l.b16 %v6359
        %v6445 = vunpack.c.h.b16 %v6359
        %v6446 = vunpack.c.l.b16 %v6360
        %v6447 = vunpack.c.h.b16 %v6360
        %v6448 = vunpack.c.l.b16 %v6361
        %v6449 = vunpack.c.h.b16 %v6361
        %v6450 = vunpack.c.l.b16 %v6362
        %v6451 = vunpack.c.h.b16 %v6362
        %v6452 = vunpack.c.l.b16 %v6363
        %v6453 = vunpack.c.h.b16 %v6363
        %v6454 = vunpack.c.l.b16 %v6364
        %v6455 = vunpack.c.h.b16 %v6364
        %v6456 = vunpack.c.l.b16 %v6365
        %v6457 = vunpack.c.h.b16 %v6365
        %v6458 = vunpack.c.l.b16 %v6366
        %v6459 = vunpack.c.h.b16 %v6366
        %v6460 = vunpack.c.l.b16 %v6367
        %v6461 = vunpack.c.h.b16 %v6367
        %v6462 = vunpack.c.l.b16 %v6368
        %v6463 = vunpack.c.h.b16 %v6368
        %v6464 = vunpack.c.l.b16 %v6369
        %v6465 = vunpack.c.h.b16 %v6369
        %v6466 = vunpack.c.l.b16 %v6370
        %v6467 = vunpack.c.h.b16 %v6370
        %v6468 = vunpack.c.l.b16 %v6371
        %v6469 = vunpack.c.h.b16 %v6371
        %v6470 = vunpack.c.l.b16 %v6372
        %v6471 = vunpack.c.h.b16 %v6372
        %v6472 = vunpack.c.l.b16 %v6373
        %v6473 = vunpack.c.h.b16 %v6373
        %v6474 = vunpack.c.l.b16 %v6374
        %v6475 = vunpack.c.h.b16 %v6374
        %v6476 = vunpack.c.l.b16 %v6375
        %v6477 = vunpack.c.h.b16 %v6375
        %v6478 = vunpack.c.l.b16 %v6376
        %v6479 = vunpack.c.h.b16 %v6376
        %v6480 = vunpack.c.l.b16 %v6377
        %v6481 = vunpack.c.h.b16 %v6377
        %v6482 = vunpack.c.l.b16 %v6378
        %v6483 = vunpack.c.h.b16 %v6378
        %v6484 = vunpack.c.l.b16 %v6379
        %v6485 = vunpack.c.h.b16 %v6379
        %v6486 = vunpack.c.l.b16 %v6380
        %v6487 = vunpack.c.h.b16 %v6380
        %v6488 = vunpack.c.l.b16 %v6381
        %v6489 = vunpack.c.h.b16 %v6381
        %v6490 = vpack.c.b16 %v6428, %v6426
        %v6491 = vpack.c.b16 %v6429, %v6427
        %v6492 = vpack.c.b16 %v6432, %v6430
        %v6493 = vpack.c.b16 %v6433, %v6431
        %v6494 = vpack.c.b16 %v6436, %v6434
        %v6495 = vpack.c.b16 %v6437, %v6435
        %v6496 = vpack.c.b16 %v6440, %v6438
        %v6497 = vpack.c.b16 %v6441, %v6439
        %v6498 = vpack.c.b16 %v6444, %v6442
        %v6499 = vpack.c.b16 %v6445, %v6443
        %v6500 = vpack.c.b16 %v6448, %v6446
        %v6501 = vpack.c.b16 %v6449, %v6447
        %v6502 = vpack.c.b16 %v6452, %v6450
        %v6503 = vpack.c.b16 %v6453, %v6451
        %v6504 = vpack.c.b16 %v6456, %v6454
        %v6505 = vpack.c.b16 %v6457, %v6455
        %v6506 = vpack.c.b16 %v6460, %v6458
        %v6507 = vpack.c.b16 %v6461, %v6459
        %v6508 = vpack.c.b16 %v6464, %v6462
        %v6509 = vpack.c.b16 %v6465, %v6463
        %v6510 = vpack.c.b16 %v6468, %v6466
        %v6511 = vpack.c.b16 %v6469, %v6467
        %v6512 = vpack.c.b16 %v6472, %v6470
        %v6513 = vpack.c.b16 %v6473, %v6471
        %v6514 = vpack.c.b16 %v6476, %v6474
        %v6515 = vpack.c.b16 %v6477, %v6475
        %v6516 = vpack.c.b16 %v6480, %v6478
        %v6517 = vpack.c.b16 %v6481, %v6479
        %v6518 = vpack.c.b16 %v6484, %v6482
        %v6519 = vpack.c.b16 %v6485, %v6483
        %v6520 = vpack.c.b16 %v6488, %v6486
        %v6521 = vpack.c.b16 %v6489, %v6487
        %6554 = vmatprep.subr.bf16.mxu0 %v6491
        %6555 = vmatpush1.bf16.msra.mxu0 %v6490
        %6556 = vmatprep.subr.bf16.mxu0 %v6493
        %6557 = vmatpush1.bf16.msra.mxu0 %v6492
        %6558 = vmatprep.subr.bf16.mxu0 %v6495
        %6559 = vmatpush1.bf16.msra.mxu0 %v6494
        %6560 = vmatprep.subr.bf16.mxu0 %v6497
        %6561 = vmatpush1.bf16.msra.mxu0 %v6496
        %6562 = vmatprep.subr.bf16.mxu0 %v6499
        %6563 = vmatpush1.bf16.msra.mxu0 %v6498
        %6564 = vmatprep.subr.bf16.mxu0 %v6501
        %6565 = vmatpush1.bf16.msra.mxu0 %v6500
        %6566 = vmatprep.subr.bf16.mxu0 %v6503
        %6567 = vmatpush1.bf16.msra.mxu0 %v6502
        %6568 = vmatprep.subr.bf16.mxu0 %v6505
        %6569 = vmatpush1.bf16.msra.mxu0 %v6504
        %6570 = vmatprep.subr.bf16.mxu0 %v6507
        %6571 = vmatpush1.bf16.msra.mxu0 %v6506
        %6572 = vmatprep.subr.bf16.mxu0 %v6509
        %6573 = vmatpush1.bf16.msra.mxu0 %v6508
        %6574 = vmatprep.subr.bf16.mxu0 %v6511
        %6575 = vmatpush1.bf16.msra.mxu0 %v6510
        %6576 = vmatprep.subr.bf16.mxu0 %v6513
        %6577 = vmatpush1.bf16.msra.mxu0 %v6512
        %6578 = vmatprep.subr.bf16.mxu0 %v6515
        %6579 = vmatpush1.bf16.msra.mxu0 %v6514
        %6580 = vmatprep.subr.bf16.mxu0 %v6517
        %6581 = vmatpush1.bf16.msra.mxu0 %v6516
        %6582 = vmatprep.subr.bf16.mxu0 %v6519
        %6583 = vmatpush1.bf16.msra.mxu0 %v6518
        %6584 = vmatprep.subr.bf16.mxu0 %v6521
        %6585 = vmatpush1.bf16.msra.mxu0 %v6520
        %6586 = vmatprep.mubr.bf16.mxu0 %v6340
        %6587 = vmatmul.mubr.bf16.gmra.mrb[0].mxu0 %v6336
        %v6588 = vpop.f32.mrb[0].mxu0
        %v6589 = vadd.f32 %v6387, %v6588
        %v6590 = vpop.f32.mrb[0].mxu0
        %v6591 = vadd.f32 %v6391, %v6590
        %v6592 = vpop.f32.mrb[0].mxu0
        %v6593 = vadd.f32 %v6387, %v6592
        %v6594 = vpop.f32.mrb[0].mxu0
        %v6595 = vadd.f32 %v6391, %v6594
        %6596 = vmatprep.mubr.bf16.mxu0 %v6348
        %6597 = vmatmul.mubr.bf16.gmra.mrb[0].mxu0 %v6344
        %v6598 = vpop.f32.mrb[0].mxu0
        %v6599 = vadd.f32 %v6387, %v6598
        %v6600 = vpop.f32.mrb[0].mxu0
        %v6601 = vadd.f32 %v6391, %v6600
        %v6602 = vpop.f32.mrb[0].mxu0
        %v6603 = vadd.f32 %v6387, %v6602
        %v6604 = vpop.f32.mrb[0].mxu0
        %v6605 = vadd.f32 %v6391, %v6604
        %6606 = vdwg.mxu0
        %v6607 = vlaneseq
        %v6608 = vshrl.u32 %v6607, 7
        %v6609 = vsub.s32 0, %v6608
        %v6610 = vrot.slane %v2230, %v6609
        %v6611 = vlaneseq
        %v6612 = vshrl.u32 %v6611, 7
        %v6613 = vsub.s32 0, %v6612
        %v6614 = vrot.slane %v2232, %v6613
        %v6615 = vmul.f32 %v6610, %v6589
        %v6616 = vmul.f32 %v6614, %v6591
        %v6617 = vmul.f32 %v6610, %v6593
        %v6618 = vmul.f32 %v6614, %v6595
        %v6619 = vmul.f32 %v6610, %v6599
        %v6620 = vmul.f32 %v6614, %v6601
        %v6621 = vmul.f32 %v6610, %v6603
        %v6622 = vmul.f32 %v6614, %v6605
        %v6623 = vadd.f32 %v4916, %v6615
        %v6624 = vadd.f32 %v4917, %v6616
        %v6625 = vadd.f32 %v4918, %v6617
        %v6626 = vadd.f32 %v4919, %v6618
        %v6627 = vadd.f32 %v4920, %v6619
        %v6628 = vadd.f32 %v4921, %v6620
        %v6629 = vadd.f32 %v4922, %v6621
        %v6630 = vadd.f32 %v4923, %v6622
        %v6631 = vadd.f32 %v6623, %v6624
        %6632 = vadd.xlane.f32.xlu0 %v6631
        %v6633 = vpop.xlane.xlu0 %6632
        %v6634 = vadd.f32 %v6625, %v6626
        %6635 = vadd.xlane.f32.xlu0 %v6634
        %v6636 = vpop.xlane.xlu0 %6635
        %v6637 = vadd.f32 %v6627, %v6628
        %6638 = vadd.xlane.f32.xlu0 %v6637
        %v6639 = vpop.xlane.xlu0 %6638
        %v6640 = vadd.f32 %v6629, %v6630
        %6641 = vadd.xlane.f32.xlu0 %v6640
        %v6642 = vpop.xlane.xlu0 %6641
        %v6643 = vmul.f32 %v6633, %v2387
        %v6644 = vmul.f32 %v6636, %v2387
        %v6645 = vmul.f32 %v6639, %v2387
        %v6646 = vmul.f32 %v6642, %v2387
        %v6647 = vmul.f32 %v6623, %v6623
        %v6648 = vmul.f32 %v6624, %v6624
        %v6649 = vmul.f32 %v6625, %v6625
        %v6650 = vmul.f32 %v6626, %v6626
        %v6651 = vmul.f32 %v6627, %v6627
        %v6652 = vmul.f32 %v6628, %v6628
        %v6653 = vmul.f32 %v6629, %v6629
        %v6654 = vmul.f32 %v6630, %v6630
        %v6655 = vadd.f32 %v6647, %v6648
        %6656 = vadd.xlane.f32.xlu0 %v6655
        %v6657 = vpop.xlane.xlu0 %6656
        %v6658 = vadd.f32 %v6649, %v6650
        %6659 = vadd.xlane.f32.xlu0 %v6658
        %v6660 = vpop.xlane.xlu0 %6659
        %v6661 = vadd.f32 %v6651, %v6652
        %6662 = vadd.xlane.f32.xlu0 %v6661
        %v6663 = vpop.xlane.xlu0 %6662
        %v6664 = vadd.f32 %v6653, %v6654
        %6665 = vadd.xlane.f32.xlu0 %v6664
        %v6666 = vpop.xlane.xlu0 %6665
        %v6667 = vmul.f32 %v6657, %v2387
        %v6668 = vmul.f32 %v6660, %v2387
        %v6669 = vmul.f32 %v6663, %v2387
        %v6670 = vmul.f32 %v6666, %v2387
        %v6671 = vmul.f32 %v6643, %v6643
        %v6672 = vmul.f32 %v6644, %v6644
        %v6673 = vmul.f32 %v6645, %v6645
        %v6674 = vmul.f32 %v6646, %v6646
        %v6675 = vsub.f32 %v6667, %v6671
        %v6676 = vsub.f32 %v6668, %v6672
        %v6677 = vsub.f32 %v6669, %v6673
        %v6678 = vsub.f32 %v6670, %v6674
        %v6679 = vsub.f32 %v6623, %v6643
        %v6680 = vsub.f32 %v6624, %v6643
        %v6681 = vsub.f32 %v6625, %v6644
        %v6682 = vsub.f32 %v6626, %v6644
        %v6683 = vsub.f32 %v6627, %v6645
        %v6684 = vsub.f32 %v6628, %v6645
        %v6685 = vsub.f32 %v6629, %v6646
        %v6686 = vsub.f32 %v6630, %v6646
        %v6687 = vadd.f32 %v6675, 1e-06
        %v6688 = vadd.f32 %v6676, 1e-06
        %v6689 = vadd.f32 %v6677, 1e-06
        %v6690 = vadd.f32 %v6678, 1e-06
        %v6691 = vrsqrt.pop %v6687
        %v6692 = vrsqrt.pop %v6688
        %v6693 = vrsqrt.pop %v6689
        %v6694 = vrsqrt.pop %v6690
        %v6695 = vmul.f32 %v6679, %v6691
        %v6696 = vmul.f32 %v6680, %v6691
        %v6697 = vmul.f32 %v6681, %v6692
        %v6698 = vmul.f32 %v6682, %v6692
        %v6699 = vmul.f32 %v6683, %v6693
        %v6700 = vmul.f32 %v6684, %v6693
        %v6701 = vmul.f32 %v6685, %v6694
        %v6702 = vmul.f32 %v6686, %v6694
        %v6703 = vlaneseq
        %v6704 = vshrl.u32 %v6703, 7
        %v6705 = vsub.s32 0, %v6704
        %v6706 = vrot.slane %v2361, %v6705
        %v6707 = vlaneseq
        %v6708 = vshrl.u32 %v6707, 7
        %v6709 = vsub.s32 0, %v6708
        %v6710 = vrot.slane %v2362, %v6709
        %v6711 = vmul.f32 %v6695, %v6706
        %v6712 = vmul.f32 %v6696, %v6710
        %v6713 = vmul.f32 %v6697, %v6706
        %v6714 = vmul.f32 %v6698, %v6710
        %v6715 = vmul.f32 %v6699, %v6706
        %v6716 = vmul.f32 %v6700, %v6710
        %v6717 = vmul.f32 %v6701, %v6706
        %v6718 = vmul.f32 %v6702, %v6710
        %v6719 = vlaneseq
        %v6720 = vshrl.u32 %v6719, 7
        %v6721 = vsub.s32 0, %v6720
        %v6722 = vrot.slane %v2271, %v6721
        %v6723 = vlaneseq
        %v6724 = vshrl.u32 %v6723, 7
        %v6725 = vsub.s32 0, %v6724
        %v6726 = vrot.slane %v2273, %v6725
        %v6727 = vadd.f32 %v6711, %v6722
        %v6728 = vadd.f32 %v6712, %v6726
        %v6729 = vadd.f32 %v6713, %v6722
        %v6730 = vadd.f32 %v6714, %v6726
        %v6731 = vadd.f32 %v6715, %v6722
        %v6732 = vadd.f32 %v6716, %v6726
        %v6733 = vadd.f32 %v6717, %v6722
        %v6734 = vadd.f32 %v6718, %v6726
        %v6735 = vpack.c.bf16 %v6729, %v6727
        %v6736 = vpack.c.bf16 %v6730, %v6728
        %v6737 = vpack.c.bf16 %v6733, %v6731
        %v6738 = vpack.c.bf16 %v6734, %v6732
        %v6739 = vld [vmem:[#allocation23] sm:$0xff]
        %v6740 = vld [vmem:[#allocation23 + $0x8] sm:$0xff]
        %v6741 = vld [vmem:[#allocation23 + $0x10] sm:$0xff]
        %v6742 = vld [vmem:[#allocation23 + $0x18] sm:$0xff]
        %v6743 = vld [vmem:[#allocation23 + $0x20] sm:$0xff]
        %v6744 = vld [vmem:[#allocation23 + $0x28] sm:$0xff]
        %v6745 = vld [vmem:[#allocation23 + $0x30] sm:$0xff]
        %v6746 = vld [vmem:[#allocation23 + $0x38] sm:$0xff]
        %v6747 = vld [vmem:[#allocation23 + $0x40] sm:$0xff]
        %v6748 = vld [vmem:[#allocation23 + $0x48] sm:$0xff]
        %v6749 = vld [vmem:[#allocation23 + $0x50] sm:$0xff]
        %v6750 = vld [vmem:[#allocation23 + $0x58] sm:$0xff]
        %v6751 = vld [vmem:[#allocation23 + $0x60] sm:$0xff]
        %v6752 = vld [vmem:[#allocation23 + $0x68] sm:$0xff]
        %v6753 = vld [vmem:[#allocation23 + $0x70] sm:$0xff]
        %v6754 = vld [vmem:[#allocation23 + $0x78] sm:$0xff]
        %v6755 = vld [vmem:[#allocation23 + $0x80] sm:$0xff]
        %v6756 = vld [vmem:[#allocation23 + $0x88] sm:$0xff]
        %v6757 = vld [vmem:[#allocation23 + $0x90] sm:$0xff]
        %v6758 = vld [vmem:[#allocation23 + $0x98] sm:$0xff]
        %v6759 = vld [vmem:[#allocation23 + $0xa0] sm:$0xff]
        %v6760 = vld [vmem:[#allocation23 + $0xa8] sm:$0xff]
        %v6761 = vld [vmem:[#allocation23 + $0xb0] sm:$0xff]
        %v6762 = vld [vmem:[#allocation23 + $0xb8] sm:$0xff]
        %v6763 = vld [vmem:[#allocation23 + $0xc0] sm:$0xff]
        %v6764 = vld [vmem:[#allocation23 + $0xc8] sm:$0xff]
        %v6765 = vld [vmem:[#allocation23 + $0xd0] sm:$0xff]
        %v6766 = vld [vmem:[#allocation23 + $0xd8] sm:$0xff]
        %v6767 = vld [vmem:[#allocation23 + $0xe0] sm:$0xff]
        %v6768 = vld [vmem:[#allocation23 + $0xe8] sm:$0xff]
        %v6769 = vld [vmem:[#allocation23 + $0xf0] sm:$0xff]
        %v6770 = vld [vmem:[#allocation23 + $0xf8] sm:$0xff]
        %v6771 = vld [vmem:[#allocation23 + $0x100] sm:$0xff]
        %v6772 = vld [vmem:[#allocation23 + $0x108] sm:$0xff]
        %v6773 = vld [vmem:[#allocation23 + $0x110] sm:$0xff]
        %v6774 = vld [vmem:[#allocation23 + $0x118] sm:$0xff]
        %v6775 = vld [vmem:[#allocation23 + $0x120] sm:$0xff]
        %v6776 = vld [vmem:[#allocation23 + $0x128] sm:$0xff]
        %v6777 = vld [vmem:[#allocation23 + $0x130] sm:$0xff]
        %v6778 = vld [vmem:[#allocation23 + $0x138] sm:$0xff]
        %v6779 = vld [vmem:[#allocation23 + $0x140] sm:$0xff]
        %v6780 = vld [vmem:[#allocation23 + $0x148] sm:$0xff]
        %v6781 = vld [vmem:[#allocation23 + $0x150] sm:$0xff]
        %v6782 = vld [vmem:[#allocation23 + $0x158] sm:$0xff]
        %v6783 = vld [vmem:[#allocation23 + $0x160] sm:$0xff]
        %v6784 = vld [vmem:[#allocation23 + $0x168] sm:$0xff]
        %v6785 = vld [vmem:[#allocation23 + $0x170] sm:$0xff]
        %v6786 = vld [vmem:[#allocation23 + $0x178] sm:$0xff]
        %v6787 = vld [vmem:[#allocation23 + $0x180] sm:$0xff]
        %v6788 = vld [vmem:[#allocation23 + $0x188] sm:$0xff]
        %v6789 = vld [vmem:[#allocation23 + $0x190] sm:$0xff]
        %v6790 = vld [vmem:[#allocation23 + $0x198] sm:$0xff]
        %v6791 = vld [vmem:[#allocation23 + $0x1a0] sm:$0xff]
        %v6792 = vld [vmem:[#allocation23 + $0x1a8] sm:$0xff]
        %v6793 = vld [vmem:[#allocation23 + $0x1b0] sm:$0xff]
        %v6794 = vld [vmem:[#allocation23 + $0x1b8] sm:$0xff]
        %v6795 = vld [vmem:[#allocation23 + $0x1c0] sm:$0xff]
        %v6796 = vld [vmem:[#allocation23 + $0x1c8] sm:$0xff]
        %v6797 = vld [vmem:[#allocation23 + $0x1d0] sm:$0xff]
        %v6798 = vld [vmem:[#allocation23 + $0x1d8] sm:$0xff]
        %v6799 = vld [vmem:[#allocation23 + $0x1e0] sm:$0xff]
        %v6800 = vld [vmem:[#allocation23 + $0x1e8] sm:$0xff]
        %v6801 = vld [vmem:[#allocation23 + $0x1f0] sm:$0xff]
        %v6802 = vld [vmem:[#allocation23 + $0x1f8] sm:$0xff]
        %v6803 = vld [vmem:[#allocation23 + $0x200] sm:$0xff]
        %v6804 = vld [vmem:[#allocation23 + $0x208] sm:$0xff]
        %v6805 = vld [vmem:[#allocation23 + $0x210] sm:$0xff]
        %v6806 = vld [vmem:[#allocation23 + $0x218] sm:$0xff]
        %v6807 = vld [vmem:[#allocation23 + $0x220] sm:$0xff]
        %v6808 = vld [vmem:[#allocation23 + $0x228] sm:$0xff]
        %v6809 = vld [vmem:[#allocation23 + $0x230] sm:$0xff]
        %v6810 = vld [vmem:[#allocation23 + $0x238] sm:$0xff]
        %v6811 = vld [vmem:[#allocation23 + $0x240] sm:$0xff]
        %v6812 = vld [vmem:[#allocation23 + $0x248] sm:$0xff]
        %v6813 = vld [vmem:[#allocation23 + $0x250] sm:$0xff]
        %v6814 = vld [vmem:[#allocation23 + $0x258] sm:$0xff]
        %v6815 = vld [vmem:[#allocation23 + $0x260] sm:$0xff]
        %v6816 = vld [vmem:[#allocation23 + $0x268] sm:$0xff]
        %v6817 = vld [vmem:[#allocation23 + $0x270] sm:$0xff]
        %v6818 = vld [vmem:[#allocation23 + $0x278] sm:$0xff]
        %v6819 = vld [vmem:[#allocation23 + $0x280] sm:$0xff]
        %v6820 = vld [vmem:[#allocation23 + $0x288] sm:$0xff]
        %v6821 = vld [vmem:[#allocation23 + $0x290] sm:$0xff]
        %v6822 = vld [vmem:[#allocation23 + $0x298] sm:$0xff]
        %v6823 = vld [vmem:[#allocation23 + $0x2a0] sm:$0xff]
        %v6824 = vld [vmem:[#allocation23 + $0x2a8] sm:$0xff]
        %v6825 = vld [vmem:[#allocation23 + $0x2b0] sm:$0xff]
        %v6826 = vld [vmem:[#allocation23 + $0x2b8] sm:$0xff]
        %v6827 = vld [vmem:[#allocation23 + $0x2c0] sm:$0xff]
        %v6828 = vld [vmem:[#allocation23 + $0x2c8] sm:$0xff]
        %v6829 = vld [vmem:[#allocation23 + $0x2d0] sm:$0xff]
        %v6830 = vld [vmem:[#allocation23 + $0x2d8] sm:$0xff]
        %v6831 = vld [vmem:[#allocation23 + $0x2e0] sm:$0xff]
        %v6832 = vld [vmem:[#allocation23 + $0x2e8] sm:$0xff]
        %v6833 = vld [vmem:[#allocation23 + $0x2f0] sm:$0xff]
        %v6834 = vld [vmem:[#allocation23 + $0x2f8] sm:$0xff]
        %v6835 = vld [vmem:[#allocation23 + $0x300] sm:$0xff]
        %v6836 = vld [vmem:[#allocation23 + $0x308] sm:$0xff]
        %v6837 = vld [vmem:[#allocation23 + $0x310] sm:$0xff]
        %v6838 = vld [vmem:[#allocation23 + $0x318] sm:$0xff]
        %v6839 = vld [vmem:[#allocation23 + $0x320] sm:$0xff]
        %v6840 = vld [vmem:[#allocation23 + $0x328] sm:$0xff]
        %v6841 = vld [vmem:[#allocation23 + $0x330] sm:$0xff]
        %v6842 = vld [vmem:[#allocation23 + $0x338] sm:$0xff]
        %v6843 = vld [vmem:[#allocation23 + $0x340] sm:$0xff]
        %v6844 = vld [vmem:[#allocation23 + $0x348] sm:$0xff]
        %v6845 = vld [vmem:[#allocation23 + $0x350] sm:$0xff]
        %v6846 = vld [vmem:[#allocation23 + $0x358] sm:$0xff]
        %v6847 = vld [vmem:[#allocation23 + $0x360] sm:$0xff]
        %v6848 = vld [vmem:[#allocation23 + $0x368] sm:$0xff]
        %v6849 = vld [vmem:[#allocation23 + $0x370] sm:$0xff]
        %v6850 = vld [vmem:[#allocation23 + $0x378] sm:$0xff]
        %v6851 = vld [vmem:[#allocation23 + $0x380] sm:$0xff]
        %v6852 = vld [vmem:[#allocation23 + $0x388] sm:$0xff]
        %v6853 = vld [vmem:[#allocation23 + $0x390] sm:$0xff]
        %v6854 = vld [vmem:[#allocation23 + $0x398] sm:$0xff]
        %v6855 = vld [vmem:[#allocation23 + $0x3a0] sm:$0xff]
        %v6856 = vld [vmem:[#allocation23 + $0x3a8] sm:$0xff]
        %v6857 = vld [vmem:[#allocation23 + $0x3b0] sm:$0xff]
        %v6858 = vld [vmem:[#allocation23 + $0x3b8] sm:$0xff]
        %v6859 = vld [vmem:[#allocation23 + $0x3c0] sm:$0xff]
        %v6860 = vld [vmem:[#allocation23 + $0x3c8] sm:$0xff]
        %v6861 = vld [vmem:[#allocation23 + $0x3d0] sm:$0xff]
        %v6862 = vld [vmem:[#allocation23 + $0x3d8] sm:$0xff]
        %v6863 = vld [vmem:[#allocation23 + $0x3e0] sm:$0xff]
        %v6864 = vld [vmem:[#allocation23 + $0x3e8] sm:$0xff]
        %v6865 = vld [vmem:[#allocation23 + $0x3f0] sm:$0xff]
        %v6866 = vld [vmem:[#allocation23 + $0x3f8] sm:$0xff]
        %v6867 = vld [vmem:[#allocation25] sm:$0xff]
        %v6869 = vlaneseq
        %v6870 = vshrl.u32 %v6869, 7
        %v6871 = vsub.s32 0, %v6870
        %v6872 = vrot.slane %v6867, %v6871
        %v6873 = vlaneseq
        %v6874 = vshrl.u32 %v6873, 7
        %v6875 = vsub.s32 1, %v6874
        %v6876 = vrot.slane %v6867, %v6875
        %v6877 = vlaneseq
        %v6878 = vshrl.u32 %v6877, 7
        %v6879 = vsub.s32 2, %v6878
        %v6880 = vrot.slane %v6867, %v6879
        %v6881 = vlaneseq
        %v6882 = vshrl.u32 %v6881, 7
        %v6883 = vsub.s32 3, %v6882
        %v6884 = vrot.slane %v6867, %v6883
        %v6885 = vlaneseq
        %v6886 = vshrl.u32 %v6885, 7
        %v6887 = vsub.s32 4, %v6886
        %v6888 = vrot.slane %v6867, %v6887
        %v6889 = vlaneseq
        %v6890 = vshrl.u32 %v6889, 7
        %v6891 = vsub.s32 5, %v6890
        %v6892 = vrot.slane %v6867, %v6891
        %v6893 = vlaneseq
        %v6894 = vshrl.u32 %v6893, 7
        %v6895 = vsub.s32 6, %v6894
        %v6896 = vrot.slane %v6867, %v6895
        %v6897 = vlaneseq
        %v6898 = vshrl.u32 %v6897, 7
        %v6899 = vsub.s32 7, %v6898
        %v6900 = vrot.slane %v6867, %v6899
        %v7037 = vunpack.c.l.b16 %v6739
        %v7038 = vunpack.c.h.b16 %v6739
        %v7039 = vunpack.c.l.b16 %v6740
        %v7040 = vunpack.c.h.b16 %v6740
        %v7041 = vunpack.c.l.b16 %v6741
        %v7042 = vunpack.c.h.b16 %v6741
        %v7043 = vunpack.c.l.b16 %v6742
        %v7044 = vunpack.c.h.b16 %v6742
        %v7045 = vunpack.c.l.b16 %v6743
        %v7046 = vunpack.c.h.b16 %v6743
        %v7047 = vunpack.c.l.b16 %v6744
        %v7048 = vunpack.c.h.b16 %v6744
        %v7049 = vunpack.c.l.b16 %v6745
        %v7050 = vunpack.c.h.b16 %v6745
        %v7051 = vunpack.c.l.b16 %v6746
        %v7052 = vunpack.c.h.b16 %v6746
        %v7053 = vunpack.c.l.b16 %v6747
        %v7054 = vunpack.c.h.b16 %v6747
        %v7055 = vunpack.c.l.b16 %v6748
        %v7056 = vunpack.c.h.b16 %v6748
        %v7057 = vunpack.c.l.b16 %v6749
        %v7058 = vunpack.c.h.b16 %v6749
        %v7059 = vunpack.c.l.b16 %v6750
        %v7060 = vunpack.c.h.b16 %v6750
        %v7061 = vunpack.c.l.b16 %v6751
        %v7062 = vunpack.c.h.b16 %v6751
        %v7063 = vunpack.c.l.b16 %v6752
        %v7064 = vunpack.c.h.b16 %v6752
        %v7065 = vunpack.c.l.b16 %v6753
        %v7066 = vunpack.c.h.b16 %v6753
        %v7067 = vunpack.c.l.b16 %v6754
        %v7068 = vunpack.c.h.b16 %v6754
        %v7069 = vunpack.c.l.b16 %v6755
        %v7070 = vunpack.c.h.b16 %v6755
        %v7071 = vunpack.c.l.b16 %v6756
        %v7072 = vunpack.c.h.b16 %v6756
        %v7073 = vunpack.c.l.b16 %v6757
        %v7074 = vunpack.c.h.b16 %v6757
        %v7075 = vunpack.c.l.b16 %v6758
        %v7076 = vunpack.c.h.b16 %v6758
        %v7077 = vunpack.c.l.b16 %v6759
        %v7078 = vunpack.c.h.b16 %v6759
        %v7079 = vunpack.c.l.b16 %v6760
        %v7080 = vunpack.c.h.b16 %v6760
        %v7081 = vunpack.c.l.b16 %v6761
        %v7082 = vunpack.c.h.b16 %v6761
        %v7083 = vunpack.c.l.b16 %v6762
        %v7084 = vunpack.c.h.b16 %v6762
        %v7085 = vunpack.c.l.b16 %v6763
        %v7086 = vunpack.c.h.b16 %v6763
        %v7087 = vunpack.c.l.b16 %v6764
        %v7088 = vunpack.c.h.b16 %v6764
        %v7089 = vunpack.c.l.b16 %v6765
        %v7090 = vunpack.c.h.b16 %v6765
        %v7091 = vunpack.c.l.b16 %v6766
        %v7092 = vunpack.c.h.b16 %v6766
        %v7093 = vunpack.c.l.b16 %v6767
        %v7094 = vunpack.c.h.b16 %v6767
        %v7095 = vunpack.c.l.b16 %v6768
        %v7096 = vunpack.c.h.b16 %v6768
        %v7097 = vunpack.c.l.b16 %v6769
        %v7098 = vunpack.c.h.b16 %v6769
        %v7099 = vunpack.c.l.b16 %v6770
        %v7100 = vunpack.c.h.b16 %v6770
        %v7101 = vunpack.c.l.b16 %v6771
        %v7102 = vunpack.c.h.b16 %v6771
        %v7103 = vunpack.c.l.b16 %v6772
        %v7104 = vunpack.c.h.b16 %v6772
        %v7105 = vunpack.c.l.b16 %v6773
        %v7106 = vunpack.c.h.b16 %v6773
        %v7107 = vunpack.c.l.b16 %v6774
        %v7108 = vunpack.c.h.b16 %v6774
        %v7109 = vunpack.c.l.b16 %v6775
        %v7110 = vunpack.c.h.b16 %v6775
        %v7111 = vunpack.c.l.b16 %v6776
        %v7112 = vunpack.c.h.b16 %v6776
        %v7113 = vunpack.c.l.b16 %v6777
        %v7114 = vunpack.c.h.b16 %v6777
        %v7115 = vunpack.c.l.b16 %v6778
        %v7116 = vunpack.c.h.b16 %v6778
        %v7117 = vunpack.c.l.b16 %v6779
        %v7118 = vunpack.c.h.b16 %v6779
        %v7119 = vunpack.c.l.b16 %v6780
        %v7120 = vunpack.c.h.b16 %v6780
        %v7121 = vunpack.c.l.b16 %v6781
        %v7122 = vunpack.c.h.b16 %v6781
        %v7123 = vunpack.c.l.b16 %v6782
        %v7124 = vunpack.c.h.b16 %v6782
        %v7125 = vunpack.c.l.b16 %v6783
        %v7126 = vunpack.c.h.b16 %v6783
        %v7127 = vunpack.c.l.b16 %v6784
        %v7128 = vunpack.c.h.b16 %v6784
        %v7129 = vunpack.c.l.b16 %v6785
        %v7130 = vunpack.c.h.b16 %v6785
        %v7131 = vunpack.c.l.b16 %v6786
        %v7132 = vunpack.c.h.b16 %v6786
        %v7133 = vunpack.c.l.b16 %v6787
        %v7134 = vunpack.c.h.b16 %v6787
        %v7135 = vunpack.c.l.b16 %v6788
        %v7136 = vunpack.c.h.b16 %v6788
        %v7137 = vunpack.c.l.b16 %v6789
        %v7138 = vunpack.c.h.b16 %v6789
        %v7139 = vunpack.c.l.b16 %v6790
        %v7140 = vunpack.c.h.b16 %v6790
        %v7141 = vunpack.c.l.b16 %v6791
        %v7142 = vunpack.c.h.b16 %v6791
        %v7143 = vunpack.c.l.b16 %v6792
        %v7144 = vunpack.c.h.b16 %v6792
        %v7145 = vunpack.c.l.b16 %v6793
        %v7146 = vunpack.c.h.b16 %v6793
        %v7147 = vunpack.c.l.b16 %v6794
        %v7148 = vunpack.c.h.b16 %v6794
        %v7149 = vunpack.c.l.b16 %v6795
        %v7150 = vunpack.c.h.b16 %v6795
        %v7151 = vunpack.c.l.b16 %v6796
        %v7152 = vunpack.c.h.b16 %v6796
        %v7153 = vunpack.c.l.b16 %v6797
        %v7154 = vunpack.c.h.b16 %v6797
        %v7155 = vunpack.c.l.b16 %v6798
        %v7156 = vunpack.c.h.b16 %v6798
        %v7157 = vunpack.c.l.b16 %v6799
        %v7158 = vunpack.c.h.b16 %v6799
        %v7159 = vunpack.c.l.b16 %v6800
        %v7160 = vunpack.c.h.b16 %v6800
        %v7161 = vunpack.c.l.b16 %v6801
        %v7162 = vunpack.c.h.b16 %v6801
        %v7163 = vunpack.c.l.b16 %v6802
        %v7164 = vunpack.c.h.b16 %v6802
        %v7165 = vunpack.c.l.b16 %v6803
        %v7166 = vunpack.c.h.b16 %v6803
        %v7167 = vunpack.c.l.b16 %v6804
        %v7168 = vunpack.c.h.b16 %v6804
        %v7169 = vunpack.c.l.b16 %v6805
        %v7170 = vunpack.c.h.b16 %v6805
        %v7171 = vunpack.c.l.b16 %v6806
        %v7172 = vunpack.c.h.b16 %v6806
        %v7173 = vunpack.c.l.b16 %v6807
        %v7174 = vunpack.c.h.b16 %v6807
        %v7175 = vunpack.c.l.b16 %v6808
        %v7176 = vunpack.c.h.b16 %v6808
        %v7177 = vunpack.c.l.b16 %v6809
        %v7178 = vunpack.c.h.b16 %v6809
        %v7179 = vunpack.c.l.b16 %v6810
        %v7180 = vunpack.c.h.b16 %v6810
        %v7181 = vunpack.c.l.b16 %v6811
        %v7182 = vunpack.c.h.b16 %v6811
        %v7183 = vunpack.c.l.b16 %v6812
        %v7184 = vunpack.c.h.b16 %v6812
        %v7185 = vunpack.c.l.b16 %v6813
        %v7186 = vunpack.c.h.b16 %v6813
        %v7187 = vunpack.c.l.b16 %v6814
        %v7188 = vunpack.c.h.b16 %v6814
        %v7189 = vunpack.c.l.b16 %v6815
        %v7190 = vunpack.c.h.b16 %v6815
        %v7191 = vunpack.c.l.b16 %v6816
        %v7192 = vunpack.c.h.b16 %v6816
        %v7193 = vunpack.c.l.b16 %v6817
        %v7194 = vunpack.c.h.b16 %v6817
        %v7195 = vunpack.c.l.b16 %v6818
        %v7196 = vunpack.c.h.b16 %v6818
        %v7197 = vunpack.c.l.b16 %v6819
        %v7198 = vunpack.c.h.b16 %v6819
        %v7199 = vunpack.c.l.b16 %v6820
        %v7200 = vunpack.c.h.b16 %v6820
        %v7201 = vunpack.c.l.b16 %v6821
        %v7202 = vunpack.c.h.b16 %v6821
        %v7203 = vunpack.c.l.b16 %v6822
        %v7204 = vunpack.c.h.b16 %v6822
        %v7205 = vunpack.c.l.b16 %v6823
        %v7206 = vunpack.c.h.b16 %v6823
        %v7207 = vunpack.c.l.b16 %v6824
        %v7208 = vunpack.c.h.b16 %v6824
        %v7209 = vunpack.c.l.b16 %v6825
        %v7210 = vunpack.c.h.b16 %v6825
        %v7211 = vunpack.c.l.b16 %v6826
        %v7212 = vunpack.c.h.b16 %v6826
        %v7213 = vunpack.c.l.b16 %v6827
        %v7214 = vunpack.c.h.b16 %v6827
        %v7215 = vunpack.c.l.b16 %v6828
        %v7216 = vunpack.c.h.b16 %v6828
        %v7217 = vunpack.c.l.b16 %v6829
        %v7218 = vunpack.c.h.b16 %v6829
        %v7219 = vunpack.c.l.b16 %v6830
        %v7220 = vunpack.c.h.b16 %v6830
        %v7221 = vunpack.c.l.b16 %v6831
        %v7222 = vunpack.c.h.b16 %v6831
        %v7223 = vunpack.c.l.b16 %v6832
        %v7224 = vunpack.c.h.b16 %v6832
        %v7225 = vunpack.c.l.b16 %v6833
        %v7226 = vunpack.c.h.b16 %v6833
        %v7227 = vunpack.c.l.b16 %v6834
        %v7228 = vunpack.c.h.b16 %v6834
        %v7229 = vunpack.c.l.b16 %v6835
        %v7230 = vunpack.c.h.b16 %v6835
        %v7231 = vunpack.c.l.b16 %v6836
        %v7232 = vunpack.c.h.b16 %v6836
        %v7233 = vunpack.c.l.b16 %v6837
        %v7234 = vunpack.c.h.b16 %v6837
        %v7235 = vunpack.c.l.b16 %v6838
        %v7236 = vunpack.c.h.b16 %v6838
        %v7237 = vunpack.c.l.b16 %v6839
        %v7238 = vunpack.c.h.b16 %v6839
        %v7239 = vunpack.c.l.b16 %v6840
        %v7240 = vunpack.c.h.b16 %v6840
        %v7241 = vunpack.c.l.b16 %v6841
        %v7242 = vunpack.c.h.b16 %v6841
        %v7243 = vunpack.c.l.b16 %v6842
        %v7244 = vunpack.c.h.b16 %v6842
        %v7245 = vunpack.c.l.b16 %v6843
        %v7246 = vunpack.c.h.b16 %v6843
        %v7247 = vunpack.c.l.b16 %v6844
        %v7248 = vunpack.c.h.b16 %v6844
        %v7249 = vunpack.c.l.b16 %v6845
        %v7250 = vunpack.c.h.b16 %v6845
        %v7251 = vunpack.c.l.b16 %v6846
        %v7252 = vunpack.c.h.b16 %v6846
        %v7253 = vunpack.c.l.b16 %v6847
        %v7254 = vunpack.c.h.b16 %v6847
        %v7255 = vunpack.c.l.b16 %v6848
        %v7256 = vunpack.c.h.b16 %v6848
        %v7257 = vunpack.c.l.b16 %v6849
        %v7258 = vunpack.c.h.b16 %v6849
        %v7259 = vunpack.c.l.b16 %v6850
        %v7260 = vunpack.c.h.b16 %v6850
        %v7261 = vunpack.c.l.b16 %v6851
        %v7262 = vunpack.c.h.b16 %v6851
        %v7263 = vunpack.c.l.b16 %v6852
        %v7264 = vunpack.c.h.b16 %v6852
        %v7265 = vunpack.c.l.b16 %v6853
        %v7266 = vunpack.c.h.b16 %v6853
        %v7267 = vunpack.c.l.b16 %v6854
        %v7268 = vunpack.c.h.b16 %v6854
        %v7269 = vunpack.c.l.b16 %v6855
        %v7270 = vunpack.c.h.b16 %v6855
        %v7271 = vunpack.c.l.b16 %v6856
        %v7272 = vunpack.c.h.b16 %v6856
        %v7273 = vunpack.c.l.b16 %v6857
        %v7274 = vunpack.c.h.b16 %v6857
        %v7275 = vunpack.c.l.b16 %v6858
        %v7276 = vunpack.c.h.b16 %v6858
        %v7277 = vunpack.c.l.b16 %v6859
        %v7278 = vunpack.c.h.b16 %v6859
        %v7279 = vunpack.c.l.b16 %v6860
        %v7280 = vunpack.c.h.b16 %v6860
        %v7281 = vunpack.c.l.b16 %v6861
        %v7282 = vunpack.c.h.b16 %v6861
        %v7283 = vunpack.c.l.b16 %v6862
        %v7284 = vunpack.c.h.b16 %v6862
        %v7285 = vunpack.c.l.b16 %v6863
        %v7286 = vunpack.c.h.b16 %v6863
        %v7287 = vunpack.c.l.b16 %v6864
        %v7288 = vunpack.c.h.b16 %v6864
        %v7289 = vunpack.c.l.b16 %v6865
        %v7290 = vunpack.c.h.b16 %v6865
        %v7291 = vunpack.c.l.b16 %v6866
        %v7292 = vunpack.c.h.b16 %v6866
        %v7293 = vpack.c.b16 %v7045, %v7037
        %v7294 = vpack.c.b16 %v7046, %v7038
        %v7295 = vpack.c.b16 %v7047, %v7039
        %v7296 = vpack.c.b16 %v7048, %v7040
        %v7297 = vpack.c.b16 %v7049, %v7041
        %v7298 = vpack.c.b16 %v7050, %v7042
        %v7299 = vpack.c.b16 %v7051, %v7043
        %v7300 = vpack.c.b16 %v7052, %v7044
        %v7301 = vpack.c.b16 %v7061, %v7053
        %v7302 = vpack.c.b16 %v7062, %v7054
        %v7303 = vpack.c.b16 %v7063, %v7055
        %v7304 = vpack.c.b16 %v7064, %v7056
        %v7305 = vpack.c.b16 %v7065, %v7057
        %v7306 = vpack.c.b16 %v7066, %v7058
        %v7307 = vpack.c.b16 %v7067, %v7059
        %v7308 = vpack.c.b16 %v7068, %v7060
        %v7309 = vpack.c.b16 %v7077, %v7069
        %v7310 = vpack.c.b16 %v7078, %v7070
        %v7311 = vpack.c.b16 %v7079, %v7071
        %v7312 = vpack.c.b16 %v7080, %v7072
        %v7313 = vpack.c.b16 %v7081, %v7073
        %v7314 = vpack.c.b16 %v7082, %v7074
        %v7315 = vpack.c.b16 %v7083, %v7075
        %v7316 = vpack.c.b16 %v7084, %v7076
        %v7317 = vpack.c.b16 %v7093, %v7085
        %v7318 = vpack.c.b16 %v7094, %v7086
        %v7319 = vpack.c.b16 %v7095, %v7087
        %v7320 = vpack.c.b16 %v7096, %v7088
        %v7321 = vpack.c.b16 %v7097, %v7089
        %v7322 = vpack.c.b16 %v7098, %v7090
        %v7323 = vpack.c.b16 %v7099, %v7091
        %v7324 = vpack.c.b16 %v7100, %v7092
        %v7325 = vpack.c.b16 %v7109, %v7101
        %v7326 = vpack.c.b16 %v7110, %v7102
        %v7327 = vpack.c.b16 %v7111, %v7103
        %v7328 = vpack.c.b16 %v7112, %v7104
        %v7329 = vpack.c.b16 %v7113, %v7105
        %v7330 = vpack.c.b16 %v7114, %v7106
        %v7331 = vpack.c.b16 %v7115, %v7107
        %v7332 = vpack.c.b16 %v7116, %v7108
        %v7333 = vpack.c.b16 %v7125, %v7117
        %v7334 = vpack.c.b16 %v7126, %v7118
        %v7335 = vpack.c.b16 %v7127, %v7119
        %v7336 = vpack.c.b16 %v7128, %v7120
        %v7337 = vpack.c.b16 %v7129, %v7121
        %v7338 = vpack.c.b16 %v7130, %v7122
        %v7339 = vpack.c.b16 %v7131, %v7123
        %v7340 = vpack.c.b16 %v7132, %v7124
        %v7341 = vpack.c.b16 %v7141, %v7133
        %v7342 = vpack.c.b16 %v7142, %v7134
        %v7343 = vpack.c.b16 %v7143, %v7135
        %v7344 = vpack.c.b16 %v7144, %v7136
        %v7345 = vpack.c.b16 %v7145, %v7137
        %v7346 = vpack.c.b16 %v7146, %v7138
        %v7347 = vpack.c.b16 %v7147, %v7139
        %v7348 = vpack.c.b16 %v7148, %v7140
        %v7349 = vpack.c.b16 %v7157, %v7149
        %v7350 = vpack.c.b16 %v7158, %v7150
        %v7351 = vpack.c.b16 %v7159, %v7151
        %v7352 = vpack.c.b16 %v7160, %v7152
        %v7353 = vpack.c.b16 %v7161, %v7153
        %v7354 = vpack.c.b16 %v7162, %v7154
        %v7355 = vpack.c.b16 %v7163, %v7155
        %v7356 = vpack.c.b16 %v7164, %v7156
        %v7357 = vpack.c.b16 %v7173, %v7165
        %v7358 = vpack.c.b16 %v7174, %v7166
        %v7359 = vpack.c.b16 %v7175, %v7167
        %v7360 = vpack.c.b16 %v7176, %v7168
        %v7361 = vpack.c.b16 %v7177, %v7169
        %v7362 = vpack.c.b16 %v7178, %v7170
        %v7363 = vpack.c.b16 %v7179, %v7171
        %v7364 = vpack.c.b16 %v7180, %v7172
        %v7365 = vpack.c.b16 %v7189, %v7181
        %v7366 = vpack.c.b16 %v7190, %v7182
        %v7367 = vpack.c.b16 %v7191, %v7183
        %v7368 = vpack.c.b16 %v7192, %v7184
        %v7369 = vpack.c.b16 %v7193, %v7185
        %v7370 = vpack.c.b16 %v7194, %v7186
        %v7371 = vpack.c.b16 %v7195, %v7187
        %v7372 = vpack.c.b16 %v7196, %v7188
        %v7373 = vpack.c.b16 %v7205, %v7197
        %v7374 = vpack.c.b16 %v7206, %v7198
        %v7375 = vpack.c.b16 %v7207, %v7199
        %v7376 = vpack.c.b16 %v7208, %v7200
        %v7377 = vpack.c.b16 %v7209, %v7201
        %v7378 = vpack.c.b16 %v7210, %v7202
        %v7379 = vpack.c.b16 %v7211, %v7203
        %v7380 = vpack.c.b16 %v7212, %v7204
        %v7381 = vpack.c.b16 %v7221, %v7213
        %v7382 = vpack.c.b16 %v7222, %v7214
        %v7383 = vpack.c.b16 %v7223, %v7215
        %v7384 = vpack.c.b16 %v7224, %v7216
        %v7385 = vpack.c.b16 %v7225, %v7217
        %v7386 = vpack.c.b16 %v7226, %v7218
        %v7387 = vpack.c.b16 %v7227, %v7219
        %v7388 = vpack.c.b16 %v7228, %v7220
        %v7389 = vpack.c.b16 %v7237, %v7229
        %v7390 = vpack.c.b16 %v7238, %v7230
        %v7391 = vpack.c.b16 %v7239, %v7231
        %v7392 = vpack.c.b16 %v7240, %v7232
        %v7393 = vpack.c.b16 %v7241, %v7233
        %v7394 = vpack.c.b16 %v7242, %v7234
        %v7395 = vpack.c.b16 %v7243, %v7235
        %v7396 = vpack.c.b16 %v7244, %v7236
        %v7397 = vpack.c.b16 %v7253, %v7245
        %v7398 = vpack.c.b16 %v7254, %v7246
        %v7399 = vpack.c.b16 %v7255, %v7247
        %v7400 = vpack.c.b16 %v7256, %v7248
        %v7401 = vpack.c.b16 %v7257, %v7249
        %v7402 = vpack.c.b16 %v7258, %v7250
        %v7403 = vpack.c.b16 %v7259, %v7251
        %v7404 = vpack.c.b16 %v7260, %v7252
        %v7405 = vpack.c.b16 %v7269, %v7261
        %v7406 = vpack.c.b16 %v7270, %v7262
        %v7407 = vpack.c.b16 %v7271, %v7263
        %v7408 = vpack.c.b16 %v7272, %v7264
        %v7409 = vpack.c.b16 %v7273, %v7265
        %v7410 = vpack.c.b16 %v7274, %v7266
        %v7411 = vpack.c.b16 %v7275, %v7267
        %v7412 = vpack.c.b16 %v7276, %v7268
        %v7413 = vpack.c.b16 %v7285, %v7277
        %v7414 = vpack.c.b16 %v7286, %v7278
        %v7415 = vpack.c.b16 %v7287, %v7279
        %v7416 = vpack.c.b16 %v7288, %v7280
        %v7417 = vpack.c.b16 %v7289, %v7281
        %v7418 = vpack.c.b16 %v7290, %v7282
        %v7419 = vpack.c.b16 %v7291, %v7283
        %v7420 = vpack.c.b16 %v7292, %v7284
        %7549 = vmatprep.subr.bf16.mxu0 %v7294
        %7550 = vmatpush1.bf16.msra.mxu0 %v7293
        %7551 = vmatprep.subr.bf16.mxu0 %v7302
        %7552 = vmatpush1.bf16.msra.mxu0 %v7301
        %7553 = vmatprep.subr.bf16.mxu0 %v7310
        %7554 = vmatpush1.bf16.msra.mxu0 %v7309
        %7555 = vmatprep.subr.bf16.mxu0 %v7318
        %7556 = vmatpush1.bf16.msra.mxu0 %v7317
        %7557 = vmatprep.subr.bf16.mxu0 %v7326
        %7558 = vmatpush1.bf16.msra.mxu0 %v7325
        %7559 = vmatprep.subr.bf16.mxu0 %v7334
        %7560 = vmatpush1.bf16.msra.mxu0 %v7333
        %7561 = vmatprep.subr.bf16.mxu0 %v7342
        %7562 = vmatpush1.bf16.msra.mxu0 %v7341
        %7563 = vmatprep.subr.bf16.mxu0 %v7350
        %7564 = vmatpush1.bf16.msra.mxu0 %v7349
        %7565 = vmatprep.subr.bf16.mxu0 %v7358
        %7566 = vmatpush1.bf16.msra.mxu0 %v7357
        %7567 = vmatprep.subr.bf16.mxu0 %v7366
        %7568 = vmatpush1.bf16.msra.mxu0 %v7365
        %7569 = vmatprep.subr.bf16.mxu0 %v7374
        %7570 = vmatpush1.bf16.msra.mxu0 %v7373
        %7571 = vmatprep.subr.bf16.mxu0 %v7382
        %7572 = vmatpush1.bf16.msra.mxu0 %v7381
        %7573 = vmatprep.subr.bf16.mxu0 %v7390
        %7574 = vmatpush1.bf16.msra.mxu0 %v7389
        %7575 = vmatprep.subr.bf16.mxu0 %v7398
        %7576 = vmatpush1.bf16.msra.mxu0 %v7397
        %7577 = vmatprep.subr.bf16.mxu0 %v7406
        %7578 = vmatpush1.bf16.msra.mxu0 %v7405
        %7579 = vmatprep.subr.bf16.mxu0 %v7414
        %7580 = vmatpush1.bf16.msra.mxu0 %v7413
        %7581 = vmatprep.mubr.bf16.mxu0 %v6736
        %7582 = vmatmul.mubr.bf16.gmra.mrb[0].mxu0 %v6735
        %v7583 = vpop.f32.mrb[0].mxu0
        %v7584 = vadd.f32 %v6872, %v7583
        %v7585 = vpop.f32.mrb[0].mxu0
        %v7586 = vadd.f32 %v6876, %v7585
        %v7587 = vpop.f32.mrb[0].mxu0
        %v7588 = vadd.f32 %v6872, %v7587
        %v7589 = vpop.f32.mrb[0].mxu0
        %v7590 = vadd.f32 %v6876, %v7589
        %7591 = vmatprep.mubr.bf16.mxu0 %v6738
        %7592 = vmatmul.mubr.bf16.gmra.mrb[0].mxu0 %v6737
        %v7593 = vpop.f32.mrb[0].mxu0
        %v7594 = vadd.f32 %v6872, %v7593
        %v7595 = vpop.f32.mrb[0].mxu0
        %v7596 = vadd.f32 %v6876, %v7595
        %v7597 = vpop.f32.mrb[0].mxu0
        %v7598 = vadd.f32 %v6872, %v7597
        %v7599 = vpop.f32.mrb[0].mxu0
        %v7600 = vadd.f32 %v6876, %v7599
        %7601 = vdwg.mxu0
        %7602 = vmatprep.subr.bf16.mxu0 %v7296
        %7603 = vmatpush1.bf16.msra.mxu0 %v7295
        %7604 = vmatprep.subr.bf16.mxu0 %v7304
        %7605 = vmatpush1.bf16.msra.mxu0 %v7303
        %7606 = vmatprep.subr.bf16.mxu0 %v7312
        %7607 = vmatpush1.bf16.msra.mxu0 %v7311
        %7608 = vmatprep.subr.bf16.mxu0 %v7320
        %7609 = vmatpush1.bf16.msra.mxu0 %v7319
        %7610 = vmatprep.subr.bf16.mxu0 %v7328
        %7611 = vmatpush1.bf16.msra.mxu0 %v7327
        %7612 = vmatprep.subr.bf16.mxu0 %v7336
        %7613 = vmatpush1.bf16.msra.mxu0 %v7335
        %7614 = vmatprep.subr.bf16.mxu0 %v7344
        %7615 = vmatpush1.bf16.msra.mxu0 %v7343
        %7616 = vmatprep.subr.bf16.mxu0 %v7352
        %7617 = vmatpush1.bf16.msra.mxu0 %v7351
        %7618 = vmatprep.subr.bf16.mxu0 %v7360
        %7619 = vmatpush1.bf16.msra.mxu0 %v7359
        %7620 = vmatprep.subr.bf16.mxu0 %v7368
        %7621 = vmatpush1.bf16.msra.mxu0 %v7367
        %7622 = vmatprep.subr.bf16.mxu0 %v7376
        %7623 = vmatpush1.bf16.msra.mxu0 %v7375
        %7624 = vmatprep.subr.bf16.mxu0 %v7384
        %7625 = vmatpush1.bf16.msra.mxu0 %v7383
        %7626 = vmatprep.subr.bf16.mxu0 %v7392
        %7627 = vmatpush1.bf16.msra.mxu0 %v7391
        %7628 = vmatprep.subr.bf16.mxu0 %v7400
        %7629 = vmatpush1.bf16.msra.mxu0 %v7399
        %7630 = vmatprep.subr.bf16.mxu0 %v7408
        %7631 = vmatpush1.bf16.msra.mxu0 %v7407
        %7632 = vmatprep.subr.bf16.mxu0 %v7416
        %7633 = vmatpush1.bf16.msra.mxu0 %v7415
        %7634 = vmatprep.mubr.bf16.mxu0 %v6736
        %7635 = vmatmul.mubr.bf16.gmra.mrb[0].mxu0 %v6735
        %v7636 = vpop.f32.mrb[0].mxu0
        %v7637 = vadd.f32 %v6880, %v7636
        %v7638 = vpop.f32.mrb[0].mxu0
        %v7639 = vadd.f32 %v6884, %v7638
        %v7640 = vpop.f32.mrb[0].mxu0
        %v7641 = vadd.f32 %v6880, %v7640
        %v7642 = vpop.f32.mrb[0].mxu0
        %v7643 = vadd.f32 %v6884, %v7642
        %7644 = vmatprep.mubr.bf16.mxu0 %v6738
        %7645 = vmatmul.mubr.bf16.gmra.mrb[0].mxu0 %v6737
        %v7646 = vpop.f32.mrb[0].mxu0
        %v7647 = vadd.f32 %v6880, %v7646
        %v7648 = vpop.f32.mrb[0].mxu0
        %v7649 = vadd.f32 %v6884, %v7648
        %v7650 = vpop.f32.mrb[0].mxu0
        %v7651 = vadd.f32 %v6880, %v7650
        %v7652 = vpop.f32.mrb[0].mxu0
        %v7653 = vadd.f32 %v6884, %v7652
        %7654 = vdwg.mxu0
        %7655 = vmatprep.subr.bf16.mxu0 %v7298
        %7656 = vmatpush1.bf16.msra.mxu0 %v7297
        %7657 = vmatprep.subr.bf16.mxu0 %v7306
        %7658 = vmatpush1.bf16.msra.mxu0 %v7305
        %7659 = vmatprep.subr.bf16.mxu0 %v7314
        %7660 = vmatpush1.bf16.msra.mxu0 %v7313
        %7661 = vmatprep.subr.bf16.mxu0 %v7322
        %7662 = vmatpush1.bf16.msra.mxu0 %v7321
        %7663 = vmatprep.subr.bf16.mxu0 %v7330
        %7664 = vmatpush1.bf16.msra.mxu0 %v7329
        %7665 = vmatprep.subr.bf16.mxu0 %v7338
        %7666 = vmatpush1.bf16.msra.mxu0 %v7337
        %7667 = vmatprep.subr.bf16.mxu0 %v7346
        %7668 = vmatpush1.bf16.msra.mxu0 %v7345
        %7669 = vmatprep.subr.bf16.mxu0 %v7354
        %7670 = vmatpush1.bf16.msra.mxu0 %v7353
        %7671 = vmatprep.subr.bf16.mxu0 %v7362
        %7672 = vmatpush1.bf16.msra.mxu0 %v7361
        %7673 = vmatprep.subr.bf16.mxu0 %v7370
        %7674 = vmatpush1.bf16.msra.mxu0 %v7369
        %7675 = vmatprep.subr.bf16.mxu0 %v7378
        %7676 = vmatpush1.bf16.msra.mxu0 %v7377
        %7677 = vmatprep.subr.bf16.mxu0 %v7386
        %7678 = vmatpush1.bf16.msra.mxu0 %v7385
        %7679 = vmatprep.subr.bf16.mxu0 %v7394
        %7680 = vmatpush1.bf16.msra.mxu0 %v7393
        %7681 = vmatprep.subr.bf16.mxu0 %v7402
        %7682 = vmatpush1.bf16.msra.mxu0 %v7401
        %7683 = vmatprep.subr.bf16.mxu0 %v7410
        %7684 = vmatpush1.bf16.msra.mxu0 %v7409
        %7685 = vmatprep.subr.bf16.mxu0 %v7418
        %7686 = vmatpush1.bf16.msra.mxu0 %v7417
        %7687 = vmatprep.mubr.bf16.mxu0 %v6736
        %7688 = vmatmul.mubr.bf16.gmra.mrb[0].mxu0 %v6735
        %v7689 = vpop.f32.mrb[0].mxu0
        %v7690 = vadd.f32 %v6888, %v7689
        %v7691 = vpop.f32.mrb[0].mxu0
        %v7692 = vadd.f32 %v6892, %v7691
        %v7693 = vpop.f32.mrb[0].mxu0
        %v7694 = vadd.f32 %v6888, %v7693
        %v7695 = vpop.f32.mrb[0].mxu0
        %v7696 = vadd.f32 %v6892, %v7695
        %7697 = vmatprep.mubr.bf16.mxu0 %v6738
        %7698 = vmatmul.mubr.bf16.gmra.mrb[0].mxu0 %v6737
        %v7699 = vpop.f32.mrb[0].mxu0
        %v7700 = vadd.f32 %v6888, %v7699
        %v7701 = vpop.f32.mrb[0].mxu0
        %v7702 = vadd.f32 %v6892, %v7701
        %v7703 = vpop.f32.mrb[0].mxu0
        %v7704 = vadd.f32 %v6888, %v7703
        %v7705 = vpop.f32.mrb[0].mxu0
        %v7706 = vadd.f32 %v6892, %v7705
        %7707 = vdwg.mxu0
        %7708 = vmatprep.subr.bf16.mxu0 %v7300
        %7709 = vmatpush1.bf16.msra.mxu0 %v7299
        %7710 = vmatprep.subr.bf16.mxu0 %v7308
        %7711 = vmatpush1.bf16.msra.mxu0 %v7307
        %7712 = vmatprep.subr.bf16.mxu0 %v7316
        %7713 = vmatpush1.bf16.msra.mxu0 %v7315
        %7714 = vmatprep.subr.bf16.mxu0 %v7324
        %7715 = vmatpush1.bf16.msra.mxu0 %v7323
        %7716 = vmatprep.subr.bf16.mxu0 %v7332
        %7717 = vmatpush1.bf16.msra.mxu0 %v7331
        %7718 = vmatprep.subr.bf16.mxu0 %v7340
        %7719 = vmatpush1.bf16.msra.mxu0 %v7339
        %7720 = vmatprep.subr.bf16.mxu0 %v7348
        %7721 = vmatpush1.bf16.msra.mxu0 %v7347
        %7722 = vmatprep.subr.bf16.mxu0 %v7356
        %7723 = vmatpush1.bf16.msra.mxu0 %v7355
        %7724 = vmatprep.subr.bf16.mxu0 %v7364
        %7725 = vmatpush1.bf16.msra.mxu0 %v7363
        %7726 = vmatprep.subr.bf16.mxu0 %v7372
        %7727 = vmatpush1.bf16.msra.mxu0 %v7371
        %7728 = vmatprep.subr.bf16.mxu0 %v7380
        %7729 = vmatpush1.bf16.msra.mxu0 %v7379
        %7730 = vmatprep.subr.bf16.mxu0 %v7388
        %7731 = vmatpush1.bf16.msra.mxu0 %v7387
        %7732 = vmatprep.subr.bf16.mxu0 %v7396
        %7733 = vmatpush1.bf16.msra.mxu0 %v7395
        %7734 = vmatprep.subr.bf16.mxu0 %v7404
        %7735 = vmatpush1.bf16.msra.mxu0 %v7403
        %7736 = vmatprep.subr.bf16.mxu0 %v7412
        %7737 = vmatpush1.bf16.msra.mxu0 %v7411
        %7738 = vmatprep.subr.bf16.mxu0 %v7420
        %7739 = vmatpush1.bf16.msra.mxu0 %v7419
        %7740 = vmatprep.mubr.bf16.mxu0 %v6736
        %7741 = vmatmul.mubr.bf16.gmra.mrb[0].mxu0 %v6735
        %v7742 = vpop.f32.mrb[0].mxu0
        %v7743 = vadd.f32 %v6896, %v7742
        %v7744 = vpop.f32.mrb[0].mxu0
        %v7745 = vadd.f32 %v6900, %v7744
        %v7746 = vpop.f32.mrb[0].mxu0
        %v7747 = vadd.f32 %v6896, %v7746
        %v7748 = vpop.f32.mrb[0].mxu0
        %v7749 = vadd.f32 %v6900, %v7748
        %7750 = vmatprep.mubr.bf16.mxu0 %v6738
        %7751 = vmatmul.mubr.bf16.gmra.mrb[0].mxu0 %v6737
        %v7752 = vpop.f32.mrb[0].mxu0
        %v7753 = vadd.f32 %v6896, %v7752
        %v7754 = vpop.f32.mrb[0].mxu0
        %v7755 = vadd.f32 %v6900, %v7754
        %v7756 = vpop.f32.mrb[0].mxu0
        %v7757 = vadd.f32 %v6896, %v7756
        %v7758 = vpop.f32.mrb[0].mxu0
        %v7759 = vadd.f32 %v6900, %v7758
        %7760 = vdwg.mxu0
        %v7761 = vmul.f32 %v7584, 0.5
        %v7762 = vmul.f32 %v7586, 0.5
        %v7763 = vmul.f32 %v7637, 0.5
        %v7764 = vmul.f32 %v7639, 0.5
        %v7765 = vmul.f32 %v7690, 0.5
        %v7766 = vmul.f32 %v7692, 0.5
        %v7767 = vmul.f32 %v7743, 0.5
        %v7768 = vmul.f32 %v7745, 0.5
        %v7769 = vmul.f32 %v7588, 0.5
        %v7770 = vmul.f32 %v7590, 0.5
        %v7771 = vmul.f32 %v7641, 0.5
        %v7772 = vmul.f32 %v7643, 0.5
        %v7773 = vmul.f32 %v7694, 0.5
        %v7774 = vmul.f32 %v7696, 0.5
        %v7775 = vmul.f32 %v7747, 0.5
        %v7776 = vmul.f32 %v7749, 0.5
        %v7777 = vmul.f32 %v7594, 0.5
        %v7778 = vmul.f32 %v7596, 0.5
        %v7779 = vmul.f32 %v7647, 0.5
        %v7780 = vmul.f32 %v7649, 0.5
        %v7781 = vmul.f32 %v7700, 0.5
        %v7782 = vmul.f32 %v7702, 0.5
        %v7783 = vmul.f32 %v7753, 0.5
        %v7784 = vmul.f32 %v7755, 0.5
        %v7785 = vmul.f32 %v7598, 0.5
        %v7786 = vmul.f32 %v7600, 0.5
        %v7787 = vmul.f32 %v7651, 0.5
        %v7788 = vmul.f32 %v7653, 0.5
        %v7789 = vmul.f32 %v7704, 0.5
        %v7790 = vmul.f32 %v7706, 0.5
        %v7791 = vmul.f32 %v7757, 0.5
        %v7792 = vmul.f32 %v7759, 0.5
        %v7793 = vmul.f32 %v7584, 0.044715
        %v7794 = vmul.f32 %v7586, 0.044715
        %v7795 = vmul.f32 %v7637, 0.044715
        %v7796 = vmul.f32 %v7639, 0.044715
        %v7797 = vmul.f32 %v7690, 0.044715
        %v7798 = vmul.f32 %v7692, 0.044715
        %v7799 = vmul.f32 %v7743, 0.044715
        %v7800 = vmul.f32 %v7745, 0.044715
        %v7801 = vmul.f32 %v7588, 0.044715
        %v7802 = vmul.f32 %v7590, 0.044715
        %v7803 = vmul.f32 %v7641, 0.044715
        %v7804 = vmul.f32 %v7643, 0.044715
        %v7805 = vmul.f32 %v7694, 0.044715
        %v7806 = vmul.f32 %v7696, 0.044715
        %v7807 = vmul.f32 %v7747, 0.044715
        %v7808 = vmul.f32 %v7749, 0.044715
        %v7809 = vmul.f32 %v7594, 0.044715
        %v7810 = vmul.f32 %v7596, 0.044715
        %v7811 = vmul.f32 %v7647, 0.044715
        %v7812 = vmul.f32 %v7649, 0.044715
        %v7813 = vmul.f32 %v7700, 0.044715
        %v7814 = vmul.f32 %v7702, 0.044715
        %v7815 = vmul.f32 %v7753, 0.044715
        %v7816 = vmul.f32 %v7755, 0.044715
        %v7817 = vmul.f32 %v7598, 0.044715
        %v7818 = vmul.f32 %v7600, 0.044715
        %v7819 = vmul.f32 %v7651, 0.044715
        %v7820 = vmul.f32 %v7653, 0.044715
        %v7821 = vmul.f32 %v7704, 0.044715
        %v7822 = vmul.f32 %v7706, 0.044715
        %v7823 = vmul.f32 %v7757, 0.044715
        %v7824 = vmul.f32 %v7759, 0.044715
        %v7825 = vmul.f32 %v7793, %v7584
        %v7826 = vmul.f32 %v7794, %v7586
        %v7827 = vmul.f32 %v7795, %v7637
        %v7828 = vmul.f32 %v7796, %v7639
        %v7829 = vmul.f32 %v7797, %v7690
        %v7830 = vmul.f32 %v7798, %v7692
        %v7831 = vmul.f32 %v7799, %v7743
        %v7832 = vmul.f32 %v7800, %v7745
        %v7833 = vmul.f32 %v7801, %v7588
        %v7834 = vmul.f32 %v7802, %v7590
        %v7835 = vmul.f32 %v7803, %v7641
        %v7836 = vmul.f32 %v7804, %v7643
        %v7837 = vmul.f32 %v7805, %v7694
        %v7838 = vmul.f32 %v7806, %v7696
        %v7839 = vmul.f32 %v7807, %v7747
        %v7840 = vmul.f32 %v7808, %v7749
        %v7841 = vmul.f32 %v7809, %v7594
        %v7842 = vmul.f32 %v7810, %v7596
        %v7843 = vmul.f32 %v7811, %v7647
        %v7844 = vmul.f32 %v7812, %v7649
        %v7845 = vmul.f32 %v7813, %v7700
        %v7846 = vmul.f32 %v7814, %v7702
        %v7847 = vmul.f32 %v7815, %v7753
        %v7848 = vmul.f32 %v7816, %v7755
        %v7849 = vmul.f32 %v7817, %v7598
        %v7850 = vmul.f32 %v7818, %v7600
        %v7851 = vmul.f32 %v7819, %v7651
        %v7852 = vmul.f32 %v7820, %v7653
        %v7853 = vmul.f32 %v7821, %v7704
        %v7854 = vmul.f32 %v7822, %v7706
        %v7855 = vmul.f32 %v7823, %v7757
        %v7856 = vmul.f32 %v7824, %v7759
        %v7857 = vmul.f32 %v7825, %v7584
        %v7858 = vmul.f32 %v7826, %v7586
        %v7859 = vmul.f32 %v7827, %v7637
        %v7860 = vmul.f32 %v7828, %v7639
        %v7861 = vmul.f32 %v7829, %v7690
        %v7862 = vmul.f32 %v7830, %v7692
        %v7863 = vmul.f32 %v7831, %v7743
        %v7864 = vmul.f32 %v7832, %v7745
        %v7865 = vmul.f32 %v7833, %v7588
        %v7866 = vmul.f32 %v7834, %v7590
        %v7867 = vmul.f32 %v7835, %v7641
        %v7868 = vmul.f32 %v7836, %v7643
        %v7869 = vmul.f32 %v7837, %v7694
        %v7870 = vmul.f32 %v7838, %v7696
        %v7871 = vmul.f32 %v7839, %v7747
        %v7872 = vmul.f32 %v7840, %v7749
        %v7873 = vmul.f32 %v7841, %v7594
        %v7874 = vmul.f32 %v7842, %v7596
        %v7875 = vmul.f32 %v7843, %v7647
        %v7876 = vmul.f32 %v7844, %v7649
        %v7877 = vmul.f32 %v7845, %v7700
        %v7878 = vmul.f32 %v7846, %v7702
        %v7879 = vmul.f32 %v7847, %v7753
        %v7880 = vmul.f32 %v7848, %v7755
        %v7881 = vmul.f32 %v7849, %v7598
        %v7882 = vmul.f32 %v7850, %v7600
        %v7883 = vmul.f32 %v7851, %v7651
        %v7884 = vmul.f32 %v7852, %v7653
        %v7885 = vmul.f32 %v7853, %v7704
        %v7886 = vmul.f32 %v7854, %v7706
        %v7887 = vmul.f32 %v7855, %v7757
        %v7888 = vmul.f32 %v7856, %v7759
        %v7889 = vadd.f32 %v7584, %v7857
        %v7890 = vadd.f32 %v7586, %v7858
        %v7891 = vadd.f32 %v7637, %v7859
        %v7892 = vadd.f32 %v7639, %v7860
        %v7893 = vadd.f32 %v7690, %v7861
        %v7894 = vadd.f32 %v7692, %v7862
        %v7895 = vadd.f32 %v7743, %v7863
        %v7896 = vadd.f32 %v7745, %v7864
        %v7897 = vadd.f32 %v7588, %v7865
        %v7898 = vadd.f32 %v7590, %v7866
        %v7899 = vadd.f32 %v7641, %v7867
        %v7900 = vadd.f32 %v7643, %v7868
        %v7901 = vadd.f32 %v7694, %v7869
        %v7902 = vadd.f32 %v7696, %v7870
        %v7903 = vadd.f32 %v7747, %v7871
        %v7904 = vadd.f32 %v7749, %v7872
        %v7905 = vadd.f32 %v7594, %v7873
        %v7906 = vadd.f32 %v7596, %v7874
        %v7907 = vadd.f32 %v7647, %v7875
        %v7908 = vadd.f32 %v7649, %v7876
        %v7909 = vadd.f32 %v7700, %v7877
        %v7910 = vadd.f32 %v7702, %v7878
        %v7911 = vadd.f32 %v7753, %v7879
        %v7912 = vadd.f32 %v7755, %v7880
        %v7913 = vadd.f32 %v7598, %v7881
        %v7914 = vadd.f32 %v7600, %v7882
        %v7915 = vadd.f32 %v7651, %v7883
        %v7916 = vadd.f32 %v7653, %v7884
        %v7917 = vadd.f32 %v7704, %v7885
        %v7918 = vadd.f32 %v7706, %v7886
        %v7919 = vadd.f32 %v7757, %v7887
        %v7920 = vadd.f32 %v7759, %v7888
        %v7921 = vmul.f32 %v7889, 0.7978846
        %v7922 = vmul.f32 %v7890, 0.7978846
        %v7923 = vmul.f32 %v7891, 0.7978846
        %v7924 = vmul.f32 %v7892, 0.7978846
        %v7925 = vmul.f32 %v7893, 0.7978846
        %v7926 = vmul.f32 %v7894, 0.7978846
        %v7927 = vmul.f32 %v7895, 0.7978846
        %v7928 = vmul.f32 %v7896, 0.7978846
        %v7929 = vmul.f32 %v7897, 0.7978846
        %v7930 = vmul.f32 %v7898, 0.7978846
        %v7931 = vmul.f32 %v7899, 0.7978846
        %v7932 = vmul.f32 %v7900, 0.7978846
        %v7933 = vmul.f32 %v7901, 0.7978846
        %v7934 = vmul.f32 %v7902, 0.7978846
        %v7935 = vmul.f32 %v7903, 0.7978846
        %v7936 = vmul.f32 %v7904, 0.7978846
        %v7937 = vmul.f32 %v7905, 0.7978846
        %v7938 = vmul.f32 %v7906, 0.7978846
        %v7939 = vmul.f32 %v7907, 0.7978846
        %v7940 = vmul.f32 %v7908, 0.7978846
        %v7941 = vmul.f32 %v7909, 0.7978846
        %v7942 = vmul.f32 %v7910, 0.7978846
        %v7943 = vmul.f32 %v7911, 0.7978846
        %v7944 = vmul.f32 %v7912, 0.7978846
        %v7945 = vmul.f32 %v7913, 0.7978846
        %v7946 = vmul.f32 %v7914, 0.7978846
        %v7947 = vmul.f32 %v7915, 0.7978846
        %v7948 = vmul.f32 %v7916, 0.7978846
        %v7949 = vmul.f32 %v7917, 0.7978846
        %v7950 = vmul.f32 %v7918, 0.7978846
        %v7951 = vmul.f32 %v7919, 0.7978846
        %v7952 = vmul.f32 %v7920, 0.7978846
        %v7953 = vtanh.pop %v7921
        %v7954 = vtanh.pop %v7922
        %v7955 = vtanh.pop %v7923
        %v7956 = vtanh.pop %v7924
        %v7957 = vtanh.pop %v7925
        %v7958 = vtanh.pop %v7926
        %v7959 = vtanh.pop %v7927
        %v7960 = vtanh.pop %v7928
        %v7961 = vtanh.pop %v7929
        %v7962 = vtanh.pop %v7930
        %v7963 = vtanh.pop %v7931
        %v7964 = vtanh.pop %v7932
        %v7965 = vtanh.pop %v7933
        %v7966 = vtanh.pop %v7934
        %v7967 = vtanh.pop %v7935
        %v7968 = vtanh.pop %v7936
        %v7969 = vtanh.pop %v7937
        %v7970 = vtanh.pop %v7938
        %v7971 = vtanh.pop %v7939
        %v7972 = vtanh.pop %v7940
        %v7973 = vtanh.pop %v7941
        %v7974 = vtanh.pop %v7942
        %v7975 = vtanh.pop %v7943
        %v7976 = vtanh.pop %v7944
        %v7977 = vtanh.pop %v7945
        %v7978 = vtanh.pop %v7946
        %v7979 = vtanh.pop %v7947
        %v7980 = vtanh.pop %v7948
        %v7981 = vtanh.pop %v7949
        %v7982 = vtanh.pop %v7950
        %v7983 = vtanh.pop %v7951
        %v7984 = vtanh.pop %v7952
        %v7985 = vadd.f32 %v7953, 1.0
        %v7986 = vadd.f32 %v7954, 1.0
        %v7987 = vadd.f32 %v7955, 1.0
        %v7988 = vadd.f32 %v7956, 1.0
        %v7989 = vadd.f32 %v7957, 1.0
        %v7990 = vadd.f32 %v7958, 1.0
        %v7991 = vadd.f32 %v7959, 1.0
        %v7992 = vadd.f32 %v7960, 1.0
        %v7993 = vadd.f32 %v7961, 1.0
        %v7994 = vadd.f32 %v7962, 1.0
        %v7995 = vadd.f32 %v7963, 1.0
        %v7996 = vadd.f32 %v7964, 1.0
        %v7997 = vadd.f32 %v7965, 1.0
        %v7998 = vadd.f32 %v7966, 1.0
        %v7999 = vadd.f32 %v7967, 1.0
        %v8000 = vadd.f32 %v7968, 1.0
        %v8001 = vadd.f32 %v7969, 1.0
        %v8002 = vadd.f32 %v7970, 1.0
        %v8003 = vadd.f32 %v7971, 1.0
        %v8004 = vadd.f32 %v7972, 1.0
        %v8005 = vadd.f32 %v7973, 1.0
        %v8006 = vadd.f32 %v7974, 1.0
        %v8007 = vadd.f32 %v7975, 1.0
        %v8008 = vadd.f32 %v7976, 1.0
        %v8009 = vadd.f32 %v7977, 1.0
        %v8010 = vadd.f32 %v7978, 1.0
        %v8011 = vadd.f32 %v7979, 1.0
        %v8012 = vadd.f32 %v7980, 1.0
        %v8013 = vadd.f32 %v7981, 1.0
        %v8014 = vadd.f32 %v7982, 1.0
        %v8015 = vadd.f32 %v7983, 1.0
        %v8016 = vadd.f32 %v7984, 1.0
        %v8017 = vmul.f32 %v7761, %v7985
        %v8018 = vmul.f32 %v7762, %v7986
        %v8019 = vmul.f32 %v7763, %v7987
        %v8020 = vmul.f32 %v7764, %v7988
        %v8021 = vmul.f32 %v7765, %v7989
        %v8022 = vmul.f32 %v7766, %v7990
        %v8023 = vmul.f32 %v7767, %v7991
        %v8024 = vmul.f32 %v7768, %v7992
        %v8025 = vmul.f32 %v7769, %v7993
        %v8026 = vmul.f32 %v7770, %v7994
        %v8027 = vmul.f32 %v7771, %v7995
        %v8028 = vmul.f32 %v7772, %v7996
        %v8029 = vmul.f32 %v7773, %v7997
        %v8030 = vmul.f32 %v7774, %v7998
        %v8031 = vmul.f32 %v7775, %v7999
        %v8032 = vmul.f32 %v7776, %v8000
        %v8033 = vmul.f32 %v7777, %v8001
        %v8034 = vmul.f32 %v7778, %v8002
        %v8035 = vmul.f32 %v7779, %v8003
        %v8036 = vmul.f32 %v7780, %v8004
        %v8037 = vmul.f32 %v7781, %v8005
        %v8038 = vmul.f32 %v7782, %v8006
        %v8039 = vmul.f32 %v7783, %v8007
        %v8040 = vmul.f32 %v7784, %v8008
        %v8041 = vmul.f32 %v7785, %v8009
        %v8042 = vmul.f32 %v7786, %v8010
        %v8043 = vmul.f32 %v7787, %v8011
        %v8044 = vmul.f32 %v7788, %v8012
        %v8045 = vmul.f32 %v7789, %v8013
        %v8046 = vmul.f32 %v7790, %v8014
        %v8047 = vmul.f32 %v7791, %v8015
        %v8048 = vmul.f32 %v7792, %v8016
        %v8049 = vpack.c.bf16 %v8025, %v8017
        %v8050 = vpack.c.bf16 %v8026, %v8018
        %v8051 = vpack.c.bf16 %v8027, %v8019
        %v8052 = vpack.c.bf16 %v8028, %v8020
        %v8053 = vpack.c.bf16 %v8029, %v8021
        %v8054 = vpack.c.bf16 %v8030, %v8022
        %v8055 = vpack.c.bf16 %v8031, %v8023
        %v8056 = vpack.c.bf16 %v8032, %v8024
        %v8057 = vpack.c.bf16 %v8041, %v8033
        %v8058 = vpack.c.bf16 %v8042, %v8034
        %v8059 = vpack.c.bf16 %v8043, %v8035
        %v8060 = vpack.c.bf16 %v8044, %v8036
        %v8061 = vpack.c.bf16 %v8045, %v8037
        %v8062 = vpack.c.bf16 %v8046, %v8038
        %v8063 = vpack.c.bf16 %v8047, %v8039
        %v8064 = vpack.c.bf16 %v8048, %v8040
        %v8065 = vld [vmem:[#allocation26] sm:$0xff]
        %v8066 = vld [vmem:[#allocation26 + $0x8] sm:$0xff]
        %v8067 = vld [vmem:[#allocation26 + $0x10] sm:$0xff]
        %v8068 = vld [vmem:[#allocation26 + $0x18] sm:$0xff]
        %v8069 = vld [vmem:[#allocation26 + $0x20] sm:$0xff]
        %v8070 = vld [vmem:[#allocation26 + $0x28] sm:$0xff]
        %v8071 = vld [vmem:[#allocation26 + $0x30] sm:$0xff]
        %v8072 = vld [vmem:[#allocation26 + $0x38] sm:$0xff]
        %v8073 = vld [vmem:[#allocation26 + $0x40] sm:$0xff]
        %v8074 = vld [vmem:[#allocation26 + $0x48] sm:$0xff]
        %v8075 = vld [vmem:[#allocation26 + $0x50] sm:$0xff]
        %v8076 = vld [vmem:[#allocation26 + $0x58] sm:$0xff]
        %v8077 = vld [vmem:[#allocation26 + $0x60] sm:$0xff]
        %v8078 = vld [vmem:[#allocation26 + $0x68] sm:$0xff]
        %v8079 = vld [vmem:[#allocation26 + $0x70] sm:$0xff]
        %v8080 = vld [vmem:[#allocation26 + $0x78] sm:$0xff]
        %v8081 = vld [vmem:[#allocation26 + $0x80] sm:$0xff]
        %v8082 = vld [vmem:[#allocation26 + $0x88] sm:$0xff]
        %v8083 = vld [vmem:[#allocation26 + $0x90] sm:$0xff]
        %v8084 = vld [vmem:[#allocation26 + $0x98] sm:$0xff]
        %v8085 = vld [vmem:[#allocation26 + $0xa0] sm:$0xff]
        %v8086 = vld [vmem:[#allocation26 + $0xa8] sm:$0xff]
        %v8087 = vld [vmem:[#allocation26 + $0xb0] sm:$0xff]
        %v8088 = vld [vmem:[#allocation26 + $0xb8] sm:$0xff]
        %v8089 = vld [vmem:[#allocation26 + $0xc0] sm:$0xff]
        %v8090 = vld [vmem:[#allocation26 + $0xc8] sm:$0xff]
        %v8091 = vld [vmem:[#allocation26 + $0xd0] sm:$0xff]
        %v8092 = vld [vmem:[#allocation26 + $0xd8] sm:$0xff]
        %v8093 = vld [vmem:[#allocation26 + $0xe0] sm:$0xff]
        %v8094 = vld [vmem:[#allocation26 + $0xe8] sm:$0xff]
        %v8095 = vld [vmem:[#allocation26 + $0xf0] sm:$0xff]
        %v8096 = vld [vmem:[#allocation26 + $0xf8] sm:$0xff]
        %v8097 = vld [vmem:[#allocation26 + $0x100] sm:$0xff]
        %v8098 = vld [vmem:[#allocation26 + $0x108] sm:$0xff]
        %v8099 = vld [vmem:[#allocation26 + $0x110] sm:$0xff]
        %v8100 = vld [vmem:[#allocation26 + $0x118] sm:$0xff]
        %v8101 = vld [vmem:[#allocation26 + $0x120] sm:$0xff]
        %v8102 = vld [vmem:[#allocation26 + $0x128] sm:$0xff]
        %v8103 = vld [vmem:[#allocation26 + $0x130] sm:$0xff]
        %v8104 = vld [vmem:[#allocation26 + $0x138] sm:$0xff]
        %v8105 = vld [vmem:[#allocation26 + $0x140] sm:$0xff]
        %v8106 = vld [vmem:[#allocation26 + $0x148] sm:$0xff]
        %v8107 = vld [vmem:[#allocation26 + $0x150] sm:$0xff]
        %v8108 = vld [vmem:[#allocation26 + $0x158] sm:$0xff]
        %v8109 = vld [vmem:[#allocation26 + $0x160] sm:$0xff]
        %v8110 = vld [vmem:[#allocation26 + $0x168] sm:$0xff]
        %v8111 = vld [vmem:[#allocation26 + $0x170] sm:$0xff]
        %v8112 = vld [vmem:[#allocation26 + $0x178] sm:$0xff]
        %v8113 = vld [vmem:[#allocation26 + $0x180] sm:$0xff]
        %v8114 = vld [vmem:[#allocation26 + $0x188] sm:$0xff]
        %v8115 = vld [vmem:[#allocation26 + $0x190] sm:$0xff]
        %v8116 = vld [vmem:[#allocation26 + $0x198] sm:$0xff]
        %v8117 = vld [vmem:[#allocation26 + $0x1a0] sm:$0xff]
        %v8118 = vld [vmem:[#allocation26 + $0x1a8] sm:$0xff]
        %v8119 = vld [vmem:[#allocation26 + $0x1b0] sm:$0xff]
        %v8120 = vld [vmem:[#allocation26 + $0x1b8] sm:$0xff]
        %v8121 = vld [vmem:[#allocation26 + $0x1c0] sm:$0xff]
        %v8122 = vld [vmem:[#allocation26 + $0x1c8] sm:$0xff]
        %v8123 = vld [vmem:[#allocation26 + $0x1d0] sm:$0xff]
        %v8124 = vld [vmem:[#allocation26 + $0x1d8] sm:$0xff]
        %v8125 = vld [vmem:[#allocation26 + $0x1e0] sm:$0xff]
        %v8126 = vld [vmem:[#allocation26 + $0x1e8] sm:$0xff]
        %v8127 = vld [vmem:[#allocation26 + $0x1f0] sm:$0xff]
        %v8128 = vld [vmem:[#allocation26 + $0x1f8] sm:$0xff]
        %v8129 = vld [vmem:[#allocation26 + $0x200] sm:$0xff]
        %v8130 = vld [vmem:[#allocation26 + $0x208] sm:$0xff]
        %v8131 = vld [vmem:[#allocation26 + $0x210] sm:$0xff]
        %v8132 = vld [vmem:[#allocation26 + $0x218] sm:$0xff]
        %v8133 = vld [vmem:[#allocation26 + $0x220] sm:$0xff]
        %v8134 = vld [vmem:[#allocation26 + $0x228] sm:$0xff]
        %v8135 = vld [vmem:[#allocation26 + $0x230] sm:$0xff]
        %v8136 = vld [vmem:[#allocation26 + $0x238] sm:$0xff]
        %v8137 = vld [vmem:[#allocation26 + $0x240] sm:$0xff]
        %v8138 = vld [vmem:[#allocation26 + $0x248] sm:$0xff]
        %v8139 = vld [vmem:[#allocation26 + $0x250] sm:$0xff]
        %v8140 = vld [vmem:[#allocation26 + $0x258] sm:$0xff]
        %v8141 = vld [vmem:[#allocation26 + $0x260] sm:$0xff]
        %v8142 = vld [vmem:[#allocation26 + $0x268] sm:$0xff]
        %v8143 = vld [vmem:[#allocation26 + $0x270] sm:$0xff]
        %v8144 = vld [vmem:[#allocation26 + $0x278] sm:$0xff]
        %v8145 = vld [vmem:[#allocation26 + $0x280] sm:$0xff]
        %v8146 = vld [vmem:[#allocation26 + $0x288] sm:$0xff]
        %v8147 = vld [vmem:[#allocation26 + $0x290] sm:$0xff]
        %v8148 = vld [vmem:[#allocation26 + $0x298] sm:$0xff]
        %v8149 = vld [vmem:[#allocation26 + $0x2a0] sm:$0xff]
        %v8150 = vld [vmem:[#allocation26 + $0x2a8] sm:$0xff]
        %v8151 = vld [vmem:[#allocation26 + $0x2b0] sm:$0xff]
        %v8152 = vld [vmem:[#allocation26 + $0x2b8] sm:$0xff]
        %v8153 = vld [vmem:[#allocation26 + $0x2c0] sm:$0xff]
        %v8154 = vld [vmem:[#allocation26 + $0x2c8] sm:$0xff]
        %v8155 = vld [vmem:[#allocation26 + $0x2d0] sm:$0xff]
        %v8156 = vld [vmem:[#allocation26 + $0x2d8] sm:$0xff]
        %v8157 = vld [vmem:[#allocation26 + $0x2e0] sm:$0xff]
        %v8158 = vld [vmem:[#allocation26 + $0x2e8] sm:$0xff]
        %v8159 = vld [vmem:[#allocation26 + $0x2f0] sm:$0xff]
        %v8160 = vld [vmem:[#allocation26 + $0x2f8] sm:$0xff]
        %v8161 = vld [vmem:[#allocation26 + $0x300] sm:$0xff]
        %v8162 = vld [vmem:[#allocation26 + $0x308] sm:$0xff]
        %v8163 = vld [vmem:[#allocation26 + $0x310] sm:$0xff]
        %v8164 = vld [vmem:[#allocation26 + $0x318] sm:$0xff]
        %v8165 = vld [vmem:[#allocation26 + $0x320] sm:$0xff]
        %v8166 = vld [vmem:[#allocation26 + $0x328] sm:$0xff]
        %v8167 = vld [vmem:[#allocation26 + $0x330] sm:$0xff]
        %v8168 = vld [vmem:[#allocation26 + $0x338] sm:$0xff]
        %v8169 = vld [vmem:[#allocation26 + $0x340] sm:$0xff]
        %v8170 = vld [vmem:[#allocation26 + $0x348] sm:$0xff]
        %v8171 = vld [vmem:[#allocation26 + $0x350] sm:$0xff]
        %v8172 = vld [vmem:[#allocation26 + $0x358] sm:$0xff]
        %v8173 = vld [vmem:[#allocation26 + $0x360] sm:$0xff]
        %v8174 = vld [vmem:[#allocation26 + $0x368] sm:$0xff]
        %v8175 = vld [vmem:[#allocation26 + $0x370] sm:$0xff]
        %v8176 = vld [vmem:[#allocation26 + $0x378] sm:$0xff]
        %v8177 = vld [vmem:[#allocation26 + $0x380] sm:$0xff]
        %v8178 = vld [vmem:[#allocation26 + $0x388] sm:$0xff]
        %v8179 = vld [vmem:[#allocation26 + $0x390] sm:$0xff]
        %v8180 = vld [vmem:[#allocation26 + $0x398] sm:$0xff]
        %v8181 = vld [vmem:[#allocation26 + $0x3a0] sm:$0xff]
        %v8182 = vld [vmem:[#allocation26 + $0x3a8] sm:$0xff]
        %v8183 = vld [vmem:[#allocation26 + $0x3b0] sm:$0xff]
        %v8184 = vld [vmem:[#allocation26 + $0x3b8] sm:$0xff]
        %v8185 = vld [vmem:[#allocation26 + $0x3c0] sm:$0xff]
        %v8186 = vld [vmem:[#allocation26 + $0x3c8] sm:$0xff]
        %v8187 = vld [vmem:[#allocation26 + $0x3d0] sm:$0xff]
        %v8188 = vld [vmem:[#allocation26 + $0x3d8] sm:$0xff]
        %v8189 = vld [vmem:[#allocation26 + $0x3e0] sm:$0xff]
        %v8190 = vld [vmem:[#allocation26 + $0x3e8] sm:$0xff]
        %v8191 = vld [vmem:[#allocation26 + $0x3f0] sm:$0xff]
        %v8192 = vld [vmem:[#allocation26 + $0x3f8] sm:$0xff]
        %v8193 = vld [vmem:[#allocation28] sm:$0x3]
        %v8195 = vlaneseq
        %v8196 = vshrl.u32 %v8195, 7
        %v8197 = vsub.s32 0, %v8196
        %v8198 = vrot.slane %v8193, %v8197
        %v8199 = vlaneseq
        %v8200 = vshrl.u32 %v8199, 7
        %v8201 = vsub.s32 1, %v8200
        %v8202 = vrot.slane %v8193, %v8201
        %v8333 = vunpack.c.l.b16 %v8065
        %v8334 = vunpack.c.h.b16 %v8065
        %v8335 = vunpack.c.l.b16 %v8066
        %v8336 = vunpack.c.h.b16 %v8066
        %v8337 = vunpack.c.l.b16 %v8067
        %v8338 = vunpack.c.h.b16 %v8067
        %v8339 = vunpack.c.l.b16 %v8068
        %v8340 = vunpack.c.h.b16 %v8068
        %v8341 = vunpack.c.l.b16 %v8069
        %v8342 = vunpack.c.h.b16 %v8069
        %v8343 = vunpack.c.l.b16 %v8070
        %v8344 = vunpack.c.h.b16 %v8070
        %v8345 = vunpack.c.l.b16 %v8071
        %v8346 = vunpack.c.h.b16 %v8071
        %v8347 = vunpack.c.l.b16 %v8072
        %v8348 = vunpack.c.h.b16 %v8072
        %v8349 = vunpack.c.l.b16 %v8073
        %v8350 = vunpack.c.h.b16 %v8073
        %v8351 = vunpack.c.l.b16 %v8074
        %v8352 = vunpack.c.h.b16 %v8074
        %v8353 = vunpack.c.l.b16 %v8075
        %v8354 = vunpack.c.h.b16 %v8075
        %v8355 = vunpack.c.l.b16 %v8076
        %v8356 = vunpack.c.h.b16 %v8076
        %v8357 = vunpack.c.l.b16 %v8077
        %v8358 = vunpack.c.h.b16 %v8077
        %v8359 = vunpack.c.l.b16 %v8078
        %v8360 = vunpack.c.h.b16 %v8078
        %v8361 = vunpack.c.l.b16 %v8079
        %v8362 = vunpack.c.h.b16 %v8079
        %v8363 = vunpack.c.l.b16 %v8080
        %v8364 = vunpack.c.h.b16 %v8080
        %v8365 = vunpack.c.l.b16 %v8081
        %v8366 = vunpack.c.h.b16 %v8081
        %v8367 = vunpack.c.l.b16 %v8082
        %v8368 = vunpack.c.h.b16 %v8082
        %v8369 = vunpack.c.l.b16 %v8083
        %v8370 = vunpack.c.h.b16 %v8083
        %v8371 = vunpack.c.l.b16 %v8084
        %v8372 = vunpack.c.h.b16 %v8084
        %v8373 = vunpack.c.l.b16 %v8085
        %v8374 = vunpack.c.h.b16 %v8085
        %v8375 = vunpack.c.l.b16 %v8086
        %v8376 = vunpack.c.h.b16 %v8086
        %v8377 = vunpack.c.l.b16 %v8087
        %v8378 = vunpack.c.h.b16 %v8087
        %v8379 = vunpack.c.l.b16 %v8088
        %v8380 = vunpack.c.h.b16 %v8088
        %v8381 = vunpack.c.l.b16 %v8089
        %v8382 = vunpack.c.h.b16 %v8089
        %v8383 = vunpack.c.l.b16 %v8090
        %v8384 = vunpack.c.h.b16 %v8090
        %v8385 = vunpack.c.l.b16 %v8091
        %v8386 = vunpack.c.h.b16 %v8091
        %v8387 = vunpack.c.l.b16 %v8092
        %v8388 = vunpack.c.h.b16 %v8092
        %v8389 = vunpack.c.l.b16 %v8093
        %v8390 = vunpack.c.h.b16 %v8093
        %v8391 = vunpack.c.l.b16 %v8094
        %v8392 = vunpack.c.h.b16 %v8094
        %v8393 = vunpack.c.l.b16 %v8095
        %v8394 = vunpack.c.h.b16 %v8095
        %v8395 = vunpack.c.l.b16 %v8096
        %v8396 = vunpack.c.h.b16 %v8096
        %v8397 = vunpack.c.l.b16 %v8097
        %v8398 = vunpack.c.h.b16 %v8097
        %v8399 = vunpack.c.l.b16 %v8098
        %v8400 = vunpack.c.h.b16 %v8098
        %v8401 = vunpack.c.l.b16 %v8099
        %v8402 = vunpack.c.h.b16 %v8099
        %v8403 = vunpack.c.l.b16 %v8100
        %v8404 = vunpack.c.h.b16 %v8100
        %v8405 = vunpack.c.l.b16 %v8101
        %v8406 = vunpack.c.h.b16 %v8101
        %v8407 = vunpack.c.l.b16 %v8102
        %v8408 = vunpack.c.h.b16 %v8102
        %v8409 = vunpack.c.l.b16 %v8103
        %v8410 = vunpack.c.h.b16 %v8103
        %v8411 = vunpack.c.l.b16 %v8104
        %v8412 = vunpack.c.h.b16 %v8104
        %v8413 = vunpack.c.l.b16 %v8105
        %v8414 = vunpack.c.h.b16 %v8105
        %v8415 = vunpack.c.l.b16 %v8106
        %v8416 = vunpack.c.h.b16 %v8106
        %v8417 = vunpack.c.l.b16 %v8107
        %v8418 = vunpack.c.h.b16 %v8107
        %v8419 = vunpack.c.l.b16 %v8108
        %v8420 = vunpack.c.h.b16 %v8108
        %v8421 = vunpack.c.l.b16 %v8109
        %v8422 = vunpack.c.h.b16 %v8109
        %v8423 = vunpack.c.l.b16 %v8110
        %v8424 = vunpack.c.h.b16 %v8110
        %v8425 = vunpack.c.l.b16 %v8111
        %v8426 = vunpack.c.h.b16 %v8111
        %v8427 = vunpack.c.l.b16 %v8112
        %v8428 = vunpack.c.h.b16 %v8112
        %v8429 = vunpack.c.l.b16 %v8113
        %v8430 = vunpack.c.h.b16 %v8113
        %v8431 = vunpack.c.l.b16 %v8114
        %v8432 = vunpack.c.h.b16 %v8114
        %v8433 = vunpack.c.l.b16 %v8115
        %v8434 = vunpack.c.h.b16 %v8115
        %v8435 = vunpack.c.l.b16 %v8116
        %v8436 = vunpack.c.h.b16 %v8116
        %v8437 = vunpack.c.l.b16 %v8117
        %v8438 = vunpack.c.h.b16 %v8117
        %v8439 = vunpack.c.l.b16 %v8118
        %v8440 = vunpack.c.h.b16 %v8118
        %v8441 = vunpack.c.l.b16 %v8119
        %v8442 = vunpack.c.h.b16 %v8119
        %v8443 = vunpack.c.l.b16 %v8120
        %v8444 = vunpack.c.h.b16 %v8120
        %v8445 = vunpack.c.l.b16 %v8121
        %v8446 = vunpack.c.h.b16 %v8121
        %v8447 = vunpack.c.l.b16 %v8122
        %v8448 = vunpack.c.h.b16 %v8122
        %v8449 = vunpack.c.l.b16 %v8123
        %v8450 = vunpack.c.h.b16 %v8123
        %v8451 = vunpack.c.l.b16 %v8124
        %v8452 = vunpack.c.h.b16 %v8124
        %v8453 = vunpack.c.l.b16 %v8125
        %v8454 = vunpack.c.h.b16 %v8125
        %v8455 = vunpack.c.l.b16 %v8126
        %v8456 = vunpack.c.h.b16 %v8126
        %v8457 = vunpack.c.l.b16 %v8127
        %v8458 = vunpack.c.h.b16 %v8127
        %v8459 = vunpack.c.l.b16 %v8128
        %v8460 = vunpack.c.h.b16 %v8128
        %v8461 = vunpack.c.l.b16 %v8129
        %v8462 = vunpack.c.h.b16 %v8129
        %v8463 = vunpack.c.l.b16 %v8130
        %v8464 = vunpack.c.h.b16 %v8130
        %v8465 = vunpack.c.l.b16 %v8131
        %v8466 = vunpack.c.h.b16 %v8131
        %v8467 = vunpack.c.l.b16 %v8132
        %v8468 = vunpack.c.h.b16 %v8132
        %v8469 = vunpack.c.l.b16 %v8133
        %v8470 = vunpack.c.h.b16 %v8133
        %v8471 = vunpack.c.l.b16 %v8134
        %v8472 = vunpack.c.h.b16 %v8134
        %v8473 = vunpack.c.l.b16 %v8135
        %v8474 = vunpack.c.h.b16 %v8135
        %v8475 = vunpack.c.l.b16 %v8136
        %v8476 = vunpack.c.h.b16 %v8136
        %v8477 = vunpack.c.l.b16 %v8137
        %v8478 = vunpack.c.h.b16 %v8137
        %v8479 = vunpack.c.l.b16 %v8138
        %v8480 = vunpack.c.h.b16 %v8138
        %v8481 = vunpack.c.l.b16 %v8139
        %v8482 = vunpack.c.h.b16 %v8139
        %v8483 = vunpack.c.l.b16 %v8140
        %v8484 = vunpack.c.h.b16 %v8140
        %v8485 = vunpack.c.l.b16 %v8141
        %v8486 = vunpack.c.h.b16 %v8141
        %v8487 = vunpack.c.l.b16 %v8142
        %v8488 = vunpack.c.h.b16 %v8142
        %v8489 = vunpack.c.l.b16 %v8143
        %v8490 = vunpack.c.h.b16 %v8143
        %v8491 = vunpack.c.l.b16 %v8144
        %v8492 = vunpack.c.h.b16 %v8144
        %v8493 = vunpack.c.l.b16 %v8145
        %v8494 = vunpack.c.h.b16 %v8145
        %v8495 = vunpack.c.l.b16 %v8146
        %v8496 = vunpack.c.h.b16 %v8146
        %v8497 = vunpack.c.l.b16 %v8147
        %v8498 = vunpack.c.h.b16 %v8147
        %v8499 = vunpack.c.l.b16 %v8148
        %v8500 = vunpack.c.h.b16 %v8148
        %v8501 = vunpack.c.l.b16 %v8149
        %v8502 = vunpack.c.h.b16 %v8149
        %v8503 = vunpack.c.l.b16 %v8150
        %v8504 = vunpack.c.h.b16 %v8150
        %v8505 = vunpack.c.l.b16 %v8151
        %v8506 = vunpack.c.h.b16 %v8151
        %v8507 = vunpack.c.l.b16 %v8152
        %v8508 = vunpack.c.h.b16 %v8152
        %v8509 = vunpack.c.l.b16 %v8153
        %v8510 = vunpack.c.h.b16 %v8153
        %v8511 = vunpack.c.l.b16 %v8154
        %v8512 = vunpack.c.h.b16 %v8154
        %v8513 = vunpack.c.l.b16 %v8155
        %v8514 = vunpack.c.h.b16 %v8155
        %v8515 = vunpack.c.l.b16 %v8156
        %v8516 = vunpack.c.h.b16 %v8156
        %v8517 = vunpack.c.l.b16 %v8157
        %v8518 = vunpack.c.h.b16 %v8157
        %v8519 = vunpack.c.l.b16 %v8158
        %v8520 = vunpack.c.h.b16 %v8158
        %v8521 = vunpack.c.l.b16 %v8159
        %v8522 = vunpack.c.h.b16 %v8159
        %v8523 = vunpack.c.l.b16 %v8160
        %v8524 = vunpack.c.h.b16 %v8160
        %v8525 = vunpack.c.l.b16 %v8161
        %v8526 = vunpack.c.h.b16 %v8161
        %v8527 = vunpack.c.l.b16 %v8162
        %v8528 = vunpack.c.h.b16 %v8162
        %v8529 = vunpack.c.l.b16 %v8163
        %v8530 = vunpack.c.h.b16 %v8163
        %v8531 = vunpack.c.l.b16 %v8164
        %v8532 = vunpack.c.h.b16 %v8164
        %v8533 = vunpack.c.l.b16 %v8165
        %v8534 = vunpack.c.h.b16 %v8165
        %v8535 = vunpack.c.l.b16 %v8166
        %v8536 = vunpack.c.h.b16 %v8166
        %v8537 = vunpack.c.l.b16 %v8167
        %v8538 = vunpack.c.h.b16 %v8167
        %v8539 = vunpack.c.l.b16 %v8168
        %v8540 = vunpack.c.h.b16 %v8168
        %v8541 = vunpack.c.l.b16 %v8169
        %v8542 = vunpack.c.h.b16 %v8169
        %v8543 = vunpack.c.l.b16 %v8170
        %v8544 = vunpack.c.h.b16 %v8170
        %v8545 = vunpack.c.l.b16 %v8171
        %v8546 = vunpack.c.h.b16 %v8171
        %v8547 = vunpack.c.l.b16 %v8172
        %v8548 = vunpack.c.h.b16 %v8172
        %v8549 = vunpack.c.l.b16 %v8173
        %v8550 = vunpack.c.h.b16 %v8173
        %v8551 = vunpack.c.l.b16 %v8174
        %v8552 = vunpack.c.h.b16 %v8174
        %v8553 = vunpack.c.l.b16 %v8175
        %v8554 = vunpack.c.h.b16 %v8175
        %v8555 = vunpack.c.l.b16 %v8176
        %v8556 = vunpack.c.h.b16 %v8176
        %v8557 = vunpack.c.l.b16 %v8177
        %v8558 = vunpack.c.h.b16 %v8177
        %v8559 = vunpack.c.l.b16 %v8178
        %v8560 = vunpack.c.h.b16 %v8178
        %v8561 = vunpack.c.l.b16 %v8179
        %v8562 = vunpack.c.h.b16 %v8179
        %v8563 = vunpack.c.l.b16 %v8180
        %v8564 = vunpack.c.h.b16 %v8180
        %v8565 = vunpack.c.l.b16 %v8181
        %v8566 = vunpack.c.h.b16 %v8181
        %v8567 = vunpack.c.l.b16 %v8182
        %v8568 = vunpack.c.h.b16 %v8182
        %v8569 = vunpack.c.l.b16 %v8183
        %v8570 = vunpack.c.h.b16 %v8183
        %v8571 = vunpack.c.l.b16 %v8184
        %v8572 = vunpack.c.h.b16 %v8184
        %v8573 = vunpack.c.l.b16 %v8185
        %v8574 = vunpack.c.h.b16 %v8185
        %v8575 = vunpack.c.l.b16 %v8186
        %v8576 = vunpack.c.h.b16 %v8186
        %v8577 = vunpack.c.l.b16 %v8187
        %v8578 = vunpack.c.h.b16 %v8187
        %v8579 = vunpack.c.l.b16 %v8188
        %v8580 = vunpack.c.h.b16 %v8188
        %v8581 = vunpack.c.l.b16 %v8189
        %v8582 = vunpack.c.h.b16 %v8189
        %v8583 = vunpack.c.l.b16 %v8190
        %v8584 = vunpack.c.h.b16 %v8190
        %v8585 = vunpack.c.l.b16 %v8191
        %v8586 = vunpack.c.h.b16 %v8191
        %v8587 = vunpack.c.l.b16 %v8192
        %v8588 = vunpack.c.h.b16 %v8192
        %v8589 = vpack.c.b16 %v8335, %v8333
        %v8590 = vpack.c.b16 %v8336, %v8334
        %v8591 = vpack.c.b16 %v8339, %v8337
        %v8592 = vpack.c.b16 %v8340, %v8338
        %v8593 = vpack.c.b16 %v8343, %v8341
        %v8594 = vpack.c.b16 %v8344, %v8342
        %v8595 = vpack.c.b16 %v8347, %v8345
        %v8596 = vpack.c.b16 %v8348, %v8346
        %v8597 = vpack.c.b16 %v8351, %v8349
        %v8598 = vpack.c.b16 %v8352, %v8350
        %v8599 = vpack.c.b16 %v8355, %v8353
        %v8600 = vpack.c.b16 %v8356, %v8354
        %v8601 = vpack.c.b16 %v8359, %v8357
        %v8602 = vpack.c.b16 %v8360, %v8358
        %v8603 = vpack.c.b16 %v8363, %v8361
        %v8604 = vpack.c.b16 %v8364, %v8362
        %v8605 = vpack.c.b16 %v8367, %v8365
        %v8606 = vpack.c.b16 %v8368, %v8366
        %v8607 = vpack.c.b16 %v8371, %v8369
        %v8608 = vpack.c.b16 %v8372, %v8370
        %v8609 = vpack.c.b16 %v8375, %v8373
        %v8610 = vpack.c.b16 %v8376, %v8374
        %v8611 = vpack.c.b16 %v8379, %v8377
        %v8612 = vpack.c.b16 %v8380, %v8378
        %v8613 = vpack.c.b16 %v8383, %v8381
        %v8614 = vpack.c.b16 %v8384, %v8382
        %v8615 = vpack.c.b16 %v8387, %v8385
        %v8616 = vpack.c.b16 %v8388, %v8386
        %v8617 = vpack.c.b16 %v8391, %v8389
        %v8618 = vpack.c.b16 %v8392, %v8390
        %v8619 = vpack.c.b16 %v8395, %v8393
        %v8620 = vpack.c.b16 %v8396, %v8394
        %v8621 = vpack.c.b16 %v8399, %v8397
        %v8622 = vpack.c.b16 %v8400, %v8398
        %v8623 = vpack.c.b16 %v8403, %v8401
        %v8624 = vpack.c.b16 %v8404, %v8402
        %v8625 = vpack.c.b16 %v8407, %v8405
        %v8626 = vpack.c.b16 %v8408, %v8406
        %v8627 = vpack.c.b16 %v8411, %v8409
        %v8628 = vpack.c.b16 %v8412, %v8410
        %v8629 = vpack.c.b16 %v8415, %v8413
        %v8630 = vpack.c.b16 %v8416, %v8414
        %v8631 = vpack.c.b16 %v8419, %v8417
        %v8632 = vpack.c.b16 %v8420, %v8418
        %v8633 = vpack.c.b16 %v8423, %v8421
        %v8634 = vpack.c.b16 %v8424, %v8422
        %v8635 = vpack.c.b16 %v8427, %v8425
        %v8636 = vpack.c.b16 %v8428, %v8426
        %v8637 = vpack.c.b16 %v8431, %v8429
        %v8638 = vpack.c.b16 %v8432, %v8430
        %v8639 = vpack.c.b16 %v8435, %v8433
        %v8640 = vpack.c.b16 %v8436, %v8434
        %v8641 = vpack.c.b16 %v8439, %v8437
        %v8642 = vpack.c.b16 %v8440, %v8438
        %v8643 = vpack.c.b16 %v8443, %v8441
        %v8644 = vpack.c.b16 %v8444, %v8442
        %v8645 = vpack.c.b16 %v8447, %v8445
        %v8646 = vpack.c.b16 %v8448, %v8446
        %v8647 = vpack.c.b16 %v8451, %v8449
        %v8648 = vpack.c.b16 %v8452, %v8450
        %v8649 = vpack.c.b16 %v8455, %v8453
        %v8650 = vpack.c.b16 %v8456, %v8454
        %v8651 = vpack.c.b16 %v8459, %v8457
        %v8652 = vpack.c.b16 %v8460, %v8458
        %v8653 = vpack.c.b16 %v8463, %v8461
        %v8654 = vpack.c.b16 %v8464, %v8462
        %v8655 = vpack.c.b16 %v8467, %v8465
        %v8656 = vpack.c.b16 %v8468, %v8466
        %v8657 = vpack.c.b16 %v8471, %v8469
        %v8658 = vpack.c.b16 %v8472, %v8470
        %v8659 = vpack.c.b16 %v8475, %v8473
        %v8660 = vpack.c.b16 %v8476, %v8474
        %v8661 = vpack.c.b16 %v8479, %v8477
        %v8662 = vpack.c.b16 %v8480, %v8478
        %v8663 = vpack.c.b16 %v8483, %v8481
        %v8664 = vpack.c.b16 %v8484, %v8482
        %v8665 = vpack.c.b16 %v8487, %v8485
        %v8666 = vpack.c.b16 %v8488, %v8486
        %v8667 = vpack.c.b16 %v8491, %v8489
        %v8668 = vpack.c.b16 %v8492, %v8490
        %v8669 = vpack.c.b16 %v8495, %v8493
        %v8670 = vpack.c.b16 %v8496, %v8494
        %v8671 = vpack.c.b16 %v8499, %v8497
        %v8672 = vpack.c.b16 %v8500, %v8498
        %v8673 = vpack.c.b16 %v8503, %v8501
        %v8674 = vpack.c.b16 %v8504, %v8502
        %v8675 = vpack.c.b16 %v8507, %v8505
        %v8676 = vpack.c.b16 %v8508, %v8506
        %v8677 = vpack.c.b16 %v8511, %v8509
        %v8678 = vpack.c.b16 %v8512, %v8510
        %v8679 = vpack.c.b16 %v8515, %v8513
        %v8680 = vpack.c.b16 %v8516, %v8514
        %v8681 = vpack.c.b16 %v8519, %v8517
        %v8682 = vpack.c.b16 %v8520, %v8518
        %v8683 = vpack.c.b16 %v8523, %v8521
        %v8684 = vpack.c.b16 %v8524, %v8522
        %v8685 = vpack.c.b16 %v8527, %v8525
        %v8686 = vpack.c.b16 %v8528, %v8526
        %v8687 = vpack.c.b16 %v8531, %v8529
        %v8688 = vpack.c.b16 %v8532, %v8530
        %v8689 = vpack.c.b16 %v8535, %v8533
        %v8690 = vpack.c.b16 %v8536, %v8534
        %v8691 = vpack.c.b16 %v8539, %v8537
        %v8692 = vpack.c.b16 %v8540, %v8538
        %v8693 = vpack.c.b16 %v8543, %v8541
        %v8694 = vpack.c.b16 %v8544, %v8542
        %v8695 = vpack.c.b16 %v8547, %v8545
        %v8696 = vpack.c.b16 %v8548, %v8546
        %v8697 = vpack.c.b16 %v8551, %v8549
        %v8698 = vpack.c.b16 %v8552, %v8550
        %v8699 = vpack.c.b16 %v8555, %v8553
        %v8700 = vpack.c.b16 %v8556, %v8554
        %v8701 = vpack.c.b16 %v8559, %v8557
        %v8702 = vpack.c.b16 %v8560, %v8558
        %v8703 = vpack.c.b16 %v8563, %v8561
        %v8704 = vpack.c.b16 %v8564, %v8562
        %v8705 = vpack.c.b16 %v8567, %v8565
        %v8706 = vpack.c.b16 %v8568, %v8566
        %v8707 = vpack.c.b16 %v8571, %v8569
        %v8708 = vpack.c.b16 %v8572, %v8570
        %v8709 = vpack.c.b16 %v8575, %v8573
        %v8710 = vpack.c.b16 %v8576, %v8574
        %v8711 = vpack.c.b16 %v8579, %v8577
        %v8712 = vpack.c.b16 %v8580, %v8578
        %v8713 = vpack.c.b16 %v8583, %v8581
        %v8714 = vpack.c.b16 %v8584, %v8582
        %v8715 = vpack.c.b16 %v8587, %v8585
        %v8716 = vpack.c.b16 %v8588, %v8586
        %8845 = vmatprep.subr.bf16.mxu0 %v8590
        %8846 = vmatpush1.bf16.msra.mxu0 %v8589
        %8847 = vmatprep.subr.bf16.mxu0 %v8592
        %8848 = vmatpush1.bf16.msra.mxu0 %v8591
        %8849 = vmatprep.subr.bf16.mxu0 %v8594
        %8850 = vmatpush1.bf16.msra.mxu0 %v8593
        %8851 = vmatprep.subr.bf16.mxu0 %v8596
        %8852 = vmatpush1.bf16.msra.mxu0 %v8595
        %8853 = vmatprep.subr.bf16.mxu0 %v8598
        %8854 = vmatpush1.bf16.msra.mxu0 %v8597
        %8855 = vmatprep.subr.bf16.mxu0 %v8600
        %8856 = vmatpush1.bf16.msra.mxu0 %v8599
        %8857 = vmatprep.subr.bf16.mxu0 %v8602
        %8858 = vmatpush1.bf16.msra.mxu0 %v8601
        %8859 = vmatprep.subr.bf16.mxu0 %v8604
        %8860 = vmatpush1.bf16.msra.mxu0 %v8603
        %8861 = vmatprep.subr.bf16.mxu0 %v8606
        %8862 = vmatpush1.bf16.msra.mxu0 %v8605
        %8863 = vmatprep.subr.bf16.mxu0 %v8608
        %8864 = vmatpush1.bf16.msra.mxu0 %v8607
        %8865 = vmatprep.subr.bf16.mxu0 %v8610
        %8866 = vmatpush1.bf16.msra.mxu0 %v8609
        %8867 = vmatprep.subr.bf16.mxu0 %v8612
        %8868 = vmatpush1.bf16.msra.mxu0 %v8611
        %8869 = vmatprep.subr.bf16.mxu0 %v8614
        %8870 = vmatpush1.bf16.msra.mxu0 %v8613
        %8871 = vmatprep.subr.bf16.mxu0 %v8616
        %8872 = vmatpush1.bf16.msra.mxu0 %v8615
        %8873 = vmatprep.subr.bf16.mxu0 %v8618
        %8874 = vmatpush1.bf16.msra.mxu0 %v8617
        %8875 = vmatprep.subr.bf16.mxu0 %v8620
        %8876 = vmatpush1.bf16.msra.mxu0 %v8619
        %8877 = vmatprep.mubr.bf16.mxu0 %v8050
        %8878 = vmatmul.mubr.bf16.gmra.mrb[0].mxu0 %v8049
        %v8879 = vpop.f32.mrb[0].mxu0
        %v8880 = vadd.f32 %v8198, %v8879
        %v8881 = vpop.f32.mrb[0].mxu0
        %v8882 = vadd.f32 %v8202, %v8881
        %v8883 = vpop.f32.mrb[0].mxu0
        %v8884 = vadd.f32 %v8198, %v8883
        %v8885 = vpop.f32.mrb[0].mxu0
        %v8886 = vadd.f32 %v8202, %v8885
        %8887 = vmatprep.mubr.bf16.mxu0 %v8058
        %8888 = vmatmul.mubr.bf16.gmra.mrb[0].mxu0 %v8057
        %v8889 = vpop.f32.mrb[0].mxu0
        %v8890 = vadd.f32 %v8198, %v8889
        %v8891 = vpop.f32.mrb[0].mxu0
        %v8892 = vadd.f32 %v8202, %v8891
        %v8893 = vpop.f32.mrb[0].mxu0
        %v8894 = vadd.f32 %v8198, %v8893
        %v8895 = vpop.f32.mrb[0].mxu0
        %v8896 = vadd.f32 %v8202, %v8895
        %8897 = vdwg.mxu0
        %8898 = vmatprep.subr.bf16.mxu0 %v8622
        %8899 = vmatpush1.bf16.msra.mxu0 %v8621
        %8900 = vmatprep.subr.bf16.mxu0 %v8624
        %8901 = vmatpush1.bf16.msra.mxu0 %v8623
        %8902 = vmatprep.subr.bf16.mxu0 %v8626
        %8903 = vmatpush1.bf16.msra.mxu0 %v8625
        %8904 = vmatprep.subr.bf16.mxu0 %v8628
        %8905 = vmatpush1.bf16.msra.mxu0 %v8627
        %8906 = vmatprep.subr.bf16.mxu0 %v8630
        %8907 = vmatpush1.bf16.msra.mxu0 %v8629
        %8908 = vmatprep.subr.bf16.mxu0 %v8632
        %8909 = vmatpush1.bf16.msra.mxu0 %v8631
        %8910 = vmatprep.subr.bf16.mxu0 %v8634
        %8911 = vmatpush1.bf16.msra.mxu0 %v8633
        %8912 = vmatprep.subr.bf16.mxu0 %v8636
        %8913 = vmatpush1.bf16.msra.mxu0 %v8635
        %8914 = vmatprep.subr.bf16.mxu0 %v8638
        %8915 = vmatpush1.bf16.msra.mxu0 %v8637
        %8916 = vmatprep.subr.bf16.mxu0 %v8640
        %8917 = vmatpush1.bf16.msra.mxu0 %v8639
        %8918 = vmatprep.subr.bf16.mxu0 %v8642
        %8919 = vmatpush1.bf16.msra.mxu0 %v8641
        %8920 = vmatprep.subr.bf16.mxu0 %v8644
        %8921 = vmatpush1.bf16.msra.mxu0 %v8643
        %8922 = vmatprep.subr.bf16.mxu0 %v8646
        %8923 = vmatpush1.bf16.msra.mxu0 %v8645
        %8924 = vmatprep.subr.bf16.mxu0 %v8648
        %8925 = vmatpush1.bf16.msra.mxu0 %v8647
        %8926 = vmatprep.subr.bf16.mxu0 %v8650
        %8927 = vmatpush1.bf16.msra.mxu0 %v8649
        %8928 = vmatprep.subr.bf16.mxu0 %v8652
        %8929 = vmatpush1.bf16.msra.mxu0 %v8651
        %8930 = vmatprep.mubr.bf16.mxu0 %v8052
        %8931 = vmatmul.mubr.bf16.gmra.mrb[0].mxu0 %v8051
        %v8932 = vpop.f32.mrb[0].mxu0
        %v8933 = vadd.f32 %v8880, %v8932
        %v8934 = vpop.f32.mrb[0].mxu0
        %v8935 = vadd.f32 %v8882, %v8934
        %v8936 = vpop.f32.mrb[0].mxu0
        %v8937 = vadd.f32 %v8884, %v8936
        %v8938 = vpop.f32.mrb[0].mxu0
        %v8939 = vadd.f32 %v8886, %v8938
        %8940 = vmatprep.mubr.bf16.mxu0 %v8060
        %8941 = vmatmul.mubr.bf16.gmra.mrb[0].mxu0 %v8059
        %v8942 = vpop.f32.mrb[0].mxu0
        %v8943 = vadd.f32 %v8890, %v8942
        %v8944 = vpop.f32.mrb[0].mxu0
        %v8945 = vadd.f32 %v8892, %v8944
        %v8946 = vpop.f32.mrb[0].mxu0
        %v8947 = vadd.f32 %v8894, %v8946
        %v8948 = vpop.f32.mrb[0].mxu0
        %v8949 = vadd.f32 %v8896, %v8948
        %8950 = vdwg.mxu0
        %8951 = vmatprep.subr.bf16.mxu0 %v8654
        %8952 = vmatpush1.bf16.msra.mxu0 %v8653
        %8953 = vmatprep.subr.bf16.mxu0 %v8656
        %8954 = vmatpush1.bf16.msra.mxu0 %v8655
        %8955 = vmatprep.subr.bf16.mxu0 %v8658
        %8956 = vmatpush1.bf16.msra.mxu0 %v8657
        %8957 = vmatprep.subr.bf16.mxu0 %v8660
        %8958 = vmatpush1.bf16.msra.mxu0 %v8659
        %8959 = vmatprep.subr.bf16.mxu0 %v8662
        %8960 = vmatpush1.bf16.msra.mxu0 %v8661
        %8961 = vmatprep.subr.bf16.mxu0 %v8664
        %8962 = vmatpush1.bf16.msra.mxu0 %v8663
        %8963 = vmatprep.subr.bf16.mxu0 %v8666
        %8964 = vmatpush1.bf16.msra.mxu0 %v8665
        %8965 = vmatprep.subr.bf16.mxu0 %v8668
        %8966 = vmatpush1.bf16.msra.mxu0 %v8667
        %8967 = vmatprep.subr.bf16.mxu0 %v8670
        %8968 = vmatpush1.bf16.msra.mxu0 %v8669
        %8969 = vmatprep.subr.bf16.mxu0 %v8672
        %8970 = vmatpush1.bf16.msra.mxu0 %v8671
        %8971 = vmatprep.subr.bf16.mxu0 %v8674
        %8972 = vmatpush1.bf16.msra.mxu0 %v8673
        %8973 = vmatprep.subr.bf16.mxu0 %v8676
        %8974 = vmatpush1.bf16.msra.mxu0 %v8675
        %8975 = vmatprep.subr.bf16.mxu0 %v8678
        %8976 = vmatpush1.bf16.msra.mxu0 %v8677
        %8977 = vmatprep.subr.bf16.mxu0 %v8680
        %8978 = vmatpush1.bf16.msra.mxu0 %v8679
        %8979 = vmatprep.subr.bf16.mxu0 %v8682
        %8980 = vmatpush1.bf16.msra.mxu0 %v8681
        %8981 = vmatprep.subr.bf16.mxu0 %v8684
        %8982 = vmatpush1.bf16.msra.mxu0 %v8683
        %8983 = vmatprep.mubr.bf16.mxu0 %v8054
        %8984 = vmatmul.mubr.bf16.gmra.mrb[0].mxu0 %v8053
        %v8985 = vpop.f32.mrb[0].mxu0
        %v8986 = vadd.f32 %v8933, %v8985
        %v8987 = vpop.f32.mrb[0].mxu0
        %v8988 = vadd.f32 %v8935, %v8987
        %v8989 = vpop.f32.mrb[0].mxu0
        %v8990 = vadd.f32 %v8937, %v8989
        %v8991 = vpop.f32.mrb[0].mxu0
        %v8992 = vadd.f32 %v8939, %v8991
        %8993 = vmatprep.mubr.bf16.mxu0 %v8062
        %8994 = vmatmul.mubr.bf16.gmra.mrb[0].mxu0 %v8061
        %v8995 = vpop.f32.mrb[0].mxu0
        %v8996 = vadd.f32 %v8943, %v8995
        %v8997 = vpop.f32.mrb[0].mxu0
        %v8998 = vadd.f32 %v8945, %v8997
        %v8999 = vpop.f32.mrb[0].mxu0
        %v9000 = vadd.f32 %v8947, %v8999
        %v9001 = vpop.f32.mrb[0].mxu0
        %v9002 = vadd.f32 %v8949, %v9001
        %9003 = vdwg.mxu0
        %9004 = vmatprep.subr.bf16.mxu0 %v8686
        %9005 = vmatpush1.bf16.msra.mxu0 %v8685
        %9006 = vmatprep.subr.bf16.mxu0 %v8688
        %9007 = vmatpush1.bf16.msra.mxu0 %v8687
        %9008 = vmatprep.subr.bf16.mxu0 %v8690
        %9009 = vmatpush1.bf16.msra.mxu0 %v8689
        %9010 = vmatprep.subr.bf16.mxu0 %v8692
        %9011 = vmatpush1.bf16.msra.mxu0 %v8691
        %9012 = vmatprep.subr.bf16.mxu0 %v8694
        %9013 = vmatpush1.bf16.msra.mxu0 %v8693
        %9014 = vmatprep.subr.bf16.mxu0 %v8696
        %9015 = vmatpush1.bf16.msra.mxu0 %v8695
        %9016 = vmatprep.subr.bf16.mxu0 %v8698
        %9017 = vmatpush1.bf16.msra.mxu0 %v8697
        %9018 = vmatprep.subr.bf16.mxu0 %v8700
        %9019 = vmatpush1.bf16.msra.mxu0 %v8699
        %9020 = vmatprep.subr.bf16.mxu0 %v8702
        %9021 = vmatpush1.bf16.msra.mxu0 %v8701
        %9022 = vmatprep.subr.bf16.mxu0 %v8704
        %9023 = vmatpush1.bf16.msra.mxu0 %v8703
        %9024 = vmatprep.subr.bf16.mxu0 %v8706
        %9025 = vmatpush1.bf16.msra.mxu0 %v8705
        %9026 = vmatprep.subr.bf16.mxu0 %v8708
        %9027 = vmatpush1.bf16.msra.mxu0 %v8707
        %9028 = vmatprep.subr.bf16.mxu0 %v8710
        %9029 = vmatpush1.bf16.msra.mxu0 %v8709
        %9030 = vmatprep.subr.bf16.mxu0 %v8712
        %9031 = vmatpush1.bf16.msra.mxu0 %v8711
        %9032 = vmatprep.subr.bf16.mxu0 %v8714
        %9033 = vmatpush1.bf16.msra.mxu0 %v8713
        %9034 = vmatprep.subr.bf16.mxu0 %v8716
        %9035 = vmatpush1.bf16.msra.mxu0 %v8715
        %9036 = vmatprep.mubr.bf16.mxu0 %v8056
        %9037 = vmatmul.mubr.bf16.gmra.mrb[0].mxu0 %v8055
        %v9038 = vpop.f32.mrb[0].mxu0
        %v9039 = vadd.f32 %v8986, %v9038
        %v9040 = vpop.f32.mrb[0].mxu0
        %v9041 = vadd.f32 %v8988, %v9040
        %v9042 = vpop.f32.mrb[0].mxu0
        %v9043 = vadd.f32 %v8990, %v9042
        %v9044 = vpop.f32.mrb[0].mxu0
        %v9045 = vadd.f32 %v8992, %v9044
        %9046 = vmatprep.mubr.bf16.mxu0 %v8064
        %9047 = vmatmul.mubr.bf16.gmra.mrb[0].mxu0 %v8063
        %v9048 = vpop.f32.mrb[0].mxu0
        %v9049 = vadd.f32 %v8996, %v9048
        %v9050 = vpop.f32.mrb[0].mxu0
        %v9051 = vadd.f32 %v8998, %v9050
        %v9052 = vpop.f32.mrb[0].mxu0
        %v9053 = vadd.f32 %v9000, %v9052
        %v9054 = vpop.f32.mrb[0].mxu0
        %v9055 = vadd.f32 %v9002, %v9054
        %9056 = vdwg.mxu0
        %v9057 = vlaneseq
        %v9058 = vshrl.u32 %v9057, 7
        %v9059 = vsub.s32 0, %v9058
        %v9060 = vrot.slane %v2353, %v9059
        %v9061 = vlaneseq
        %v9062 = vshrl.u32 %v9061, 7
        %v9063 = vsub.s32 0, %v9062
        %v9064 = vrot.slane %v2355, %v9063
        %v9065 = vmul.f32 %v9060, %v9039
        %v9066 = vmul.f32 %v9064, %v9041
        %v9067 = vmul.f32 %v9060, %v9043
        %v9068 = vmul.f32 %v9064, %v9045
        %v9069 = vmul.f32 %v9060, %v9049
        %v9070 = vmul.f32 %v9064, %v9051
        %v9071 = vmul.f32 %v9060, %v9053
        %v9072 = vmul.f32 %v9064, %v9055
        %v9073 = vadd.f32 %v6623, %v9065
        %v9074 = vadd.f32 %v6624, %v9066
        %v9075 = vadd.f32 %v6625, %v9067
        %v9076 = vadd.f32 %v6626, %v9068
        %v9077 = vadd.f32 %v6627, %v9069
        %v9078 = vadd.f32 %v6628, %v9070
        %v9079 = vadd.f32 %v6629, %v9071
        %v9080 = vadd.f32 %v6630, %v9072
        %9081 = vst [vmem:[%s849] sm:$0xff] %v9073
        %9082 = vst [vmem:[%s849 + $0x8] sm:$0xff] %v9074
        %9083 = vst [vmem:[%s849 + $0x10] sm:$0xff] %v9075
        %9084 = vst [vmem:[%s849 + $0x18] sm:$0xff] %v9076
        %9085 = vst [vmem:[%s849 + $0x20] sm:$0xff] %v9077
        %9086 = vst [vmem:[%s849 + $0x28] sm:$0xff] %v9078
        %9087 = vst [vmem:[%s849 + $0x30] sm:$0xff] %v9079
        %9088 = vst [vmem:[%s849 + $0x38] sm:$0xff] %v9080
        %s9089 = sand.u32 %s440, 1
        %s9090 = scalar_lea.sflag [#allocation4], %s9089
        %s9091 = sand.u32 %s440, 1
        %s9092 = smul.addr %s9091, 64
        %s9093 = scalar_lea.vmem [#allocation29], %s9092
        // Predicated region
        $region157: #{tpu_custom_call.1} parent=87 // pred_check
          %p9094 = pneg %p450
        $region158: #{tpu_custom_call.1} parent=87 // pred_check_branch
          %9096 = sbr.rel (%p9094) target = $region160
        $region159: #{tpu_custom_call.1} parent=87 // pred_region
          %s9097 = smul.u32 4, %s49
          %s9099 = ssub.s32 1024, 1024
          %9100 = vsyncadd %s9090, %s9099
          %s9101 = smul.addr %s9097, 2
          %s9102 = smul.addr %s48, 16
          %s9103 = sadd.s32 %s9101, %s9102
          %s9104 = smul.addr %s9103, 128
          %s9105 = scalar_lea.hbm %s17, %s9104
          %s9106 = sshll.u32 %s9093, 4
          %s9107 = int_to_ptr.vmem [resolvable:$true] %s9106
          %9112 = dma.vmem_to_hbm [thread:$0]  %s9107, 1024, %s9105, %s9090, 256, 256, 16
        $region160: #{tpu_custom_call.1} parent=87 // pred_fallthru
          _
      $region88: #{tpu_custom_call.1} parent=5 // pred_fallthru
        _
      %p9113 = scmp.le.s32.totalorder 2, %s39
      // Predicated region
      $region161: #{tpu_custom_call.1} parent=5 // pred_check
        %p9114 = pneg %p9113
      $region162: #{tpu_custom_call.1} parent=5 // pred_check_branch
        %9116 = sbr.rel (%p9114) target = $region164
      $region163: #{tpu_custom_call.1} parent=5 // pred_region
        %s9117 = ssub.s32 %s39, 2
        // Predicated region
        $region165: #{tpu_custom_call.1} parent=163 // pred_check
          %p9118 = pneg %p456
        $region166: #{tpu_custom_call.1} parent=163 // pred_check_branch
          %9120 = sbr.rel (%p9118) target = $region168
        $region167: #{tpu_custom_call.1} parent=163 // pred_region
          %s9121 = sand.u32 %s441, 1
          %s9122 = scalar_lea.sflag [#allocation4], %s9121
          %s9123 = sand.u32 %s441, 1
          %s9124 = smul.addr %s9123, 64
          %s9125 = scalar_lea.vmem [#allocation29], %s9124
          %9126 = dma.done %s9122, 1024
        $region168: #{tpu_custom_call.1} parent=163 // pred_fallthru
          _
      $region164: #{tpu_custom_call.1} parent=5 // pred_fallthru
        _
    $region6: #{tpu_custom_call.1} parent=1 // loop_footer
      %s43 = sadd.s32 1, %s39
    $region7: #{tpu_custom_call.1} parent=1 // loop_footer_branch
      %38 = sbr.rel target = $region3
    $region8: #{tpu_custom_call.1} parent=1 // loop_exit
      _
    %9127 = vsyncpa [#allocation3], 1
    %s9128 = scalar_lea.sflag [#allocation3], 1
    %9129 = vsyncpa %s9128, 1
    %9130 = vsyncpa [#allocation6], 1
    %s9131 = scalar_lea.sflag [#allocation6], 1
    %9132 = vsyncpa %s9131, 1
    %9133 = vsyncpa [#allocation9], 1
    %9134 = vsyncpa [#allocation12], 1
    %9135 = vsyncpa [#allocation15], 1
    %9136 = vsyncpa [#allocation18], 1
    %9137 = vsyncpa [#allocation21], 1
    %9138 = vsyncpa [#allocation24], 1
    %9139 = vsyncpa [#allocation27], 1
    %9140 = vsyncpa [#allocation4], 1
    %s9141 = scalar_lea.sflag [#allocation4], 1
    %9142 = vsyncpa %s9141, 1

</llo_original>
